<compile_context>
chip_gen: v5e
topology: v5e:2x2
jax: 0.10.0
libtpu: 0.0.40
codegen_flags: <defaults>
</compile_context>

<pallas_src>
import jax
import jax.numpy as jnp
import numpy as np
from jax import lax
from jax.experimental import pallas as pl
from jax.experimental.pallas import tpu as pltpu


def make_se_block_kernel(gb, H, W):
    """Kernel for one grid step = `gb` images of H x W pixels, 2 pixels packed per row."""
    Wp = W // 2              # packed columns (adjacent pixel pairs along W)
    HWp = H * Wp
    Mp = gb * HWp            # packed rows handled per step

    def kernel(x_ref, w1_ref, b1_ref, w2_ref, b2_ref, w3_ref, b3_ref,
               wse1_ref, wse2_ref, out_ref):
        C1p = w1_ref.shape[1]            # 2 * plane       (paired conv1 outputs, 32)
        C3p = w3_ref.shape[1]            # 2 * plane * 4   (paired conv3 outputs, 128)

        # ---- conv1 (1x1) + folded bn1 + relu : (Mp,128) @ (128,32), lane-dense input ----
        h1 = jnp.dot(x_ref[...].astype(jnp.bfloat16), w1_ref[...],
                     preferred_element_type=jnp.float32) + b1_ref[...]
        h1 = jnp.maximum(h1, 0.0).astype(jnp.bfloat16)               # (Mp, 32)

        # ---- conv2 (3x3, stride=1, SAME) + folded bn2 + relu -----------------------------
        # Nine accumulated (Mp,32)@(32,32) dots; no lane-axis concat.  Taps are built with
        # row/sublane concats only, the W-neighbour mixing lives in the packed weights.
        a = h1.reshape(gb, H, Wp, C1p)
        zrow = jnp.zeros((gb, 1, Wp, C1p), jnp.bfloat16)
        zcol = jnp.zeros((gb, H, 1, C1p), jnp.bfloat16)

        def shift_h(t, kh):              # t'[:, h] = t[:, h + kh - 1]  (zero borders)
            if kh == 0:
                return jnp.concatenate([zrow, t[:, :H - 1]], axis=1)
            if kh == 2:
                return jnp.concatenate([t[:, 1:], zrow], axis=1)
            return t

        def shift_wp(t, pos):            # pos 0: packed col wp-1, 1: wp, 2: wp+1 (zero borders)
            if pos == 0:
                return jnp.concatenate([zcol, t[:, :, :Wp - 1]], axis=2)
            if pos == 2:
                return jnp.concatenate([t[:, :, 1:], zcol], axis=2)
            return t

        h2 = b2_ref[...]                                              # (1, 32) f32, broadcasts
        for kh in range(3):
            th = shift_h(a, kh)
            for pos in range(3):
                t = shift_wp(th, pos).reshape(Mp, C1p)
                h2 = h2 + jnp.dot(t, w2_ref[kh, pos],
                                  preferred_element_type=jnp.float32)
        h2 = jnp.maximum(h2, 0.0).astype(jnp.bfloat16)                # (Mp, 32)

        # ---- conv3 (1x1) + folded bn3 : (Mp,32) @ (32,128) -> lane-dense ----
        h3 = jnp.dot(h2, w3_ref[...],
                     preferred_element_type=jnp.float32) + b3_ref[...]  # (Mp, 128) f32

        # ---- SE layer: per-image avg pool -> fc -> relu -> fc -> sigmoid -> scale ----
        h3g = h3.reshape(gb, HWp, C3p)
        pooled = jnp.mean(h3g, axis=1)                                # (gb,128) [even|odd] halves
        s = jnp.dot(pooled.astype(jnp.bfloat16), wse1_ref[...],
                    preferred_element_type=jnp.float32)               # wse1p folds halves (x0.5)
        s = jnp.maximum(s, 0.0)
        s = jax.nn.sigmoid(jnp.dot(s.astype(jnp.bfloat16), wse2_ref[...],
                                   preferred_element_type=jnp.float32))  # (gb,128), halves duplicated
        y = (h3g * s[:, None, :]).reshape(Mp, C3p)

        # ---- residual (identity) + relu; re-read x_ref here (keeps live ranges short) ----
        out_ref[...] = jnp.maximum(y + x_ref[...], 0.0).astype(out_ref.dtype)

    return kernel


def se_block_forward(x_nhwc, w1p, b1p, w2p, b2p, w3p, b3p, wse1p, wse2p, *, target_rows=512):
    """x_nhwc: (B,H,W,Cin) f32.  Packed bf16 weights, packed f32 biases (1, 2C)."""
    B, H, W, Cin = x_nhwc.shape
    C3 = w3p.shape[1] // 2
    HW = H * W
    assert W % 2 == 0, "pixel-pair packing needs even W"              # TODO(synk): odd W fallback
    assert Cin == C3 and 2 * C3 == 128, "packing assumes 64 channels in/out"

    # Images per grid step: aim for >= target_rows pixel rows per step, keep >= 2 grid
    # steps whenever B >= 2 (v7x megacore), keep packed blocks 8-sublane aligned.
    gb = min(max(1, pl.cdiv(target_rows, HW)), B)
    if B >= 2:
        gb = min(gb, max(1, B // 2))
    while (gb * HW) % 16 != 0:
        gb += 1

    Bp = pl.cdiv(B, gb) * gb
    if Bp != B:   # ragged batch: pad whole images; their SE scale is per-image, so harmless
        x_nhwc = jnp.concatenate(
            [x_nhwc, jnp.zeros((Bp - B, H, W, Cin), x_nhwc.dtype)], axis=0)
    steps = Bp // gb
    mp = gb * HW // 2                     # packed rows per block (2 pixels / 128 lanes per row)

    x_packed = x_nhwc.reshape(Bp * HW // 2, 2 * Cin)

    kernel = make_se_block_kernel(gb, H, W)
    out_packed = pl.pallas_call(
        kernel,
        out_shape=jax.ShapeDtypeStruct((Bp * HW // 2, 2 * C3), x_nhwc.dtype),
        grid=(steps,),
        in_specs=[
            pl.BlockSpec((mp, 2 * Cin), lambda g: (g, 0)),            # x, lane-dense pixel pairs
            pl.BlockSpec(w1p.shape, lambda g: (0, 0)),                # conv1 (block-diag pair)
            pl.BlockSpec(b1p.shape, lambda g: (0, 0)),
            pl.BlockSpec(w2p.shape, lambda g: (0, 0, 0, 0)),          # conv2 packed taps (3,3,32,32)
            pl.BlockSpec(b2p.shape, lambda g: (0, 0)),
            pl.BlockSpec(w3p.shape, lambda g: (0, 0)),                # conv3 (block-diag pair)
            pl.BlockSpec(b3p.shape, lambda g: (0, 0)),
            pl.BlockSpec(wse1p.shape, lambda g: (0, 0)),              # SE fc1 (halves folded, x0.5)
            pl.BlockSpec(wse2p.shape, lambda g: (0, 0)),              # SE fc2 (halves duplicated)
        ],
        out_specs=pl.BlockSpec((mp, 2 * C3), lambda g: (g, 0)),
        compiler_params=pltpu.CompilerParams(
            dimension_semantics=("parallel",)),                       # independent image groups
    )(x_packed, w1p, b1p, w2p, b2p, w3p, b3p, wse1p, wse2p)

    return out_packed.reshape(Bp, H, W, C3)[:B]


# ----------------------- wrapper-side weight preparation (plain JAX) -----------------------

def fold_bn(w, conv_b, gamma, beta, mean, var, eps=1e-5):
    # inference-mode BatchNorm folded into the preceding conv (w is ..., Cout)
    scale = gamma / jnp.sqrt(var + eps)
    return w * scale, (conv_b - mean) * scale + beta


def block_diag_pair(w):
    """(Ci,Co) -> (2Ci,2Co) block-diag: applies w independently to each pixel of a packed pair."""
    z = jnp.zeros_like(w)
    return jnp.concatenate([jnp.concatenate([w, z], axis=1),
                            jnp.concatenate([z, w], axis=1)], axis=0)


def pack_conv2_pair_weights(w2_hwio):
    """3x3 HWIO conv weights -> (3,3,2C,2C) packed pixel-pair tap matrices.

    Index [kh, pos], pos 0/1/2 = previous / same / next packed W column.
    Packed row layout is [even-pixel channels | odd-pixel channels]."""
    C = w2_hwio.shape[-1]
    z = jnp.zeros((C, C), w2_hwio.dtype)

    def quad(ee, eo, oe, oo):    # rows: input even|odd half;  cols: output even|odd half
        return jnp.concatenate([jnp.concatenate([ee, eo], axis=1),
                                jnp.concatenate([oe, oo], axis=1)], axis=0)

    taps = []
    for kh in range(3):
        wl, wc, wr = w2_hwio[kh, 0], w2_hwio[kh, 1], w2_hwio[kh, 2]
        prev = quad(z, z, wl, z)        # odd pixel of previous pair -> even output (kw=0)
        same = quad(wc, wl, wr, wc)     # within-pair taps (kw = 0, 1, 2)
        nxt = quad(z, wr, z, z)         # even pixel of next pair -> odd output (kw=2)
        taps.append(jnp.stack([prev, same, nxt]))
    return jnp.stack(taps)


def reference_forward(x_nhwc, w1, b1, w2_4d, b2, w3, b3, wse1, wse2):
    h1 = jnp.maximum(jnp.einsum('bhwi,io->bhwo', x_nhwc, w1) + b1, 0.0)
    h2 = lax.conv_general_dilated(h1, w2_4d, window_strides=(1, 1), padding='SAME',
                                  dimension_numbers=('NHWC', 'HWIO', 'NHWC'))
    h2 = jnp.maximum(h2 + b2, 0.0)
    h3 = jnp.einsum('bhwi,io->bhwo', h2, w3) + b3
    pooled = jnp.mean(h3, axis=(1, 2))
    s = jax.nn.sigmoid(jnp.maximum(pooled @ wse1, 0.0) @ wse2)
    y = h3 * s[:, None, None, :]
    return jnp.maximum(y + x_nhwc, 0.0)


if __name__ == "__main__":
    # SEBlock(in_channels=64, plane=16): expansion=4 -> 64 output channels,
    # stride=1, down_sample=None -> identity residual.
    B, H, W = 16, 8, 8
    plane, expansion, reduction = 16, 4, 16
    Cin = plane * expansion          # 64
    C1 = plane                       # 16
    C3 = plane * expansion           # 64
    Cr = C3 // reduction             # 4

    key = jax.random.PRNGKey(0)
    ks = jax.random.split(key, 12)

    x_nchw = jax.random.normal(ks[0], (B, Cin, H, W), jnp.float32)    # PyTorch layout
    x_nhwc = jnp.transpose(x_nchw, (0, 2, 3, 1))                      # kernel layout

    w1 = jax.random.normal(ks[1], (Cin, C1), jnp.float32) * 0.1
    cb1 = jax.random.normal(ks[2], (C1,), jnp.float32) * 0.1
    w2 = jax.random.normal(ks[3], (3, 3, C1, C1), jnp.float32) * 0.1  # HWIO
    cb2 = jax.random.normal(ks[4], (C1,), jnp.float32) * 0.1
    w3 = jax.random.normal(ks[5], (C1, C3), jnp.float32) * 0.1
    cb3 = jax.random.normal(ks[6], (C3,), jnp.float32) * 0.1

    def bn_params(k, c):
        k1, k2, k3, k4 = jax.random.split(k, 4)
        return (1.0 + 0.1 * jax.random.normal(k1, (c,), jnp.float32),
                0.1 * jax.random.normal(k2, (c,), jnp.float32),
                0.1 * jax.random.normal(k3, (c,), jnp.float32),
                1.0 + 0.1 * jax.random.uniform(k4, (c,), jnp.float32))

    g1, be1, m1, v1 = bn_params(ks[7], C1)
    g2, be2, m2, v2 = bn_params(ks[8], C1)
    g3, be3, m3, v3 = bn_params(ks[9], C3)

    wse1 = jax.random.normal(ks[10], (C3, Cr), jnp.float32) * 0.1     # bias=False
    wse2 = jax.random.normal(ks[11], (Cr, C3), jnp.float32) * 0.1

    # fold eval-mode BN into the convs, round matmul weights to bf16
    w1e, b1e = fold_bn(w1, cb1, g1, be1, m1, v1)
    w2e, b2e = fold_bn(w2, cb2, g2, be2, m2, v2)
    w3e, b3e = fold_bn(w3, cb3, g3, be3, m3, v3)
    w1b = w1e.astype(jnp.bfloat16)
    w2b = w2e.astype(jnp.bfloat16)
    w3b = w3e.astype(jnp.bfloat16)
    wse1b = wse1.astype(jnp.bfloat16)
    wse2b = wse2.astype(jnp.bfloat16)

    # pixel-pair packed weights / biases (exact rearrangements of the bf16 weights)
    w1p = block_diag_pair(w1b)                                        # (128, 32)
    w2p = pack_conv2_pair_weights(w2b)                                # (3, 3, 32, 32)
    w3p = block_diag_pair(w3b)                                        # (32, 128)
    wse1p = (jnp.concatenate([wse1b, wse1b], axis=0) * 0.5).astype(jnp.bfloat16)   # (128, 4)
    wse2p = jnp.concatenate([wse2b, wse2b], axis=1)                   # (4, 128)
    b1p = jnp.concatenate([b1e, b1e]).reshape(1, 2 * C1)
    b2p = jnp.concatenate([b2e, b2e]).reshape(1, 2 * C1)
    b3p = jnp.concatenate([b3e, b3e]).reshape(1, 2 * C3)

    out_nhwc = se_block_forward(x_nhwc, w1p, b1p, w2p, b2p, w3p, b3p, wse1p, wse2p)
    out_nhwc = jax.block_until_ready(out_nhwc)
    out_nchw = jnp.transpose(out_nhwc, (0, 3, 1, 2))                  # back to PyTorch layout

    # reference in f32 math using the same bf16-rounded weights the kernel consumes
    ref = reference_forward(
        x_nhwc, w1b.astype(jnp.float32), b1e, w2b.astype(jnp.float32), b2e,
        w3b.astype(jnp.float32), b3e, wse1b.astype(jnp.float32), wse2b.astype(jnp.float32))
    ref = jax.block_until_ready(ref)

    np.testing.assert_allclose(np.asarray(out_nhwc), np.asarray(ref), rtol=2e-2, atol=2e-2)
    print("KERNEL_OK")
</pallas_src>

<mosaic_0001>
module attributes {stable_mosaic.version = 11 : i64} {
  func.func @kernel(%arg0: i32, %arg1: memref<256x128xf32, #tpu.memory_space<vmem>>, %arg2: memref<128x32xbf16, #tpu.memory_space<vmem>>, %arg3: memref<1x32xf32, #tpu.memory_space<vmem>>, %arg4: memref<3x3x32x32xbf16, #tpu.memory_space<vmem>>, %arg5: memref<1x32xf32, #tpu.memory_space<vmem>>, %arg6: memref<32x128xbf16, #tpu.memory_space<vmem>>, %arg7: memref<1x128xf32, #tpu.memory_space<vmem>>, %arg8: memref<128x4xbf16, #tpu.memory_space<vmem>>, %arg9: memref<4x128xbf16, #tpu.memory_space<vmem>>, %arg10: memref<256x128xf32, #tpu.memory_space<vmem>>) attributes {dimension_semantics = [#tpu.dimension_semantics<parallel>], iteration_bounds = array<i64: 2>, scalar_prefetch = 0 : i64, scratch_operands = 0 : i64, tpu.core_type = #tpu.core_type<tc>, window_params = [{transform_indices = @transform_0, window_bounds = array<i64: 256, 128>}, {pipeline_mode = #tpu.pipeline_mode<synchronous>, transform_indices = @transform_1, window_bounds = array<i64: 128, 32>}, {pipeline_mode = #tpu.pipeline_mode<synchronous>, transform_indices = @transform_2, window_bounds = array<i64: 1, 32>}, {pipeline_mode = #tpu.pipeline_mode<synchronous>, transform_indices = @transform_3, window_bounds = array<i64: 3, 3, 32, 32>}, {pipeline_mode = #tpu.pipeline_mode<synchronous>, transform_indices = @transform_4, window_bounds = array<i64: 1, 32>}, {pipeline_mode = #tpu.pipeline_mode<synchronous>, transform_indices = @transform_5, window_bounds = array<i64: 32, 128>}, {pipeline_mode = #tpu.pipeline_mode<synchronous>, transform_indices = @transform_6, window_bounds = array<i64: 1, 128>}, {pipeline_mode = #tpu.pipeline_mode<synchronous>, transform_indices = @transform_7, window_bounds = array<i64: 128, 4>}, {pipeline_mode = #tpu.pipeline_mode<synchronous>, transform_indices = @transform_8, window_bounds = array<i64: 4, 128>}, {transform_indices = @transform_9, window_bounds = array<i64: 256, 128>}]} {
    %c0 = arith.constant 0 : index
    %c0_0 = arith.constant 0 : index
    %0 = vector.load %arg1[%c0, %c0_0] : memref<256x128xf32, #tpu.memory_space<vmem>>, vector<256x128xf32>
    %1 = arith.truncf %0 : vector<256x128xf32> to vector<256x128xbf16>
    %c0_1 = arith.constant 0 : index
    %c0_2 = arith.constant 0 : index
    %2 = vector.load %arg2[%c0_1, %c0_2] : memref<128x32xbf16, #tpu.memory_space<vmem>>, vector<128x32xbf16>
    %cst = arith.constant dense<0.000000e+00> : vector<256x32xf32>
    %3 = tpu.matmul %1, %2, %cst {dimension_numbers = #tpu.dot_dimension_numbers<[1], [0], [0], [1], [0, 0, 1, 1], [], []>} : vector<256x128xbf16>, vector<128x32xbf16>, vector<256x32xf32> -> vector<256x32xf32>
    %c0_3 = arith.constant 0 : index
    %c0_4 = arith.constant 0 : index
    %4 = vector.load %arg3[%c0_3, %c0_4] : memref<1x32xf32, #tpu.memory_space<vmem>>, vector<1x32xf32>
    %5 = vector.broadcast %4 : vector<1x32xf32> to vector<256x32xf32>
    %6 = arith.addf %3, %5 : vector<256x32xf32>
    %cst_5 = arith.constant 0.000000e+00 : f32
    %7 = vector.broadcast %cst_5 : f32 to vector<256x32xf32>
    %8 = arith.maximumf %6, %7 : vector<256x32xf32>
    %9 = arith.truncf %8 : vector<256x32xf32> to vector<256x32xbf16>
    %10 = vector.shape_cast %9 : vector<256x32xbf16> to vector<8x8x4x32xbf16>
    %cst_6 = arith.constant 0.000000e+00 : bf16
    %11 = vector.broadcast %cst_6 : bf16 to vector<8x1x4x32xbf16>
    %cst_7 = arith.constant 0.000000e+00 : bf16
    %12 = vector.broadcast %cst_7 : bf16 to vector<8x8x1x32xbf16>
    %c0_8 = arith.constant 0 : index
    %c0_9 = arith.constant 0 : index
    %13 = vector.load %arg5[%c0_8, %c0_9] : memref<1x32xf32, #tpu.memory_space<vmem>>, vector<1x32xf32>
    %14 = vector.extract_strided_slice %10 {offsets = [0, 0, 0, 0], sizes = [8, 7, 4, 32], strides = [1, 1, 1, 1]} : vector<8x8x4x32xbf16> to vector<8x7x4x32xbf16>
    %15 = tpu.concatenate %11, %14 in 1 : vector<8x1x4x32xbf16>, vector<8x7x4x32xbf16> -> vector<8x8x4x32xbf16>
    %16 = vector.extract_strided_slice %15 {offsets = [0, 0, 0, 0], sizes = [8, 8, 3, 32], strides = [1, 1, 1, 1]} : vector<8x8x4x32xbf16> to vector<8x8x3x32xbf16>
    %17 = tpu.concatenate %12, %16 in 2 : vector<8x8x1x32xbf16>, vector<8x8x3x32xbf16> -> vector<8x8x4x32xbf16>
    %18 = vector.shape_cast %17 : vector<8x8x4x32xbf16> to vector<256x32xbf16>
    %c0_10 = arith.constant 0 : index
    %c0_11 = arith.constant 0 : index
    %c0_12 = arith.constant 0 : index
    %c0_13 = arith.constant 0 : index
    %19 = vector.load %arg4[%c0_10, %c0_11, %c0_12, %c0_13] : memref<3x3x32x32xbf16, #tpu.memory_space<vmem>>, vector<1x1x32x32xbf16>
    %20 = vector.shape_cast %19 : vector<1x1x32x32xbf16> to vector<32x32xbf16>
    %cst_14 = arith.constant dense<0.000000e+00> : vector<256x32xf32>
    %21 = tpu.matmul %18, %20, %cst_14 {dimension_numbers = #tpu.dot_dimension_numbers<[1], [0], [0], [1], [0, 0, 1, 1], [], []>} : vector<256x32xbf16>, vector<32x32xbf16>, vector<256x32xf32> -> vector<256x32xf32>
    %22 = vector.broadcast %13 : vector<1x32xf32> to vector<256x32xf32>
    %23 = arith.addf %22, %21 : vector<256x32xf32>
    %24 = vector.shape_cast %15 : vector<8x8x4x32xbf16> to vector<256x32xbf16>
    %c0_15 = arith.constant 0 : index
    %c1 = arith.constant 1 : index
    %c0_16 = arith.constant 0 : index
    %c0_17 = arith.constant 0 : index
    %25 = vector.load %arg4[%c0_15, %c1, %c0_16, %c0_17] : memref<3x3x32x32xbf16, #tpu.memory_space<vmem>>, vector<1x1x32x32xbf16>
    %26 = vector.shape_cast %25 : vector<1x1x32x32xbf16> to vector<32x32xbf16>
    %cst_18 = arith.constant dense<0.000000e+00> : vector<256x32xf32>
    %27 = tpu.matmul %24, %26, %cst_18 {dimension_numbers = #tpu.dot_dimension_numbers<[1], [0], [0], [1], [0, 0, 1, 1], [], []>} : vector<256x32xbf16>, vector<32x32xbf16>, vector<256x32xf32> -> vector<256x32xf32>
    %28 = arith.addf %23, %27 : vector<256x32xf32>
    %29 = vector.extract_strided_slice %15 {offsets = [0, 0, 1, 0], sizes = [8, 8, 3, 32], strides = [1, 1, 1, 1]} : vector<8x8x4x32xbf16> to vector<8x8x3x32xbf16>
    %30 = tpu.concatenate %29, %12 in 2 : vector<8x8x3x32xbf16>, vector<8x8x1x32xbf16> -> vector<8x8x4x32xbf16>
    %31 = vector.shape_cast %30 : vector<8x8x4x32xbf16> to vector<256x32xbf16>
    %c0_19 = arith.constant 0 : index
    %c2 = arith.constant 2 : index
    %c0_20 = arith.constant 0 : index
    %c0_21 = arith.constant 0 : index
    %32 = vector.load %arg4[%c0_19, %c2, %c0_20, %c0_21] : memref<3x3x32x32xbf16, #tpu.memory_space<vmem>>, vector<1x1x32x32xbf16>
    %33 = vector.shape_cast %32 : vector<1x1x32x32xbf16> to vector<32x32xbf16>
    %cst_22 = arith.constant dense<0.000000e+00> : vector<256x32xf32>
    %34 = tpu.matmul %31, %33, %cst_22 {dimension_numbers = #tpu.dot_dimension_numbers<[1], [0], [0], [1], [0, 0, 1, 1], [], []>} : vector<256x32xbf16>, vector<32x32xbf16>, vector<256x32xf32> -> vector<256x32xf32>
    %35 = arith.addf %28, %34 : vector<256x32xf32>
    %36 = vector.extract_strided_slice %10 {offsets = [0, 0, 0, 0], sizes = [8, 8, 3, 32], strides = [1, 1, 1, 1]} : vector<8x8x4x32xbf16> to vector<8x8x3x32xbf16>
    %37 = tpu.concatenate %12, %36 in 2 : vector<8x8x1x32xbf16>, vector<8x8x3x32xbf16> -> vector<8x8x4x32xbf16>
    %38 = vector.shape_cast %37 : vector<8x8x4x32xbf16> to vector<256x32xbf16>
    %c1_23 = arith.constant 1 : index
    %c0_24 = arith.constant 0 : index
    %c0_25 = arith.constant 0 : index
    %c0_26 = arith.constant 0 : index
    %39 = vector.load %arg4[%c1_23, %c0_24, %c0_25, %c0_26] : memref<3x3x32x32xbf16, #tpu.memory_space<vmem>>, vector<1x1x32x32xbf16>
    %40 = vector.shape_cast %39 : vector<1x1x32x32xbf16> to vector<32x32xbf16>
    %cst_27 = arith.constant dense<0.000000e+00> : vector<256x32xf32>
    %41 = tpu.matmul %38, %40, %cst_27 {dimension_numbers = #tpu.dot_dimension_numbers<[1], [0], [0], [1], [0, 0, 1, 1], [], []>} : vector<256x32xbf16>, vector<32x32xbf16>, vector<256x32xf32> -> vector<256x32xf32>
    %42 = arith.addf %35, %41 : vector<256x32xf32>
    %43 = vector.shape_cast %10 : vector<8x8x4x32xbf16> to vector<256x32xbf16>
    %c1_28 = arith.constant 1 : index
    %c1_29 = arith.constant 1 : index
    %c0_30 = arith.constant 0 : index
    %c0_31 = arith.constant 0 : index
    %44 = vector.load %arg4[%c1_28, %c1_29, %c0_30, %c0_31] : memref<3x3x32x32xbf16, #tpu.memory_space<vmem>>, vector<1x1x32x32xbf16>
    %45 = vector.shape_cast %44 : vector<1x1x32x32xbf16> to vector<32x32xbf16>
    %cst_32 = arith.constant dense<0.000000e+00> : vector<256x32xf32>
    %46 = tpu.matmul %43, %45, %cst_32 {dimension_numbers = #tpu.dot_dimension_numbers<[1], [0], [0], [1], [0, 0, 1, 1], [], []>} : vector<256x32xbf16>, vector<32x32xbf16>, vector<256x32xf32> -> vector<256x32xf32>
    %47 = arith.addf %42, %46 : vector<256x32xf32>
    %48 = vector.extract_strided_slice %10 {offsets = [0, 0, 1, 0], sizes = [8, 8, 3, 32], strides = [1, 1, 1, 1]} : vector<8x8x4x32xbf16> to vector<8x8x3x32xbf16>
    %49 = tpu.concatenate %48, %12 in 2 : vector<8x8x3x32xbf16>, vector<8x8x1x32xbf16> -> vector<8x8x4x32xbf16>
    %50 = vector.shape_cast %49 : vector<8x8x4x32xbf16> to vector<256x32xbf16>
    %c1_33 = arith.constant 1 : index
    %c2_34 = arith.constant 2 : index
    %c0_35 = arith.constant 0 : index
    %c0_36 = arith.constant 0 : index
    %51 = vector.load %arg4[%c1_33, %c2_34, %c0_35, %c0_36] : memref<3x3x32x32xbf16, #tpu.memory_space<vmem>>, vector<1x1x32x32xbf16>
    %52 = vector.shape_cast %51 : vector<1x1x32x32xbf16> to vector<32x32xbf16>
    %cst_37 = arith.constant dense<0.000000e+00> : vector<256x32xf32>
    %53 = tpu.matmul %50, %52, %cst_37 {dimension_numbers = #tpu.dot_dimension_numbers<[1], [0], [0], [1], [0, 0, 1, 1], [], []>} : vector<256x32xbf16>, vector<32x32xbf16>, vector<256x32xf32> -> vector<256x32xf32>
    %54 = arith.addf %47, %53 : vector<256x32xf32>
    %55 = vector.extract_strided_slice %10 {offsets = [0, 1, 0, 0], sizes = [8, 7, 4, 32], strides = [1, 1, 1, 1]} : vector<8x8x4x32xbf16> to vector<8x7x4x32xbf16>
    %56 = tpu.concatenate %55, %11 in 1 : vector<8x7x4x32xbf16>, vector<8x1x4x32xbf16> -> vector<8x8x4x32xbf16>
    %57 = vector.extract_strided_slice %56 {offsets = [0, 0, 0, 0], sizes = [8, 8, 3, 32], strides = [1, 1, 1, 1]} : vector<8x8x4x32xbf16> to vector<8x8x3x32xbf16>
    %58 = tpu.concatenate %12, %57 in 2 : vector<8x8x1x32xbf16>, vector<8x8x3x32xbf16> -> vector<8x8x4x32xbf16>
    %59 = vector.shape_cast %58 : vector<8x8x4x32xbf16> to vector<256x32xbf16>
    %c2_38 = arith.constant 2 : index
    %c0_39 = arith.constant 0 : index
    %c0_40 = arith.constant 0 : index
    %c0_41 = arith.constant 0 : index
    %60 = vector.load %arg4[%c2_38, %c0_39, %c0_40, %c0_41] : memref<3x3x32x32xbf16, #tpu.memory_space<vmem>>, vector<1x1x32x32xbf16>
    %61 = vector.shape_cast %60 : vector<1x1x32x32xbf16> to vector<32x32xbf16>
    %cst_42 = arith.constant dense<0.000000e+00> : vector<256x32xf32>
    %62 = tpu.matmul %59, %61, %cst_42 {dimension_numbers = #tpu.dot_dimension_numbers<[1], [0], [0], [1], [0, 0, 1, 1], [], []>} : vector<256x32xbf16>, vector<32x32xbf16>, vector<256x32xf32> -> vector<256x32xf32>
    %63 = arith.addf %54, %62 : vector<256x32xf32>
    %64 = vector.shape_cast %56 : vector<8x8x4x32xbf16> to vector<256x32xbf16>
    %c2_43 = arith.constant 2 : index
    %c1_44 = arith.constant 1 : index
    %c0_45 = arith.constant 0 : index
    %c0_46 = arith.constant 0 : index
    %65 = vector.load %arg4[%c2_43, %c1_44, %c0_45, %c0_46] : memref<3x3x32x32xbf16, #tpu.memory_space<vmem>>, vector<1x1x32x32xbf16>
    %66 = vector.shape_cast %65 : vector<1x1x32x32xbf16> to vector<32x32xbf16>
    %cst_47 = arith.constant dense<0.000000e+00> : vector<256x32xf32>
    %67 = tpu.matmul %64, %66, %cst_47 {dimension_numbers = #tpu.dot_dimension_numbers<[1], [0], [0], [1], [0, 0, 1, 1], [], []>} : vector<256x32xbf16>, vector<32x32xbf16>, vector<256x32xf32> -> vector<256x32xf32>
    %68 = arith.addf %63, %67 : vector<256x32xf32>
    %69 = vector.extract_strided_slice %56 {offsets = [0, 0, 1, 0], sizes = [8, 8, 3, 32], strides = [1, 1, 1, 1]} : vector<8x8x4x32xbf16> to vector<8x8x3x32xbf16>
    %70 = tpu.concatenate %69, %12 in 2 : vector<8x8x3x32xbf16>, vector<8x8x1x32xbf16> -> vector<8x8x4x32xbf16>
    %71 = vector.shape_cast %70 : vector<8x8x4x32xbf16> to vector<256x32xbf16>
    %c2_48 = arith.constant 2 : index
    %c2_49 = arith.constant 2 : index
    %c0_50 = arith.constant 0 : index
    %c0_51 = arith.constant 0 : index
    %72 = vector.load %arg4[%c2_48, %c2_49, %c0_50, %c0_51] : memref<3x3x32x32xbf16, #tpu.memory_space<vmem>>, vector<1x1x32x32xbf16>
    %73 = vector.shape_cast %72 : vector<1x1x32x32xbf16> to vector<32x32xbf16>
    %cst_52 = arith.constant dense<0.000000e+00> : vector<256x32xf32>
    %74 = tpu.matmul %71, %73, %cst_52 {dimension_numbers = #tpu.dot_dimension_numbers<[1], [0], [0], [1], [0, 0, 1, 1], [], []>} : vector<256x32xbf16>, vector<32x32xbf16>, vector<256x32xf32> -> vector<256x32xf32>
    %75 = arith.addf %68, %74 : vector<256x32xf32>
    %cst_53 = arith.constant 0.000000e+00 : f32
    %76 = vector.broadcast %cst_53 : f32 to vector<256x32xf32>
    %77 = arith.maximumf %75, %76 : vector<256x32xf32>
    %78 = arith.truncf %77 : vector<256x32xf32> to vector<256x32xbf16>
    %c0_54 = arith.constant 0 : index
    %c0_55 = arith.constant 0 : index
    %79 = vector.load %arg6[%c0_54, %c0_55] : memref<32x128xbf16, #tpu.memory_space<vmem>>, vector<32x128xbf16>
    %cst_56 = arith.constant dense<0.000000e+00> : vector<256x128xf32>
    %80 = tpu.matmul %78, %79, %cst_56 {dimension_numbers = #tpu.dot_dimension_numbers<[1], [0], [0], [1], [0, 0, 1, 1], [], []>} : vector<256x32xbf16>, vector<32x128xbf16>, vector<256x128xf32> -> vector<256x128xf32>
    %c0_57 = arith.constant 0 : index
    %c0_58 = arith.constant 0 : index
    %81 = vector.load %arg7[%c0_57, %c0_58] : memref<1x128xf32, #tpu.memory_space<vmem>>, vector<1x128xf32>
    %82 = vector.broadcast %81 : vector<1x128xf32> to vector<256x128xf32>
    %83 = arith.addf %80, %82 : vector<256x128xf32>
    %84 = vector.shape_cast %83 : vector<256x128xf32> to vector<8x32x128xf32>
    %cst_59 = arith.constant dense<0.000000e+00> : vector<8x128xf32>
    %85 = vector.multi_reduction <add>, %84, %cst_59 [1] : vector<8x32x128xf32> to vector<8x128xf32>
    %cst_60 = arith.constant 3.200000e+01 : f32
    %86 = vector.broadcast %cst_60 : f32 to vector<8x128xf32>
    %87 = arith.divf %85, %86 : vector<8x128xf32>
    %88 = arith.truncf %87 : vector<8x128xf32> to vector<8x128xbf16>
    %c0_61 = arith.constant 0 : index
    %c0_62 = arith.constant 0 : index
    %89 = vector.load %arg8[%c0_61, %c0_62] : memref<128x4xbf16, #tpu.memory_space<vmem>>, vector<128x4xbf16>
    %cst_63 = arith.constant dense<0.000000e+00> : vector<8x4xf32>
    %90 = tpu.matmul %88, %89, %cst_63 {dimension_numbers = #tpu.dot_dimension_numbers<[1], [0], [0], [1], [0, 0, 1, 1], [], []>} : vector<8x128xbf16>, vector<128x4xbf16>, vector<8x4xf32> -> vector<8x4xf32>
    %cst_64 = arith.constant 0.000000e+00 : f32
    %91 = vector.broadcast %cst_64 : f32 to vector<8x4xf32>
    %92 = arith.maximumf %90, %91 : vector<8x4xf32>
    %93 = arith.truncf %92 : vector<8x4xf32> to vector<8x4xbf16>
    %c0_65 = arith.constant 0 : index
    %c0_66 = arith.constant 0 : index
    %94 = vector.load %arg9[%c0_65, %c0_66] : memref<4x128xbf16, #tpu.memory_space<vmem>>, vector<4x128xbf16>
    %cst_67 = arith.constant dense<0.000000e+00> : vector<8x128xf32>
    %95 = tpu.matmul %93, %94, %cst_67 {dimension_numbers = #tpu.dot_dimension_numbers<[1], [0], [0], [1], [0, 0, 1, 1], [], []>} : vector<8x4xbf16>, vector<4x128xbf16>, vector<8x128xf32> -> vector<8x128xf32>
    %96 = arith.negf %95 : vector<8x128xf32>
    %97 = math.exp %96 : vector<8x128xf32>
    %cst_68 = arith.constant 1.000000e+00 : f32
    %98 = vector.broadcast %cst_68 : f32 to vector<8x128xf32>
    %99 = arith.addf %98, %97 : vector<8x128xf32>
    %100 = arith.divf %98, %99 : vector<8x128xf32>
    %101 = vector.shape_cast %100 : vector<8x128xf32> to vector<8x1x128xf32>
    %102 = vector.broadcast %101 : vector<8x1x128xf32> to vector<8x32x128xf32>
    %103 = arith.mulf %84, %102 : vector<8x32x128xf32>
    %104 = vector.shape_cast %103 : vector<8x32x128xf32> to vector<256x128xf32>
    %c0_69 = arith.constant 0 : index
    %c0_70 = arith.constant 0 : index
    %105 = vector.load %arg1[%c0_69, %c0_70] : memref<256x128xf32, #tpu.memory_space<vmem>>, vector<256x128xf32>
    %106 = arith.addf %104, %105 : vector<256x128xf32>
    %cst_71 = arith.constant 0.000000e+00 : f32
    %107 = vector.broadcast %cst_71 : f32 to vector<256x128xf32>
    %108 = arith.maximumf %106, %107 : vector<256x128xf32>
    %c0_72 = arith.constant 0 : index
    %c0_73 = arith.constant 0 : index
    %109 = vector.load %arg10[%c0_72, %c0_73] : memref<256x128xf32, #tpu.memory_space<vmem>>, vector<256x128xf32>
    tpu.vector_store %arg10[%c0_72, %c0_73], %108 {strides = array<i32>} : memref<256x128xf32, #tpu.memory_space<vmem>>, vector<256x128xf32>,
    return
  }
  func.func @transform_0(%arg0: i32) -> (i32, i32) {
    %c0_i32 = arith.constant 0 : i32
    %c0_i32_0 = arith.constant 0 : i32
    return %arg0, %c0_i32 : i32, i32
  }
  func.func @transform_1(%arg0: i32) -> (i32, i32) {
    %c0_i32 = arith.constant 0 : i32
    %c0_i32_0 = arith.constant 0 : i32
    %c0_i32_1 = arith.constant 0 : i32
    return %c0_i32, %c0_i32_0 : i32, i32
  }
  func.func @transform_2(%arg0: i32) -> (i32, i32) {
    %c0_i32 = arith.constant 0 : i32
    %c0_i32_0 = arith.constant 0 : i32
    %c0_i32_1 = arith.constant 0 : i32
    return %c0_i32, %c0_i32_0 : i32, i32
  }
  func.func @transform_3(%arg0: i32) -> (i32, i32, i32, i32) {
    %c0_i32 = arith.constant 0 : i32
    %c0_i32_0 = arith.constant 0 : i32
    %c0_i32_1 = arith.constant 0 : i32
    %c0_i32_2 = arith.constant 0 : i32
    %c0_i32_3 = arith.constant 0 : i32
    return %c0_i32, %c0_i32_0, %c0_i32_1, %c0_i32_2 : i32, i32, i32, i32
  }
  func.func @transform_4(%arg0: i32) -> (i32, i32) {
    %c0_i32 = arith.constant 0 : i32
    %c0_i32_0 = arith.constant 0 : i32
    %c0_i32_1 = arith.constant 0 : i32
    return %c0_i32, %c0_i32_0 : i32, i32
  }
  func.func @transform_5(%arg0: i32) -> (i32, i32) {
    %c0_i32 = arith.constant 0 : i32
    %c0_i32_0 = arith.constant 0 : i32
    %c0_i32_1 = arith.constant 0 : i32
    return %c0_i32, %c0_i32_0 : i32, i32
  }
  func.func @transform_6(%arg0: i32) -> (i32, i32) {
    %c0_i32 = arith.constant 0 : i32
    %c0_i32_0 = arith.constant 0 : i32
    %c0_i32_1 = arith.constant 0 : i32
    return %c0_i32, %c0_i32_0 : i32, i32
  }
  func.func @transform_7(%arg0: i32) -> (i32, i32) {
    %c0_i32 = arith.constant 0 : i32
    %c0_i32_0 = arith.constant 0 : i32
    %c0_i32_1 = arith.constant 0 : i32
    return %c0_i32, %c0_i32_0 : i32, i32
  }
  func.func @transform_8(%arg0: i32) -> (i32, i32) {
    %c0_i32 = arith.constant 0 : i32
    %c0_i32_0 = arith.constant 0 : i32
    %c0_i32_1 = arith.constant 0 : i32
    return %c0_i32, %c0_i32_0 : i32, i32
  }
  func.func @transform_9(%arg0: i32) -> (i32, i32) {
    %c0_i32 = arith.constant 0 : i32
    %c0_i32_0 = arith.constant 0 : i32
    return %arg0, %c0_i32 : i32, i32
  }
}

</mosaic_0001>

<llo_original>
// kernel: tpu_custom_call.1
$region0: #{tpu_custom_call.1}
  #allocation0 [shape = 'u32[]', space=smem, size = 0x4, offset = 0x4, fixed_abs, tag = 'smem constant byte address 0x4 - core index']
  #allocation1 [shape = 'u32[72,128]{1,0:T(1,128)}', space=vmem, size = 0x9000, scoped, tag = 'internal scratch']
  %s0 = inlined_call_operand.hbm [shape: f32[512,128], index: 0, kind: input, shape index: {}]
  %s1 = inlined_call_operand.vmem [shape: bf16[128,32], index: 1, kind: input, shape index: {}]
  %s2 = inlined_call_operand.vmem [shape: f32[1,32], index: 2, kind: input, shape index: {}]
  %s3 = inlined_call_operand.vmem [shape: bf16[3,3,32,32], index: 3, kind: input, shape index: {}]
  %s4 = inlined_call_operand.hbm [shape: f32[1,32], index: 4, kind: input, shape index: {}]
  %s5 = inlined_call_operand.hbm [shape: bf16[32,128], index: 5, kind: input, shape index: {}]
  %s6 = inlined_call_operand.vmem [shape: f32[1,128], index: 6, kind: input, shape index: {}]
  %s7 = inlined_call_operand.vmem [shape: bf16[128,4], index: 7, kind: input, shape index: {}]
  %s8 = inlined_call_operand.vmem [shape: bf16[4,128], index: 8, kind: input, shape index: {}]
  %s9 = inlined_call_operand.hbm [shape: f32[512,128], index: 9, kind: output, shape index: {}]
  %s10 = sld [smem:[#allocation0]]
  $region81: #{tpu_custom_call.1} parent=0
    _
  %s12 = ssub.s32 1, %s10
  %s13 = scalar_select 0, %s12, %s10
  $region1: #{tpu_custom_call.1} parent=0
    #allocation2 [shape = 'u8[262144]{0}', space=vmem, size = 0x40000, scoped, tag = 'input window, operand 0']
    #allocation3 [shape = 's32[2]{0}', space=sflag, size = 0x8, scoped, tag = 'scoped memory for tpu_custom_call.1']
    #allocation4 [shape = 's32[2]{0}', space=sflag, size = 0x8, scoped, tag = 'scoped memory for tpu_custom_call.1']
    #allocation5 [shape = 'u8[512]{0}', space=vmem, size = 0x400, scoped, tag = 'input window, operand 4, single buffered']
    #allocation6 [shape = 's32[1]{0}', space=sflag, size = 0x4, scoped, tag = 'scoped memory for tpu_custom_call.1']
    #allocation7 [shape = 'u8[8192]{0}', space=vmem, size = 0x2000, scoped, tag = 'input window, operand 5, single buffered']
    #allocation8 [shape = 'u8[262144]{0}', space=vmem, size = 0x40000, scoped, tag = 'output window, operand 0']
    %14 = vsyncpa [#allocation3], 0
    %s15 = scalar_lea.sflag [#allocation3], 1
    %16 = vsyncpa %s15, 0
    %17 = vsyncpa [#allocation6], 0
    %18 = vsyncpa [#allocation4], 0
    %s19 = scalar_lea.sflag [#allocation4], 1
    %20 = vsyncpa %s19, 0
    loop: start=0, step=1, limit=4
    $region2: #{tpu_custom_call.1} parent=1 // loop_pre_header
      _
    $region3: #{tpu_custom_call.1} parent=1 // loop_header
      %s22 = sphi 0, %s26
      %p23 = scmp.ge.s32.totalorder %s22, 4
      %s32 = sphi 0, %s34
      %s35 = sphi 0, %s32
      %s36 = sphi 0, %s35
      %s52 = sphi 0, %s36
      %s56 = sphi 0, %s56
      %s58 = sphi 0, %s56
      %s59 = sphi 0, %s58
      %s73 = sphi 0, %s59
      %s77 = sphi 0, %s77
      %s79 = sphi 0, %s77
      %s80 = sphi 0, %s79
      %s94 = sphi 0, %s80
      %s98 = sphi 0, %s98
      %s100 = sphi 0, %s98
      %s101 = sphi 0, %s100
      %s115 = sphi 0, %s101
      %s119 = sphi 0, %s119
      %s121 = sphi 0, %s119
      %s122 = sphi 0, %s121
      %s136 = sphi 0, %s122
      %s140 = sphi 0, %s140
      %s142 = sphi 0, %s140
      %s143 = sphi 0, %s142
      %s157 = sphi 0, %s143
      %s161 = sphi 0, %s161
      %s163 = sphi 0, %s161
      %s164 = sphi 0, %s163
      %s178 = sphi 0, %s164
      %s182 = sphi 0, %s182
      %s184 = sphi 0, %s182
      %s185 = sphi 0, %s184
      %s199 = sphi 0, %s185
      %s203 = sphi 0, %s203
      %s205 = sphi 0, %s203
      %s206 = sphi 0, %s205
      %s220 = sphi 0, %s206
      %s226 = sphi 0, %s228
      %s229 = sphi 0, %s226
      %s230 = sphi 0, %s229
      %s246 = sphi 0, %s230
    $region4: #{tpu_custom_call.1} parent=1 // loop_header_branch
      %25 = sbr.rel (%p23) target = $region8
    $region5: #{tpu_custom_call.1} parent=1 // loop_body
      %s27 = ssub.s32 %s22, 1
      %s28 = ssub.s32 %s22, 2
      %s29 = sadd.s32 %s22, 1
      %s30 = ssub.s32 %s22, %s29
      %p31 = scmp.eq.s32.totalorder %s30, 0
      %s33 = sadd.s32 %s32, 1
      %s34 = scalar_select %p31, %s32, %s33
      %p37 = pneg %p31
      %p38 = scmp.eq.s32.totalorder %s22, 1
      %p39 = por %p37, %p38
      %p40 = scmp.ne.s32.totalorder %s32, %s35
      %p41 = scmp.eq.s32.totalorder %s22, 0
      %p42 = por %p40, %p41
      %p43 = scmp.ne.s32.totalorder %s32, %s35
      %p44 = scmp.eq.s32.totalorder %s27, 1
      %p45 = por %p43, %p44
      %p46 = scmp.ne.s32.totalorder %s35, %s36
      %p47 = scmp.eq.s32.totalorder %s27, 0
      %p48 = por %p46, %p47
      %p49 = scmp.ne.s32.totalorder %s35, %s36
      %p50 = scmp.eq.s32.totalorder %s28, 1
      %p51 = por %p49, %p50
      %p53 = scmp.ne.s32.totalorder %s36, %s52
      %p54 = scmp.eq.s32.totalorder %s28, 0
      %p55 = por %p53, %p54
      %s57 = sadd.s32 %s56, 1
      %p60 = scmp.eq.s32.totalorder %s22, 1
      %p61 = scmp.ne.s32.totalorder %s56, %s58
      %p62 = scmp.eq.s32.totalorder %s22, 0
      %p63 = por %p61, %p62
      %p64 = scmp.ne.s32.totalorder %s56, %s58
      %p65 = scmp.eq.s32.totalorder %s27, 1
      %p66 = por %p64, %p65
      %p67 = scmp.ne.s32.totalorder %s58, %s59
      %p68 = scmp.eq.s32.totalorder %s27, 0
      %p69 = por %p67, %p68
      %p70 = scmp.ne.s32.totalorder %s58, %s59
      %p71 = scmp.eq.s32.totalorder %s28, 1
      %p72 = por %p70, %p71
      %p74 = scmp.ne.s32.totalorder %s59, %s73
      %p75 = scmp.eq.s32.totalorder %s28, 0
      %p76 = por %p74, %p75
      %s78 = sadd.s32 %s77, 1
      %p81 = scmp.eq.s32.totalorder %s22, 1
      %p82 = scmp.ne.s32.totalorder %s77, %s79
      %p83 = scmp.eq.s32.totalorder %s22, 0
      %p84 = por %p82, %p83
      %p85 = scmp.ne.s32.totalorder %s77, %s79
      %p86 = scmp.eq.s32.totalorder %s27, 1
      %p87 = por %p85, %p86
      %p88 = scmp.ne.s32.totalorder %s79, %s80
      %p89 = scmp.eq.s32.totalorder %s27, 0
      %p90 = por %p88, %p89
      %p91 = scmp.ne.s32.totalorder %s79, %s80
      %p92 = scmp.eq.s32.totalorder %s28, 1
      %p93 = por %p91, %p92
      %p95 = scmp.ne.s32.totalorder %s80, %s94
      %p96 = scmp.eq.s32.totalorder %s28, 0
      %p97 = por %p95, %p96
      %s99 = sadd.s32 %s98, 1
      %p102 = scmp.eq.s32.totalorder %s22, 1
      %p103 = scmp.ne.s32.totalorder %s98, %s100
      %p104 = scmp.eq.s32.totalorder %s22, 0
      %p105 = por %p103, %p104
      %p106 = scmp.ne.s32.totalorder %s98, %s100
      %p107 = scmp.eq.s32.totalorder %s27, 1
      %p108 = por %p106, %p107
      %p109 = scmp.ne.s32.totalorder %s100, %s101
      %p110 = scmp.eq.s32.totalorder %s27, 0
      %p111 = por %p109, %p110
      %p112 = scmp.ne.s32.totalorder %s100, %s101
      %p113 = scmp.eq.s32.totalorder %s28, 1
      %p114 = por %p112, %p113
      %p116 = scmp.ne.s32.totalorder %s101, %s115
      %p117 = scmp.eq.s32.totalorder %s28, 0
      %p118 = por %p116, %p117
      %s120 = sadd.s32 %s119, 1
      %p123 = scmp.eq.s32.totalorder %s22, 1
      %p124 = scmp.ne.s32.totalorder %s119, %s121
      %p125 = scmp.eq.s32.totalorder %s22, 0
      %p126 = por %p124, %p125
      %p127 = scmp.ne.s32.totalorder %s119, %s121
      %p128 = scmp.eq.s32.totalorder %s27, 1
      %p129 = por %p127, %p128
      %p130 = scmp.ne.s32.totalorder %s121, %s122
      %p131 = scmp.eq.s32.totalorder %s27, 0
      %p132 = por %p130, %p131
      %p133 = scmp.ne.s32.totalorder %s121, %s122
      %p134 = scmp.eq.s32.totalorder %s28, 1
      %p135 = por %p133, %p134
      %p137 = scmp.ne.s32.totalorder %s122, %s136
      %p138 = scmp.eq.s32.totalorder %s28, 0
      %p139 = por %p137, %p138
      %s141 = sadd.s32 %s140, 1
      %p144 = scmp.eq.s32.totalorder %s22, 1
      %p145 = scmp.ne.s32.totalorder %s140, %s142
      %p146 = scmp.eq.s32.totalorder %s22, 0
      %p147 = por %p145, %p146
      %p148 = scmp.ne.s32.totalorder %s140, %s142
      %p149 = scmp.eq.s32.totalorder %s27, 1
      %p150 = por %p148, %p149
      %p151 = scmp.ne.s32.totalorder %s142, %s143
      %p152 = scmp.eq.s32.totalorder %s27, 0
      %p153 = por %p151, %p152
      %p154 = scmp.ne.s32.totalorder %s142, %s143
      %p155 = scmp.eq.s32.totalorder %s28, 1
      %p156 = por %p154, %p155
      %p158 = scmp.ne.s32.totalorder %s143, %s157
      %p159 = scmp.eq.s32.totalorder %s28, 0
      %p160 = por %p158, %p159
      %s162 = sadd.s32 %s161, 1
      %p165 = scmp.eq.s32.totalorder %s22, 1
      %p166 = scmp.ne.s32.totalorder %s161, %s163
      %p167 = scmp.eq.s32.totalorder %s22, 0
      %p168 = por %p166, %p167
      %p169 = scmp.ne.s32.totalorder %s161, %s163
      %p170 = scmp.eq.s32.totalorder %s27, 1
      %p171 = por %p169, %p170
      %p172 = scmp.ne.s32.totalorder %s163, %s164
      %p173 = scmp.eq.s32.totalorder %s27, 0
      %p174 = por %p172, %p173
      %p175 = scmp.ne.s32.totalorder %s163, %s164
      %p176 = scmp.eq.s32.totalorder %s28, 1
      %p177 = por %p175, %p176
      %p179 = scmp.ne.s32.totalorder %s164, %s178
      %p180 = scmp.eq.s32.totalorder %s28, 0
      %p181 = por %p179, %p180
      %s183 = sadd.s32 %s182, 1
      %p186 = scmp.eq.s32.totalorder %s22, 1
      %p187 = scmp.ne.s32.totalorder %s182, %s184
      %p188 = scmp.eq.s32.totalorder %s22, 0
      %p189 = por %p187, %p188
      %p190 = scmp.ne.s32.totalorder %s182, %s184
      %p191 = scmp.eq.s32.totalorder %s27, 1
      %p192 = por %p190, %p191
      %p193 = scmp.ne.s32.totalorder %s184, %s185
      %p194 = scmp.eq.s32.totalorder %s27, 0
      %p195 = por %p193, %p194
      %p196 = scmp.ne.s32.totalorder %s184, %s185
      %p197 = scmp.eq.s32.totalorder %s28, 1
      %p198 = por %p196, %p197
      %p200 = scmp.ne.s32.totalorder %s185, %s199
      %p201 = scmp.eq.s32.totalorder %s28, 0
      %p202 = por %p200, %p201
      %s204 = sadd.s32 %s203, 1
      %p207 = scmp.eq.s32.totalorder %s22, 1
      %p208 = scmp.ne.s32.totalorder %s203, %s205
      %p209 = scmp.eq.s32.totalorder %s22, 0
      %p210 = por %p208, %p209
      %p211 = scmp.ne.s32.totalorder %s203, %s205
      %p212 = scmp.eq.s32.totalorder %s27, 1
      %p213 = por %p211, %p212
      %p214 = scmp.ne.s32.totalorder %s205, %s206
      %p215 = scmp.eq.s32.totalorder %s27, 0
      %p216 = por %p214, %p215
      %p217 = scmp.ne.s32.totalorder %s205, %s206
      %p218 = scmp.eq.s32.totalorder %s28, 1
      %p219 = por %p217, %p218
      %p221 = scmp.ne.s32.totalorder %s206, %s220
      %p222 = scmp.eq.s32.totalorder %s28, 0
      %p223 = por %p221, %p222
      %s224 = ssub.s32 %s22, %s29
      %p225 = scmp.eq.s32.totalorder %s224, 0
      %s227 = sadd.s32 %s226, 1
      %s228 = scalar_select %p225, %s226, %s227
      %p231 = pneg %p225
      %p232 = scmp.eq.s32.totalorder %s22, 1
      %p233 = por %p231, %p232
      %p234 = scmp.ne.s32.totalorder %s226, %s229
      %p235 = scmp.eq.s32.totalorder %s22, 0
      %p236 = por %p234, %p235
      %p237 = scmp.ne.s32.totalorder %s226, %s229
      %p238 = scmp.eq.s32.totalorder %s27, 1
      %p239 = por %p237, %p238
      %p240 = scmp.ne.s32.totalorder %s229, %s230
      %p241 = scmp.eq.s32.totalorder %s27, 0
      %p242 = por %p240, %p241
      %p243 = scmp.ne.s32.totalorder %s229, %s230
      %p244 = scmp.eq.s32.totalorder %s28, 1
      %p245 = por %p243, %p244
      %p247 = scmp.ne.s32.totalorder %s230, %s246
      %p248 = scmp.eq.s32.totalorder %s28, 0
      %p249 = por %p247, %p248
      %p250 = scmp.le.s32.totalorder 1, %s22
      %p251 = scmp.lt.s32.totalorder %s22, 3
      %p252 = pnand %p250, %p251
      %p253 = pneg %p252
      // Predicated region
      $region9: #{tpu_custom_call.1} parent=5 // pred_check
        _
      $region10: #{tpu_custom_call.1} parent=5 // pred_check_branch
        %255 = sbr.rel (%p252) target = $region12
      $region11: #{tpu_custom_call.1} parent=5 // pred_region
        %s256 = ssub.s32 %s22, 1
        // Predicated region
        $region13: #{tpu_custom_call.1} parent=11 // pred_check
          %p257 = pneg %p69
        $region14: #{tpu_custom_call.1} parent=11 // pred_check_branch
          %259 = sbr.rel (%p257) target = $region16
        $region15: #{tpu_custom_call.1} parent=11 // pred_region
          _
        $region16: #{tpu_custom_call.1} parent=11 // pred_fallthru
          _
        // Predicated region
        $region17: #{tpu_custom_call.1} parent=11 // pred_check
          %p260 = pneg %p90
        $region18: #{tpu_custom_call.1} parent=11 // pred_check_branch
          %262 = sbr.rel (%p260) target = $region20
        $region19: #{tpu_custom_call.1} parent=11 // pred_region
          _
        $region20: #{tpu_custom_call.1} parent=11 // pred_fallthru
          _
        // Predicated region
        $region21: #{tpu_custom_call.1} parent=11 // pred_check
          %p263 = pneg %p111
        $region22: #{tpu_custom_call.1} parent=11 // pred_check_branch
          %265 = sbr.rel (%p263) target = $region24
        $region23: #{tpu_custom_call.1} parent=11 // pred_region
          _
        $region24: #{tpu_custom_call.1} parent=11 // pred_fallthru
          _
        // Predicated region
        $region25: #{tpu_custom_call.1} parent=11 // pred_check
          %p266 = pneg %p132
        $region26: #{tpu_custom_call.1} parent=11 // pred_check_branch
          %268 = sbr.rel (%p266) target = $region28
        $region27: #{tpu_custom_call.1} parent=11 // pred_region
          %270 = vsyncadd [#allocation6], 0
          %s272 = sshll.u32 %s4, 4
          %s273 = int_to_ptr.hbm [resolvable:$true] %s272
          %s274 = sshll.u32 [#allocation5], 4
          %s275 = int_to_ptr.vmem [resolvable:$true] %s274
          %277 = dma.hbm_to_vmem [thread:$0]  %s273, 16, %s275, [#allocation6]
        $region28: #{tpu_custom_call.1} parent=11 // pred_fallthru
          _
        // Predicated region
        $region29: #{tpu_custom_call.1} parent=11 // pred_check
          %p278 = pneg %p153
        $region30: #{tpu_custom_call.1} parent=11 // pred_check_branch
          %280 = sbr.rel (%p278) target = $region32
        $region31: #{tpu_custom_call.1} parent=11 // pred_region
          %282 = vsyncadd [#allocation6], 0
          %s283 = sshll.u32 %s5, 4
          %s284 = int_to_ptr.hbm [resolvable:$true] %s283
          %s285 = sshll.u32 [#allocation7], 4
          %s286 = int_to_ptr.vmem [resolvable:$true] %s285
          %291 = dma.hbm_to_vmem [thread:$0]  %s284, 256, %s286, [#allocation6], 64, 64, 4
        $region32: #{tpu_custom_call.1} parent=11 // pred_fallthru
          _
        // Predicated region
        $region33: #{tpu_custom_call.1} parent=11 // pred_check
          %p292 = pneg %p174
        $region34: #{tpu_custom_call.1} parent=11 // pred_check_branch
          %294 = sbr.rel (%p292) target = $region36
        $region35: #{tpu_custom_call.1} parent=11 // pred_region
          _
        $region36: #{tpu_custom_call.1} parent=11 // pred_fallthru
          _
        // Predicated region
        $region37: #{tpu_custom_call.1} parent=11 // pred_check
          %p295 = pneg %p195
        $region38: #{tpu_custom_call.1} parent=11 // pred_check_branch
          %297 = sbr.rel (%p295) target = $region40
        $region39: #{tpu_custom_call.1} parent=11 // pred_region
          _
        $region40: #{tpu_custom_call.1} parent=11 // pred_fallthru
          _
        // Predicated region
        $region41: #{tpu_custom_call.1} parent=11 // pred_check
          %p298 = pneg %p216
        $region42: #{tpu_custom_call.1} parent=11 // pred_check_branch
          %300 = sbr.rel (%p298) target = $region44
        $region43: #{tpu_custom_call.1} parent=11 // pred_region
          _
        $region44: #{tpu_custom_call.1} parent=11 // pred_fallthru
          _
      $region12: #{tpu_custom_call.1} parent=5 // pred_fallthru
        _
      %p301 = scmp.lt.s32.totalorder %s22, 2
      // Predicated region
      $region45: #{tpu_custom_call.1} parent=5 // pred_check
        %p302 = pneg %p301
      $region46: #{tpu_custom_call.1} parent=5 // pred_check_branch
        %304 = sbr.rel (%p302) target = $region48
      $region47: #{tpu_custom_call.1} parent=5 // pred_region
        // Predicated region
        $region49: #{tpu_custom_call.1} parent=47 // pred_check
          %p305 = pneg %p42
        $region50: #{tpu_custom_call.1} parent=47 // pred_check_branch
          %307 = sbr.rel (%p305) target = $region52
        $region51: #{tpu_custom_call.1} parent=47 // pred_region
          %s308 = sand.u32 %s32, 1
          %s309 = scalar_lea.sflag [#allocation3], %s308
          %s310 = sand.u32 %s32, 1
          %s311 = smul.addr %s310, 256
          %s312 = scalar_lea.vmem [#allocation2], %s311
          %s313 = smul.u32 32, %s22
          %315 = vsyncadd %s309, 0
          %s316 = smul.addr %s313, 8
          %s317 = scalar_lea.hbm %s0, %s316
          %s318 = sshll.u32 %s317, 4
          %s319 = int_to_ptr.hbm [resolvable:$true] %s318
          %s320 = sshll.u32 %s312, 4
          %s321 = int_to_ptr.vmem [resolvable:$true] %s320
          %326 = dma.hbm_to_vmem [thread:$0]  %s319, 4096, %s321, %s309, 128, 128, 8
        $region52: #{tpu_custom_call.1} parent=47 // pred_fallthru
          _
      $region48: #{tpu_custom_call.1} parent=5 // pred_fallthru
        _
      %p327 = scmp.le.s32.totalorder 1, %s22
      %p328 = scmp.lt.s32.totalorder %s22, 3
      %p329 = pnand %p327, %p328
      %p330 = pneg %p329
      // Predicated region
      $region53: #{tpu_custom_call.1} parent=5 // pred_check
        _
      $region54: #{tpu_custom_call.1} parent=5 // pred_check_branch
        %332 = sbr.rel (%p329) target = $region56
      $region55: #{tpu_custom_call.1} parent=5 // pred_region
        %s333 = ssub.s32 %s22, 1
        %s334 = sand.u32 %s35, 1
        %s335 = scalar_lea.sflag [#allocation3], %s334
        %s336 = sand.u32 %s35, 1
        %s337 = smul.addr %s336, 256
        %s338 = scalar_lea.vmem [#allocation2], %s337
        // Predicated region
        $region57: #{tpu_custom_call.1} parent=55 // pred_check
          %p339 = pneg %p48
        $region58: #{tpu_custom_call.1} parent=55 // pred_check_branch
          %341 = sbr.rel (%p339) target = $region60
        $region59: #{tpu_custom_call.1} parent=55 // pred_region
          %343 = dma.done %s335, 4096
        $region60: #{tpu_custom_call.1} parent=55 // pred_fallthru
          _
        // Predicated region
        $region61: #{tpu_custom_call.1} parent=55 // pred_check
          %p344 = pneg %p132
        $region62: #{tpu_custom_call.1} parent=55 // pred_check_branch
          %346 = sbr.rel (%p344) target = $region64
        $region63: #{tpu_custom_call.1} parent=55 // pred_region
          %348 = dma.done [#allocation6], 16
        $region64: #{tpu_custom_call.1} parent=55 // pred_fallthru
          _
        // Predicated region
        $region65: #{tpu_custom_call.1} parent=55 // pred_check
          %p349 = pneg %p153
        $region66: #{tpu_custom_call.1} parent=55 // pred_check_branch
          %351 = sbr.rel (%p349) target = $region68
        $region67: #{tpu_custom_call.1} parent=55 // pred_region
          %353 = dma.done [#allocation6], 256
        $region68: #{tpu_custom_call.1} parent=55 // pred_fallthru
          _
        %s354 = sand.u32 %s35, 1
        %s355 = scalar_lea.sflag [#allocation3], %s354
        %s356 = sand.u32 %s35, 1
        %s357 = smul.addr %s356, 256
        %s358 = scalar_lea.vmem [#allocation2], %s357
        %p359 = pneg %p48
        %p360 = pneg %p45
        %p361 = pneg %p69
        %p362 = pneg %p66
        %p363 = pneg %p90
        %p364 = pneg %p87
        %p365 = pneg %p111
        %p366 = pneg %p108
        %p367 = pneg %p132
        %p368 = pneg %p129
        %p369 = pneg %p153
        %p370 = pneg %p150
        %p371 = pneg %p174
        %p372 = pneg %p171
        %p373 = pneg %p195
        %p374 = pneg %p192
        %p375 = pneg %p216
        %p376 = pneg %p213
        %p377 = pneg %p242
        %p378 = pneg %p239
        %s379 = sand.u32 %s229, 1
        %s380 = scalar_lea.sflag [#allocation4], %s379
        %s381 = sand.u32 %s229, 1
        %s382 = smul.addr %s381, 256
        %s383 = scalar_lea.vmem [#allocation8], %s382
        %s384 = smul.u32 32, %s27
        %s385 = smul.u32 32, %s27
        %v387 = vld [vmem:[%s338] sm:$0xff]
        %v388 = vld [vmem:[%s338 + $0x8] sm:$0xff]
        %v389 = vld [vmem:[%s338 + $0x10] sm:$0xff]
        %v390 = vld [vmem:[%s338 + $0x18] sm:$0xff]
        %v391 = vld [vmem:[%s338 + $0x20] sm:$0xff]
        %v392 = vld [vmem:[%s338 + $0x28] sm:$0xff]
        %v393 = vld [vmem:[%s338 + $0x30] sm:$0xff]
        %v394 = vld [vmem:[%s338 + $0x38] sm:$0xff]
        %v395 = vld [vmem:[%s338 + $0x40] sm:$0xff]
        %v396 = vld [vmem:[%s338 + $0x48] sm:$0xff]
        %v397 = vld [vmem:[%s338 + $0x50] sm:$0xff]
        %v398 = vld [vmem:[%s338 + $0x58] sm:$0xff]
        %v399 = vld [vmem:[%s338 + $0x60] sm:$0xff]
        %v400 = vld [vmem:[%s338 + $0x68] sm:$0xff]
        %v401 = vld [vmem:[%s338 + $0x70] sm:$0xff]
        %v402 = vld [vmem:[%s338 + $0x78] sm:$0xff]
        %v403 = vld [vmem:[%s338 + $0x80] sm:$0xff]
        %v404 = vld [vmem:[%s338 + $0x88] sm:$0xff]
        %v405 = vld [vmem:[%s338 + $0x90] sm:$0xff]
        %v406 = vld [vmem:[%s338 + $0x98] sm:$0xff]
        %v407 = vld [vmem:[%s338 + $0xa0] sm:$0xff]
        %v408 = vld [vmem:[%s338 + $0xa8] sm:$0xff]
        %v409 = vld [vmem:[%s338 + $0xb0] sm:$0xff]
        %v410 = vld [vmem:[%s338 + $0xb8] sm:$0xff]
        %v411 = vld [vmem:[%s338 + $0xc0] sm:$0xff]
        %v412 = vld [vmem:[%s338 + $0xc8] sm:$0xff]
        %v413 = vld [vmem:[%s338 + $0xd0] sm:$0xff]
        %v414 = vld [vmem:[%s338 + $0xd8] sm:$0xff]
        %v415 = vld [vmem:[%s338 + $0xe0] sm:$0xff]
        %v416 = vld [vmem:[%s338 + $0xe8] sm:$0xff]
        %v417 = vld [vmem:[%s338 + $0xf0] sm:$0xff]
        %v418 = vld [vmem:[%s338 + $0xf8] sm:$0xff]
        %v419 = vpack.c.bf16 %v388, %v387
        %v420 = vpack.c.bf16 %v390, %v389
        %v421 = vpack.c.bf16 %v392, %v391
        %v422 = vpack.c.bf16 %v394, %v393
        %v423 = vpack.c.bf16 %v396, %v395
        %v424 = vpack.c.bf16 %v398, %v397
        %v425 = vpack.c.bf16 %v400, %v399
        %v426 = vpack.c.bf16 %v402, %v401
        %v427 = vpack.c.bf16 %v404, %v403
        %v428 = vpack.c.bf16 %v406, %v405
        %v429 = vpack.c.bf16 %v408, %v407
        %v430 = vpack.c.bf16 %v410, %v409
        %v431 = vpack.c.bf16 %v412, %v411
        %v432 = vpack.c.bf16 %v414, %v413
        %v433 = vpack.c.bf16 %v416, %v415
        %v434 = vpack.c.bf16 %v418, %v417
        %v435 = vld [vmem:[%s1] sm:$0xf]
        %v436 = vld [vmem:[%s1 + $0x4] sm:$0xf]
        %v437 = vld [vmem:[%s1 + $0x8] sm:$0xf]
        %v438 = vld [vmem:[%s1 + $0xc] sm:$0xf]
        %v439 = vld [vmem:[%s1 + $0x10] sm:$0xf]
        %v440 = vld [vmem:[%s1 + $0x14] sm:$0xf]
        %v441 = vld [vmem:[%s1 + $0x18] sm:$0xf]
        %v442 = vld [vmem:[%s1 + $0x1c] sm:$0xf]
        %v443 = vld [vmem:[%s1 + $0x20] sm:$0xf]
        %v444 = vld [vmem:[%s1 + $0x24] sm:$0xf]
        %v445 = vld [vmem:[%s1 + $0x28] sm:$0xf]
        %v446 = vld [vmem:[%s1 + $0x2c] sm:$0xf]
        %v447 = vld [vmem:[%s1 + $0x30] sm:$0xf]
        %v448 = vld [vmem:[%s1 + $0x34] sm:$0xf]
        %v449 = vld [vmem:[%s1 + $0x38] sm:$0xf]
        %v450 = vld [vmem:[%s1 + $0x3c] sm:$0xf]
        %v451 = vld [vmem:[%s2] sm:$0x1]
        %v453 = vperm.slane %v451, 0
        %v471 = vunpack.c.l.b16 %v435
        %v472 = vunpack.c.l.b16 %v436
        %v473 = vunpack.c.l.b16 %v437
        %v474 = vunpack.c.l.b16 %v438
        %v475 = vunpack.c.l.b16 %v439
        %v476 = vunpack.c.l.b16 %v440
        %v477 = vunpack.c.l.b16 %v441
        %v478 = vunpack.c.l.b16 %v442
        %v479 = vunpack.c.l.b16 %v443
        %v480 = vunpack.c.l.b16 %v444
        %v481 = vunpack.c.l.b16 %v445
        %v482 = vunpack.c.l.b16 %v446
        %v483 = vunpack.c.l.b16 %v447
        %v484 = vunpack.c.l.b16 %v448
        %v485 = vunpack.c.l.b16 %v449
        %v486 = vunpack.c.l.b16 %v450
        %v487 = vpack.c.b16 %v472, %v471
        %v488 = vpack.c.b16 %v474, %v473
        %v489 = vpack.c.b16 %v476, %v475
        %v490 = vpack.c.b16 %v478, %v477
        %v491 = vpack.c.b16 %v480, %v479
        %v492 = vpack.c.b16 %v482, %v481
        %v493 = vpack.c.b16 %v484, %v483
        %v494 = vpack.c.b16 %v486, %v485
        %503 = vmatpush.bf16.msra.mxu0 %v494
        %504 = vmatpush.bf16.msra.mxu0 %v493
        %505 = vmatpush.bf16.msra.mxu0 %v492
        %506 = vmatpush.bf16.msra.mxu0 %v491
        %507 = vmatpush.bf16.msra.mxu0 %v490
        %508 = vmatpush.bf16.msra.mxu0 %v489
        %509 = vmatpush.bf16.msra.mxu0 %v488
        %510 = vmatpush.bf16.msra.mxu0 %v487
        %511 = vmatmul.bf16.gmra.mxu0 %v419
        %v512 = vpop.f32.mrf.mxu0
        %v513 = vadd.f32 %v453, %v512
        %v514 = vpop.f32.mrf.mxu0
        %v515 = vadd.f32 %v453, %v514
        %516 = vmatmul.bf16.gmra.mxu0 %v420
        %v517 = vpop.f32.mrf.mxu0
        %v518 = vadd.f32 %v453, %v517
        %v519 = vpop.f32.mrf.mxu0
        %v520 = vadd.f32 %v453, %v519
        %521 = vmatmul.bf16.gmra.mxu0 %v421
        %v522 = vpop.f32.mrf.mxu0
        %v523 = vadd.f32 %v453, %v522
        %v524 = vpop.f32.mrf.mxu0
        %v525 = vadd.f32 %v453, %v524
        %526 = vmatmul.bf16.gmra.mxu0 %v422
        %v527 = vpop.f32.mrf.mxu0
        %v528 = vadd.f32 %v453, %v527
        %v529 = vpop.f32.mrf.mxu0
        %v530 = vadd.f32 %v453, %v529
        %531 = vmatmul.bf16.gmra.mxu0 %v423
        %v532 = vpop.f32.mrf.mxu0
        %v533 = vadd.f32 %v453, %v532
        %v534 = vpop.f32.mrf.mxu0
        %v535 = vadd.f32 %v453, %v534
        %536 = vmatmul.bf16.gmra.mxu0 %v424
        %v537 = vpop.f32.mrf.mxu0
        %v538 = vadd.f32 %v453, %v537
        %v539 = vpop.f32.mrf.mxu0
        %v540 = vadd.f32 %v453, %v539
        %541 = vmatmul.bf16.gmra.mxu0 %v425
        %v542 = vpop.f32.mrf.mxu0
        %v543 = vadd.f32 %v453, %v542
        %v544 = vpop.f32.mrf.mxu0
        %v545 = vadd.f32 %v453, %v544
        %546 = vmatmul.bf16.gmra.mxu0 %v426
        %v547 = vpop.f32.mrf.mxu0
        %v548 = vadd.f32 %v453, %v547
        %v549 = vpop.f32.mrf.mxu0
        %v550 = vadd.f32 %v453, %v549
        %551 = vmatmul.bf16.gmra.mxu0 %v427
        %v552 = vpop.f32.mrf.mxu0
        %v553 = vadd.f32 %v453, %v552
        %v554 = vpop.f32.mrf.mxu0
        %v555 = vadd.f32 %v453, %v554
        %556 = vmatmul.bf16.gmra.mxu0 %v428
        %v557 = vpop.f32.mrf.mxu0
        %v558 = vadd.f32 %v453, %v557
        %v559 = vpop.f32.mrf.mxu0
        %v560 = vadd.f32 %v453, %v559
        %561 = vmatmul.bf16.gmra.mxu0 %v429
        %v562 = vpop.f32.mrf.mxu0
        %v563 = vadd.f32 %v453, %v562
        %v564 = vpop.f32.mrf.mxu0
        %v565 = vadd.f32 %v453, %v564
        %566 = vmatmul.bf16.gmra.mxu0 %v430
        %v567 = vpop.f32.mrf.mxu0
        %v568 = vadd.f32 %v453, %v567
        %v569 = vpop.f32.mrf.mxu0
        %v570 = vadd.f32 %v453, %v569
        %571 = vmatmul.bf16.gmra.mxu0 %v431
        %v572 = vpop.f32.mrf.mxu0
        %v573 = vadd.f32 %v453, %v572
        %v574 = vpop.f32.mrf.mxu0
        %v575 = vadd.f32 %v453, %v574
        %576 = vmatmul.bf16.gmra.mxu0 %v432
        %v577 = vpop.f32.mrf.mxu0
        %v578 = vadd.f32 %v453, %v577
        %v579 = vpop.f32.mrf.mxu0
        %v580 = vadd.f32 %v453, %v579
        %581 = vmatmul.bf16.gmra.mxu0 %v433
        %v582 = vpop.f32.mrf.mxu0
        %v583 = vadd.f32 %v453, %v582
        %v584 = vpop.f32.mrf.mxu0
        %v585 = vadd.f32 %v453, %v584
        %586 = vmatmul.bf16.gmra.mxu0 %v434
        %v587 = vpop.f32.mrf.mxu0
        %v588 = vadd.f32 %v453, %v587
        %v589 = vpop.f32.mrf.mxu0
        %v590 = vadd.f32 %v453, %v589
        %591 = vdwg.mxu0
        %v592 = vmax.f32 %v513, 0.0
        %v593 = vmax.f32 %v515, 0.0
        %v594 = vmax.f32 %v518, 0.0
        %v595 = vmax.f32 %v520, 0.0
        %v596 = vmax.f32 %v523, 0.0
        %v597 = vmax.f32 %v525, 0.0
        %v598 = vmax.f32 %v528, 0.0
        %v599 = vmax.f32 %v530, 0.0
        %v600 = vmax.f32 %v533, 0.0
        %v601 = vmax.f32 %v535, 0.0
        %v602 = vmax.f32 %v538, 0.0
        %v603 = vmax.f32 %v540, 0.0
        %v604 = vmax.f32 %v543, 0.0
        %v605 = vmax.f32 %v545, 0.0
        %v606 = vmax.f32 %v548, 0.0
        %v607 = vmax.f32 %v550, 0.0
        %v608 = vmax.f32 %v553, 0.0
        %v609 = vmax.f32 %v555, 0.0
        %v610 = vmax.f32 %v558, 0.0
        %v611 = vmax.f32 %v560, 0.0
        %v612 = vmax.f32 %v563, 0.0
        %v613 = vmax.f32 %v565, 0.0
        %v614 = vmax.f32 %v568, 0.0
        %v615 = vmax.f32 %v570, 0.0
        %v616 = vmax.f32 %v573, 0.0
        %v617 = vmax.f32 %v575, 0.0
        %v618 = vmax.f32 %v578, 0.0
        %v619 = vmax.f32 %v580, 0.0
        %v620 = vmax.f32 %v583, 0.0
        %v621 = vmax.f32 %v585, 0.0
        %v622 = vmax.f32 %v588, 0.0
        %v623 = vmax.f32 %v590, 0.0
        %v624 = vpack.c.bf16 %v592, %v592
        %v625 = vpack.c.bf16 %v593, %v593
        %v626 = vpack.c.bf16 %v594, %v594
        %v627 = vpack.c.bf16 %v595, %v595
        %v628 = vpack.c.bf16 %v596, %v596
        %v629 = vpack.c.bf16 %v597, %v597
        %v630 = vpack.c.bf16 %v598, %v598
        %v631 = vpack.c.bf16 %v599, %v599
        %v632 = vpack.c.bf16 %v600, %v600
        %v633 = vpack.c.bf16 %v601, %v601
        %v634 = vpack.c.bf16 %v602, %v602
        %v635 = vpack.c.bf16 %v603, %v603
        %v636 = vpack.c.bf16 %v604, %v604
        %v637 = vpack.c.bf16 %v605, %v605
        %v638 = vpack.c.bf16 %v606, %v606
        %v639 = vpack.c.bf16 %v607, %v607
        %v640 = vpack.c.bf16 %v608, %v608
        %v641 = vpack.c.bf16 %v609, %v609
        %v642 = vpack.c.bf16 %v610, %v610
        %v643 = vpack.c.bf16 %v611, %v611
        %v644 = vpack.c.bf16 %v612, %v612
        %v645 = vpack.c.bf16 %v613, %v613
        %v646 = vpack.c.bf16 %v614, %v614
        %v647 = vpack.c.bf16 %v615, %v615
        %v648 = vpack.c.bf16 %v616, %v616
        %v649 = vpack.c.bf16 %v617, %v617
        %v650 = vpack.c.bf16 %v618, %v618
        %v651 = vpack.c.bf16 %v619, %v619
        %v652 = vpack.c.bf16 %v620, %v620
        %v653 = vpack.c.bf16 %v621, %v621
        %v654 = vpack.c.bf16 %v622, %v622
        %v655 = vpack.c.bf16 %v623, %v623
        %v688 = vrot.slane %v624, 2
        %v689 = vrot.slane %v625, 2
        %v690 = vrot.slane %v626, 2
        %v691 = vrot.slane %v627, 2
        %v692 = vrot.slane %v628, 2
        %v693 = vrot.slane %v629, 2
        %v694 = vrot.slane %v630, 2
        %v695 = vrot.slane %v631, 2
        %v696 = vrot.slane %v632, 2
        %v697 = vrot.slane %v633, 2
        %v698 = vrot.slane %v634, 2
        %v699 = vrot.slane %v635, 2
        %v700 = vrot.slane %v636, 2
        %v701 = vrot.slane %v637, 2
        %v702 = vrot.slane %v638, 2
        %v703 = vrot.slane %v639, 2
        %v704 = vrot.slane %v640, 2
        %v705 = vrot.slane %v641, 2
        %v706 = vrot.slane %v642, 2
        %v707 = vrot.slane %v643, 2
        %v708 = vrot.slane %v644, 2
        %v709 = vrot.slane %v645, 2
        %v710 = vrot.slane %v646, 2
        %v711 = vrot.slane %v647, 2
        %v712 = vrot.slane %v648, 2
        %v713 = vrot.slane %v649, 2
        %v714 = vrot.slane %v650, 2
        %v715 = vrot.slane %v651, 2
        %v716 = vrot.slane %v652, 2
        %v717 = vrot.slane %v653, 2
        %v718 = vrot.slane %v654, 2
        %v719 = vrot.slane %v655, 2
        %vm720 = vcmask 1041408
        %v723 = vsel %vm720, %v624, %v688
        %vm724 = vcmask 1043458
        %v725 = vsel %vm724, %v624, %v688
        %v727 = vrot.slane %v725, 2
        %v730 = vsel %vm720, %v625, %v689
        %v731 = vsel %vm724, %v625, %v689
        %v733 = vrot.slane %v731, 2
        %v736 = vsel %vm720, %v626, %v690
        %v737 = vsel %vm724, %v626, %v690
        %v739 = vrot.slane %v737, 2
        %v742 = vsel %vm720, %v627, %v691
        %v743 = vsel %vm724, %v627, %v691
        %v745 = vrot.slane %v743, 2
        %v748 = vsel %vm720, %v628, %v692
        %v749 = vsel %vm724, %v628, %v692
        %v751 = vrot.slane %v749, 2
        %v754 = vsel %vm720, %v629, %v693
        %v755 = vsel %vm724, %v629, %v693
        %v757 = vrot.slane %v755, 2
        %v760 = vsel %vm720, %v630, %v694
        %v761 = vsel %vm724, %v630, %v694
        %v763 = vrot.slane %v761, 2
        %v766 = vsel %vm720, %v631, %v695
        %v767 = vsel %vm724, %v631, %v695
        %v769 = vrot.slane %v767, 2
        %v772 = vsel %vm720, %v632, %v696
        %v773 = vsel %vm724, %v632, %v696
        %v775 = vrot.slane %v773, 2
        %v778 = vsel %vm720, %v633, %v697
        %v779 = vsel %vm724, %v633, %v697
        %v781 = vrot.slane %v779, 2
        %v784 = vsel %vm720, %v634, %v698
        %v785 = vsel %vm724, %v634, %v698
        %v787 = vrot.slane %v785, 2
        %v790 = vsel %vm720, %v635, %v699
        %v791 = vsel %vm724, %v635, %v699
        %v793 = vrot.slane %v791, 2
        %v796 = vsel %vm720, %v636, %v700
        %v797 = vsel %vm724, %v636, %v700
        %v799 = vrot.slane %v797, 2
        %v802 = vsel %vm720, %v637, %v701
        %v803 = vsel %vm724, %v637, %v701
        %v805 = vrot.slane %v803, 2
        %v808 = vsel %vm720, %v638, %v702
        %v809 = vsel %vm724, %v638, %v702
        %v811 = vrot.slane %v809, 2
        %v814 = vsel %vm720, %v639, %v703
        %v815 = vsel %vm724, %v639, %v703
        %v817 = vrot.slane %v815, 2
        %v820 = vsel %vm720, %v640, %v704
        %v821 = vsel %vm724, %v640, %v704
        %v823 = vrot.slane %v821, 2
        %v826 = vsel %vm720, %v641, %v705
        %v827 = vsel %vm724, %v641, %v705
        %v829 = vrot.slane %v827, 2
        %v832 = vsel %vm720, %v642, %v706
        %v833 = vsel %vm724, %v642, %v706
        %v835 = vrot.slane %v833, 2
        %v838 = vsel %vm720, %v643, %v707
        %v839 = vsel %vm724, %v643, %v707
        %v841 = vrot.slane %v839, 2
        %v844 = vsel %vm720, %v644, %v708
        %v845 = vsel %vm724, %v644, %v708
        %v847 = vrot.slane %v845, 2
        %v850 = vsel %vm720, %v645, %v709
        %v851 = vsel %vm724, %v645, %v709
        %v853 = vrot.slane %v851, 2
        %v856 = vsel %vm720, %v646, %v710
        %v857 = vsel %vm724, %v646, %v710
        %v859 = vrot.slane %v857, 2
        %v862 = vsel %vm720, %v647, %v711
        %v863 = vsel %vm724, %v647, %v711
        %v865 = vrot.slane %v863, 2
        %v868 = vsel %vm720, %v648, %v712
        %v869 = vsel %vm724, %v648, %v712
        %v871 = vrot.slane %v869, 2
        %v874 = vsel %vm720, %v649, %v713
        %v875 = vsel %vm724, %v649, %v713
        %v877 = vrot.slane %v875, 2
        %v880 = vsel %vm720, %v650, %v714
        %v881 = vsel %vm724, %v650, %v714
        %v883 = vrot.slane %v881, 2
        %v886 = vsel %vm720, %v651, %v715
        %v887 = vsel %vm724, %v651, %v715
        %v889 = vrot.slane %v887, 2
        %v892 = vsel %vm720, %v652, %v716
        %v893 = vsel %vm724, %v652, %v716
        %v895 = vrot.slane %v893, 2
        %v898 = vsel %vm720, %v653, %v717
        %v899 = vsel %vm724, %v653, %v717
        %v901 = vrot.slane %v899, 2
        %v904 = vsel %vm720, %v654, %v718
        %v905 = vsel %vm724, %v654, %v718
        %v907 = vrot.slane %v905, 2
        %v910 = vsel %vm720, %v655, %v719
        %v911 = vsel %vm724, %v655, %v719
        %v913 = vrot.slane %v911, 2
        %v914 = vld [vmem:[#allocation5] sm:$0x1]
        %v916 = vshrl.u32 0, 16
        %v918 = vrot.slane %v916, 7
        %v919 = vshll.u32 0, 16
        %v921 = vor.u32 %v918, %v919
        %v922 = vshrl.u32 %v723, 16
        %v924 = vrot.slane %v922, 7
        %v925 = vshll.u32 %v723, 16
        %v927 = vor.u32 %v924, %v925
        %v929 = vshrl.u32 %v727, 16
        %v931 = vrot.slane %v929, 7
        %v932 = vshll.u32 %v727, 16
        %v934 = vor.u32 %v931, %v932
        %v935 = vshrl.u32 %v730, 16
        %v937 = vrot.slane %v935, 7
        %v938 = vshll.u32 %v730, 16
        %v940 = vor.u32 %v937, %v938
        %v942 = vshrl.u32 %v733, 16
        %v944 = vrot.slane %v942, 7
        %v945 = vshll.u32 %v733, 16
        %v947 = vor.u32 %v944, %v945
        %v948 = vshrl.u32 %v736, 16
        %v950 = vrot.slane %v948, 7
        %v951 = vshll.u32 %v736, 16
        %v953 = vor.u32 %v950, %v951
        %v955 = vshrl.u32 %v739, 16
        %v957 = vrot.slane %v955, 7
        %v958 = vshll.u32 %v739, 16
        %v960 = vor.u32 %v957, %v958
        %v961 = vshrl.u32 %v742, 16
        %v963 = vrot.slane %v961, 7
        %v964 = vshll.u32 %v742, 16
        %v966 = vor.u32 %v963, %v964
        %v967 = vshrl.u32 %v748, 16
        %v969 = vrot.slane %v967, 7
        %v970 = vshll.u32 %v748, 16
        %v972 = vor.u32 %v969, %v970
        %v974 = vshrl.u32 %v751, 16
        %v976 = vrot.slane %v974, 7
        %v977 = vshll.u32 %v751, 16
        %v979 = vor.u32 %v976, %v977
        %v980 = vshrl.u32 %v754, 16
        %v982 = vrot.slane %v980, 7
        %v983 = vshll.u32 %v754, 16
        %v985 = vor.u32 %v982, %v983
        %v987 = vshrl.u32 %v757, 16
        %v989 = vrot.slane %v987, 7
        %v990 = vshll.u32 %v757, 16
        %v992 = vor.u32 %v989, %v990
        %v993 = vshrl.u32 %v760, 16
        %v995 = vrot.slane %v993, 7
        %v996 = vshll.u32 %v760, 16
        %v998 = vor.u32 %v995, %v996
        %v1000 = vshrl.u32 %v763, 16
        %v1002 = vrot.slane %v1000, 7
        %v1003 = vshll.u32 %v763, 16
        %v1005 = vor.u32 %v1002, %v1003
        %v1006 = vshrl.u32 %v766, 16
        %v1008 = vrot.slane %v1006, 7
        %v1009 = vshll.u32 %v766, 16
        %v1011 = vor.u32 %v1008, %v1009
        %v1012 = vshrl.u32 %v772, 16
        %v1014 = vrot.slane %v1012, 7
        %v1015 = vshll.u32 %v772, 16
        %v1017 = vor.u32 %v1014, %v1015
        %v1019 = vshrl.u32 %v775, 16
        %v1021 = vrot.slane %v1019, 7
        %v1022 = vshll.u32 %v775, 16
        %v1024 = vor.u32 %v1021, %v1022
        %v1025 = vshrl.u32 %v778, 16
        %v1027 = vrot.slane %v1025, 7
        %v1028 = vshll.u32 %v778, 16
        %v1030 = vor.u32 %v1027, %v1028
        %v1032 = vshrl.u32 %v781, 16
        %v1034 = vrot.slane %v1032, 7
        %v1035 = vshll.u32 %v781, 16
        %v1037 = vor.u32 %v1034, %v1035
        %v1038 = vshrl.u32 %v784, 16
        %v1040 = vrot.slane %v1038, 7
        %v1041 = vshll.u32 %v784, 16
        %v1043 = vor.u32 %v1040, %v1041
        %v1045 = vshrl.u32 %v787, 16
        %v1047 = vrot.slane %v1045, 7
        %v1048 = vshll.u32 %v787, 16
        %v1050 = vor.u32 %v1047, %v1048
        %v1051 = vshrl.u32 %v790, 16
        %v1053 = vrot.slane %v1051, 7
        %v1054 = vshll.u32 %v790, 16
        %v1056 = vor.u32 %v1053, %v1054
        %v1057 = vshrl.u32 %v796, 16
        %v1059 = vrot.slane %v1057, 7
        %v1060 = vshll.u32 %v796, 16
        %v1062 = vor.u32 %v1059, %v1060
        %v1064 = vshrl.u32 %v799, 16
        %v1066 = vrot.slane %v1064, 7
        %v1067 = vshll.u32 %v799, 16
        %v1069 = vor.u32 %v1066, %v1067
        %v1070 = vshrl.u32 %v802, 16
        %v1072 = vrot.slane %v1070, 7
        %v1073 = vshll.u32 %v802, 16
        %v1075 = vor.u32 %v1072, %v1073
        %v1077 = vshrl.u32 %v805, 16
        %v1079 = vrot.slane %v1077, 7
        %v1080 = vshll.u32 %v805, 16
        %v1082 = vor.u32 %v1079, %v1080
        %v1083 = vshrl.u32 %v808, 16
        %v1085 = vrot.slane %v1083, 7
        %v1086 = vshll.u32 %v808, 16
        %v1088 = vor.u32 %v1085, %v1086
        %v1090 = vshrl.u32 %v811, 16
        %v1092 = vrot.slane %v1090, 7
        %v1093 = vshll.u32 %v811, 16
        %v1095 = vor.u32 %v1092, %v1093
        %v1096 = vshrl.u32 %v814, 16
        %v1098 = vrot.slane %v1096, 7
        %v1099 = vshll.u32 %v814, 16
        %v1101 = vor.u32 %v1098, %v1099
        %v1102 = vshrl.u32 %v820, 16
        %v1104 = vrot.slane %v1102, 7
        %v1105 = vshll.u32 %v820, 16
        %v1107 = vor.u32 %v1104, %v1105
        %v1109 = vshrl.u32 %v823, 16
        %v1111 = vrot.slane %v1109, 7
        %v1112 = vshll.u32 %v823, 16
        %v1114 = vor.u32 %v1111, %v1112
        %v1115 = vshrl.u32 %v826, 16
        %v1117 = vrot.slane %v1115, 7
        %v1118 = vshll.u32 %v826, 16
        %v1120 = vor.u32 %v1117, %v1118
        %v1122 = vshrl.u32 %v829, 16
        %v1124 = vrot.slane %v1122, 7
        %v1125 = vshll.u32 %v829, 16
        %v1127 = vor.u32 %v1124, %v1125
        %v1128 = vshrl.u32 %v832, 16
        %v1130 = vrot.slane %v1128, 7
        %v1131 = vshll.u32 %v832, 16
        %v1133 = vor.u32 %v1130, %v1131
        %v1135 = vshrl.u32 %v835, 16
        %v1137 = vrot.slane %v1135, 7
        %v1138 = vshll.u32 %v835, 16
        %v1140 = vor.u32 %v1137, %v1138
        %v1141 = vshrl.u32 %v838, 16
        %v1143 = vrot.slane %v1141, 7
        %v1144 = vshll.u32 %v838, 16
        %v1146 = vor.u32 %v1143, %v1144
        %v1147 = vshrl.u32 %v844, 16
        %v1149 = vrot.slane %v1147, 7
        %v1150 = vshll.u32 %v844, 16
        %v1152 = vor.u32 %v1149, %v1150
        %v1154 = vshrl.u32 %v847, 16
        %v1156 = vrot.slane %v1154, 7
        %v1157 = vshll.u32 %v847, 16
        %v1159 = vor.u32 %v1156, %v1157
        %v1160 = vshrl.u32 %v850, 16
        %v1162 = vrot.slane %v1160, 7
        %v1163 = vshll.u32 %v850, 16
        %v1165 = vor.u32 %v1162, %v1163
        %v1167 = vshrl.u32 %v853, 16
        %v1169 = vrot.slane %v1167, 7
        %v1170 = vshll.u32 %v853, 16
        %v1172 = vor.u32 %v1169, %v1170
        %v1173 = vshrl.u32 %v856, 16
        %v1175 = vrot.slane %v1173, 7
        %v1176 = vshll.u32 %v856, 16
        %v1178 = vor.u32 %v1175, %v1176
        %v1180 = vshrl.u32 %v859, 16
        %v1182 = vrot.slane %v1180, 7
        %v1183 = vshll.u32 %v859, 16
        %v1185 = vor.u32 %v1182, %v1183
        %v1186 = vshrl.u32 %v862, 16
        %v1188 = vrot.slane %v1186, 7
        %v1189 = vshll.u32 %v862, 16
        %v1191 = vor.u32 %v1188, %v1189
        %v1192 = vshrl.u32 %v868, 16
        %v1194 = vrot.slane %v1192, 7
        %v1195 = vshll.u32 %v868, 16
        %v1197 = vor.u32 %v1194, %v1195
        %v1199 = vshrl.u32 %v871, 16
        %v1201 = vrot.slane %v1199, 7
        %v1202 = vshll.u32 %v871, 16
        %v1204 = vor.u32 %v1201, %v1202
        %v1205 = vshrl.u32 %v874, 16
        %v1207 = vrot.slane %v1205, 7
        %v1208 = vshll.u32 %v874, 16
        %v1210 = vor.u32 %v1207, %v1208
        %v1212 = vshrl.u32 %v877, 16
        %v1214 = vrot.slane %v1212, 7
        %v1215 = vshll.u32 %v877, 16
        %v1217 = vor.u32 %v1214, %v1215
        %v1218 = vshrl.u32 %v880, 16
        %v1220 = vrot.slane %v1218, 7
        %v1221 = vshll.u32 %v880, 16
        %v1223 = vor.u32 %v1220, %v1221
        %v1225 = vshrl.u32 %v883, 16
        %v1227 = vrot.slane %v1225, 7
        %v1228 = vshll.u32 %v883, 16
        %v1230 = vor.u32 %v1227, %v1228
        %v1231 = vshrl.u32 %v886, 16
        %v1233 = vrot.slane %v1231, 7
        %v1234 = vshll.u32 %v886, 16
        %v1236 = vor.u32 %v1233, %v1234
        %v1237 = vshrl.u32 %v892, 16
        %v1239 = vrot.slane %v1237, 7
        %v1240 = vshll.u32 %v892, 16
        %v1242 = vor.u32 %v1239, %v1240
        %v1244 = vshrl.u32 %v895, 16
        %v1246 = vrot.slane %v1244, 7
        %v1247 = vshll.u32 %v895, 16
        %v1249 = vor.u32 %v1246, %v1247
        %v1250 = vshrl.u32 %v898, 16
        %v1252 = vrot.slane %v1250, 7
        %v1253 = vshll.u32 %v898, 16
        %v1255 = vor.u32 %v1252, %v1253
        %v1257 = vshrl.u32 %v901, 16
        %v1259 = vrot.slane %v1257, 7
        %v1260 = vshll.u32 %v901, 16
        %v1262 = vor.u32 %v1259, %v1260
        %v1263 = vshrl.u32 %v904, 16
        %v1265 = vrot.slane %v1263, 7
        %v1266 = vshll.u32 %v904, 16
        %v1268 = vor.u32 %v1265, %v1266
        %v1270 = vshrl.u32 %v907, 16
        %v1272 = vrot.slane %v1270, 7
        %v1273 = vshll.u32 %v907, 16
        %v1275 = vor.u32 %v1272, %v1273
        %v1276 = vshrl.u32 %v910, 16
        %v1278 = vrot.slane %v1276, 7
        %v1279 = vshll.u32 %v910, 16
        %v1281 = vor.u32 %v1278, %v1279
        %vm1339 = vcmask 1040384
        %vm1340 = vsmask.f32 256
        %vm1341 = vmand %vm1339, %vm1340
        %v1342 = vsel %vm1341, 0, %v921
        %v1343 = vsel %vm1341, 0, %v927
        %v1344 = vsel %vm1341, 0, %v934
        %v1345 = vsel %vm1341, 0, %v940
        %v1346 = vsel %vm1341, 0, %v947
        %v1347 = vsel %vm1341, 0, %v953
        %v1348 = vsel %vm1341, 0, %v960
        %v1349 = vsel %vm1341, 0, %v966
        %v1350 = vsel %vm1341, 0, %v972
        %v1351 = vsel %vm1341, 0, %v979
        %v1352 = vsel %vm1341, 0, %v985
        %v1353 = vsel %vm1341, 0, %v992
        %v1354 = vsel %vm1341, 0, %v998
        %v1355 = vsel %vm1341, 0, %v1005
        %v1356 = vsel %vm1341, 0, %v1011
        %v1357 = vsel %vm1341, 0, %v1017
        %v1358 = vsel %vm1341, 0, %v1024
        %v1359 = vsel %vm1341, 0, %v1030
        %v1360 = vsel %vm1341, 0, %v1037
        %v1361 = vsel %vm1341, 0, %v1043
        %v1362 = vsel %vm1341, 0, %v1050
        %v1363 = vsel %vm1341, 0, %v1056
        %v1364 = vsel %vm1341, 0, %v1062
        %v1365 = vsel %vm1341, 0, %v1069
        %v1366 = vsel %vm1341, 0, %v1075
        %v1367 = vsel %vm1341, 0, %v1082
        %v1368 = vsel %vm1341, 0, %v1088
        %v1369 = vsel %vm1341, 0, %v1095
        %v1370 = vsel %vm1341, 0, %v1101
        %v1371 = vsel %vm1341, 0, %v1107
        %v1372 = vsel %vm1341, 0, %v1114
        %v1373 = vsel %vm1341, 0, %v1120
        %v1374 = vsel %vm1341, 0, %v1127
        %v1375 = vsel %vm1341, 0, %v1133
        %v1376 = vsel %vm1341, 0, %v1140
        %v1377 = vsel %vm1341, 0, %v1146
        %v1378 = vsel %vm1341, 0, %v1152
        %v1379 = vsel %vm1341, 0, %v1159
        %v1380 = vsel %vm1341, 0, %v1165
        %v1381 = vsel %vm1341, 0, %v1172
        %v1382 = vsel %vm1341, 0, %v1178
        %v1383 = vsel %vm1341, 0, %v1185
        %v1384 = vsel %vm1341, 0, %v1191
        %v1385 = vsel %vm1341, 0, %v1197
        %v1386 = vsel %vm1341, 0, %v1204
        %v1387 = vsel %vm1341, 0, %v1210
        %v1388 = vsel %vm1341, 0, %v1217
        %v1389 = vsel %vm1341, 0, %v1223
        %v1390 = vsel %vm1341, 0, %v1230
        %v1391 = vsel %vm1341, 0, %v1236
        %v1392 = vsel %vm1341, 0, %v1242
        %v1393 = vsel %vm1341, 0, %v1249
        %v1394 = vsel %vm1341, 0, %v1255
        %v1395 = vsel %vm1341, 0, %v1262
        %v1396 = vsel %vm1341, 0, %v1268
        %v1397 = vsel %vm1341, 0, %v1275
        %v1398 = vsel %vm1341, 0, %v1281
        %v1399 = vld [vmem:[%s3] sm:$0xf]
        %v1400 = vld [vmem:[%s3 + $0x4] sm:$0xf]
        %v1401 = vld [vmem:[%s3 + $0x8] sm:$0xf]
        %v1402 = vld [vmem:[%s3 + $0xc] sm:$0xf]
        %1404 = vst [vmem:[#allocation1] ss:$4 sm:$0xff] %v1342
        %s1406 = scalar_lea.vmem [#allocation1], 1
        %1407 = vst [vmem:[%s1406] ss:$4 sm:$0xff] %v1343
        %s1409 = scalar_lea.vmem [#allocation1], 2
        %1410 = vst [vmem:[%s1409] ss:$4 sm:$0xff] %v1344
        %s1412 = scalar_lea.vmem [#allocation1], 3
        %1413 = vst [vmem:[%s1412] ss:$4 sm:$0xff] %v1345
        %s1415 = scalar_lea.vmem [#allocation1], 32
        %1416 = vst [vmem:[%s1415] ss:$4 sm:$0xff] %v1346
        %s1418 = scalar_lea.vmem [#allocation1], 33
        %1419 = vst [vmem:[%s1418] ss:$4 sm:$0xff] %v1347
        %s1421 = scalar_lea.vmem [#allocation1], 34
        %1422 = vst [vmem:[%s1421] ss:$4 sm:$0xff] %v1348
        %s1424 = scalar_lea.vmem [#allocation1], 35
        %1425 = vst [vmem:[%s1424] ss:$4 sm:$0xff] %v1349
        %v1426 = vld.sshfl [vmem:[#allocation1] sm:$0xff pattern:$0x73625140]
        %v1427 = vld.sshfl [vmem:[#allocation1 + $0x20] sm:$0xff pattern:$0x73625140]
        %1428 = vst [vmem:[#allocation1] ss:$4 sm:$0xff] %v1342
        %1430 = vst [vmem:[%s1406] ss:$4 sm:$0xff] %v1350
        %1432 = vst [vmem:[%s1409] ss:$4 sm:$0xff] %v1351
        %1434 = vst [vmem:[%s1412] ss:$4 sm:$0xff] %v1352
        %1436 = vst [vmem:[%s1415] ss:$4 sm:$0xff] %v1353
        %1438 = vst [vmem:[%s1418] ss:$4 sm:$0xff] %v1354
        %1440 = vst [vmem:[%s1421] ss:$4 sm:$0xff] %v1355
        %1442 = vst [vmem:[%s1424] ss:$4 sm:$0xff] %v1356
        %v1443 = vld.sshfl [vmem:[#allocation1] sm:$0xff pattern:$0x73625140]
        %v1444 = vld.sshfl [vmem:[#allocation1 + $0x20] sm:$0xff pattern:$0x73625140]
        %1445 = vst [vmem:[#allocation1] ss:$4 sm:$0xff] %v1342
        %1447 = vst [vmem:[%s1406] ss:$4 sm:$0xff] %v1357
        %1449 = vst [vmem:[%s1409] ss:$4 sm:$0xff] %v1358
        %1451 = vst [vmem:[%s1412] ss:$4 sm:$0xff] %v1359
        %1453 = vst [vmem:[%s1415] ss:$4 sm:$0xff] %v1360
        %1455 = vst [vmem:[%s1418] ss:$4 sm:$0xff] %v1361
        %1457 = vst [vmem:[%s1421] ss:$4 sm:$0xff] %v1362
        %1459 = vst [vmem:[%s1424] ss:$4 sm:$0xff] %v1363
        %v1460 = vld.sshfl [vmem:[#allocation1] sm:$0xff pattern:$0x73625140]
        %v1461 = vld.sshfl [vmem:[#allocation1 + $0x20] sm:$0xff pattern:$0x73625140]
        %1462 = vst [vmem:[#allocation1] ss:$4 sm:$0xff] %v1342
        %1464 = vst [vmem:[%s1406] ss:$4 sm:$0xff] %v1364
        %1466 = vst [vmem:[%s1409] ss:$4 sm:$0xff] %v1365
        %1468 = vst [vmem:[%s1412] ss:$4 sm:$0xff] %v1366
        %1470 = vst [vmem:[%s1415] ss:$4 sm:$0xff] %v1367
        %1472 = vst [vmem:[%s1418] ss:$4 sm:$0xff] %v1368
        %1474 = vst [vmem:[%s1421] ss:$4 sm:$0xff] %v1369
        %1476 = vst [vmem:[%s1424] ss:$4 sm:$0xff] %v1370
        %v1477 = vld.sshfl [vmem:[#allocation1] sm:$0xff pattern:$0x73625140]
        %v1478 = vld.sshfl [vmem:[#allocation1 + $0x20] sm:$0xff pattern:$0x73625140]
        %1479 = vst [vmem:[#allocation1] ss:$4 sm:$0xff] %v1342
        %1481 = vst [vmem:[%s1406] ss:$4 sm:$0xff] %v1371
        %1483 = vst [vmem:[%s1409] ss:$4 sm:$0xff] %v1372
        %1485 = vst [vmem:[%s1412] ss:$4 sm:$0xff] %v1373
        %1487 = vst [vmem:[%s1415] ss:$4 sm:$0xff] %v1374
        %1489 = vst [vmem:[%s1418] ss:$4 sm:$0xff] %v1375
        %1491 = vst [vmem:[%s1421] ss:$4 sm:$0xff] %v1376
        %1493 = vst [vmem:[%s1424] ss:$4 sm:$0xff] %v1377
        %v1494 = vld.sshfl [vmem:[#allocation1] sm:$0xff pattern:$0x73625140]
        %v1495 = vld.sshfl [vmem:[#allocation1 + $0x20] sm:$0xff pattern:$0x73625140]
        %1496 = vst [vmem:[#allocation1] ss:$4 sm:$0xff] %v1342
        %1498 = vst [vmem:[%s1406] ss:$4 sm:$0xff] %v1378
        %1500 = vst [vmem:[%s1409] ss:$4 sm:$0xff] %v1379
        %1502 = vst [vmem:[%s1412] ss:$4 sm:$0xff] %v1380
        %1504 = vst [vmem:[%s1415] ss:$4 sm:$0xff] %v1381
        %1506 = vst [vmem:[%s1418] ss:$4 sm:$0xff] %v1382
        %1508 = vst [vmem:[%s1421] ss:$4 sm:$0xff] %v1383
        %1510 = vst [vmem:[%s1424] ss:$4 sm:$0xff] %v1384
        %v1511 = vld.sshfl [vmem:[#allocation1] sm:$0xff pattern:$0x73625140]
        %v1512 = vld.sshfl [vmem:[#allocation1 + $0x20] sm:$0xff pattern:$0x73625140]
        %1513 = vst [vmem:[#allocation1] ss:$4 sm:$0xff] %v1342
        %1515 = vst [vmem:[%s1406] ss:$4 sm:$0xff] %v1385
        %1517 = vst [vmem:[%s1409] ss:$4 sm:$0xff] %v1386
        %1519 = vst [vmem:[%s1412] ss:$4 sm:$0xff] %v1387
        %1521 = vst [vmem:[%s1415] ss:$4 sm:$0xff] %v1388
        %1523 = vst [vmem:[%s1418] ss:$4 sm:$0xff] %v1389
        %1525 = vst [vmem:[%s1421] ss:$4 sm:$0xff] %v1390
        %1527 = vst [vmem:[%s1424] ss:$4 sm:$0xff] %v1391
        %v1528 = vld.sshfl [vmem:[#allocation1] sm:$0xff pattern:$0x73625140]
        %v1529 = vld.sshfl [vmem:[#allocation1 + $0x20] sm:$0xff pattern:$0x73625140]
        %1530 = vst [vmem:[#allocation1] ss:$4 sm:$0xff] %v1342
        %1532 = vst [vmem:[%s1406] ss:$4 sm:$0xff] %v1392
        %1534 = vst [vmem:[%s1409] ss:$4 sm:$0xff] %v1393
        %1536 = vst [vmem:[%s1412] ss:$4 sm:$0xff] %v1394
        %1538 = vst [vmem:[%s1415] ss:$4 sm:$0xff] %v1395
        %1540 = vst [vmem:[%s1418] ss:$4 sm:$0xff] %v1396
        %1542 = vst [vmem:[%s1421] ss:$4 sm:$0xff] %v1397
        %1544 = vst [vmem:[%s1424] ss:$4 sm:$0xff] %v1398
        %v1545 = vld.sshfl [vmem:[#allocation1] sm:$0xff pattern:$0x73625140]
        %v1546 = vld.sshfl [vmem:[#allocation1 + $0x20] sm:$0xff pattern:$0x73625140]
        %v1551 = vunpack.c.l.b16 %v1399
        %v1552 = vunpack.c.l.b16 %v1400
        %v1553 = vunpack.c.l.b16 %v1401
        %v1554 = vunpack.c.l.b16 %v1402
        %v1555 = vpack.c.b16 %v1552, %v1551
        %v1556 = vpack.c.b16 %v1554, %v1553
        %vm1559 = vcmask 261120
        %v1560 = vsel %vm1559, %v1426, 0
        %v1562 = vsel %vm1559, %v1427, 0
        %v1564 = vsel %vm1559, %v1443, 0
        %v1566 = vsel %vm1559, %v1444, 0
        %v1568 = vsel %vm1559, %v1460, 0
        %v1570 = vsel %vm1559, %v1461, 0
        %v1572 = vsel %vm1559, %v1477, 0
        %v1574 = vsel %vm1559, %v1478, 0
        %v1576 = vsel %vm1559, %v1494, 0
        %v1578 = vsel %vm1559, %v1495, 0
        %v1580 = vsel %vm1559, %v1511, 0
        %v1582 = vsel %vm1559, %v1512, 0
        %v1584 = vsel %vm1559, %v1528, 0
        %v1586 = vsel %vm1559, %v1529, 0
        %v1588 = vsel %vm1559, %v1545, 0
        %v1590 = vsel %vm1559, %v1546, 0
        %1592 = vmatpush.bf16.msra.mxu0 0
        %1593 = vmatpush.bf16.msra.mxu0 0
        %1594 = vmatpush.bf16.msra.mxu0 0
        %1595 = vmatpush.bf16.msra.mxu0 0
        %1596 = vmatpush.bf16.msra.mxu0 0
        %1597 = vmatpush.bf16.msra.mxu0 0
        %1598 = vmatpush.bf16.msra.mxu0 %v1556
        %1599 = vmatpush.bf16.msra.mxu0 %v1555
        %1600 = vmatmul.bf16.gmra.mxu0 %v1560
        %v1601 = vpop.f32.mrf.mxu0
        %v1602 = vadd.f32 0.0, %v1601
        %v1603 = vpop.f32.mrf.mxu0
        %v1604 = vadd.f32 0.0, %v1603
        %1605 = vmatmul.bf16.gmra.mxu0 %v1562
        %v1606 = vpop.f32.mrf.mxu0
        %v1607 = vadd.f32 0.0, %v1606
        %v1608 = vpop.f32.mrf.mxu0
        %v1609 = vadd.f32 0.0, %v1608
        %1610 = vmatmul.bf16.gmra.mxu0 %v1564
        %v1611 = vpop.f32.mrf.mxu0
        %v1612 = vadd.f32 0.0, %v1611
        %v1613 = vpop.f32.mrf.mxu0
        %v1614 = vadd.f32 0.0, %v1613
        %1615 = vmatmul.bf16.gmra.mxu0 %v1566
        %v1616 = vpop.f32.mrf.mxu0
        %v1617 = vadd.f32 0.0, %v1616
        %v1618 = vpop.f32.mrf.mxu0
        %v1619 = vadd.f32 0.0, %v1618
        %1620 = vmatmul.bf16.gmra.mxu0 %v1568
        %v1621 = vpop.f32.mrf.mxu0
        %v1622 = vadd.f32 0.0, %v1621
        %v1623 = vpop.f32.mrf.mxu0
        %v1624 = vadd.f32 0.0, %v1623
        %1625 = vmatmul.bf16.gmra.mxu0 %v1570
        %v1626 = vpop.f32.mrf.mxu0
        %v1627 = vadd.f32 0.0, %v1626
        %v1628 = vpop.f32.mrf.mxu0
        %v1629 = vadd.f32 0.0, %v1628
        %1630 = vmatmul.bf16.gmra.mxu0 %v1572
        %v1631 = vpop.f32.mrf.mxu0
        %v1632 = vadd.f32 0.0, %v1631
        %v1633 = vpop.f32.mrf.mxu0
        %v1634 = vadd.f32 0.0, %v1633
        %1635 = vmatmul.bf16.gmra.mxu0 %v1574
        %v1636 = vpop.f32.mrf.mxu0
        %v1637 = vadd.f32 0.0, %v1636
        %v1638 = vpop.f32.mrf.mxu0
        %v1639 = vadd.f32 0.0, %v1638
        %1640 = vmatmul.bf16.gmra.mxu0 %v1576
        %v1641 = vpop.f32.mrf.mxu0
        %v1642 = vadd.f32 0.0, %v1641
        %v1643 = vpop.f32.mrf.mxu0
        %v1644 = vadd.f32 0.0, %v1643
        %1645 = vmatmul.bf16.gmra.mxu0 %v1578
        %v1646 = vpop.f32.mrf.mxu0
        %v1647 = vadd.f32 0.0, %v1646
        %v1648 = vpop.f32.mrf.mxu0
        %v1649 = vadd.f32 0.0, %v1648
        %1650 = vmatmul.bf16.gmra.mxu0 %v1580
        %v1651 = vpop.f32.mrf.mxu0
        %v1652 = vadd.f32 0.0, %v1651
        %v1653 = vpop.f32.mrf.mxu0
        %v1654 = vadd.f32 0.0, %v1653
        %1655 = vmatmul.bf16.gmra.mxu0 %v1582
        %v1656 = vpop.f32.mrf.mxu0
        %v1657 = vadd.f32 0.0, %v1656
        %v1658 = vpop.f32.mrf.mxu0
        %v1659 = vadd.f32 0.0, %v1658
        %1660 = vmatmul.bf16.gmra.mxu0 %v1584
        %v1661 = vpop.f32.mrf.mxu0
        %v1662 = vadd.f32 0.0, %v1661
        %v1663 = vpop.f32.mrf.mxu0
        %v1664 = vadd.f32 0.0, %v1663
        %1665 = vmatmul.bf16.gmra.mxu0 %v1586
        %v1666 = vpop.f32.mrf.mxu0
        %v1667 = vadd.f32 0.0, %v1666
        %v1668 = vpop.f32.mrf.mxu0
        %v1669 = vadd.f32 0.0, %v1668
        %1670 = vmatmul.bf16.gmra.mxu0 %v1588
        %v1671 = vpop.f32.mrf.mxu0
        %v1672 = vadd.f32 0.0, %v1671
        %v1673 = vpop.f32.mrf.mxu0
        %v1674 = vadd.f32 0.0, %v1673
        %1675 = vmatmul.bf16.gmra.mxu0 %v1590
        %v1676 = vpop.f32.mrf.mxu0
        %v1677 = vadd.f32 0.0, %v1676
        %v1678 = vpop.f32.mrf.mxu0
        %v1679 = vadd.f32 0.0, %v1678
        %1680 = vdwg.mxu0
        %v1682 = vperm.slane %v914, 0
        %v1684 = vadd.f32 %v1682, %v1602
        %v1685 = vadd.f32 %v1682, %v1604
        %v1686 = vadd.f32 %v1682, %v1607
        %v1687 = vadd.f32 %v1682, %v1609
        %v1688 = vadd.f32 %v1682, %v1612
        %v1689 = vadd.f32 %v1682, %v1614
        %v1690 = vadd.f32 %v1682, %v1617
        %v1691 = vadd.f32 %v1682, %v1619
        %v1692 = vadd.f32 %v1682, %v1622
        %v1693 = vadd.f32 %v1682, %v1624
        %v1694 = vadd.f32 %v1682, %v1627
        %v1695 = vadd.f32 %v1682, %v1629
        %v1696 = vadd.f32 %v1682, %v1632
        %v1697 = vadd.f32 %v1682, %v1634
        %v1698 = vadd.f32 %v1682, %v1637
        %v1699 = vadd.f32 %v1682, %v1639
        %v1700 = vadd.f32 %v1682, %v1642
        %v1701 = vadd.f32 %v1682, %v1644
        %v1702 = vadd.f32 %v1682, %v1647
        %v1703 = vadd.f32 %v1682, %v1649
        %v1704 = vadd.f32 %v1682, %v1652
        %v1705 = vadd.f32 %v1682, %v1654
        %v1706 = vadd.f32 %v1682, %v1657
        %v1707 = vadd.f32 %v1682, %v1659
        %v1708 = vadd.f32 %v1682, %v1662
        %v1709 = vadd.f32 %v1682, %v1664
        %v1710 = vadd.f32 %v1682, %v1667
        %v1711 = vadd.f32 %v1682, %v1669
        %v1712 = vadd.f32 %v1682, %v1672
        %v1713 = vadd.f32 %v1682, %v1674
        %v1714 = vadd.f32 %v1682, %v1677
        %v1715 = vadd.f32 %v1682, %v1679
        %s1716 = scalar_lea.vmem %s3, 16
        %v1717 = vld [vmem:[%s1716] sm:$0xf]
        %v1718 = vld [vmem:[%s1716 + $0x4] sm:$0xf]
        %v1719 = vld [vmem:[%s1716 + $0x8] sm:$0xf]
        %v1720 = vld [vmem:[%s1716 + $0xc] sm:$0xf]
        %1721 = vst [vmem:[#allocation1] ss:$4 sm:$0xff] 0
        %s1722 = scalar_lea.vmem [#allocation1], 1
        %1723 = vst [vmem:[%s1722] ss:$4 sm:$0xff] %v723
        %s1724 = scalar_lea.vmem [#allocation1], 2
        %1725 = vst [vmem:[%s1724] ss:$4 sm:$0xff] %v727
        %s1726 = scalar_lea.vmem [#allocation1], 3
        %1727 = vst [vmem:[%s1726] ss:$4 sm:$0xff] %v730
        %s1728 = scalar_lea.vmem [#allocation1], 32
        %1729 = vst [vmem:[%s1728] ss:$4 sm:$0xff] %v733
        %s1730 = scalar_lea.vmem [#allocation1], 33
        %1731 = vst [vmem:[%s1730] ss:$4 sm:$0xff] %v736
        %s1732 = scalar_lea.vmem [#allocation1], 34
        %1733 = vst [vmem:[%s1732] ss:$4 sm:$0xff] %v739
        %s1734 = scalar_lea.vmem [#allocation1], 35
        %1735 = vst [vmem:[%s1734] ss:$4 sm:$0xff] %v742
        %v1736 = vld.sshfl [vmem:[#allocation1] sm:$0xff pattern:$0x73625140]
        %v1737 = vld.sshfl [vmem:[#allocation1 + $0x20] sm:$0xff pattern:$0x73625140]
        %1738 = vst [vmem:[#allocation1] ss:$4 sm:$0xff] 0
        %1739 = vst [vmem:[%s1722] ss:$4 sm:$0xff] %v748
        %1740 = vst [vmem:[%s1724] ss:$4 sm:$0xff] %v751
        %1741 = vst [vmem:[%s1726] ss:$4 sm:$0xff] %v754
        %1742 = vst [vmem:[%s1728] ss:$4 sm:$0xff] %v757
        %1743 = vst [vmem:[%s1730] ss:$4 sm:$0xff] %v760
        %1744 = vst [vmem:[%s1732] ss:$4 sm:$0xff] %v763
        %1745 = vst [vmem:[%s1734] ss:$4 sm:$0xff] %v766
        %v1746 = vld.sshfl [vmem:[#allocation1] sm:$0xff pattern:$0x73625140]
        %v1747 = vld.sshfl [vmem:[#allocation1 + $0x20] sm:$0xff pattern:$0x73625140]
        %1748 = vst [vmem:[#allocation1] ss:$4 sm:$0xff] 0
        %1749 = vst [vmem:[%s1722] ss:$4 sm:$0xff] %v772
        %1750 = vst [vmem:[%s1724] ss:$4 sm:$0xff] %v775
        %1751 = vst [vmem:[%s1726] ss:$4 sm:$0xff] %v778
        %1752 = vst [vmem:[%s1728] ss:$4 sm:$0xff] %v781
        %1753 = vst [vmem:[%s1730] ss:$4 sm:$0xff] %v784
        %1754 = vst [vmem:[%s1732] ss:$4 sm:$0xff] %v787
        %1755 = vst [vmem:[%s1734] ss:$4 sm:$0xff] %v790
        %v1756 = vld.sshfl [vmem:[#allocation1] sm:$0xff pattern:$0x73625140]
        %v1757 = vld.sshfl [vmem:[#allocation1 + $0x20] sm:$0xff pattern:$0x73625140]
        %1758 = vst [vmem:[#allocation1] ss:$4 sm:$0xff] 0
        %1759 = vst [vmem:[%s1722] ss:$4 sm:$0xff] %v796
        %1760 = vst [vmem:[%s1724] ss:$4 sm:$0xff] %v799
        %1761 = vst [vmem:[%s1726] ss:$4 sm:$0xff] %v802
        %1762 = vst [vmem:[%s1728] ss:$4 sm:$0xff] %v805
        %1763 = vst [vmem:[%s1730] ss:$4 sm:$0xff] %v808
        %1764 = vst [vmem:[%s1732] ss:$4 sm:$0xff] %v811
        %1765 = vst [vmem:[%s1734] ss:$4 sm:$0xff] %v814
        %v1766 = vld.sshfl [vmem:[#allocation1] sm:$0xff pattern:$0x73625140]
        %v1767 = vld.sshfl [vmem:[#allocation1 + $0x20] sm:$0xff pattern:$0x73625140]
        %1768 = vst [vmem:[#allocation1] ss:$4 sm:$0xff] 0
        %1769 = vst [vmem:[%s1722] ss:$4 sm:$0xff] %v820
        %1770 = vst [vmem:[%s1724] ss:$4 sm:$0xff] %v823
        %1771 = vst [vmem:[%s1726] ss:$4 sm:$0xff] %v826
        %1772 = vst [vmem:[%s1728] ss:$4 sm:$0xff] %v829
        %1773 = vst [vmem:[%s1730] ss:$4 sm:$0xff] %v832
        %1774 = vst [vmem:[%s1732] ss:$4 sm:$0xff] %v835
        %1775 = vst [vmem:[%s1734] ss:$4 sm:$0xff] %v838
        %v1776 = vld.sshfl [vmem:[#allocation1] sm:$0xff pattern:$0x73625140]
        %v1777 = vld.sshfl [vmem:[#allocation1 + $0x20] sm:$0xff pattern:$0x73625140]
        %1778 = vst [vmem:[#allocation1] ss:$4 sm:$0xff] 0
        %1779 = vst [vmem:[%s1722] ss:$4 sm:$0xff] %v844
        %1780 = vst [vmem:[%s1724] ss:$4 sm:$0xff] %v847
        %1781 = vst [vmem:[%s1726] ss:$4 sm:$0xff] %v850
        %1782 = vst [vmem:[%s1728] ss:$4 sm:$0xff] %v853
        %1783 = vst [vmem:[%s1730] ss:$4 sm:$0xff] %v856
        %1784 = vst [vmem:[%s1732] ss:$4 sm:$0xff] %v859
        %1785 = vst [vmem:[%s1734] ss:$4 sm:$0xff] %v862
        %v1786 = vld.sshfl [vmem:[#allocation1] sm:$0xff pattern:$0x73625140]
        %v1787 = vld.sshfl [vmem:[#allocation1 + $0x20] sm:$0xff pattern:$0x73625140]
        %1788 = vst [vmem:[#allocation1] ss:$4 sm:$0xff] 0
        %1789 = vst [vmem:[%s1722] ss:$4 sm:$0xff] %v868
        %1790 = vst [vmem:[%s1724] ss:$4 sm:$0xff] %v871
        %1791 = vst [vmem:[%s1726] ss:$4 sm:$0xff] %v874
        %1792 = vst [vmem:[%s1728] ss:$4 sm:$0xff] %v877
        %1793 = vst [vmem:[%s1730] ss:$4 sm:$0xff] %v880
        %1794 = vst [vmem:[%s1732] ss:$4 sm:$0xff] %v883
        %1795 = vst [vmem:[%s1734] ss:$4 sm:$0xff] %v886
        %v1796 = vld.sshfl [vmem:[#allocation1] sm:$0xff pattern:$0x73625140]
        %v1797 = vld.sshfl [vmem:[#allocation1 + $0x20] sm:$0xff pattern:$0x73625140]
        %1798 = vst [vmem:[#allocation1] ss:$4 sm:$0xff] 0
        %1799 = vst [vmem:[%s1722] ss:$4 sm:$0xff] %v892
        %1800 = vst [vmem:[%s1724] ss:$4 sm:$0xff] %v895
        %1801 = vst [vmem:[%s1726] ss:$4 sm:$0xff] %v898
        %1802 = vst [vmem:[%s1728] ss:$4 sm:$0xff] %v901
        %1803 = vst [vmem:[%s1730] ss:$4 sm:$0xff] %v904
        %1804 = vst [vmem:[%s1732] ss:$4 sm:$0xff] %v907
        %1805 = vst [vmem:[%s1734] ss:$4 sm:$0xff] %v910
        %v1806 = vld.sshfl [vmem:[#allocation1] sm:$0xff pattern:$0x73625140]
        %v1807 = vld.sshfl [vmem:[#allocation1 + $0x20] sm:$0xff pattern:$0x73625140]
        %v1812 = vunpack.c.l.b16 %v1717
        %v1813 = vunpack.c.l.b16 %v1718
        %v1814 = vunpack.c.l.b16 %v1719
        %v1815 = vunpack.c.l.b16 %v1720
        %v1816 = vpack.c.b16 %v1813, %v1812
        %v1817 = vpack.c.b16 %v1815, %v1814
        %v1820 = vsel %vm1559, %v1736, 0
        %v1822 = vsel %vm1559, %v1737, 0
        %v1824 = vsel %vm1559, %v1746, 0
        %v1826 = vsel %vm1559, %v1747, 0
        %v1828 = vsel %vm1559, %v1756, 0
        %v1830 = vsel %vm1559, %v1757, 0
        %v1832 = vsel %vm1559, %v1766, 0
        %v1834 = vsel %vm1559, %v1767, 0
        %v1836 = vsel %vm1559, %v1776, 0
        %v1838 = vsel %vm1559, %v1777, 0
        %v1840 = vsel %vm1559, %v1786, 0
        %v1842 = vsel %vm1559, %v1787, 0
        %v1844 = vsel %vm1559, %v1796, 0
        %v1846 = vsel %vm1559, %v1797, 0
        %v1848 = vsel %vm1559, %v1806, 0
        %v1850 = vsel %vm1559, %v1807, 0
        %1852 = vmatpush.bf16.msra.mxu0 0
        %1853 = vmatpush.bf16.msra.mxu0 0
        %1854 = vmatpush.bf16.msra.mxu0 0
        %1855 = vmatpush.bf16.msra.mxu0 0
        %1856 = vmatpush.bf16.msra.mxu0 0
        %1857 = vmatpush.bf16.msra.mxu0 0
        %1858 = vmatpush.bf16.msra.mxu0 %v1817
        %1859 = vmatpush.bf16.msra.mxu0 %v1816
        %1860 = vmatmul.bf16.gmra.mxu0 %v1820
        %v1861 = vpop.f32.mrf.mxu0
        %v1862 = vadd.f32 0.0, %v1861
        %v1863 = vpop.f32.mrf.mxu0
        %v1864 = vadd.f32 0.0, %v1863
        %1865 = vmatmul.bf16.gmra.mxu0 %v1822
        %v1866 = vpop.f32.mrf.mxu0
        %v1867 = vadd.f32 0.0, %v1866
        %v1868 = vpop.f32.mrf.mxu0
        %v1869 = vadd.f32 0.0, %v1868
        %1870 = vmatmul.bf16.gmra.mxu0 %v1824
        %v1871 = vpop.f32.mrf.mxu0
        %v1872 = vadd.f32 0.0, %v1871
        %v1873 = vpop.f32.mrf.mxu0
        %v1874 = vadd.f32 0.0, %v1873
        %1875 = vmatmul.bf16.gmra.mxu0 %v1826
        %v1876 = vpop.f32.mrf.mxu0
        %v1877 = vadd.f32 0.0, %v1876
        %v1878 = vpop.f32.mrf.mxu0
        %v1879 = vadd.f32 0.0, %v1878
        %1880 = vmatmul.bf16.gmra.mxu0 %v1828
        %v1881 = vpop.f32.mrf.mxu0
        %v1882 = vadd.f32 0.0, %v1881
        %v1883 = vpop.f32.mrf.mxu0
        %v1884 = vadd.f32 0.0, %v1883
        %1885 = vmatmul.bf16.gmra.mxu0 %v1830
        %v1886 = vpop.f32.mrf.mxu0
        %v1887 = vadd.f32 0.0, %v1886
        %v1888 = vpop.f32.mrf.mxu0
        %v1889 = vadd.f32 0.0, %v1888
        %1890 = vmatmul.bf16.gmra.mxu0 %v1832
        %v1891 = vpop.f32.mrf.mxu0
        %v1892 = vadd.f32 0.0, %v1891
        %v1893 = vpop.f32.mrf.mxu0
        %v1894 = vadd.f32 0.0, %v1893
        %1895 = vmatmul.bf16.gmra.mxu0 %v1834
        %v1896 = vpop.f32.mrf.mxu0
        %v1897 = vadd.f32 0.0, %v1896
        %v1898 = vpop.f32.mrf.mxu0
        %v1899 = vadd.f32 0.0, %v1898
        %1900 = vmatmul.bf16.gmra.mxu0 %v1836
        %v1901 = vpop.f32.mrf.mxu0
        %v1902 = vadd.f32 0.0, %v1901
        %v1903 = vpop.f32.mrf.mxu0
        %v1904 = vadd.f32 0.0, %v1903
        %1905 = vmatmul.bf16.gmra.mxu0 %v1838
        %v1906 = vpop.f32.mrf.mxu0
        %v1907 = vadd.f32 0.0, %v1906
        %v1908 = vpop.f32.mrf.mxu0
        %v1909 = vadd.f32 0.0, %v1908
        %1910 = vmatmul.bf16.gmra.mxu0 %v1840
        %v1911 = vpop.f32.mrf.mxu0
        %v1912 = vadd.f32 0.0, %v1911
        %v1913 = vpop.f32.mrf.mxu0
        %v1914 = vadd.f32 0.0, %v1913
        %1915 = vmatmul.bf16.gmra.mxu0 %v1842
        %v1916 = vpop.f32.mrf.mxu0
        %v1917 = vadd.f32 0.0, %v1916
        %v1918 = vpop.f32.mrf.mxu0
        %v1919 = vadd.f32 0.0, %v1918
        %1920 = vmatmul.bf16.gmra.mxu0 %v1844
        %v1921 = vpop.f32.mrf.mxu0
        %v1922 = vadd.f32 0.0, %v1921
        %v1923 = vpop.f32.mrf.mxu0
        %v1924 = vadd.f32 0.0, %v1923
        %1925 = vmatmul.bf16.gmra.mxu0 %v1846
        %v1926 = vpop.f32.mrf.mxu0
        %v1927 = vadd.f32 0.0, %v1926
        %v1928 = vpop.f32.mrf.mxu0
        %v1929 = vadd.f32 0.0, %v1928
        %1930 = vmatmul.bf16.gmra.mxu0 %v1848
        %v1931 = vpop.f32.mrf.mxu0
        %v1932 = vadd.f32 0.0, %v1931
        %v1933 = vpop.f32.mrf.mxu0
        %v1934 = vadd.f32 0.0, %v1933
        %1935 = vmatmul.bf16.gmra.mxu0 %v1850
        %v1936 = vpop.f32.mrf.mxu0
        %v1937 = vadd.f32 0.0, %v1936
        %v1938 = vpop.f32.mrf.mxu0
        %v1939 = vadd.f32 0.0, %v1938
        %1940 = vdwg.mxu0
        %v1941 = vadd.f32 %v1684, %v1862
        %v1942 = vadd.f32 %v1685, %v1864
        %v1943 = vadd.f32 %v1686, %v1867
        %v1944 = vadd.f32 %v1687, %v1869
        %v1945 = vadd.f32 %v1688, %v1872
        %v1946 = vadd.f32 %v1689, %v1874
        %v1947 = vadd.f32 %v1690, %v1877
        %v1948 = vadd.f32 %v1691, %v1879
        %v1949 = vadd.f32 %v1692, %v1882
        %v1950 = vadd.f32 %v1693, %v1884
        %v1951 = vadd.f32 %v1694, %v1887
        %v1952 = vadd.f32 %v1695, %v1889
        %v1953 = vadd.f32 %v1696, %v1892
        %v1954 = vadd.f32 %v1697, %v1894
        %v1955 = vadd.f32 %v1698, %v1897
        %v1956 = vadd.f32 %v1699, %v1899
        %v1957 = vadd.f32 %v1700, %v1902
        %v1958 = vadd.f32 %v1701, %v1904
        %v1959 = vadd.f32 %v1702, %v1907
        %v1960 = vadd.f32 %v1703, %v1909
        %v1961 = vadd.f32 %v1704, %v1912
        %v1962 = vadd.f32 %v1705, %v1914
        %v1963 = vadd.f32 %v1706, %v1917
        %v1964 = vadd.f32 %v1707, %v1919
        %v1965 = vadd.f32 %v1708, %v1922
        %v1966 = vadd.f32 %v1709, %v1924
        %v1967 = vadd.f32 %v1710, %v1927
        %v1968 = vadd.f32 %v1711, %v1929
        %v1969 = vadd.f32 %v1712, %v1932
        %v1970 = vadd.f32 %v1713, %v1934
        %v1971 = vadd.f32 %v1714, %v1937
        %v1972 = vadd.f32 %v1715, %v1939
        %v1973 = vrot.slane %v919, 1
        %v1974 = vor.u32 %v916, %v1973
        %v1975 = vrot.slane %v925, 1
        %v1976 = vor.u32 %v922, %v1975
        %v1977 = vrot.slane %v932, 1
        %v1978 = vor.u32 %v929, %v1977
        %v1979 = vrot.slane %v938, 1
        %v1980 = vor.u32 %v935, %v1979
        %v1981 = vrot.slane %v945, 1
        %v1982 = vor.u32 %v942, %v1981
        %v1983 = vrot.slane %v951, 1
        %v1984 = vor.u32 %v948, %v1983
        %v1985 = vrot.slane %v958, 1
        %v1986 = vor.u32 %v955, %v1985
        %v1987 = vrot.slane %v964, 1
        %v1988 = vor.u32 %v961, %v1987
        %v1989 = vrot.slane %v970, 1
        %v1990 = vor.u32 %v967, %v1989
        %v1991 = vrot.slane %v977, 1
        %v1992 = vor.u32 %v974, %v1991
        %v1993 = vrot.slane %v983, 1
        %v1994 = vor.u32 %v980, %v1993
        %v1995 = vrot.slane %v990, 1
        %v1996 = vor.u32 %v987, %v1995
        %v1997 = vrot.slane %v996, 1
        %v1998 = vor.u32 %v993, %v1997
        %v1999 = vrot.slane %v1003, 1
        %v2000 = vor.u32 %v1000, %v1999
        %v2001 = vrot.slane %v1009, 1
        %v2002 = vor.u32 %v1006, %v2001
        %v2003 = vrot.slane %v1015, 1
        %v2004 = vor.u32 %v1012, %v2003
        %v2005 = vrot.slane %v1022, 1
        %v2006 = vor.u32 %v1019, %v2005
        %v2007 = vrot.slane %v1028, 1
        %v2008 = vor.u32 %v1025, %v2007
        %v2009 = vrot.slane %v1035, 1
        %v2010 = vor.u32 %v1032, %v2009
        %v2011 = vrot.slane %v1041, 1
        %v2012 = vor.u32 %v1038, %v2011
        %v2013 = vrot.slane %v1048, 1
        %v2014 = vor.u32 %v1045, %v2013
        %v2015 = vrot.slane %v1054, 1
        %v2016 = vor.u32 %v1051, %v2015
        %v2017 = vrot.slane %v1060, 1
        %v2018 = vor.u32 %v1057, %v2017
        %v2019 = vrot.slane %v1067, 1
        %v2020 = vor.u32 %v1064, %v2019
        %v2021 = vrot.slane %v1073, 1
        %v2022 = vor.u32 %v1070, %v2021
        %v2023 = vrot.slane %v1080, 1
        %v2024 = vor.u32 %v1077, %v2023
        %v2025 = vrot.slane %v1086, 1
        %v2026 = vor.u32 %v1083, %v2025
        %v2027 = vrot.slane %v1093, 1
        %v2028 = vor.u32 %v1090, %v2027
        %v2029 = vrot.slane %v1099, 1
        %v2030 = vor.u32 %v1096, %v2029
        %v2031 = vrot.slane %v1105, 1
        %v2032 = vor.u32 %v1102, %v2031
        %v2033 = vrot.slane %v1112, 1
        %v2034 = vor.u32 %v1109, %v2033
        %v2035 = vrot.slane %v1118, 1
        %v2036 = vor.u32 %v1115, %v2035
        %v2037 = vrot.slane %v1125, 1
        %v2038 = vor.u32 %v1122, %v2037
        %v2039 = vrot.slane %v1131, 1
        %v2040 = vor.u32 %v1128, %v2039
        %v2041 = vrot.slane %v1138, 1
        %v2042 = vor.u32 %v1135, %v2041
        %v2043 = vrot.slane %v1144, 1
        %v2044 = vor.u32 %v1141, %v2043
        %v2045 = vrot.slane %v1150, 1
        %v2046 = vor.u32 %v1147, %v2045
        %v2047 = vrot.slane %v1157, 1
        %v2048 = vor.u32 %v1154, %v2047
        %v2049 = vrot.slane %v1163, 1
        %v2050 = vor.u32 %v1160, %v2049
        %v2051 = vrot.slane %v1170, 1
        %v2052 = vor.u32 %v1167, %v2051
        %v2053 = vrot.slane %v1176, 1
        %v2054 = vor.u32 %v1173, %v2053
        %v2055 = vrot.slane %v1183, 1
        %v2056 = vor.u32 %v1180, %v2055
        %v2057 = vrot.slane %v1189, 1
        %v2058 = vor.u32 %v1186, %v2057
        %v2059 = vrot.slane %v1195, 1
        %v2060 = vor.u32 %v1192, %v2059
        %v2061 = vrot.slane %v1202, 1
        %v2062 = vor.u32 %v1199, %v2061
        %v2063 = vrot.slane %v1208, 1
        %v2064 = vor.u32 %v1205, %v2063
        %v2065 = vrot.slane %v1215, 1
        %v2066 = vor.u32 %v1212, %v2065
        %v2067 = vrot.slane %v1221, 1
        %v2068 = vor.u32 %v1218, %v2067
        %v2069 = vrot.slane %v1228, 1
        %v2070 = vor.u32 %v1225, %v2069
        %v2071 = vrot.slane %v1234, 1
        %v2072 = vor.u32 %v1231, %v2071
        %v2073 = vrot.slane %v1240, 1
        %v2074 = vor.u32 %v1237, %v2073
        %v2075 = vrot.slane %v1247, 1
        %v2076 = vor.u32 %v1244, %v2075
        %v2077 = vrot.slane %v1253, 1
        %v2078 = vor.u32 %v1250, %v2077
        %v2079 = vrot.slane %v1260, 1
        %v2080 = vor.u32 %v1257, %v2079
        %v2081 = vrot.slane %v1266, 1
        %v2082 = vor.u32 %v1263, %v2081
        %v2083 = vrot.slane %v1273, 1
        %v2084 = vor.u32 %v1270, %v2083
        %v2085 = vrot.slane %v1279, 1
        %v2086 = vor.u32 %v1276, %v2085
        %vm2144 = vcmask 1041408
        %vm2145 = vsmask.f32 1280
        %vm2146 = vmand %vm2144, %vm2145
        %v2147 = vsel %vm2146, %v1974, 0
        %v2148 = vsel %vm2146, %v1976, 0
        %v2149 = vsel %vm2146, %v1978, 0
        %v2150 = vsel %vm2146, %v1980, 0
        %v2151 = vsel %vm2146, %v1982, 0
        %v2152 = vsel %vm2146, %v1984, 0
        %v2153 = vsel %vm2146, %v1986, 0
        %v2154 = vsel %vm2146, %v1988, 0
        %v2155 = vsel %vm2146, %v1990, 0
        %v2156 = vsel %vm2146, %v1992, 0
        %v2157 = vsel %vm2146, %v1994, 0
        %v2158 = vsel %vm2146, %v1996, 0
        %v2159 = vsel %vm2146, %v1998, 0
        %v2160 = vsel %vm2146, %v2000, 0
        %v2161 = vsel %vm2146, %v2002, 0
        %v2162 = vsel %vm2146, %v2004, 0
        %v2163 = vsel %vm2146, %v2006, 0
        %v2164 = vsel %vm2146, %v2008, 0
        %v2165 = vsel %vm2146, %v2010, 0
        %v2166 = vsel %vm2146, %v2012, 0
        %v2167 = vsel %vm2146, %v2014, 0
        %v2168 = vsel %vm2146, %v2016, 0
        %v2169 = vsel %vm2146, %v2018, 0
        %v2170 = vsel %vm2146, %v2020, 0
        %v2171 = vsel %vm2146, %v2022, 0
        %v2172 = vsel %vm2146, %v2024, 0
        %v2173 = vsel %vm2146, %v2026, 0
        %v2174 = vsel %vm2146, %v2028, 0
        %v2175 = vsel %vm2146, %v2030, 0
        %v2176 = vsel %vm2146, %v2032, 0
        %v2177 = vsel %vm2146, %v2034, 0
        %v2178 = vsel %vm2146, %v2036, 0
        %v2179 = vsel %vm2146, %v2038, 0
        %v2180 = vsel %vm2146, %v2040, 0
        %v2181 = vsel %vm2146, %v2042, 0
        %v2182 = vsel %vm2146, %v2044, 0
        %v2183 = vsel %vm2146, %v2046, 0
        %v2184 = vsel %vm2146, %v2048, 0
        %v2185 = vsel %vm2146, %v2050, 0
        %v2186 = vsel %vm2146, %v2052, 0
        %v2187 = vsel %vm2146, %v2054, 0
        %v2188 = vsel %vm2146, %v2056, 0
        %v2189 = vsel %vm2146, %v2058, 0
        %v2190 = vsel %vm2146, %v2060, 0
        %v2191 = vsel %vm2146, %v2062, 0
        %v2192 = vsel %vm2146, %v2064, 0
        %v2193 = vsel %vm2146, %v2066, 0
        %v2194 = vsel %vm2146, %v2068, 0
        %v2195 = vsel %vm2146, %v2070, 0
        %v2196 = vsel %vm2146, %v2072, 0
        %v2197 = vsel %vm2146, %v2074, 0
        %v2198 = vsel %vm2146, %v2076, 0
        %v2199 = vsel %vm2146, %v2078, 0
        %v2200 = vsel %vm2146, %v2080, 0
        %v2201 = vsel %vm2146, %v2082, 0
        %v2202 = vsel %vm2146, %v2084, 0
        %v2203 = vsel %vm2146, %v2086, 0
        %s2204 = scalar_lea.vmem %s3, 32
        %v2205 = vld [vmem:[%s2204] sm:$0xf]
        %v2206 = vld [vmem:[%s2204 + $0x4] sm:$0xf]
        %v2207 = vld [vmem:[%s2204 + $0x8] sm:$0xf]
        %v2208 = vld [vmem:[%s2204 + $0xc] sm:$0xf]
        %2210 = vst [vmem:[#allocation1] ss:$4 sm:$0xff] %v2147
        %s2212 = scalar_lea.vmem [#allocation1], 1
        %2213 = vst [vmem:[%s2212] ss:$4 sm:$0xff] %v2148
        %s2215 = scalar_lea.vmem [#allocation1], 2
        %2216 = vst [vmem:[%s2215] ss:$4 sm:$0xff] %v2149
        %s2218 = scalar_lea.vmem [#allocation1], 3
        %2219 = vst [vmem:[%s2218] ss:$4 sm:$0xff] %v2150
        %s2221 = scalar_lea.vmem [#allocation1], 32
        %2222 = vst [vmem:[%s2221] ss:$4 sm:$0xff] %v2151
        %s2224 = scalar_lea.vmem [#allocation1], 33
        %2225 = vst [vmem:[%s2224] ss:$4 sm:$0xff] %v2152
        %s2227 = scalar_lea.vmem [#allocation1], 34
        %2228 = vst [vmem:[%s2227] ss:$4 sm:$0xff] %v2153
        %s2230 = scalar_lea.vmem [#allocation1], 35
        %2231 = vst [vmem:[%s2230] ss:$4 sm:$0xff] %v2154
        %v2232 = vld.sshfl [vmem:[#allocation1] sm:$0xff pattern:$0x73625140]
        %v2233 = vld.sshfl [vmem:[#allocation1 + $0x20] sm:$0xff pattern:$0x73625140]
        %2234 = vst [vmem:[#allocation1] ss:$4 sm:$0xff] %v2147
        %2236 = vst [vmem:[%s2212] ss:$4 sm:$0xff] %v2155
        %2238 = vst [vmem:[%s2215] ss:$4 sm:$0xff] %v2156
        %2240 = vst [vmem:[%s2218] ss:$4 sm:$0xff] %v2157
        %2242 = vst [vmem:[%s2221] ss:$4 sm:$0xff] %v2158
        %2244 = vst [vmem:[%s2224] ss:$4 sm:$0xff] %v2159
        %2246 = vst [vmem:[%s2227] ss:$4 sm:$0xff] %v2160
        %2248 = vst [vmem:[%s2230] ss:$4 sm:$0xff] %v2161
        %v2249 = vld.sshfl [vmem:[#allocation1] sm:$0xff pattern:$0x73625140]
        %v2250 = vld.sshfl [vmem:[#allocation1 + $0x20] sm:$0xff pattern:$0x73625140]
        %2251 = vst [vmem:[#allocation1] ss:$4 sm:$0xff] %v2147
        %2253 = vst [vmem:[%s2212] ss:$4 sm:$0xff] %v2162
        %2255 = vst [vmem:[%s2215] ss:$4 sm:$0xff] %v2163
        %2257 = vst [vmem:[%s2218] ss:$4 sm:$0xff] %v2164
        %2259 = vst [vmem:[%s2221] ss:$4 sm:$0xff] %v2165
        %2261 = vst [vmem:[%s2224] ss:$4 sm:$0xff] %v2166
        %2263 = vst [vmem:[%s2227] ss:$4 sm:$0xff] %v2167
        %2265 = vst [vmem:[%s2230] ss:$4 sm:$0xff] %v2168
        %v2266 = vld.sshfl [vmem:[#allocation1] sm:$0xff pattern:$0x73625140]
        %v2267 = vld.sshfl [vmem:[#allocation1 + $0x20] sm:$0xff pattern:$0x73625140]
        %2268 = vst [vmem:[#allocation1] ss:$4 sm:$0xff] %v2147
        %2270 = vst [vmem:[%s2212] ss:$4 sm:$0xff] %v2169
        %2272 = vst [vmem:[%s2215] ss:$4 sm:$0xff] %v2170
        %2274 = vst [vmem:[%s2218] ss:$4 sm:$0xff] %v2171
        %2276 = vst [vmem:[%s2221] ss:$4 sm:$0xff] %v2172
        %2278 = vst [vmem:[%s2224] ss:$4 sm:$0xff] %v2173
        %2280 = vst [vmem:[%s2227] ss:$4 sm:$0xff] %v2174
        %2282 = vst [vmem:[%s2230] ss:$4 sm:$0xff] %v2175
        %v2283 = vld.sshfl [vmem:[#allocation1] sm:$0xff pattern:$0x73625140]
        %v2284 = vld.sshfl [vmem:[#allocation1 + $0x20] sm:$0xff pattern:$0x73625140]
        %2285 = vst [vmem:[#allocation1] ss:$4 sm:$0xff] %v2147
        %2287 = vst [vmem:[%s2212] ss:$4 sm:$0xff] %v2176
        %2289 = vst [vmem:[%s2215] ss:$4 sm:$0xff] %v2177
        %2291 = vst [vmem:[%s2218] ss:$4 sm:$0xff] %v2178
        %2293 = vst [vmem:[%s2221] ss:$4 sm:$0xff] %v2179
        %2295 = vst [vmem:[%s2224] ss:$4 sm:$0xff] %v2180
        %2297 = vst [vmem:[%s2227] ss:$4 sm:$0xff] %v2181
        %2299 = vst [vmem:[%s2230] ss:$4 sm:$0xff] %v2182
        %v2300 = vld.sshfl [vmem:[#allocation1] sm:$0xff pattern:$0x73625140]
        %v2301 = vld.sshfl [vmem:[#allocation1 + $0x20] sm:$0xff pattern:$0x73625140]
        %2302 = vst [vmem:[#allocation1] ss:$4 sm:$0xff] %v2147
        %2304 = vst [vmem:[%s2212] ss:$4 sm:$0xff] %v2183
        %2306 = vst [vmem:[%s2215] ss:$4 sm:$0xff] %v2184
        %2308 = vst [vmem:[%s2218] ss:$4 sm:$0xff] %v2185
        %2310 = vst [vmem:[%s2221] ss:$4 sm:$0xff] %v2186
        %2312 = vst [vmem:[%s2224] ss:$4 sm:$0xff] %v2187
        %2314 = vst [vmem:[%s2227] ss:$4 sm:$0xff] %v2188
        %2316 = vst [vmem:[%s2230] ss:$4 sm:$0xff] %v2189
        %v2317 = vld.sshfl [vmem:[#allocation1] sm:$0xff pattern:$0x73625140]
        %v2318 = vld.sshfl [vmem:[#allocation1 + $0x20] sm:$0xff pattern:$0x73625140]
        %2319 = vst [vmem:[#allocation1] ss:$4 sm:$0xff] %v2147
        %2321 = vst [vmem:[%s2212] ss:$4 sm:$0xff] %v2190
        %2323 = vst [vmem:[%s2215] ss:$4 sm:$0xff] %v2191
        %2325 = vst [vmem:[%s2218] ss:$4 sm:$0xff] %v2192
        %2327 = vst [vmem:[%s2221] ss:$4 sm:$0xff] %v2193
        %2329 = vst [vmem:[%s2224] ss:$4 sm:$0xff] %v2194
        %2331 = vst [vmem:[%s2227] ss:$4 sm:$0xff] %v2195
        %2333 = vst [vmem:[%s2230] ss:$4 sm:$0xff] %v2196
        %v2334 = vld.sshfl [vmem:[#allocation1] sm:$0xff pattern:$0x73625140]
        %v2335 = vld.sshfl [vmem:[#allocation1 + $0x20] sm:$0xff pattern:$0x73625140]
        %2336 = vst [vmem:[#allocation1] ss:$4 sm:$0xff] %v2147
        %2338 = vst [vmem:[%s2212] ss:$4 sm:$0xff] %v2197
        %2340 = vst [vmem:[%s2215] ss:$4 sm:$0xff] %v2198
        %2342 = vst [vmem:[%s2218] ss:$4 sm:$0xff] %v2199
        %2344 = vst [vmem:[%s2221] ss:$4 sm:$0xff] %v2200
        %2346 = vst [vmem:[%s2224] ss:$4 sm:$0xff] %v2201
        %2348 = vst [vmem:[%s2227] ss:$4 sm:$0xff] %v2202
        %2350 = vst [vmem:[%s2230] ss:$4 sm:$0xff] %v2203
        %v2351 = vld.sshfl [vmem:[#allocation1] sm:$0xff pattern:$0x73625140]
        %v2352 = vld.sshfl [vmem:[#allocation1 + $0x20] sm:$0xff pattern:$0x73625140]
        %v2357 = vunpack.c.l.b16 %v2205
        %v2358 = vunpack.c.l.b16 %v2206
        %v2359 = vunpack.c.l.b16 %v2207
        %v2360 = vunpack.c.l.b16 %v2208
        %v2361 = vpack.c.b16 %v2358, %v2357
        %v2362 = vpack.c.b16 %v2360, %v2359
        %v2365 = vsel %vm1559, %v2232, 0
        %v2367 = vsel %vm1559, %v2233, 0
        %v2369 = vsel %vm1559, %v2249, 0
        %v2371 = vsel %vm1559, %v2250, 0
        %v2373 = vsel %vm1559, %v2266, 0
        %v2375 = vsel %vm1559, %v2267, 0
        %v2377 = vsel %vm1559, %v2283, 0
        %v2379 = vsel %vm1559, %v2284, 0
        %v2381 = vsel %vm1559, %v2300, 0
        %v2383 = vsel %vm1559, %v2301, 0
        %v2385 = vsel %vm1559, %v2317, 0
        %v2387 = vsel %vm1559, %v2318, 0
        %v2389 = vsel %vm1559, %v2334, 0
        %v2391 = vsel %vm1559, %v2335, 0
        %v2393 = vsel %vm1559, %v2351, 0
        %v2395 = vsel %vm1559, %v2352, 0
        %2397 = vmatpush.bf16.msra.mxu0 0
        %2398 = vmatpush.bf16.msra.mxu0 0
        %2399 = vmatpush.bf16.msra.mxu0 0
        %2400 = vmatpush.bf16.msra.mxu0 0
        %2401 = vmatpush.bf16.msra.mxu0 0
        %2402 = vmatpush.bf16.msra.mxu0 0
        %2403 = vmatpush.bf16.msra.mxu0 %v2362
        %2404 = vmatpush.bf16.msra.mxu0 %v2361
        %2405 = vmatmul.bf16.gmra.mxu0 %v2365
        %v2406 = vpop.f32.mrf.mxu0
        %v2407 = vadd.f32 0.0, %v2406
        %v2408 = vpop.f32.mrf.mxu0
        %v2409 = vadd.f32 0.0, %v2408
        %2410 = vmatmul.bf16.gmra.mxu0 %v2367
        %v2411 = vpop.f32.mrf.mxu0
        %v2412 = vadd.f32 0.0, %v2411
        %v2413 = vpop.f32.mrf.mxu0
        %v2414 = vadd.f32 0.0, %v2413
        %2415 = vmatmul.bf16.gmra.mxu0 %v2369
        %v2416 = vpop.f32.mrf.mxu0
        %v2417 = vadd.f32 0.0, %v2416
        %v2418 = vpop.f32.mrf.mxu0
        %v2419 = vadd.f32 0.0, %v2418
        %2420 = vmatmul.bf16.gmra.mxu0 %v2371
        %v2421 = vpop.f32.mrf.mxu0
        %v2422 = vadd.f32 0.0, %v2421
        %v2423 = vpop.f32.mrf.mxu0
        %v2424 = vadd.f32 0.0, %v2423
        %2425 = vmatmul.bf16.gmra.mxu0 %v2373
        %v2426 = vpop.f32.mrf.mxu0
        %v2427 = vadd.f32 0.0, %v2426
        %v2428 = vpop.f32.mrf.mxu0
        %v2429 = vadd.f32 0.0, %v2428
        %2430 = vmatmul.bf16.gmra.mxu0 %v2375
        %v2431 = vpop.f32.mrf.mxu0
        %v2432 = vadd.f32 0.0, %v2431
        %v2433 = vpop.f32.mrf.mxu0
        %v2434 = vadd.f32 0.0, %v2433
        %2435 = vmatmul.bf16.gmra.mxu0 %v2377
        %v2436 = vpop.f32.mrf.mxu0
        %v2437 = vadd.f32 0.0, %v2436
        %v2438 = vpop.f32.mrf.mxu0
        %v2439 = vadd.f32 0.0, %v2438
        %2440 = vmatmul.bf16.gmra.mxu0 %v2379
        %v2441 = vpop.f32.mrf.mxu0
        %v2442 = vadd.f32 0.0, %v2441
        %v2443 = vpop.f32.mrf.mxu0
        %v2444 = vadd.f32 0.0, %v2443
        %2445 = vmatmul.bf16.gmra.mxu0 %v2381
        %v2446 = vpop.f32.mrf.mxu0
        %v2447 = vadd.f32 0.0, %v2446
        %v2448 = vpop.f32.mrf.mxu0
        %v2449 = vadd.f32 0.0, %v2448
        %2450 = vmatmul.bf16.gmra.mxu0 %v2383
        %v2451 = vpop.f32.mrf.mxu0
        %v2452 = vadd.f32 0.0, %v2451
        %v2453 = vpop.f32.mrf.mxu0
        %v2454 = vadd.f32 0.0, %v2453
        %2455 = vmatmul.bf16.gmra.mxu0 %v2385
        %v2456 = vpop.f32.mrf.mxu0
        %v2457 = vadd.f32 0.0, %v2456
        %v2458 = vpop.f32.mrf.mxu0
        %v2459 = vadd.f32 0.0, %v2458
        %2460 = vmatmul.bf16.gmra.mxu0 %v2387
        %v2461 = vpop.f32.mrf.mxu0
        %v2462 = vadd.f32 0.0, %v2461
        %v2463 = vpop.f32.mrf.mxu0
        %v2464 = vadd.f32 0.0, %v2463
        %2465 = vmatmul.bf16.gmra.mxu0 %v2389
        %v2466 = vpop.f32.mrf.mxu0
        %v2467 = vadd.f32 0.0, %v2466
        %v2468 = vpop.f32.mrf.mxu0
        %v2469 = vadd.f32 0.0, %v2468
        %2470 = vmatmul.bf16.gmra.mxu0 %v2391
        %v2471 = vpop.f32.mrf.mxu0
        %v2472 = vadd.f32 0.0, %v2471
        %v2473 = vpop.f32.mrf.mxu0
        %v2474 = vadd.f32 0.0, %v2473
        %2475 = vmatmul.bf16.gmra.mxu0 %v2393
        %v2476 = vpop.f32.mrf.mxu0
        %v2477 = vadd.f32 0.0, %v2476
        %v2478 = vpop.f32.mrf.mxu0
        %v2479 = vadd.f32 0.0, %v2478
        %2480 = vmatmul.bf16.gmra.mxu0 %v2395
        %v2481 = vpop.f32.mrf.mxu0
        %v2482 = vadd.f32 0.0, %v2481
        %v2483 = vpop.f32.mrf.mxu0
        %v2484 = vadd.f32 0.0, %v2483
        %2485 = vdwg.mxu0
        %v2486 = vadd.f32 %v1941, %v2407
        %v2487 = vadd.f32 %v1942, %v2409
        %v2488 = vadd.f32 %v1943, %v2412
        %v2489 = vadd.f32 %v1944, %v2414
        %v2490 = vadd.f32 %v1945, %v2417
        %v2491 = vadd.f32 %v1946, %v2419
        %v2492 = vadd.f32 %v1947, %v2422
        %v2493 = vadd.f32 %v1948, %v2424
        %v2494 = vadd.f32 %v1949, %v2427
        %v2495 = vadd.f32 %v1950, %v2429
        %v2496 = vadd.f32 %v1951, %v2432
        %v2497 = vadd.f32 %v1952, %v2434
        %v2498 = vadd.f32 %v1953, %v2437
        %v2499 = vadd.f32 %v1954, %v2439
        %v2500 = vadd.f32 %v1955, %v2442
        %v2501 = vadd.f32 %v1956, %v2444
        %v2502 = vadd.f32 %v1957, %v2447
        %v2503 = vadd.f32 %v1958, %v2449
        %v2504 = vadd.f32 %v1959, %v2452
        %v2505 = vadd.f32 %v1960, %v2454
        %v2506 = vadd.f32 %v1961, %v2457
        %v2507 = vadd.f32 %v1962, %v2459
        %v2508 = vadd.f32 %v1963, %v2462
        %v2509 = vadd.f32 %v1964, %v2464
        %v2510 = vadd.f32 %v1965, %v2467
        %v2511 = vadd.f32 %v1966, %v2469
        %v2512 = vadd.f32 %v1967, %v2472
        %v2513 = vadd.f32 %v1968, %v2474
        %v2514 = vadd.f32 %v1969, %v2477
        %v2515 = vadd.f32 %v1970, %v2479
        %v2516 = vadd.f32 %v1971, %v2482
        %v2517 = vadd.f32 %v1972, %v2484
        %2518 = vst [vmem:[#allocation1] ss:$4 sm:$0xff] %v723
        %v2519 = vld.sshfl [vmem:[#allocation1] sm:$0xff pattern:$0x73625140]
        %s2520 = scalar_lea.vmem [#allocation1], 32
        %2521 = vst [vmem:[%s2520] ss:$4 sm:$0xff] %v727
        %v2522 = vld.sshfl [vmem:[#allocation1 + $0x20] sm:$0xff pattern:$0x73625140]
        %2523 = vst [vmem:[#allocation1] ss:$4 sm:$0xff] %v730
        %v2524 = vld.sshfl [vmem:[#allocation1] sm:$0xff pattern:$0x73625140]
        %2525 = vst [vmem:[%s2520] ss:$4 sm:$0xff] %v733
        %v2526 = vld.sshfl [vmem:[#allocation1 + $0x20] sm:$0xff pattern:$0x73625140]
        %2527 = vst [vmem:[#allocation1] ss:$4 sm:$0xff] %v736
        %v2528 = vld.sshfl [vmem:[#allocation1] sm:$0xff pattern:$0x73625140]
        %2529 = vst [vmem:[%s2520] ss:$4 sm:$0xff] %v739
        %v2530 = vld.sshfl [vmem:[#allocation1 + $0x20] sm:$0xff pattern:$0x73625140]
        %2531 = vst [vmem:[#allocation1] ss:$4 sm:$0xff] %v742
        %v2532 = vld.sshfl [vmem:[#allocation1] sm:$0xff pattern:$0x73625140]
        %2534 = vst [vmem:[%s2520] ss:$4 sm:$0xff] %v745
        %v2535 = vld.sshfl [vmem:[#allocation1 + $0x20] sm:$0xff pattern:$0x73625140]
        %2536 = vst [vmem:[#allocation1] ss:$4 sm:$0xff] %v748
        %v2537 = vld.sshfl [vmem:[#allocation1] sm:$0xff pattern:$0x73625140]
        %2538 = vst [vmem:[%s2520] ss:$4 sm:$0xff] %v751
        %v2539 = vld.sshfl [vmem:[#allocation1 + $0x20] sm:$0xff pattern:$0x73625140]
        %2540 = vst [vmem:[#allocation1] ss:$4 sm:$0xff] %v754
        %v2541 = vld.sshfl [vmem:[#allocation1] sm:$0xff pattern:$0x73625140]
        %2542 = vst [vmem:[%s2520] ss:$4 sm:$0xff] %v757
        %v2543 = vld.sshfl [vmem:[#allocation1 + $0x20] sm:$0xff pattern:$0x73625140]
        %2544 = vst [vmem:[#allocation1] ss:$4 sm:$0xff] %v760
        %v2545 = vld.sshfl [vmem:[#allocation1] sm:$0xff pattern:$0x73625140]
        %2546 = vst [vmem:[%s2520] ss:$4 sm:$0xff] %v763
        %v2547 = vld.sshfl [vmem:[#allocation1 + $0x20] sm:$0xff pattern:$0x73625140]
        %2548 = vst [vmem:[#allocation1] ss:$4 sm:$0xff] %v766
        %v2549 = vld.sshfl [vmem:[#allocation1] sm:$0xff pattern:$0x73625140]
        %2551 = vst [vmem:[%s2520] ss:$4 sm:$0xff] %v769
        %v2552 = vld.sshfl [vmem:[#allocation1 + $0x20] sm:$0xff pattern:$0x73625140]
        %2553 = vst [vmem:[#allocation1] ss:$4 sm:$0xff] %v772
        %v2554 = vld.sshfl [vmem:[#allocation1] sm:$0xff pattern:$0x73625140]
        %2555 = vst [vmem:[%s2520] ss:$4 sm:$0xff] %v775
        %v2556 = vld.sshfl [vmem:[#allocation1 + $0x20] sm:$0xff pattern:$0x73625140]
        %2557 = vst [vmem:[#allocation1] ss:$4 sm:$0xff] %v778
        %v2558 = vld.sshfl [vmem:[#allocation1] sm:$0xff pattern:$0x73625140]
        %2559 = vst [vmem:[%s2520] ss:$4 sm:$0xff] %v781
        %v2560 = vld.sshfl [vmem:[#allocation1 + $0x20] sm:$0xff pattern:$0x73625140]
        %2561 = vst [vmem:[#allocation1] ss:$4 sm:$0xff] %v784
        %v2562 = vld.sshfl [vmem:[#allocation1] sm:$0xff pattern:$0x73625140]
        %2563 = vst [vmem:[%s2520] ss:$4 sm:$0xff] %v787
        %v2564 = vld.sshfl [vmem:[#allocation1 + $0x20] sm:$0xff pattern:$0x73625140]
        %2565 = vst [vmem:[#allocation1] ss:$4 sm:$0xff] %v790
        %v2566 = vld.sshfl [vmem:[#allocation1] sm:$0xff pattern:$0x73625140]
        %2568 = vst [vmem:[%s2520] ss:$4 sm:$0xff] %v793
        %v2569 = vld.sshfl [vmem:[#allocation1 + $0x20] sm:$0xff pattern:$0x73625140]
        %2570 = vst [vmem:[#allocation1] ss:$4 sm:$0xff] %v796
        %v2571 = vld.sshfl [vmem:[#allocation1] sm:$0xff pattern:$0x73625140]
        %2572 = vst [vmem:[%s2520] ss:$4 sm:$0xff] %v799
        %v2573 = vld.sshfl [vmem:[#allocation1 + $0x20] sm:$0xff pattern:$0x73625140]
        %2574 = vst [vmem:[#allocation1] ss:$4 sm:$0xff] %v802
        %v2575 = vld.sshfl [vmem:[#allocation1] sm:$0xff pattern:$0x73625140]
        %2576 = vst [vmem:[%s2520] ss:$4 sm:$0xff] %v805
        %v2577 = vld.sshfl [vmem:[#allocation1 + $0x20] sm:$0xff pattern:$0x73625140]
        %2578 = vst [vmem:[#allocation1] ss:$4 sm:$0xff] %v808
        %v2579 = vld.sshfl [vmem:[#allocation1] sm:$0xff pattern:$0x73625140]
        %2580 = vst [vmem:[%s2520] ss:$4 sm:$0xff] %v811
        %v2581 = vld.sshfl [vmem:[#allocation1 + $0x20] sm:$0xff pattern:$0x73625140]
        %2582 = vst [vmem:[#allocation1] ss:$4 sm:$0xff] %v814
        %v2583 = vld.sshfl [vmem:[#allocation1] sm:$0xff pattern:$0x73625140]
        %2585 = vst [vmem:[%s2520] ss:$4 sm:$0xff] %v817
        %v2586 = vld.sshfl [vmem:[#allocation1 + $0x20] sm:$0xff pattern:$0x73625140]
        %2587 = vst [vmem:[#allocation1] ss:$4 sm:$0xff] %v820
        %v2588 = vld.sshfl [vmem:[#allocation1] sm:$0xff pattern:$0x73625140]
        %2589 = vst [vmem:[%s2520] ss:$4 sm:$0xff] %v823
        %v2590 = vld.sshfl [vmem:[#allocation1 + $0x20] sm:$0xff pattern:$0x73625140]
        %2591 = vst [vmem:[#allocation1] ss:$4 sm:$0xff] %v826
        %v2592 = vld.sshfl [vmem:[#allocation1] sm:$0xff pattern:$0x73625140]
        %2593 = vst [vmem:[%s2520] ss:$4 sm:$0xff] %v829
        %v2594 = vld.sshfl [vmem:[#allocation1 + $0x20] sm:$0xff pattern:$0x73625140]
        %2595 = vst [vmem:[#allocation1] ss:$4 sm:$0xff] %v832
        %v2596 = vld.sshfl [vmem:[#allocation1] sm:$0xff pattern:$0x73625140]
        %2597 = vst [vmem:[%s2520] ss:$4 sm:$0xff] %v835
        %v2598 = vld.sshfl [vmem:[#allocation1 + $0x20] sm:$0xff pattern:$0x73625140]
        %2599 = vst [vmem:[#allocation1] ss:$4 sm:$0xff] %v838
        %v2600 = vld.sshfl [vmem:[#allocation1] sm:$0xff pattern:$0x73625140]
        %2602 = vst [vmem:[%s2520] ss:$4 sm:$0xff] %v841
        %v2603 = vld.sshfl [vmem:[#allocation1 + $0x20] sm:$0xff pattern:$0x73625140]
        %2604 = vst [vmem:[#allocation1] ss:$4 sm:$0xff] %v844
        %v2605 = vld.sshfl [vmem:[#allocation1] sm:$0xff pattern:$0x73625140]
        %2606 = vst [vmem:[%s2520] ss:$4 sm:$0xff] %v847
        %v2607 = vld.sshfl [vmem:[#allocation1 + $0x20] sm:$0xff pattern:$0x73625140]
        %2608 = vst [vmem:[#allocation1] ss:$4 sm:$0xff] %v850
        %v2609 = vld.sshfl [vmem:[#allocation1] sm:$0xff pattern:$0x73625140]
        %2610 = vst [vmem:[%s2520] ss:$4 sm:$0xff] %v853
        %v2611 = vld.sshfl [vmem:[#allocation1 + $0x20] sm:$0xff pattern:$0x73625140]
        %2612 = vst [vmem:[#allocation1] ss:$4 sm:$0xff] %v856
        %v2613 = vld.sshfl [vmem:[#allocation1] sm:$0xff pattern:$0x73625140]
        %2614 = vst [vmem:[%s2520] ss:$4 sm:$0xff] %v859
        %v2615 = vld.sshfl [vmem:[#allocation1 + $0x20] sm:$0xff pattern:$0x73625140]
        %2616 = vst [vmem:[#allocation1] ss:$4 sm:$0xff] %v862
        %v2617 = vld.sshfl [vmem:[#allocation1] sm:$0xff pattern:$0x73625140]
        %2619 = vst [vmem:[%s2520] ss:$4 sm:$0xff] %v865
        %v2620 = vld.sshfl [vmem:[#allocation1 + $0x20] sm:$0xff pattern:$0x73625140]
        %2621 = vst [vmem:[#allocation1] ss:$4 sm:$0xff] %v868
        %v2622 = vld.sshfl [vmem:[#allocation1] sm:$0xff pattern:$0x73625140]
        %2623 = vst [vmem:[%s2520] ss:$4 sm:$0xff] %v871
        %v2624 = vld.sshfl [vmem:[#allocation1 + $0x20] sm:$0xff pattern:$0x73625140]
        %2625 = vst [vmem:[#allocation1] ss:$4 sm:$0xff] %v874
        %v2626 = vld.sshfl [vmem:[#allocation1] sm:$0xff pattern:$0x73625140]
        %2627 = vst [vmem:[%s2520] ss:$4 sm:$0xff] %v877
        %v2628 = vld.sshfl [vmem:[#allocation1 + $0x20] sm:$0xff pattern:$0x73625140]
        %2629 = vst [vmem:[#allocation1] ss:$4 sm:$0xff] %v880
        %v2630 = vld.sshfl [vmem:[#allocation1] sm:$0xff pattern:$0x73625140]
        %2631 = vst [vmem:[%s2520] ss:$4 sm:$0xff] %v883
        %v2632 = vld.sshfl [vmem:[#allocation1 + $0x20] sm:$0xff pattern:$0x73625140]
        %2633 = vst [vmem:[#allocation1] ss:$4 sm:$0xff] %v886
        %v2634 = vld.sshfl [vmem:[#allocation1] sm:$0xff pattern:$0x73625140]
        %2636 = vst [vmem:[%s2520] ss:$4 sm:$0xff] %v889
        %v2637 = vld.sshfl [vmem:[#allocation1 + $0x20] sm:$0xff pattern:$0x73625140]
        %2638 = vst [vmem:[#allocation1] ss:$4 sm:$0xff] %v892
        %v2639 = vld.sshfl [vmem:[#allocation1] sm:$0xff pattern:$0x73625140]
        %2640 = vst [vmem:[%s2520] ss:$4 sm:$0xff] %v895
        %v2641 = vld.sshfl [vmem:[#allocation1 + $0x20] sm:$0xff pattern:$0x73625140]
        %2642 = vst [vmem:[#allocation1] ss:$4 sm:$0xff] %v898
        %v2643 = vld.sshfl [vmem:[#allocation1] sm:$0xff pattern:$0x73625140]
        %2644 = vst [vmem:[%s2520] ss:$4 sm:$0xff] %v901
        %v2645 = vld.sshfl [vmem:[#allocation1 + $0x20] sm:$0xff pattern:$0x73625140]
        %2646 = vst [vmem:[#allocation1] ss:$4 sm:$0xff] %v904
        %v2647 = vld.sshfl [vmem:[#allocation1] sm:$0xff pattern:$0x73625140]
        %2648 = vst [vmem:[%s2520] ss:$4 sm:$0xff] %v907
        %v2649 = vld.sshfl [vmem:[#allocation1 + $0x20] sm:$0xff pattern:$0x73625140]
        %2650 = vst [vmem:[#allocation1] ss:$4 sm:$0xff] %v910
        %v2651 = vld.sshfl [vmem:[#allocation1] sm:$0xff pattern:$0x73625140]
        %2653 = vst [vmem:[%s2520] ss:$4 sm:$0xff] %v913
        %v2654 = vld.sshfl [vmem:[#allocation1 + $0x20] sm:$0xff pattern:$0x73625140]
        %v2655 = vshrl.u32 %v2519, 16
        %v2657 = vrot.slane %v2655, 7
        %v2658 = vshll.u32 %v2519, 16
        %v2660 = vor.u32 %v2657, %v2658
        %v2661 = vshrl.u32 %v2522, 16
        %v2663 = vrot.slane %v2661, 7
        %v2664 = vshll.u32 %v2522, 16
        %v2666 = vor.u32 %v2663, %v2664
        %v2667 = vshrl.u32 %v2524, 16
        %v2669 = vrot.slane %v2667, 7
        %v2670 = vshll.u32 %v2524, 16
        %v2672 = vor.u32 %v2669, %v2670
        %v2673 = vshrl.u32 %v2526, 16
        %v2675 = vrot.slane %v2673, 7
        %v2676 = vshll.u32 %v2526, 16
        %v2678 = vor.u32 %v2675, %v2676
        %v2679 = vshrl.u32 %v2528, 16
        %v2681 = vrot.slane %v2679, 7
        %v2682 = vshll.u32 %v2528, 16
        %v2684 = vor.u32 %v2681, %v2682
        %v2685 = vshrl.u32 %v2530, 16
        %v2687 = vrot.slane %v2685, 7
        %v2688 = vshll.u32 %v2530, 16
        %v2690 = vor.u32 %v2687, %v2688
        %v2691 = vshrl.u32 %v2532, 16
        %v2693 = vrot.slane %v2691, 7
        %v2694 = vshll.u32 %v2532, 16
        %v2696 = vor.u32 %v2693, %v2694
        %v2697 = vshrl.u32 %v2535, 16
        %v2699 = vrot.slane %v2697, 7
        %v2700 = vshll.u32 %v2535, 16
        %v2702 = vor.u32 %v2699, %v2700
        %v2703 = vshrl.u32 %v2537, 16
        %v2705 = vrot.slane %v2703, 7
        %v2706 = vshll.u32 %v2537, 16
        %v2708 = vor.u32 %v2705, %v2706
        %v2709 = vshrl.u32 %v2539, 16
        %v2711 = vrot.slane %v2709, 7
        %v2712 = vshll.u32 %v2539, 16
        %v2714 = vor.u32 %v2711, %v2712
        %v2715 = vshrl.u32 %v2541, 16
        %v2717 = vrot.slane %v2715, 7
        %v2718 = vshll.u32 %v2541, 16
        %v2720 = vor.u32 %v2717, %v2718
        %v2721 = vshrl.u32 %v2543, 16
        %v2723 = vrot.slane %v2721, 7
        %v2724 = vshll.u32 %v2543, 16
        %v2726 = vor.u32 %v2723, %v2724
        %v2727 = vshrl.u32 %v2545, 16
        %v2729 = vrot.slane %v2727, 7
        %v2730 = vshll.u32 %v2545, 16
        %v2732 = vor.u32 %v2729, %v2730
        %v2733 = vshrl.u32 %v2547, 16
        %v2735 = vrot.slane %v2733, 7
        %v2736 = vshll.u32 %v2547, 16
        %v2738 = vor.u32 %v2735, %v2736
        %v2739 = vshrl.u32 %v2549, 16
        %v2741 = vrot.slane %v2739, 7
        %v2742 = vshll.u32 %v2549, 16
        %v2744 = vor.u32 %v2741, %v2742
        %v2745 = vshrl.u32 %v2552, 16
        %v2747 = vrot.slane %v2745, 7
        %v2748 = vshll.u32 %v2552, 16
        %v2750 = vor.u32 %v2747, %v2748
        %v2751 = vshrl.u32 %v2554, 16
        %v2753 = vrot.slane %v2751, 7
        %v2754 = vshll.u32 %v2554, 16
        %v2756 = vor.u32 %v2753, %v2754
        %v2757 = vshrl.u32 %v2556, 16
        %v2759 = vrot.slane %v2757, 7
        %v2760 = vshll.u32 %v2556, 16
        %v2762 = vor.u32 %v2759, %v2760
        %v2763 = vshrl.u32 %v2558, 16
        %v2765 = vrot.slane %v2763, 7
        %v2766 = vshll.u32 %v2558, 16
        %v2768 = vor.u32 %v2765, %v2766
        %v2769 = vshrl.u32 %v2560, 16
        %v2771 = vrot.slane %v2769, 7
        %v2772 = vshll.u32 %v2560, 16
        %v2774 = vor.u32 %v2771, %v2772
        %v2775 = vshrl.u32 %v2562, 16
        %v2777 = vrot.slane %v2775, 7
        %v2778 = vshll.u32 %v2562, 16
        %v2780 = vor.u32 %v2777, %v2778
        %v2781 = vshrl.u32 %v2564, 16
        %v2783 = vrot.slane %v2781, 7
        %v2784 = vshll.u32 %v2564, 16
        %v2786 = vor.u32 %v2783, %v2784
        %v2787 = vshrl.u32 %v2566, 16
        %v2789 = vrot.slane %v2787, 7
        %v2790 = vshll.u32 %v2566, 16
        %v2792 = vor.u32 %v2789, %v2790
        %v2793 = vshrl.u32 %v2569, 16
        %v2795 = vrot.slane %v2793, 7
        %v2796 = vshll.u32 %v2569, 16
        %v2798 = vor.u32 %v2795, %v2796
        %v2799 = vshrl.u32 %v2571, 16
        %v2801 = vrot.slane %v2799, 7
        %v2802 = vshll.u32 %v2571, 16
        %v2804 = vor.u32 %v2801, %v2802
        %v2805 = vshrl.u32 %v2573, 16
        %v2807 = vrot.slane %v2805, 7
        %v2808 = vshll.u32 %v2573, 16
        %v2810 = vor.u32 %v2807, %v2808
        %v2811 = vshrl.u32 %v2575, 16
        %v2813 = vrot.slane %v2811, 7
        %v2814 = vshll.u32 %v2575, 16
        %v2816 = vor.u32 %v2813, %v2814
        %v2817 = vshrl.u32 %v2577, 16
        %v2819 = vrot.slane %v2817, 7
        %v2820 = vshll.u32 %v2577, 16
        %v2822 = vor.u32 %v2819, %v2820
        %v2823 = vshrl.u32 %v2579, 16
        %v2825 = vrot.slane %v2823, 7
        %v2826 = vshll.u32 %v2579, 16
        %v2828 = vor.u32 %v2825, %v2826
        %v2829 = vshrl.u32 %v2581, 16
        %v2831 = vrot.slane %v2829, 7
        %v2832 = vshll.u32 %v2581, 16
        %v2834 = vor.u32 %v2831, %v2832
        %v2835 = vshrl.u32 %v2583, 16
        %v2837 = vrot.slane %v2835, 7
        %v2838 = vshll.u32 %v2583, 16
        %v2840 = vor.u32 %v2837, %v2838
        %v2841 = vshrl.u32 %v2586, 16
        %v2843 = vrot.slane %v2841, 7
        %v2844 = vshll.u32 %v2586, 16
        %v2846 = vor.u32 %v2843, %v2844
        %v2847 = vshrl.u32 %v2588, 16
        %v2849 = vrot.slane %v2847, 7
        %v2850 = vshll.u32 %v2588, 16
        %v2852 = vor.u32 %v2849, %v2850
        %v2853 = vshrl.u32 %v2590, 16
        %v2855 = vrot.slane %v2853, 7
        %v2856 = vshll.u32 %v2590, 16
        %v2858 = vor.u32 %v2855, %v2856
        %v2859 = vshrl.u32 %v2592, 16
        %v2861 = vrot.slane %v2859, 7
        %v2862 = vshll.u32 %v2592, 16
        %v2864 = vor.u32 %v2861, %v2862
        %v2865 = vshrl.u32 %v2594, 16
        %v2867 = vrot.slane %v2865, 7
        %v2868 = vshll.u32 %v2594, 16
        %v2870 = vor.u32 %v2867, %v2868
        %v2871 = vshrl.u32 %v2596, 16
        %v2873 = vrot.slane %v2871, 7
        %v2874 = vshll.u32 %v2596, 16
        %v2876 = vor.u32 %v2873, %v2874
        %v2877 = vshrl.u32 %v2598, 16
        %v2879 = vrot.slane %v2877, 7
        %v2880 = vshll.u32 %v2598, 16
        %v2882 = vor.u32 %v2879, %v2880
        %v2883 = vshrl.u32 %v2600, 16
        %v2885 = vrot.slane %v2883, 7
        %v2886 = vshll.u32 %v2600, 16
        %v2888 = vor.u32 %v2885, %v2886
        %v2889 = vshrl.u32 %v2603, 16
        %v2891 = vrot.slane %v2889, 7
        %v2892 = vshll.u32 %v2603, 16
        %v2894 = vor.u32 %v2891, %v2892
        %v2895 = vshrl.u32 %v2605, 16
        %v2897 = vrot.slane %v2895, 7
        %v2898 = vshll.u32 %v2605, 16
        %v2900 = vor.u32 %v2897, %v2898
        %v2901 = vshrl.u32 %v2607, 16
        %v2903 = vrot.slane %v2901, 7
        %v2904 = vshll.u32 %v2607, 16
        %v2906 = vor.u32 %v2903, %v2904
        %v2907 = vshrl.u32 %v2609, 16
        %v2909 = vrot.slane %v2907, 7
        %v2910 = vshll.u32 %v2609, 16
        %v2912 = vor.u32 %v2909, %v2910
        %v2913 = vshrl.u32 %v2611, 16
        %v2915 = vrot.slane %v2913, 7
        %v2916 = vshll.u32 %v2611, 16
        %v2918 = vor.u32 %v2915, %v2916
        %v2919 = vshrl.u32 %v2613, 16
        %v2921 = vrot.slane %v2919, 7
        %v2922 = vshll.u32 %v2613, 16
        %v2924 = vor.u32 %v2921, %v2922
        %v2925 = vshrl.u32 %v2615, 16
        %v2927 = vrot.slane %v2925, 7
        %v2928 = vshll.u32 %v2615, 16
        %v2930 = vor.u32 %v2927, %v2928
        %v2931 = vshrl.u32 %v2617, 16
        %v2933 = vrot.slane %v2931, 7
        %v2934 = vshll.u32 %v2617, 16
        %v2936 = vor.u32 %v2933, %v2934
        %v2937 = vshrl.u32 %v2620, 16
        %v2939 = vrot.slane %v2937, 7
        %v2940 = vshll.u32 %v2620, 16
        %v2942 = vor.u32 %v2939, %v2940
        %v2943 = vshrl.u32 %v2622, 16
        %v2945 = vrot.slane %v2943, 7
        %v2946 = vshll.u32 %v2622, 16
        %v2948 = vor.u32 %v2945, %v2946
        %v2949 = vshrl.u32 %v2624, 16
        %v2951 = vrot.slane %v2949, 7
        %v2952 = vshll.u32 %v2624, 16
        %v2954 = vor.u32 %v2951, %v2952
        %v2955 = vshrl.u32 %v2626, 16
        %v2957 = vrot.slane %v2955, 7
        %v2958 = vshll.u32 %v2626, 16
        %v2960 = vor.u32 %v2957, %v2958
        %v2961 = vshrl.u32 %v2628, 16
        %v2963 = vrot.slane %v2961, 7
        %v2964 = vshll.u32 %v2628, 16
        %v2966 = vor.u32 %v2963, %v2964
        %v2967 = vshrl.u32 %v2630, 16
        %v2969 = vrot.slane %v2967, 7
        %v2970 = vshll.u32 %v2630, 16
        %v2972 = vor.u32 %v2969, %v2970
        %v2973 = vshrl.u32 %v2632, 16
        %v2975 = vrot.slane %v2973, 7
        %v2976 = vshll.u32 %v2632, 16
        %v2978 = vor.u32 %v2975, %v2976
        %v2979 = vshrl.u32 %v2634, 16
        %v2981 = vrot.slane %v2979, 7
        %v2982 = vshll.u32 %v2634, 16
        %v2984 = vor.u32 %v2981, %v2982
        %v2985 = vshrl.u32 %v2637, 16
        %v2987 = vrot.slane %v2985, 7
        %v2988 = vshll.u32 %v2637, 16
        %v2990 = vor.u32 %v2987, %v2988
        %v2991 = vshrl.u32 %v2639, 16
        %v2993 = vrot.slane %v2991, 7
        %v2994 = vshll.u32 %v2639, 16
        %v2996 = vor.u32 %v2993, %v2994
        %v2997 = vshrl.u32 %v2641, 16
        %v2999 = vrot.slane %v2997, 7
        %v3000 = vshll.u32 %v2641, 16
        %v3002 = vor.u32 %v2999, %v3000
        %v3003 = vshrl.u32 %v2643, 16
        %v3005 = vrot.slane %v3003, 7
        %v3006 = vshll.u32 %v2643, 16
        %v3008 = vor.u32 %v3005, %v3006
        %v3009 = vshrl.u32 %v2645, 16
        %v3011 = vrot.slane %v3009, 7
        %v3012 = vshll.u32 %v2645, 16
        %v3014 = vor.u32 %v3011, %v3012
        %v3015 = vshrl.u32 %v2647, 16
        %v3017 = vrot.slane %v3015, 7
        %v3018 = vshll.u32 %v2647, 16
        %v3020 = vor.u32 %v3017, %v3018
        %v3021 = vshrl.u32 %v2649, 16
        %v3023 = vrot.slane %v3021, 7
        %v3024 = vshll.u32 %v2649, 16
        %v3026 = vor.u32 %v3023, %v3024
        %v3027 = vshrl.u32 %v2651, 16
        %v3029 = vrot.slane %v3027, 7
        %v3030 = vshll.u32 %v2651, 16
        %v3032 = vor.u32 %v3029, %v3030
        %v3033 = vshrl.u32 %v2654, 16
        %v3035 = vrot.slane %v3033, 7
        %v3036 = vshll.u32 %v2654, 16
        %v3038 = vor.u32 %v3035, %v3036
        %v3103 = vsel %vm1341, 0, %v2660
        %v3104 = vsel %vm1341, 0, %v2666
        %v3105 = vsel %vm1341, 0, %v2672
        %v3106 = vsel %vm1341, 0, %v2678
        %v3107 = vsel %vm1341, 0, %v2684
        %v3108 = vsel %vm1341, 0, %v2690
        %v3109 = vsel %vm1341, 0, %v2696
        %v3110 = vsel %vm1341, 0, %v2702
        %v3111 = vsel %vm1341, 0, %v2708
        %v3112 = vsel %vm1341, 0, %v2714
        %v3113 = vsel %vm1341, 0, %v2720
        %v3114 = vsel %vm1341, 0, %v2726
        %v3115 = vsel %vm1341, 0, %v2732
        %v3116 = vsel %vm1341, 0, %v2738
        %v3117 = vsel %vm1341, 0, %v2744
        %v3118 = vsel %vm1341, 0, %v2750
        %v3119 = vsel %vm1341, 0, %v2756
        %v3120 = vsel %vm1341, 0, %v2762
        %v3121 = vsel %vm1341, 0, %v2768
        %v3122 = vsel %vm1341, 0, %v2774
        %v3123 = vsel %vm1341, 0, %v2780
        %v3124 = vsel %vm1341, 0, %v2786
        %v3125 = vsel %vm1341, 0, %v2792
        %v3126 = vsel %vm1341, 0, %v2798
        %v3127 = vsel %vm1341, 0, %v2804
        %v3128 = vsel %vm1341, 0, %v2810
        %v3129 = vsel %vm1341, 0, %v2816
        %v3130 = vsel %vm1341, 0, %v2822
        %v3131 = vsel %vm1341, 0, %v2828
        %v3132 = vsel %vm1341, 0, %v2834
        %v3133 = vsel %vm1341, 0, %v2840
        %v3134 = vsel %vm1341, 0, %v2846
        %v3135 = vsel %vm1341, 0, %v2852
        %v3136 = vsel %vm1341, 0, %v2858
        %v3137 = vsel %vm1341, 0, %v2864
        %v3138 = vsel %vm1341, 0, %v2870
        %v3139 = vsel %vm1341, 0, %v2876
        %v3140 = vsel %vm1341, 0, %v2882
        %v3141 = vsel %vm1341, 0, %v2888
        %v3142 = vsel %vm1341, 0, %v2894
        %v3143 = vsel %vm1341, 0, %v2900
        %v3144 = vsel %vm1341, 0, %v2906
        %v3145 = vsel %vm1341, 0, %v2912
        %v3146 = vsel %vm1341, 0, %v2918
        %v3147 = vsel %vm1341, 0, %v2924
        %v3148 = vsel %vm1341, 0, %v2930
        %v3149 = vsel %vm1341, 0, %v2936
        %v3150 = vsel %vm1341, 0, %v2942
        %v3151 = vsel %vm1341, 0, %v2948
        %v3152 = vsel %vm1341, 0, %v2954
        %v3153 = vsel %vm1341, 0, %v2960
        %v3154 = vsel %vm1341, 0, %v2966
        %v3155 = vsel %vm1341, 0, %v2972
        %v3156 = vsel %vm1341, 0, %v2978
        %v3157 = vsel %vm1341, 0, %v2984
        %v3158 = vsel %vm1341, 0, %v2990
        %v3159 = vsel %vm1341, 0, %v2996
        %v3160 = vsel %vm1341, 0, %v3002
        %v3161 = vsel %vm1341, 0, %v3008
        %v3162 = vsel %vm1341, 0, %v3014
        %v3163 = vsel %vm1341, 0, %v3020
        %v3164 = vsel %vm1341, 0, %v3026
        %v3165 = vsel %vm1341, 0, %v3032
        %v3166 = vsel %vm1341, 0, %v3038
        %s3167 = scalar_lea.vmem %s3, 48
        %v3168 = vld [vmem:[%s3167] sm:$0xf]
        %v3169 = vld [vmem:[%s3167 + $0x4] sm:$0xf]
        %v3170 = vld [vmem:[%s3167 + $0x8] sm:$0xf]
        %v3171 = vld [vmem:[%s3167 + $0xc] sm:$0xf]
        %3173 = vst [vmem:[#allocation1] ss:$4 sm:$0xff] %v3103
        %s3175 = scalar_lea.vmem [#allocation1], 1
        %3176 = vst [vmem:[%s3175] ss:$4 sm:$0xff] %v3104
        %s3178 = scalar_lea.vmem [#allocation1], 2
        %3179 = vst [vmem:[%s3178] ss:$4 sm:$0xff] %v3105
        %s3181 = scalar_lea.vmem [#allocation1], 3
        %3182 = vst [vmem:[%s3181] ss:$4 sm:$0xff] %v3106
        %s3184 = scalar_lea.vmem [#allocation1], 32
        %3185 = vst [vmem:[%s3184] ss:$4 sm:$0xff] %v3107
        %s3187 = scalar_lea.vmem [#allocation1], 33
        %3188 = vst [vmem:[%s3187] ss:$4 sm:$0xff] %v3108
        %s3190 = scalar_lea.vmem [#allocation1], 34
        %3191 = vst [vmem:[%s3190] ss:$4 sm:$0xff] %v3109
        %s3193 = scalar_lea.vmem [#allocation1], 35
        %3194 = vst [vmem:[%s3193] ss:$4 sm:$0xff] %v3110
        %v3195 = vld.sshfl [vmem:[#allocation1] sm:$0xff pattern:$0x73625140]
        %v3196 = vld.sshfl [vmem:[#allocation1 + $0x20] sm:$0xff pattern:$0x73625140]
        %3198 = vst [vmem:[#allocation1] ss:$4 sm:$0xff] %v3111
        %3200 = vst [vmem:[%s3175] ss:$4 sm:$0xff] %v3112
        %3202 = vst [vmem:[%s3178] ss:$4 sm:$0xff] %v3113
        %3204 = vst [vmem:[%s3181] ss:$4 sm:$0xff] %v3114
        %3206 = vst [vmem:[%s3184] ss:$4 sm:$0xff] %v3115
        %3208 = vst [vmem:[%s3187] ss:$4 sm:$0xff] %v3116
        %3210 = vst [vmem:[%s3190] ss:$4 sm:$0xff] %v3117
        %3212 = vst [vmem:[%s3193] ss:$4 sm:$0xff] %v3118
        %v3213 = vld.sshfl [vmem:[#allocation1] sm:$0xff pattern:$0x73625140]
        %v3214 = vld.sshfl [vmem:[#allocation1 + $0x20] sm:$0xff pattern:$0x73625140]
        %3216 = vst [vmem:[#allocation1] ss:$4 sm:$0xff] %v3119
        %3218 = vst [vmem:[%s3175] ss:$4 sm:$0xff] %v3120
        %3220 = vst [vmem:[%s3178] ss:$4 sm:$0xff] %v3121
        %3222 = vst [vmem:[%s3181] ss:$4 sm:$0xff] %v3122
        %3224 = vst [vmem:[%s3184] ss:$4 sm:$0xff] %v3123
        %3226 = vst [vmem:[%s3187] ss:$4 sm:$0xff] %v3124
        %3228 = vst [vmem:[%s3190] ss:$4 sm:$0xff] %v3125
        %3230 = vst [vmem:[%s3193] ss:$4 sm:$0xff] %v3126
        %v3231 = vld.sshfl [vmem:[#allocation1] sm:$0xff pattern:$0x73625140]
        %v3232 = vld.sshfl [vmem:[#allocation1 + $0x20] sm:$0xff pattern:$0x73625140]
        %3234 = vst [vmem:[#allocation1] ss:$4 sm:$0xff] %v3127
        %3236 = vst [vmem:[%s3175] ss:$4 sm:$0xff] %v3128
        %3238 = vst [vmem:[%s3178] ss:$4 sm:$0xff] %v3129
        %3240 = vst [vmem:[%s3181] ss:$4 sm:$0xff] %v3130
        %3242 = vst [vmem:[%s3184] ss:$4 sm:$0xff] %v3131
        %3244 = vst [vmem:[%s3187] ss:$4 sm:$0xff] %v3132
        %3246 = vst [vmem:[%s3190] ss:$4 sm:$0xff] %v3133
        %3248 = vst [vmem:[%s3193] ss:$4 sm:$0xff] %v3134
        %v3249 = vld.sshfl [vmem:[#allocation1] sm:$0xff pattern:$0x73625140]
        %v3250 = vld.sshfl [vmem:[#allocation1 + $0x20] sm:$0xff pattern:$0x73625140]
        %3252 = vst [vmem:[#allocation1] ss:$4 sm:$0xff] %v3135
        %3254 = vst [vmem:[%s3175] ss:$4 sm:$0xff] %v3136
        %3256 = vst [vmem:[%s3178] ss:$4 sm:$0xff] %v3137
        %3258 = vst [vmem:[%s3181] ss:$4 sm:$0xff] %v3138
        %3260 = vst [vmem:[%s3184] ss:$4 sm:$0xff] %v3139
        %3262 = vst [vmem:[%s3187] ss:$4 sm:$0xff] %v3140
        %3264 = vst [vmem:[%s3190] ss:$4 sm:$0xff] %v3141
        %3266 = vst [vmem:[%s3193] ss:$4 sm:$0xff] %v3142
        %v3267 = vld.sshfl [vmem:[#allocation1] sm:$0xff pattern:$0x73625140]
        %v3268 = vld.sshfl [vmem:[#allocation1 + $0x20] sm:$0xff pattern:$0x73625140]
        %3270 = vst [vmem:[#allocation1] ss:$4 sm:$0xff] %v3143
        %3272 = vst [vmem:[%s3175] ss:$4 sm:$0xff] %v3144
        %3274 = vst [vmem:[%s3178] ss:$4 sm:$0xff] %v3145
        %3276 = vst [vmem:[%s3181] ss:$4 sm:$0xff] %v3146
        %3278 = vst [vmem:[%s3184] ss:$4 sm:$0xff] %v3147
        %3280 = vst [vmem:[%s3187] ss:$4 sm:$0xff] %v3148
        %3282 = vst [vmem:[%s3190] ss:$4 sm:$0xff] %v3149
        %3284 = vst [vmem:[%s3193] ss:$4 sm:$0xff] %v3150
        %v3285 = vld.sshfl [vmem:[#allocation1] sm:$0xff pattern:$0x73625140]
        %v3286 = vld.sshfl [vmem:[#allocation1 + $0x20] sm:$0xff pattern:$0x73625140]
        %3288 = vst [vmem:[#allocation1] ss:$4 sm:$0xff] %v3151
        %3290 = vst [vmem:[%s3175] ss:$4 sm:$0xff] %v3152
        %3292 = vst [vmem:[%s3178] ss:$4 sm:$0xff] %v3153
        %3294 = vst [vmem:[%s3181] ss:$4 sm:$0xff] %v3154
        %3296 = vst [vmem:[%s3184] ss:$4 sm:$0xff] %v3155
        %3298 = vst [vmem:[%s3187] ss:$4 sm:$0xff] %v3156
        %3300 = vst [vmem:[%s3190] ss:$4 sm:$0xff] %v3157
        %3302 = vst [vmem:[%s3193] ss:$4 sm:$0xff] %v3158
        %v3303 = vld.sshfl [vmem:[#allocation1] sm:$0xff pattern:$0x73625140]
        %v3304 = vld.sshfl [vmem:[#allocation1 + $0x20] sm:$0xff pattern:$0x73625140]
        %3306 = vst [vmem:[#allocation1] ss:$4 sm:$0xff] %v3159
        %3308 = vst [vmem:[%s3175] ss:$4 sm:$0xff] %v3160
        %3310 = vst [vmem:[%s3178] ss:$4 sm:$0xff] %v3161
        %3312 = vst [vmem:[%s3181] ss:$4 sm:$0xff] %v3162
        %3314 = vst [vmem:[%s3184] ss:$4 sm:$0xff] %v3163
        %3316 = vst [vmem:[%s3187] ss:$4 sm:$0xff] %v3164
        %3318 = vst [vmem:[%s3190] ss:$4 sm:$0xff] %v3165
        %3320 = vst [vmem:[%s3193] ss:$4 sm:$0xff] %v3166
        %v3321 = vld.sshfl [vmem:[#allocation1] sm:$0xff pattern:$0x73625140]
        %v3322 = vld.sshfl [vmem:[#allocation1 + $0x20] sm:$0xff pattern:$0x73625140]
        %v3327 = vunpack.c.l.b16 %v3168
        %v3328 = vunpack.c.l.b16 %v3169
        %v3329 = vunpack.c.l.b16 %v3170
        %v3330 = vunpack.c.l.b16 %v3171
        %v3331 = vpack.c.b16 %v3328, %v3327
        %v3332 = vpack.c.b16 %v3330, %v3329
        %v3335 = vsel %vm1559, %v3195, 0
        %v3337 = vsel %vm1559, %v3196, 0
        %v3339 = vsel %vm1559, %v3213, 0
        %v3341 = vsel %vm1559, %v3214, 0
        %v3343 = vsel %vm1559, %v3231, 0
        %v3345 = vsel %vm1559, %v3232, 0
        %v3347 = vsel %vm1559, %v3249, 0
        %v3349 = vsel %vm1559, %v3250, 0
        %v3351 = vsel %vm1559, %v3267, 0
        %v3353 = vsel %vm1559, %v3268, 0
        %v3355 = vsel %vm1559, %v3285, 0
        %v3357 = vsel %vm1559, %v3286, 0
        %v3359 = vsel %vm1559, %v3303, 0
        %v3361 = vsel %vm1559, %v3304, 0
        %v3363 = vsel %vm1559, %v3321, 0
        %v3365 = vsel %vm1559, %v3322, 0
        %3367 = vmatpush.bf16.msra.mxu0 0
        %3368 = vmatpush.bf16.msra.mxu0 0
        %3369 = vmatpush.bf16.msra.mxu0 0
        %3370 = vmatpush.bf16.msra.mxu0 0
        %3371 = vmatpush.bf16.msra.mxu0 0
        %3372 = vmatpush.bf16.msra.mxu0 0
        %3373 = vmatpush.bf16.msra.mxu0 %v3332
        %3374 = vmatpush.bf16.msra.mxu0 %v3331
        %3375 = vmatmul.bf16.gmra.mxu0 %v3335
        %v3376 = vpop.f32.mrf.mxu0
        %v3377 = vadd.f32 0.0, %v3376
        %v3378 = vpop.f32.mrf.mxu0
        %v3379 = vadd.f32 0.0, %v3378
        %3380 = vmatmul.bf16.gmra.mxu0 %v3337
        %v3381 = vpop.f32.mrf.mxu0
        %v3382 = vadd.f32 0.0, %v3381
        %v3383 = vpop.f32.mrf.mxu0
        %v3384 = vadd.f32 0.0, %v3383
        %3385 = vmatmul.bf16.gmra.mxu0 %v3339
        %v3386 = vpop.f32.mrf.mxu0
        %v3387 = vadd.f32 0.0, %v3386
        %v3388 = vpop.f32.mrf.mxu0
        %v3389 = vadd.f32 0.0, %v3388
        %3390 = vmatmul.bf16.gmra.mxu0 %v3341
        %v3391 = vpop.f32.mrf.mxu0
        %v3392 = vadd.f32 0.0, %v3391
        %v3393 = vpop.f32.mrf.mxu0
        %v3394 = vadd.f32 0.0, %v3393
        %3395 = vmatmul.bf16.gmra.mxu0 %v3343
        %v3396 = vpop.f32.mrf.mxu0
        %v3397 = vadd.f32 0.0, %v3396
        %v3398 = vpop.f32.mrf.mxu0
        %v3399 = vadd.f32 0.0, %v3398
        %3400 = vmatmul.bf16.gmra.mxu0 %v3345
        %v3401 = vpop.f32.mrf.mxu0
        %v3402 = vadd.f32 0.0, %v3401
        %v3403 = vpop.f32.mrf.mxu0
        %v3404 = vadd.f32 0.0, %v3403
        %3405 = vmatmul.bf16.gmra.mxu0 %v3347
        %v3406 = vpop.f32.mrf.mxu0
        %v3407 = vadd.f32 0.0, %v3406
        %v3408 = vpop.f32.mrf.mxu0
        %v3409 = vadd.f32 0.0, %v3408
        %3410 = vmatmul.bf16.gmra.mxu0 %v3349
        %v3411 = vpop.f32.mrf.mxu0
        %v3412 = vadd.f32 0.0, %v3411
        %v3413 = vpop.f32.mrf.mxu0
        %v3414 = vadd.f32 0.0, %v3413
        %3415 = vmatmul.bf16.gmra.mxu0 %v3351
        %v3416 = vpop.f32.mrf.mxu0
        %v3417 = vadd.f32 0.0, %v3416
        %v3418 = vpop.f32.mrf.mxu0
        %v3419 = vadd.f32 0.0, %v3418
        %3420 = vmatmul.bf16.gmra.mxu0 %v3353
        %v3421 = vpop.f32.mrf.mxu0
        %v3422 = vadd.f32 0.0, %v3421
        %v3423 = vpop.f32.mrf.mxu0
        %v3424 = vadd.f32 0.0, %v3423
        %3425 = vmatmul.bf16.gmra.mxu0 %v3355
        %v3426 = vpop.f32.mrf.mxu0
        %v3427 = vadd.f32 0.0, %v3426
        %v3428 = vpop.f32.mrf.mxu0
        %v3429 = vadd.f32 0.0, %v3428
        %3430 = vmatmul.bf16.gmra.mxu0 %v3357
        %v3431 = vpop.f32.mrf.mxu0
        %v3432 = vadd.f32 0.0, %v3431
        %v3433 = vpop.f32.mrf.mxu0
        %v3434 = vadd.f32 0.0, %v3433
        %3435 = vmatmul.bf16.gmra.mxu0 %v3359
        %v3436 = vpop.f32.mrf.mxu0
        %v3437 = vadd.f32 0.0, %v3436
        %v3438 = vpop.f32.mrf.mxu0
        %v3439 = vadd.f32 0.0, %v3438
        %3440 = vmatmul.bf16.gmra.mxu0 %v3361
        %v3441 = vpop.f32.mrf.mxu0
        %v3442 = vadd.f32 0.0, %v3441
        %v3443 = vpop.f32.mrf.mxu0
        %v3444 = vadd.f32 0.0, %v3443
        %3445 = vmatmul.bf16.gmra.mxu0 %v3363
        %v3446 = vpop.f32.mrf.mxu0
        %v3447 = vadd.f32 0.0, %v3446
        %v3448 = vpop.f32.mrf.mxu0
        %v3449 = vadd.f32 0.0, %v3448
        %3450 = vmatmul.bf16.gmra.mxu0 %v3365
        %v3451 = vpop.f32.mrf.mxu0
        %v3452 = vadd.f32 0.0, %v3451
        %v3453 = vpop.f32.mrf.mxu0
        %v3454 = vadd.f32 0.0, %v3453
        %3455 = vdwg.mxu0
        %v3456 = vadd.f32 %v2486, %v3377
        %v3457 = vadd.f32 %v2487, %v3379
        %v3458 = vadd.f32 %v2488, %v3382
        %v3459 = vadd.f32 %v2489, %v3384
        %v3460 = vadd.f32 %v2490, %v3387
        %v3461 = vadd.f32 %v2491, %v3389
        %v3462 = vadd.f32 %v2492, %v3392
        %v3463 = vadd.f32 %v2493, %v3394
        %v3464 = vadd.f32 %v2494, %v3397
        %v3465 = vadd.f32 %v2495, %v3399
        %v3466 = vadd.f32 %v2496, %v3402
        %v3467 = vadd.f32 %v2497, %v3404
        %v3468 = vadd.f32 %v2498, %v3407
        %v3469 = vadd.f32 %v2499, %v3409
        %v3470 = vadd.f32 %v2500, %v3412
        %v3471 = vadd.f32 %v2501, %v3414
        %v3472 = vadd.f32 %v2502, %v3417
        %v3473 = vadd.f32 %v2503, %v3419
        %v3474 = vadd.f32 %v2504, %v3422
        %v3475 = vadd.f32 %v2505, %v3424
        %v3476 = vadd.f32 %v2506, %v3427
        %v3477 = vadd.f32 %v2507, %v3429
        %v3478 = vadd.f32 %v2508, %v3432
        %v3479 = vadd.f32 %v2509, %v3434
        %v3480 = vadd.f32 %v2510, %v3437
        %v3481 = vadd.f32 %v2511, %v3439
        %v3482 = vadd.f32 %v2512, %v3442
        %v3483 = vadd.f32 %v2513, %v3444
        %v3484 = vadd.f32 %v2514, %v3447
        %v3485 = vadd.f32 %v2515, %v3449
        %v3486 = vadd.f32 %v2516, %v3452
        %v3487 = vadd.f32 %v2517, %v3454
        %s3488 = scalar_lea.vmem %s3, 64
        %v3489 = vld [vmem:[%s3488] sm:$0xf]
        %v3490 = vld [vmem:[%s3488 + $0x4] sm:$0xf]
        %v3491 = vld [vmem:[%s3488 + $0x8] sm:$0xf]
        %v3492 = vld [vmem:[%s3488 + $0xc] sm:$0xf]
        %v3493 = vunpack.c.l.b16 %v624
        %v3494 = vunpack.c.l.b16 %v625
        %v3495 = vunpack.c.l.b16 %v626
        %v3496 = vunpack.c.l.b16 %v627
        %v3497 = vunpack.c.l.b16 %v628
        %v3498 = vunpack.c.l.b16 %v629
        %v3499 = vunpack.c.l.b16 %v630
        %v3500 = vunpack.c.l.b16 %v631
        %v3501 = vunpack.c.l.b16 %v632
        %v3502 = vunpack.c.l.b16 %v633
        %v3503 = vunpack.c.l.b16 %v634
        %v3504 = vunpack.c.l.b16 %v635
        %v3505 = vunpack.c.l.b16 %v636
        %v3506 = vunpack.c.l.b16 %v637
        %v3507 = vunpack.c.l.b16 %v638
        %v3508 = vunpack.c.l.b16 %v639
        %v3509 = vunpack.c.l.b16 %v640
        %v3510 = vunpack.c.l.b16 %v641
        %v3511 = vunpack.c.l.b16 %v642
        %v3512 = vunpack.c.l.b16 %v643
        %v3513 = vunpack.c.l.b16 %v644
        %v3514 = vunpack.c.l.b16 %v645
        %v3515 = vunpack.c.l.b16 %v646
        %v3516 = vunpack.c.l.b16 %v647
        %v3517 = vunpack.c.l.b16 %v648
        %v3518 = vunpack.c.l.b16 %v649
        %v3519 = vunpack.c.l.b16 %v650
        %v3520 = vunpack.c.l.b16 %v651
        %v3521 = vunpack.c.l.b16 %v652
        %v3522 = vunpack.c.l.b16 %v653
        %v3523 = vunpack.c.l.b16 %v654
        %v3524 = vunpack.c.l.b16 %v655
        %v3525 = vpack.c.b16 %v3494, %v3493
        %v3526 = vpack.c.b16 %v3496, %v3495
        %v3527 = vpack.c.b16 %v3498, %v3497
        %v3528 = vpack.c.b16 %v3500, %v3499
        %v3529 = vpack.c.b16 %v3502, %v3501
        %v3530 = vpack.c.b16 %v3504, %v3503
        %v3531 = vpack.c.b16 %v3506, %v3505
        %v3532 = vpack.c.b16 %v3508, %v3507
        %v3533 = vpack.c.b16 %v3510, %v3509
        %v3534 = vpack.c.b16 %v3512, %v3511
        %v3535 = vpack.c.b16 %v3514, %v3513
        %v3536 = vpack.c.b16 %v3516, %v3515
        %v3537 = vpack.c.b16 %v3518, %v3517
        %v3538 = vpack.c.b16 %v3520, %v3519
        %v3539 = vpack.c.b16 %v3522, %v3521
        %v3540 = vpack.c.b16 %v3524, %v3523
        %v3545 = vunpack.c.l.b16 %v3489
        %v3546 = vunpack.c.l.b16 %v3490
        %v3547 = vunpack.c.l.b16 %v3491
        %v3548 = vunpack.c.l.b16 %v3492
        %v3549 = vpack.c.b16 %v3546, %v3545
        %v3550 = vpack.c.b16 %v3548, %v3547
        %v3554 = vsel %vm1559, %v3525, 0
        %v3557 = vsel %vm1559, %v3526, 0
        %v3560 = vsel %vm1559, %v3527, 0
        %v3563 = vsel %vm1559, %v3528, 0
        %v3566 = vsel %vm1559, %v3529, 0
        %v3569 = vsel %vm1559, %v3530, 0
        %v3572 = vsel %vm1559, %v3531, 0
        %v3575 = vsel %vm1559, %v3532, 0
        %v3578 = vsel %vm1559, %v3533, 0
        %v3581 = vsel %vm1559, %v3534, 0
        %v3584 = vsel %vm1559, %v3535, 0
        %v3587 = vsel %vm1559, %v3536, 0
        %v3590 = vsel %vm1559, %v3537, 0
        %v3593 = vsel %vm1559, %v3538, 0
        %v3596 = vsel %vm1559, %v3539, 0
        %v3599 = vsel %vm1559, %v3540, 0
        %3601 = vmatpush.bf16.msra.mxu0 0
        %3602 = vmatpush.bf16.msra.mxu0 0
        %3603 = vmatpush.bf16.msra.mxu0 0
        %3604 = vmatpush.bf16.msra.mxu0 0
        %3605 = vmatpush.bf16.msra.mxu0 0
        %3606 = vmatpush.bf16.msra.mxu0 0
        %3607 = vmatpush.bf16.msra.mxu0 %v3550
        %3608 = vmatpush.bf16.msra.mxu0 %v3549
        %3609 = vmatmul.bf16.gmra.mxu0 %v3554
        %v3610 = vpop.f32.mrf.mxu0
        %v3611 = vadd.f32 0.0, %v3610
        %v3612 = vpop.f32.mrf.mxu0
        %v3613 = vadd.f32 0.0, %v3612
        %3614 = vmatmul.bf16.gmra.mxu0 %v3557
        %v3615 = vpop.f32.mrf.mxu0
        %v3616 = vadd.f32 0.0, %v3615
        %v3617 = vpop.f32.mrf.mxu0
        %v3618 = vadd.f32 0.0, %v3617
        %3619 = vmatmul.bf16.gmra.mxu0 %v3560
        %v3620 = vpop.f32.mrf.mxu0
        %v3621 = vadd.f32 0.0, %v3620
        %v3622 = vpop.f32.mrf.mxu0
        %v3623 = vadd.f32 0.0, %v3622
        %3624 = vmatmul.bf16.gmra.mxu0 %v3563
        %v3625 = vpop.f32.mrf.mxu0
        %v3626 = vadd.f32 0.0, %v3625
        %v3627 = vpop.f32.mrf.mxu0
        %v3628 = vadd.f32 0.0, %v3627
        %3629 = vmatmul.bf16.gmra.mxu0 %v3566
        %v3630 = vpop.f32.mrf.mxu0
        %v3631 = vadd.f32 0.0, %v3630
        %v3632 = vpop.f32.mrf.mxu0
        %v3633 = vadd.f32 0.0, %v3632
        %3634 = vmatmul.bf16.gmra.mxu0 %v3569
        %v3635 = vpop.f32.mrf.mxu0
        %v3636 = vadd.f32 0.0, %v3635
        %v3637 = vpop.f32.mrf.mxu0
        %v3638 = vadd.f32 0.0, %v3637
        %3639 = vmatmul.bf16.gmra.mxu0 %v3572
        %v3640 = vpop.f32.mrf.mxu0
        %v3641 = vadd.f32 0.0, %v3640
        %v3642 = vpop.f32.mrf.mxu0
        %v3643 = vadd.f32 0.0, %v3642
        %3644 = vmatmul.bf16.gmra.mxu0 %v3575
        %v3645 = vpop.f32.mrf.mxu0
        %v3646 = vadd.f32 0.0, %v3645
        %v3647 = vpop.f32.mrf.mxu0
        %v3648 = vadd.f32 0.0, %v3647
        %3649 = vmatmul.bf16.gmra.mxu0 %v3578
        %v3650 = vpop.f32.mrf.mxu0
        %v3651 = vadd.f32 0.0, %v3650
        %v3652 = vpop.f32.mrf.mxu0
        %v3653 = vadd.f32 0.0, %v3652
        %3654 = vmatmul.bf16.gmra.mxu0 %v3581
        %v3655 = vpop.f32.mrf.mxu0
        %v3656 = vadd.f32 0.0, %v3655
        %v3657 = vpop.f32.mrf.mxu0
        %v3658 = vadd.f32 0.0, %v3657
        %3659 = vmatmul.bf16.gmra.mxu0 %v3584
        %v3660 = vpop.f32.mrf.mxu0
        %v3661 = vadd.f32 0.0, %v3660
        %v3662 = vpop.f32.mrf.mxu0
        %v3663 = vadd.f32 0.0, %v3662
        %3664 = vmatmul.bf16.gmra.mxu0 %v3587
        %v3665 = vpop.f32.mrf.mxu0
        %v3666 = vadd.f32 0.0, %v3665
        %v3667 = vpop.f32.mrf.mxu0
        %v3668 = vadd.f32 0.0, %v3667
        %3669 = vmatmul.bf16.gmra.mxu0 %v3590
        %v3670 = vpop.f32.mrf.mxu0
        %v3671 = vadd.f32 0.0, %v3670
        %v3672 = vpop.f32.mrf.mxu0
        %v3673 = vadd.f32 0.0, %v3672
        %3674 = vmatmul.bf16.gmra.mxu0 %v3593
        %v3675 = vpop.f32.mrf.mxu0
        %v3676 = vadd.f32 0.0, %v3675
        %v3677 = vpop.f32.mrf.mxu0
        %v3678 = vadd.f32 0.0, %v3677
        %3679 = vmatmul.bf16.gmra.mxu0 %v3596
        %v3680 = vpop.f32.mrf.mxu0
        %v3681 = vadd.f32 0.0, %v3680
        %v3682 = vpop.f32.mrf.mxu0
        %v3683 = vadd.f32 0.0, %v3682
        %3684 = vmatmul.bf16.gmra.mxu0 %v3599
        %v3685 = vpop.f32.mrf.mxu0
        %v3686 = vadd.f32 0.0, %v3685
        %v3687 = vpop.f32.mrf.mxu0
        %v3688 = vadd.f32 0.0, %v3687
        %3689 = vdwg.mxu0
        %v3690 = vadd.f32 %v3456, %v3611
        %v3691 = vadd.f32 %v3457, %v3613
        %v3692 = vadd.f32 %v3458, %v3616
        %v3693 = vadd.f32 %v3459, %v3618
        %v3694 = vadd.f32 %v3460, %v3621
        %v3695 = vadd.f32 %v3461, %v3623
        %v3696 = vadd.f32 %v3462, %v3626
        %v3697 = vadd.f32 %v3463, %v3628
        %v3698 = vadd.f32 %v3464, %v3631
        %v3699 = vadd.f32 %v3465, %v3633
        %v3700 = vadd.f32 %v3466, %v3636
        %v3701 = vadd.f32 %v3467, %v3638
        %v3702 = vadd.f32 %v3468, %v3641
        %v3703 = vadd.f32 %v3469, %v3643
        %v3704 = vadd.f32 %v3470, %v3646
        %v3705 = vadd.f32 %v3471, %v3648
        %v3706 = vadd.f32 %v3472, %v3651
        %v3707 = vadd.f32 %v3473, %v3653
        %v3708 = vadd.f32 %v3474, %v3656
        %v3709 = vadd.f32 %v3475, %v3658
        %v3710 = vadd.f32 %v3476, %v3661
        %v3711 = vadd.f32 %v3477, %v3663
        %v3712 = vadd.f32 %v3478, %v3666
        %v3713 = vadd.f32 %v3479, %v3668
        %v3714 = vadd.f32 %v3480, %v3671
        %v3715 = vadd.f32 %v3481, %v3673
        %v3716 = vadd.f32 %v3482, %v3676
        %v3717 = vadd.f32 %v3483, %v3678
        %v3718 = vadd.f32 %v3484, %v3681
        %v3719 = vadd.f32 %v3485, %v3683
        %v3720 = vadd.f32 %v3486, %v3686
        %v3721 = vadd.f32 %v3487, %v3688
        %3722 = vst [vmem:[#allocation1] ss:$4 sm:$0xff] %v723
        %v3723 = vld.sshfl [vmem:[#allocation1] sm:$0xff pattern:$0x73625140]
        %s3724 = scalar_lea.vmem [#allocation1], 32
        %3725 = vst [vmem:[%s3724] ss:$4 sm:$0xff] %v727
        %v3726 = vld.sshfl [vmem:[#allocation1 + $0x20] sm:$0xff pattern:$0x73625140]
        %3727 = vst [vmem:[#allocation1] ss:$4 sm:$0xff] %v730
        %v3728 = vld.sshfl [vmem:[#allocation1] sm:$0xff pattern:$0x73625140]
        %3729 = vst [vmem:[%s3724] ss:$4 sm:$0xff] %v733
        %v3730 = vld.sshfl [vmem:[#allocation1 + $0x20] sm:$0xff pattern:$0x73625140]
        %3731 = vst [vmem:[#allocation1] ss:$4 sm:$0xff] %v736
        %v3732 = vld.sshfl [vmem:[#allocation1] sm:$0xff pattern:$0x73625140]
        %3733 = vst [vmem:[%s3724] ss:$4 sm:$0xff] %v739
        %v3734 = vld.sshfl [vmem:[#allocation1 + $0x20] sm:$0xff pattern:$0x73625140]
        %3735 = vst [vmem:[#allocation1] ss:$4 sm:$0xff] %v742
        %v3736 = vld.sshfl [vmem:[#allocation1] sm:$0xff pattern:$0x73625140]
        %3737 = vst [vmem:[%s3724] ss:$4 sm:$0xff] %v745
        %v3738 = vld.sshfl [vmem:[#allocation1 + $0x20] sm:$0xff pattern:$0x73625140]
        %3739 = vst [vmem:[#allocation1] ss:$4 sm:$0xff] %v748
        %v3740 = vld.sshfl [vmem:[#allocation1] sm:$0xff pattern:$0x73625140]
        %3741 = vst [vmem:[%s3724] ss:$4 sm:$0xff] %v751
        %v3742 = vld.sshfl [vmem:[#allocation1 + $0x20] sm:$0xff pattern:$0x73625140]
        %3743 = vst [vmem:[#allocation1] ss:$4 sm:$0xff] %v754
        %v3744 = vld.sshfl [vmem:[#allocation1] sm:$0xff pattern:$0x73625140]
        %3745 = vst [vmem:[%s3724] ss:$4 sm:$0xff] %v757
        %v3746 = vld.sshfl [vmem:[#allocation1 + $0x20] sm:$0xff pattern:$0x73625140]
        %3747 = vst [vmem:[#allocation1] ss:$4 sm:$0xff] %v760
        %v3748 = vld.sshfl [vmem:[#allocation1] sm:$0xff pattern:$0x73625140]
        %3749 = vst [vmem:[%s3724] ss:$4 sm:$0xff] %v763
        %v3750 = vld.sshfl [vmem:[#allocation1 + $0x20] sm:$0xff pattern:$0x73625140]
        %3751 = vst [vmem:[#allocation1] ss:$4 sm:$0xff] %v766
        %v3752 = vld.sshfl [vmem:[#allocation1] sm:$0xff pattern:$0x73625140]
        %3753 = vst [vmem:[%s3724] ss:$4 sm:$0xff] %v769
        %v3754 = vld.sshfl [vmem:[#allocation1 + $0x20] sm:$0xff pattern:$0x73625140]
        %3755 = vst [vmem:[#allocation1] ss:$4 sm:$0xff] %v772
        %v3756 = vld.sshfl [vmem:[#allocation1] sm:$0xff pattern:$0x73625140]
        %3757 = vst [vmem:[%s3724] ss:$4 sm:$0xff] %v775
        %v3758 = vld.sshfl [vmem:[#allocation1 + $0x20] sm:$0xff pattern:$0x73625140]
        %3759 = vst [vmem:[#allocation1] ss:$4 sm:$0xff] %v778
        %v3760 = vld.sshfl [vmem:[#allocation1] sm:$0xff pattern:$0x73625140]
        %3761 = vst [vmem:[%s3724] ss:$4 sm:$0xff] %v781
        %v3762 = vld.sshfl [vmem:[#allocation1 + $0x20] sm:$0xff pattern:$0x73625140]
        %3763 = vst [vmem:[#allocation1] ss:$4 sm:$0xff] %v784
        %v3764 = vld.sshfl [vmem:[#allocation1] sm:$0xff pattern:$0x73625140]
        %3765 = vst [vmem:[%s3724] ss:$4 sm:$0xff] %v787
        %v3766 = vld.sshfl [vmem:[#allocation1 + $0x20] sm:$0xff pattern:$0x73625140]
        %3767 = vst [vmem:[#allocation1] ss:$4 sm:$0xff] %v790
        %v3768 = vld.sshfl [vmem:[#allocation1] sm:$0xff pattern:$0x73625140]
        %3769 = vst [vmem:[%s3724] ss:$4 sm:$0xff] %v793
        %v3770 = vld.sshfl [vmem:[#allocation1 + $0x20] sm:$0xff pattern:$0x73625140]
        %3771 = vst [vmem:[#allocation1] ss:$4 sm:$0xff] %v796
        %v3772 = vld.sshfl [vmem:[#allocation1] sm:$0xff pattern:$0x73625140]
        %3773 = vst [vmem:[%s3724] ss:$4 sm:$0xff] %v799
        %v3774 = vld.sshfl [vmem:[#allocation1 + $0x20] sm:$0xff pattern:$0x73625140]
        %3775 = vst [vmem:[#allocation1] ss:$4 sm:$0xff] %v802
        %v3776 = vld.sshfl [vmem:[#allocation1] sm:$0xff pattern:$0x73625140]
        %3777 = vst [vmem:[%s3724] ss:$4 sm:$0xff] %v805
        %v3778 = vld.sshfl [vmem:[#allocation1 + $0x20] sm:$0xff pattern:$0x73625140]
        %3779 = vst [vmem:[#allocation1] ss:$4 sm:$0xff] %v808
        %v3780 = vld.sshfl [vmem:[#allocation1] sm:$0xff pattern:$0x73625140]
        %3781 = vst [vmem:[%s3724] ss:$4 sm:$0xff] %v811
        %v3782 = vld.sshfl [vmem:[#allocation1 + $0x20] sm:$0xff pattern:$0x73625140]
        %3783 = vst [vmem:[#allocation1] ss:$4 sm:$0xff] %v814
        %v3784 = vld.sshfl [vmem:[#allocation1] sm:$0xff pattern:$0x73625140]
        %3785 = vst [vmem:[%s3724] ss:$4 sm:$0xff] %v817
        %v3786 = vld.sshfl [vmem:[#allocation1 + $0x20] sm:$0xff pattern:$0x73625140]
        %3787 = vst [vmem:[#allocation1] ss:$4 sm:$0xff] %v820
        %v3788 = vld.sshfl [vmem:[#allocation1] sm:$0xff pattern:$0x73625140]
        %3789 = vst [vmem:[%s3724] ss:$4 sm:$0xff] %v823
        %v3790 = vld.sshfl [vmem:[#allocation1 + $0x20] sm:$0xff pattern:$0x73625140]
        %3791 = vst [vmem:[#allocation1] ss:$4 sm:$0xff] %v826
        %v3792 = vld.sshfl [vmem:[#allocation1] sm:$0xff pattern:$0x73625140]
        %3793 = vst [vmem:[%s3724] ss:$4 sm:$0xff] %v829
        %v3794 = vld.sshfl [vmem:[#allocation1 + $0x20] sm:$0xff pattern:$0x73625140]
        %3795 = vst [vmem:[#allocation1] ss:$4 sm:$0xff] %v832
        %v3796 = vld.sshfl [vmem:[#allocation1] sm:$0xff pattern:$0x73625140]
        %3797 = vst [vmem:[%s3724] ss:$4 sm:$0xff] %v835
        %v3798 = vld.sshfl [vmem:[#allocation1 + $0x20] sm:$0xff pattern:$0x73625140]
        %3799 = vst [vmem:[#allocation1] ss:$4 sm:$0xff] %v838
        %v3800 = vld.sshfl [vmem:[#allocation1] sm:$0xff pattern:$0x73625140]
        %3801 = vst [vmem:[%s3724] ss:$4 sm:$0xff] %v841
        %v3802 = vld.sshfl [vmem:[#allocation1 + $0x20] sm:$0xff pattern:$0x73625140]
        %3803 = vst [vmem:[#allocation1] ss:$4 sm:$0xff] %v844
        %v3804 = vld.sshfl [vmem:[#allocation1] sm:$0xff pattern:$0x73625140]
        %3805 = vst [vmem:[%s3724] ss:$4 sm:$0xff] %v847
        %v3806 = vld.sshfl [vmem:[#allocation1 + $0x20] sm:$0xff pattern:$0x73625140]
        %3807 = vst [vmem:[#allocation1] ss:$4 sm:$0xff] %v850
        %v3808 = vld.sshfl [vmem:[#allocation1] sm:$0xff pattern:$0x73625140]
        %3809 = vst [vmem:[%s3724] ss:$4 sm:$0xff] %v853
        %v3810 = vld.sshfl [vmem:[#allocation1 + $0x20] sm:$0xff pattern:$0x73625140]
        %3811 = vst [vmem:[#allocation1] ss:$4 sm:$0xff] %v856
        %v3812 = vld.sshfl [vmem:[#allocation1] sm:$0xff pattern:$0x73625140]
        %3813 = vst [vmem:[%s3724] ss:$4 sm:$0xff] %v859
        %v3814 = vld.sshfl [vmem:[#allocation1 + $0x20] sm:$0xff pattern:$0x73625140]
        %3815 = vst [vmem:[#allocation1] ss:$4 sm:$0xff] %v862
        %v3816 = vld.sshfl [vmem:[#allocation1] sm:$0xff pattern:$0x73625140]
        %3817 = vst [vmem:[%s3724] ss:$4 sm:$0xff] %v865
        %v3818 = vld.sshfl [vmem:[#allocation1 + $0x20] sm:$0xff pattern:$0x73625140]
        %3819 = vst [vmem:[#allocation1] ss:$4 sm:$0xff] %v868
        %v3820 = vld.sshfl [vmem:[#allocation1] sm:$0xff pattern:$0x73625140]
        %3821 = vst [vmem:[%s3724] ss:$4 sm:$0xff] %v871
        %v3822 = vld.sshfl [vmem:[#allocation1 + $0x20] sm:$0xff pattern:$0x73625140]
        %3823 = vst [vmem:[#allocation1] ss:$4 sm:$0xff] %v874
        %v3824 = vld.sshfl [vmem:[#allocation1] sm:$0xff pattern:$0x73625140]
        %3825 = vst [vmem:[%s3724] ss:$4 sm:$0xff] %v877
        %v3826 = vld.sshfl [vmem:[#allocation1 + $0x20] sm:$0xff pattern:$0x73625140]
        %3827 = vst [vmem:[#allocation1] ss:$4 sm:$0xff] %v880
        %v3828 = vld.sshfl [vmem:[#allocation1] sm:$0xff pattern:$0x73625140]
        %3829 = vst [vmem:[%s3724] ss:$4 sm:$0xff] %v883
        %v3830 = vld.sshfl [vmem:[#allocation1 + $0x20] sm:$0xff pattern:$0x73625140]
        %3831 = vst [vmem:[#allocation1] ss:$4 sm:$0xff] %v886
        %v3832 = vld.sshfl [vmem:[#allocation1] sm:$0xff pattern:$0x73625140]
        %3833 = vst [vmem:[%s3724] ss:$4 sm:$0xff] %v889
        %v3834 = vld.sshfl [vmem:[#allocation1 + $0x20] sm:$0xff pattern:$0x73625140]
        %3835 = vst [vmem:[#allocation1] ss:$4 sm:$0xff] %v892
        %v3836 = vld.sshfl [vmem:[#allocation1] sm:$0xff pattern:$0x73625140]
        %3837 = vst [vmem:[%s3724] ss:$4 sm:$0xff] %v895
        %v3838 = vld.sshfl [vmem:[#allocation1 + $0x20] sm:$0xff pattern:$0x73625140]
        %3839 = vst [vmem:[#allocation1] ss:$4 sm:$0xff] %v898
        %v3840 = vld.sshfl [vmem:[#allocation1] sm:$0xff pattern:$0x73625140]
        %3841 = vst [vmem:[%s3724] ss:$4 sm:$0xff] %v901
        %v3842 = vld.sshfl [vmem:[#allocation1 + $0x20] sm:$0xff pattern:$0x73625140]
        %3843 = vst [vmem:[#allocation1] ss:$4 sm:$0xff] %v904
        %v3844 = vld.sshfl [vmem:[#allocation1] sm:$0xff pattern:$0x73625140]
        %3845 = vst [vmem:[%s3724] ss:$4 sm:$0xff] %v907
        %v3846 = vld.sshfl [vmem:[#allocation1 + $0x20] sm:$0xff pattern:$0x73625140]
        %3847 = vst [vmem:[#allocation1] ss:$4 sm:$0xff] %v910
        %v3848 = vld.sshfl [vmem:[#allocation1] sm:$0xff pattern:$0x73625140]
        %3849 = vst [vmem:[%s3724] ss:$4 sm:$0xff] %v913
        %v3850 = vld.sshfl [vmem:[#allocation1 + $0x20] sm:$0xff pattern:$0x73625140]
        %v3851 = vshrl.u32 %v3723, 16
        %v3853 = vshll.u32 %v3723, 16
        %v3855 = vrot.slane %v3853, 1
        %v3856 = vor.u32 %v3851, %v3855
        %v3857 = vshrl.u32 %v3726, 16
        %v3859 = vshll.u32 %v3726, 16
        %v3861 = vrot.slane %v3859, 1
        %v3862 = vor.u32 %v3857, %v3861
        %v3863 = vshrl.u32 %v3728, 16
        %v3865 = vshll.u32 %v3728, 16
        %v3867 = vrot.slane %v3865, 1
        %v3868 = vor.u32 %v3863, %v3867
        %v3869 = vshrl.u32 %v3730, 16
        %v3871 = vshll.u32 %v3730, 16
        %v3873 = vrot.slane %v3871, 1
        %v3874 = vor.u32 %v3869, %v3873
        %v3875 = vshrl.u32 %v3732, 16
        %v3877 = vshll.u32 %v3732, 16
        %v3879 = vrot.slane %v3877, 1
        %v3880 = vor.u32 %v3875, %v3879
        %v3881 = vshrl.u32 %v3734, 16
        %v3883 = vshll.u32 %v3734, 16
        %v3885 = vrot.slane %v3883, 1
        %v3886 = vor.u32 %v3881, %v3885
        %v3887 = vshrl.u32 %v3736, 16
        %v3889 = vshll.u32 %v3736, 16
        %v3891 = vrot.slane %v3889, 1
        %v3892 = vor.u32 %v3887, %v3891
        %v3893 = vshrl.u32 %v3738, 16
        %v3895 = vshll.u32 %v3738, 16
        %v3897 = vrot.slane %v3895, 1
        %v3898 = vor.u32 %v3893, %v3897
        %v3899 = vshrl.u32 %v3740, 16
        %v3901 = vshll.u32 %v3740, 16
        %v3903 = vrot.slane %v3901, 1
        %v3904 = vor.u32 %v3899, %v3903
        %v3905 = vshrl.u32 %v3742, 16
        %v3907 = vshll.u32 %v3742, 16
        %v3909 = vrot.slane %v3907, 1
        %v3910 = vor.u32 %v3905, %v3909
        %v3911 = vshrl.u32 %v3744, 16
        %v3913 = vshll.u32 %v3744, 16
        %v3915 = vrot.slane %v3913, 1
        %v3916 = vor.u32 %v3911, %v3915
        %v3917 = vshrl.u32 %v3746, 16
        %v3919 = vshll.u32 %v3746, 16
        %v3921 = vrot.slane %v3919, 1
        %v3922 = vor.u32 %v3917, %v3921
        %v3923 = vshrl.u32 %v3748, 16
        %v3925 = vshll.u32 %v3748, 16
        %v3927 = vrot.slane %v3925, 1
        %v3928 = vor.u32 %v3923, %v3927
        %v3929 = vshrl.u32 %v3750, 16
        %v3931 = vshll.u32 %v3750, 16
        %v3933 = vrot.slane %v3931, 1
        %v3934 = vor.u32 %v3929, %v3933
        %v3935 = vshrl.u32 %v3752, 16
        %v3937 = vshll.u32 %v3752, 16
        %v3939 = vrot.slane %v3937, 1
        %v3940 = vor.u32 %v3935, %v3939
        %v3941 = vshrl.u32 %v3754, 16
        %v3943 = vshll.u32 %v3754, 16
        %v3945 = vrot.slane %v3943, 1
        %v3946 = vor.u32 %v3941, %v3945
        %v3947 = vshrl.u32 %v3756, 16
        %v3949 = vshll.u32 %v3756, 16
        %v3951 = vrot.slane %v3949, 1
        %v3952 = vor.u32 %v3947, %v3951
        %v3953 = vshrl.u32 %v3758, 16
        %v3955 = vshll.u32 %v3758, 16
        %v3957 = vrot.slane %v3955, 1
        %v3958 = vor.u32 %v3953, %v3957
        %v3959 = vshrl.u32 %v3760, 16
        %v3961 = vshll.u32 %v3760, 16
        %v3963 = vrot.slane %v3961, 1
        %v3964 = vor.u32 %v3959, %v3963
        %v3965 = vshrl.u32 %v3762, 16
        %v3967 = vshll.u32 %v3762, 16
        %v3969 = vrot.slane %v3967, 1
        %v3970 = vor.u32 %v3965, %v3969
        %v3971 = vshrl.u32 %v3764, 16
        %v3973 = vshll.u32 %v3764, 16
        %v3975 = vrot.slane %v3973, 1
        %v3976 = vor.u32 %v3971, %v3975
        %v3977 = vshrl.u32 %v3766, 16
        %v3979 = vshll.u32 %v3766, 16
        %v3981 = vrot.slane %v3979, 1
        %v3982 = vor.u32 %v3977, %v3981
        %v3983 = vshrl.u32 %v3768, 16
        %v3985 = vshll.u32 %v3768, 16
        %v3987 = vrot.slane %v3985, 1
        %v3988 = vor.u32 %v3983, %v3987
        %v3989 = vshrl.u32 %v3770, 16
        %v3991 = vshll.u32 %v3770, 16
        %v3993 = vrot.slane %v3991, 1
        %v3994 = vor.u32 %v3989, %v3993
        %v3995 = vshrl.u32 %v3772, 16
        %v3997 = vshll.u32 %v3772, 16
        %v3999 = vrot.slane %v3997, 1
        %v4000 = vor.u32 %v3995, %v3999
        %v4001 = vshrl.u32 %v3774, 16
        %v4003 = vshll.u32 %v3774, 16
        %v4005 = vrot.slane %v4003, 1
        %v4006 = vor.u32 %v4001, %v4005
        %v4007 = vshrl.u32 %v3776, 16
        %v4009 = vshll.u32 %v3776, 16
        %v4011 = vrot.slane %v4009, 1
        %v4012 = vor.u32 %v4007, %v4011
        %v4013 = vshrl.u32 %v3778, 16
        %v4015 = vshll.u32 %v3778, 16
        %v4017 = vrot.slane %v4015, 1
        %v4018 = vor.u32 %v4013, %v4017
        %v4019 = vshrl.u32 %v3780, 16
        %v4021 = vshll.u32 %v3780, 16
        %v4023 = vrot.slane %v4021, 1
        %v4024 = vor.u32 %v4019, %v4023
        %v4025 = vshrl.u32 %v3782, 16
        %v4027 = vshll.u32 %v3782, 16
        %v4029 = vrot.slane %v4027, 1
        %v4030 = vor.u32 %v4025, %v4029
        %v4031 = vshrl.u32 %v3784, 16
        %v4033 = vshll.u32 %v3784, 16
        %v4035 = vrot.slane %v4033, 1
        %v4036 = vor.u32 %v4031, %v4035
        %v4037 = vshrl.u32 %v3786, 16
        %v4039 = vshll.u32 %v3786, 16
        %v4041 = vrot.slane %v4039, 1
        %v4042 = vor.u32 %v4037, %v4041
        %v4043 = vshrl.u32 %v3788, 16
        %v4045 = vshll.u32 %v3788, 16
        %v4047 = vrot.slane %v4045, 1
        %v4048 = vor.u32 %v4043, %v4047
        %v4049 = vshrl.u32 %v3790, 16
        %v4051 = vshll.u32 %v3790, 16
        %v4053 = vrot.slane %v4051, 1
        %v4054 = vor.u32 %v4049, %v4053
        %v4055 = vshrl.u32 %v3792, 16
        %v4057 = vshll.u32 %v3792, 16
        %v4059 = vrot.slane %v4057, 1
        %v4060 = vor.u32 %v4055, %v4059
        %v4061 = vshrl.u32 %v3794, 16
        %v4063 = vshll.u32 %v3794, 16
        %v4065 = vrot.slane %v4063, 1
        %v4066 = vor.u32 %v4061, %v4065
        %v4067 = vshrl.u32 %v3796, 16
        %v4069 = vshll.u32 %v3796, 16
        %v4071 = vrot.slane %v4069, 1
        %v4072 = vor.u32 %v4067, %v4071
        %v4073 = vshrl.u32 %v3798, 16
        %v4075 = vshll.u32 %v3798, 16
        %v4077 = vrot.slane %v4075, 1
        %v4078 = vor.u32 %v4073, %v4077
        %v4079 = vshrl.u32 %v3800, 16
        %v4081 = vshll.u32 %v3800, 16
        %v4083 = vrot.slane %v4081, 1
        %v4084 = vor.u32 %v4079, %v4083
        %v4085 = vshrl.u32 %v3802, 16
        %v4087 = vshll.u32 %v3802, 16
        %v4089 = vrot.slane %v4087, 1
        %v4090 = vor.u32 %v4085, %v4089
        %v4091 = vshrl.u32 %v3804, 16
        %v4093 = vshll.u32 %v3804, 16
        %v4095 = vrot.slane %v4093, 1
        %v4096 = vor.u32 %v4091, %v4095
        %v4097 = vshrl.u32 %v3806, 16
        %v4099 = vshll.u32 %v3806, 16
        %v4101 = vrot.slane %v4099, 1
        %v4102 = vor.u32 %v4097, %v4101
        %v4103 = vshrl.u32 %v3808, 16
        %v4105 = vshll.u32 %v3808, 16
        %v4107 = vrot.slane %v4105, 1
        %v4108 = vor.u32 %v4103, %v4107
        %v4109 = vshrl.u32 %v3810, 16
        %v4111 = vshll.u32 %v3810, 16
        %v4113 = vrot.slane %v4111, 1
        %v4114 = vor.u32 %v4109, %v4113
        %v4115 = vshrl.u32 %v3812, 16
        %v4117 = vshll.u32 %v3812, 16
        %v4119 = vrot.slane %v4117, 1
        %v4120 = vor.u32 %v4115, %v4119
        %v4121 = vshrl.u32 %v3814, 16
        %v4123 = vshll.u32 %v3814, 16
        %v4125 = vrot.slane %v4123, 1
        %v4126 = vor.u32 %v4121, %v4125
        %v4127 = vshrl.u32 %v3816, 16
        %v4129 = vshll.u32 %v3816, 16
        %v4131 = vrot.slane %v4129, 1
        %v4132 = vor.u32 %v4127, %v4131
        %v4133 = vshrl.u32 %v3818, 16
        %v4135 = vshll.u32 %v3818, 16
        %v4137 = vrot.slane %v4135, 1
        %v4138 = vor.u32 %v4133, %v4137
        %v4139 = vshrl.u32 %v3820, 16
        %v4141 = vshll.u32 %v3820, 16
        %v4143 = vrot.slane %v4141, 1
        %v4144 = vor.u32 %v4139, %v4143
        %v4145 = vshrl.u32 %v3822, 16
        %v4147 = vshll.u32 %v3822, 16
        %v4149 = vrot.slane %v4147, 1
        %v4150 = vor.u32 %v4145, %v4149
        %v4151 = vshrl.u32 %v3824, 16
        %v4153 = vshll.u32 %v3824, 16
        %v4155 = vrot.slane %v4153, 1
        %v4156 = vor.u32 %v4151, %v4155
        %v4157 = vshrl.u32 %v3826, 16
        %v4159 = vshll.u32 %v3826, 16
        %v4161 = vrot.slane %v4159, 1
        %v4162 = vor.u32 %v4157, %v4161
        %v4163 = vshrl.u32 %v3828, 16
        %v4165 = vshll.u32 %v3828, 16
        %v4167 = vrot.slane %v4165, 1
        %v4168 = vor.u32 %v4163, %v4167
        %v4169 = vshrl.u32 %v3830, 16
        %v4171 = vshll.u32 %v3830, 16
        %v4173 = vrot.slane %v4171, 1
        %v4174 = vor.u32 %v4169, %v4173
        %v4175 = vshrl.u32 %v3832, 16
        %v4177 = vshll.u32 %v3832, 16
        %v4179 = vrot.slane %v4177, 1
        %v4180 = vor.u32 %v4175, %v4179
        %v4181 = vshrl.u32 %v3834, 16
        %v4183 = vshll.u32 %v3834, 16
        %v4185 = vrot.slane %v4183, 1
        %v4186 = vor.u32 %v4181, %v4185
        %v4187 = vshrl.u32 %v3836, 16
        %v4189 = vshll.u32 %v3836, 16
        %v4191 = vrot.slane %v4189, 1
        %v4192 = vor.u32 %v4187, %v4191
        %v4193 = vshrl.u32 %v3838, 16
        %v4195 = vshll.u32 %v3838, 16
        %v4197 = vrot.slane %v4195, 1
        %v4198 = vor.u32 %v4193, %v4197
        %v4199 = vshrl.u32 %v3840, 16
        %v4201 = vshll.u32 %v3840, 16
        %v4203 = vrot.slane %v4201, 1
        %v4204 = vor.u32 %v4199, %v4203
        %v4205 = vshrl.u32 %v3842, 16
        %v4207 = vshll.u32 %v3842, 16
        %v4209 = vrot.slane %v4207, 1
        %v4210 = vor.u32 %v4205, %v4209
        %v4211 = vshrl.u32 %v3844, 16
        %v4213 = vshll.u32 %v3844, 16
        %v4215 = vrot.slane %v4213, 1
        %v4216 = vor.u32 %v4211, %v4215
        %v4217 = vshrl.u32 %v3846, 16
        %v4219 = vshll.u32 %v3846, 16
        %v4221 = vrot.slane %v4219, 1
        %v4222 = vor.u32 %v4217, %v4221
        %v4223 = vshrl.u32 %v3848, 16
        %v4225 = vshll.u32 %v3848, 16
        %v4227 = vrot.slane %v4225, 1
        %v4228 = vor.u32 %v4223, %v4227
        %v4229 = vshrl.u32 %v3850, 16
        %v4231 = vshll.u32 %v3850, 16
        %v4233 = vrot.slane %v4231, 1
        %v4234 = vor.u32 %v4229, %v4233
        %v4299 = vsel %vm2146, %v3856, 0
        %v4300 = vsel %vm2146, %v3862, 0
        %v4301 = vsel %vm2146, %v3868, 0
        %v4302 = vsel %vm2146, %v3874, 0
        %v4303 = vsel %vm2146, %v3880, 0
        %v4304 = vsel %vm2146, %v3886, 0
        %v4305 = vsel %vm2146, %v3892, 0
        %v4306 = vsel %vm2146, %v3898, 0
        %v4307 = vsel %vm2146, %v3904, 0
        %v4308 = vsel %vm2146, %v3910, 0
        %v4309 = vsel %vm2146, %v3916, 0
        %v4310 = vsel %vm2146, %v3922, 0
        %v4311 = vsel %vm2146, %v3928, 0
        %v4312 = vsel %vm2146, %v3934, 0
        %v4313 = vsel %vm2146, %v3940, 0
        %v4314 = vsel %vm2146, %v3946, 0
        %v4315 = vsel %vm2146, %v3952, 0
        %v4316 = vsel %vm2146, %v3958, 0
        %v4317 = vsel %vm2146, %v3964, 0
        %v4318 = vsel %vm2146, %v3970, 0
        %v4319 = vsel %vm2146, %v3976, 0
        %v4320 = vsel %vm2146, %v3982, 0
        %v4321 = vsel %vm2146, %v3988, 0
        %v4322 = vsel %vm2146, %v3994, 0
        %v4323 = vsel %vm2146, %v4000, 0
        %v4324 = vsel %vm2146, %v4006, 0
        %v4325 = vsel %vm2146, %v4012, 0
        %v4326 = vsel %vm2146, %v4018, 0
        %v4327 = vsel %vm2146, %v4024, 0
        %v4328 = vsel %vm2146, %v4030, 0
        %v4329 = vsel %vm2146, %v4036, 0
        %v4330 = vsel %vm2146, %v4042, 0
        %v4331 = vsel %vm2146, %v4048, 0
        %v4332 = vsel %vm2146, %v4054, 0
        %v4333 = vsel %vm2146, %v4060, 0
        %v4334 = vsel %vm2146, %v4066, 0
        %v4335 = vsel %vm2146, %v4072, 0
        %v4336 = vsel %vm2146, %v4078, 0
        %v4337 = vsel %vm2146, %v4084, 0
        %v4338 = vsel %vm2146, %v4090, 0
        %v4339 = vsel %vm2146, %v4096, 0
        %v4340 = vsel %vm2146, %v4102, 0
        %v4341 = vsel %vm2146, %v4108, 0
        %v4342 = vsel %vm2146, %v4114, 0
        %v4343 = vsel %vm2146, %v4120, 0
        %v4344 = vsel %vm2146, %v4126, 0
        %v4345 = vsel %vm2146, %v4132, 0
        %v4346 = vsel %vm2146, %v4138, 0
        %v4347 = vsel %vm2146, %v4144, 0
        %v4348 = vsel %vm2146, %v4150, 0
        %v4349 = vsel %vm2146, %v4156, 0
        %v4350 = vsel %vm2146, %v4162, 0
        %v4351 = vsel %vm2146, %v4168, 0
        %v4352 = vsel %vm2146, %v4174, 0
        %v4353 = vsel %vm2146, %v4180, 0
        %v4354 = vsel %vm2146, %v4186, 0
        %v4355 = vsel %vm2146, %v4192, 0
        %v4356 = vsel %vm2146, %v4198, 0
        %v4357 = vsel %vm2146, %v4204, 0
        %v4358 = vsel %vm2146, %v4210, 0
        %v4359 = vsel %vm2146, %v4216, 0
        %v4360 = vsel %vm2146, %v4222, 0
        %v4361 = vsel %vm2146, %v4228, 0
        %v4362 = vsel %vm2146, %v4234, 0
        %s4363 = scalar_lea.vmem %s3, 80
        %v4364 = vld [vmem:[%s4363] sm:$0xf]
        %v4365 = vld [vmem:[%s4363 + $0x4] sm:$0xf]
        %v4366 = vld [vmem:[%s4363 + $0x8] sm:$0xf]
        %v4367 = vld [vmem:[%s4363 + $0xc] sm:$0xf]
        %4369 = vst [vmem:[#allocation1] ss:$4 sm:$0xff] %v4299
        %s4371 = scalar_lea.vmem [#allocation1], 1
        %4372 = vst [vmem:[%s4371] ss:$4 sm:$0xff] %v4300
        %s4374 = scalar_lea.vmem [#allocation1], 2
        %4375 = vst [vmem:[%s4374] ss:$4 sm:$0xff] %v4301
        %s4377 = scalar_lea.vmem [#allocation1], 3
        %4378 = vst [vmem:[%s4377] ss:$4 sm:$0xff] %v4302
        %s4380 = scalar_lea.vmem [#allocation1], 32
        %4381 = vst [vmem:[%s4380] ss:$4 sm:$0xff] %v4303
        %s4383 = scalar_lea.vmem [#allocation1], 33
        %4384 = vst [vmem:[%s4383] ss:$4 sm:$0xff] %v4304
        %s4386 = scalar_lea.vmem [#allocation1], 34
        %4387 = vst [vmem:[%s4386] ss:$4 sm:$0xff] %v4305
        %s4389 = scalar_lea.vmem [#allocation1], 35
        %4390 = vst [vmem:[%s4389] ss:$4 sm:$0xff] %v4306
        %v4391 = vld.sshfl [vmem:[#allocation1] sm:$0xff pattern:$0x73625140]
        %v4392 = vld.sshfl [vmem:[#allocation1 + $0x20] sm:$0xff pattern:$0x73625140]
        %4394 = vst [vmem:[#allocation1] ss:$4 sm:$0xff] %v4307
        %4396 = vst [vmem:[%s4371] ss:$4 sm:$0xff] %v4308
        %4398 = vst [vmem:[%s4374] ss:$4 sm:$0xff] %v4309
        %4400 = vst [vmem:[%s4377] ss:$4 sm:$0xff] %v4310
        %4402 = vst [vmem:[%s4380] ss:$4 sm:$0xff] %v4311
        %4404 = vst [vmem:[%s4383] ss:$4 sm:$0xff] %v4312
        %4406 = vst [vmem:[%s4386] ss:$4 sm:$0xff] %v4313
        %4408 = vst [vmem:[%s4389] ss:$4 sm:$0xff] %v4314
        %v4409 = vld.sshfl [vmem:[#allocation1] sm:$0xff pattern:$0x73625140]
        %v4410 = vld.sshfl [vmem:[#allocation1 + $0x20] sm:$0xff pattern:$0x73625140]
        %4412 = vst [vmem:[#allocation1] ss:$4 sm:$0xff] %v4315
        %4414 = vst [vmem:[%s4371] ss:$4 sm:$0xff] %v4316
        %4416 = vst [vmem:[%s4374] ss:$4 sm:$0xff] %v4317
        %4418 = vst [vmem:[%s4377] ss:$4 sm:$0xff] %v4318
        %4420 = vst [vmem:[%s4380] ss:$4 sm:$0xff] %v4319
        %4422 = vst [vmem:[%s4383] ss:$4 sm:$0xff] %v4320
        %4424 = vst [vmem:[%s4386] ss:$4 sm:$0xff] %v4321
        %4426 = vst [vmem:[%s4389] ss:$4 sm:$0xff] %v4322
        %v4427 = vld.sshfl [vmem:[#allocation1] sm:$0xff pattern:$0x73625140]
        %v4428 = vld.sshfl [vmem:[#allocation1 + $0x20] sm:$0xff pattern:$0x73625140]
        %4430 = vst [vmem:[#allocation1] ss:$4 sm:$0xff] %v4323
        %4432 = vst [vmem:[%s4371] ss:$4 sm:$0xff] %v4324
        %4434 = vst [vmem:[%s4374] ss:$4 sm:$0xff] %v4325
        %4436 = vst [vmem:[%s4377] ss:$4 sm:$0xff] %v4326
        %4438 = vst [vmem:[%s4380] ss:$4 sm:$0xff] %v4327
        %4440 = vst [vmem:[%s4383] ss:$4 sm:$0xff] %v4328
        %4442 = vst [vmem:[%s4386] ss:$4 sm:$0xff] %v4329
        %4444 = vst [vmem:[%s4389] ss:$4 sm:$0xff] %v4330
        %v4445 = vld.sshfl [vmem:[#allocation1] sm:$0xff pattern:$0x73625140]
        %v4446 = vld.sshfl [vmem:[#allocation1 + $0x20] sm:$0xff pattern:$0x73625140]
        %4448 = vst [vmem:[#allocation1] ss:$4 sm:$0xff] %v4331
        %4450 = vst [vmem:[%s4371] ss:$4 sm:$0xff] %v4332
        %4452 = vst [vmem:[%s4374] ss:$4 sm:$0xff] %v4333
        %4454 = vst [vmem:[%s4377] ss:$4 sm:$0xff] %v4334
        %4456 = vst [vmem:[%s4380] ss:$4 sm:$0xff] %v4335
        %4458 = vst [vmem:[%s4383] ss:$4 sm:$0xff] %v4336
        %4460 = vst [vmem:[%s4386] ss:$4 sm:$0xff] %v4337
        %4462 = vst [vmem:[%s4389] ss:$4 sm:$0xff] %v4338
        %v4463 = vld.sshfl [vmem:[#allocation1] sm:$0xff pattern:$0x73625140]
        %v4464 = vld.sshfl [vmem:[#allocation1 + $0x20] sm:$0xff pattern:$0x73625140]
        %4466 = vst [vmem:[#allocation1] ss:$4 sm:$0xff] %v4339
        %4468 = vst [vmem:[%s4371] ss:$4 sm:$0xff] %v4340
        %4470 = vst [vmem:[%s4374] ss:$4 sm:$0xff] %v4341
        %4472 = vst [vmem:[%s4377] ss:$4 sm:$0xff] %v4342
        %4474 = vst [vmem:[%s4380] ss:$4 sm:$0xff] %v4343
        %4476 = vst [vmem:[%s4383] ss:$4 sm:$0xff] %v4344
        %4478 = vst [vmem:[%s4386] ss:$4 sm:$0xff] %v4345
        %4480 = vst [vmem:[%s4389] ss:$4 sm:$0xff] %v4346
        %v4481 = vld.sshfl [vmem:[#allocation1] sm:$0xff pattern:$0x73625140]
        %v4482 = vld.sshfl [vmem:[#allocation1 + $0x20] sm:$0xff pattern:$0x73625140]
        %4484 = vst [vmem:[#allocation1] ss:$4 sm:$0xff] %v4347
        %4486 = vst [vmem:[%s4371] ss:$4 sm:$0xff] %v4348
        %4488 = vst [vmem:[%s4374] ss:$4 sm:$0xff] %v4349
        %4490 = vst [vmem:[%s4377] ss:$4 sm:$0xff] %v4350
        %4492 = vst [vmem:[%s4380] ss:$4 sm:$0xff] %v4351
        %4494 = vst [vmem:[%s4383] ss:$4 sm:$0xff] %v4352
        %4496 = vst [vmem:[%s4386] ss:$4 sm:$0xff] %v4353
        %4498 = vst [vmem:[%s4389] ss:$4 sm:$0xff] %v4354
        %v4499 = vld.sshfl [vmem:[#allocation1] sm:$0xff pattern:$0x73625140]
        %v4500 = vld.sshfl [vmem:[#allocation1 + $0x20] sm:$0xff pattern:$0x73625140]
        %4502 = vst [vmem:[#allocation1] ss:$4 sm:$0xff] %v4355
        %4504 = vst [vmem:[%s4371] ss:$4 sm:$0xff] %v4356
        %4506 = vst [vmem:[%s4374] ss:$4 sm:$0xff] %v4357
        %4508 = vst [vmem:[%s4377] ss:$4 sm:$0xff] %v4358
        %4510 = vst [vmem:[%s4380] ss:$4 sm:$0xff] %v4359
        %4512 = vst [vmem:[%s4383] ss:$4 sm:$0xff] %v4360
        %4514 = vst [vmem:[%s4386] ss:$4 sm:$0xff] %v4361
        %4516 = vst [vmem:[%s4389] ss:$4 sm:$0xff] %v4362
        %v4517 = vld.sshfl [vmem:[#allocation1] sm:$0xff pattern:$0x73625140]
        %v4518 = vld.sshfl [vmem:[#allocation1 + $0x20] sm:$0xff pattern:$0x73625140]
        %v4523 = vunpack.c.l.b16 %v4364
        %v4524 = vunpack.c.l.b16 %v4365
        %v4525 = vunpack.c.l.b16 %v4366
        %v4526 = vunpack.c.l.b16 %v4367
        %v4527 = vpack.c.b16 %v4524, %v4523
        %v4528 = vpack.c.b16 %v4526, %v4525
        %v4531 = vsel %vm1559, %v4391, 0
        %v4533 = vsel %vm1559, %v4392, 0
        %v4535 = vsel %vm1559, %v4409, 0
        %v4537 = vsel %vm1559, %v4410, 0
        %v4539 = vsel %vm1559, %v4427, 0
        %v4541 = vsel %vm1559, %v4428, 0
        %v4543 = vsel %vm1559, %v4445, 0
        %v4545 = vsel %vm1559, %v4446, 0
        %v4547 = vsel %vm1559, %v4463, 0
        %v4549 = vsel %vm1559, %v4464, 0
        %v4551 = vsel %vm1559, %v4481, 0
        %v4553 = vsel %vm1559, %v4482, 0
        %v4555 = vsel %vm1559, %v4499, 0
        %v4557 = vsel %vm1559, %v4500, 0
        %v4559 = vsel %vm1559, %v4517, 0
        %v4561 = vsel %vm1559, %v4518, 0
        %4563 = vmatpush.bf16.msra.mxu0 0
        %4564 = vmatpush.bf16.msra.mxu0 0
        %4565 = vmatpush.bf16.msra.mxu0 0
        %4566 = vmatpush.bf16.msra.mxu0 0
        %4567 = vmatpush.bf16.msra.mxu0 0
        %4568 = vmatpush.bf16.msra.mxu0 0
        %4569 = vmatpush.bf16.msra.mxu0 %v4528
        %4570 = vmatpush.bf16.msra.mxu0 %v4527
        %4571 = vmatmul.bf16.gmra.mxu0 %v4531
        %v4572 = vpop.f32.mrf.mxu0
        %v4573 = vadd.f32 0.0, %v4572
        %v4574 = vpop.f32.mrf.mxu0
        %v4575 = vadd.f32 0.0, %v4574
        %4576 = vmatmul.bf16.gmra.mxu0 %v4533
        %v4577 = vpop.f32.mrf.mxu0
        %v4578 = vadd.f32 0.0, %v4577
        %v4579 = vpop.f32.mrf.mxu0
        %v4580 = vadd.f32 0.0, %v4579
        %4581 = vmatmul.bf16.gmra.mxu0 %v4535
        %v4582 = vpop.f32.mrf.mxu0
        %v4583 = vadd.f32 0.0, %v4582
        %v4584 = vpop.f32.mrf.mxu0
        %v4585 = vadd.f32 0.0, %v4584
        %4586 = vmatmul.bf16.gmra.mxu0 %v4537
        %v4587 = vpop.f32.mrf.mxu0
        %v4588 = vadd.f32 0.0, %v4587
        %v4589 = vpop.f32.mrf.mxu0
        %v4590 = vadd.f32 0.0, %v4589
        %4591 = vmatmul.bf16.gmra.mxu0 %v4539
        %v4592 = vpop.f32.mrf.mxu0
        %v4593 = vadd.f32 0.0, %v4592
        %v4594 = vpop.f32.mrf.mxu0
        %v4595 = vadd.f32 0.0, %v4594
        %4596 = vmatmul.bf16.gmra.mxu0 %v4541
        %v4597 = vpop.f32.mrf.mxu0
        %v4598 = vadd.f32 0.0, %v4597
        %v4599 = vpop.f32.mrf.mxu0
        %v4600 = vadd.f32 0.0, %v4599
        %4601 = vmatmul.bf16.gmra.mxu0 %v4543
        %v4602 = vpop.f32.mrf.mxu0
        %v4603 = vadd.f32 0.0, %v4602
        %v4604 = vpop.f32.mrf.mxu0
        %v4605 = vadd.f32 0.0, %v4604
        %4606 = vmatmul.bf16.gmra.mxu0 %v4545
        %v4607 = vpop.f32.mrf.mxu0
        %v4608 = vadd.f32 0.0, %v4607
        %v4609 = vpop.f32.mrf.mxu0
        %v4610 = vadd.f32 0.0, %v4609
        %4611 = vmatmul.bf16.gmra.mxu0 %v4547
        %v4612 = vpop.f32.mrf.mxu0
        %v4613 = vadd.f32 0.0, %v4612
        %v4614 = vpop.f32.mrf.mxu0
        %v4615 = vadd.f32 0.0, %v4614
        %4616 = vmatmul.bf16.gmra.mxu0 %v4549
        %v4617 = vpop.f32.mrf.mxu0
        %v4618 = vadd.f32 0.0, %v4617
        %v4619 = vpop.f32.mrf.mxu0
        %v4620 = vadd.f32 0.0, %v4619
        %4621 = vmatmul.bf16.gmra.mxu0 %v4551
        %v4622 = vpop.f32.mrf.mxu0
        %v4623 = vadd.f32 0.0, %v4622
        %v4624 = vpop.f32.mrf.mxu0
        %v4625 = vadd.f32 0.0, %v4624
        %4626 = vmatmul.bf16.gmra.mxu0 %v4553
        %v4627 = vpop.f32.mrf.mxu0
        %v4628 = vadd.f32 0.0, %v4627
        %v4629 = vpop.f32.mrf.mxu0
        %v4630 = vadd.f32 0.0, %v4629
        %4631 = vmatmul.bf16.gmra.mxu0 %v4555
        %v4632 = vpop.f32.mrf.mxu0
        %v4633 = vadd.f32 0.0, %v4632
        %v4634 = vpop.f32.mrf.mxu0
        %v4635 = vadd.f32 0.0, %v4634
        %4636 = vmatmul.bf16.gmra.mxu0 %v4557
        %v4637 = vpop.f32.mrf.mxu0
        %v4638 = vadd.f32 0.0, %v4637
        %v4639 = vpop.f32.mrf.mxu0
        %v4640 = vadd.f32 0.0, %v4639
        %4641 = vmatmul.bf16.gmra.mxu0 %v4559
        %v4642 = vpop.f32.mrf.mxu0
        %v4643 = vadd.f32 0.0, %v4642
        %v4644 = vpop.f32.mrf.mxu0
        %v4645 = vadd.f32 0.0, %v4644
        %4646 = vmatmul.bf16.gmra.mxu0 %v4561
        %v4647 = vpop.f32.mrf.mxu0
        %v4648 = vadd.f32 0.0, %v4647
        %v4649 = vpop.f32.mrf.mxu0
        %v4650 = vadd.f32 0.0, %v4649
        %4651 = vdwg.mxu0
        %v4652 = vadd.f32 %v3690, %v4573
        %v4653 = vadd.f32 %v3691, %v4575
        %v4654 = vadd.f32 %v3692, %v4578
        %v4655 = vadd.f32 %v3693, %v4580
        %v4656 = vadd.f32 %v3694, %v4583
        %v4657 = vadd.f32 %v3695, %v4585
        %v4658 = vadd.f32 %v3696, %v4588
        %v4659 = vadd.f32 %v3697, %v4590
        %v4660 = vadd.f32 %v3698, %v4593
        %v4661 = vadd.f32 %v3699, %v4595
        %v4662 = vadd.f32 %v3700, %v4598
        %v4663 = vadd.f32 %v3701, %v4600
        %v4664 = vadd.f32 %v3702, %v4603
        %v4665 = vadd.f32 %v3703, %v4605
        %v4666 = vadd.f32 %v3704, %v4608
        %v4667 = vadd.f32 %v3705, %v4610
        %v4668 = vadd.f32 %v3706, %v4613
        %v4669 = vadd.f32 %v3707, %v4615
        %v4670 = vadd.f32 %v3708, %v4618
        %v4671 = vadd.f32 %v3709, %v4620
        %v4672 = vadd.f32 %v3710, %v4623
        %v4673 = vadd.f32 %v3711, %v4625
        %v4674 = vadd.f32 %v3712, %v4628
        %v4675 = vadd.f32 %v3713, %v4630
        %v4676 = vadd.f32 %v3714, %v4633
        %v4677 = vadd.f32 %v3715, %v4635
        %v4678 = vadd.f32 %v3716, %v4638
        %v4679 = vadd.f32 %v3717, %v4640
        %v4680 = vadd.f32 %v3718, %v4643
        %v4681 = vadd.f32 %v3719, %v4645
        %v4682 = vadd.f32 %v3720, %v4648
        %v4683 = vadd.f32 %v3721, %v4650
        %4684 = vst [vmem:[#allocation1] ss:$4 sm:$0xff] %v727
        %v4685 = vld.sshfl [vmem:[#allocation1] sm:$0xff pattern:$0x73625140]
        %s4686 = scalar_lea.vmem [#allocation1], 32
        %4687 = vst [vmem:[%s4686] ss:$4 sm:$0xff] %v730
        %v4688 = vld.sshfl [vmem:[#allocation1 + $0x20] sm:$0xff pattern:$0x73625140]
        %4689 = vst [vmem:[#allocation1] ss:$4 sm:$0xff] %v733
        %v4690 = vld.sshfl [vmem:[#allocation1] sm:$0xff pattern:$0x73625140]
        %4691 = vst [vmem:[%s4686] ss:$4 sm:$0xff] %v736
        %v4692 = vld.sshfl [vmem:[#allocation1 + $0x20] sm:$0xff pattern:$0x73625140]
        %4693 = vst [vmem:[#allocation1] ss:$4 sm:$0xff] %v739
        %v4694 = vld.sshfl [vmem:[#allocation1] sm:$0xff pattern:$0x73625140]
        %4695 = vst [vmem:[%s4686] ss:$4 sm:$0xff] %v742
        %v4696 = vld.sshfl [vmem:[#allocation1 + $0x20] sm:$0xff pattern:$0x73625140]
        %4697 = vst [vmem:[#allocation1] ss:$4 sm:$0xff] %v745
        %v4698 = vld.sshfl [vmem:[#allocation1] sm:$0xff pattern:$0x73625140]
        %4699 = vst [vmem:[%s4686] ss:$4 sm:$0xff] 0
        %v4700 = vld.sshfl [vmem:[#allocation1 + $0x20] sm:$0xff pattern:$0x73625140]
        %4701 = vst [vmem:[#allocation1] ss:$4 sm:$0xff] %v751
        %v4702 = vld.sshfl [vmem:[#allocation1] sm:$0xff pattern:$0x73625140]
        %4703 = vst [vmem:[%s4686] ss:$4 sm:$0xff] %v754
        %v4704 = vld.sshfl [vmem:[#allocation1 + $0x20] sm:$0xff pattern:$0x73625140]
        %4705 = vst [vmem:[#allocation1] ss:$4 sm:$0xff] %v757
        %v4706 = vld.sshfl [vmem:[#allocation1] sm:$0xff pattern:$0x73625140]
        %4707 = vst [vmem:[%s4686] ss:$4 sm:$0xff] %v760
        %v4708 = vld.sshfl [vmem:[#allocation1 + $0x20] sm:$0xff pattern:$0x73625140]
        %4709 = vst [vmem:[#allocation1] ss:$4 sm:$0xff] %v763
        %v4710 = vld.sshfl [vmem:[#allocation1] sm:$0xff pattern:$0x73625140]
        %4711 = vst [vmem:[%s4686] ss:$4 sm:$0xff] %v766
        %v4712 = vld.sshfl [vmem:[#allocation1 + $0x20] sm:$0xff pattern:$0x73625140]
        %4713 = vst [vmem:[#allocation1] ss:$4 sm:$0xff] %v769
        %v4714 = vld.sshfl [vmem:[#allocation1] sm:$0xff pattern:$0x73625140]
        %4715 = vst [vmem:[%s4686] ss:$4 sm:$0xff] 0
        %v4716 = vld.sshfl [vmem:[#allocation1 + $0x20] sm:$0xff pattern:$0x73625140]
        %4717 = vst [vmem:[#allocation1] ss:$4 sm:$0xff] %v775
        %v4718 = vld.sshfl [vmem:[#allocation1] sm:$0xff pattern:$0x73625140]
        %4719 = vst [vmem:[%s4686] ss:$4 sm:$0xff] %v778
        %v4720 = vld.sshfl [vmem:[#allocation1 + $0x20] sm:$0xff pattern:$0x73625140]
        %4721 = vst [vmem:[#allocation1] ss:$4 sm:$0xff] %v781
        %v4722 = vld.sshfl [vmem:[#allocation1] sm:$0xff pattern:$0x73625140]
        %4723 = vst [vmem:[%s4686] ss:$4 sm:$0xff] %v784
        %v4724 = vld.sshfl [vmem:[#allocation1 + $0x20] sm:$0xff pattern:$0x73625140]
        %4725 = vst [vmem:[#allocation1] ss:$4 sm:$0xff] %v787
        %v4726 = vld.sshfl [vmem:[#allocation1] sm:$0xff pattern:$0x73625140]
        %4727 = vst [vmem:[%s4686] ss:$4 sm:$0xff] %v790
        %v4728 = vld.sshfl [vmem:[#allocation1 + $0x20] sm:$0xff pattern:$0x73625140]
        %4729 = vst [vmem:[#allocation1] ss:$4 sm:$0xff] %v793
        %v4730 = vld.sshfl [vmem:[#allocation1] sm:$0xff pattern:$0x73625140]
        %4731 = vst [vmem:[%s4686] ss:$4 sm:$0xff] 0
        %v4732 = vld.sshfl [vmem:[#allocation1 + $0x20] sm:$0xff pattern:$0x73625140]
        %4733 = vst [vmem:[#allocation1] ss:$4 sm:$0xff] %v799
        %v4734 = vld.sshfl [vmem:[#allocation1] sm:$0xff pattern:$0x73625140]
        %4735 = vst [vmem:[%s4686] ss:$4 sm:$0xff] %v802
        %v4736 = vld.sshfl [vmem:[#allocation1 + $0x20] sm:$0xff pattern:$0x73625140]
        %4737 = vst [vmem:[#allocation1] ss:$4 sm:$0xff] %v805
        %v4738 = vld.sshfl [vmem:[#allocation1] sm:$0xff pattern:$0x73625140]
        %4739 = vst [vmem:[%s4686] ss:$4 sm:$0xff] %v808
        %v4740 = vld.sshfl [vmem:[#allocation1 + $0x20] sm:$0xff pattern:$0x73625140]
        %4741 = vst [vmem:[#allocation1] ss:$4 sm:$0xff] %v811
        %v4742 = vld.sshfl [vmem:[#allocation1] sm:$0xff pattern:$0x73625140]
        %4743 = vst [vmem:[%s4686] ss:$4 sm:$0xff] %v814
        %v4744 = vld.sshfl [vmem:[#allocation1 + $0x20] sm:$0xff pattern:$0x73625140]
        %4745 = vst [vmem:[#allocation1] ss:$4 sm:$0xff] %v817
        %v4746 = vld.sshfl [vmem:[#allocation1] sm:$0xff pattern:$0x73625140]
        %4747 = vst [vmem:[%s4686] ss:$4 sm:$0xff] 0
        %v4748 = vld.sshfl [vmem:[#allocation1 + $0x20] sm:$0xff pattern:$0x73625140]
        %4749 = vst [vmem:[#allocation1] ss:$4 sm:$0xff] %v823
        %v4750 = vld.sshfl [vmem:[#allocation1] sm:$0xff pattern:$0x73625140]
        %4751 = vst [vmem:[%s4686] ss:$4 sm:$0xff] %v826
        %v4752 = vld.sshfl [vmem:[#allocation1 + $0x20] sm:$0xff pattern:$0x73625140]
        %4753 = vst [vmem:[#allocation1] ss:$4 sm:$0xff] %v829
        %v4754 = vld.sshfl [vmem:[#allocation1] sm:$0xff pattern:$0x73625140]
        %4755 = vst [vmem:[%s4686] ss:$4 sm:$0xff] %v832
        %v4756 = vld.sshfl [vmem:[#allocation1 + $0x20] sm:$0xff pattern:$0x73625140]
        %4757 = vst [vmem:[#allocation1] ss:$4 sm:$0xff] %v835
        %v4758 = vld.sshfl [vmem:[#allocation1] sm:$0xff pattern:$0x73625140]
        %4759 = vst [vmem:[%s4686] ss:$4 sm:$0xff] %v838
        %v4760 = vld.sshfl [vmem:[#allocation1 + $0x20] sm:$0xff pattern:$0x73625140]
        %4761 = vst [vmem:[#allocation1] ss:$4 sm:$0xff] %v841
        %v4762 = vld.sshfl [vmem:[#allocation1] sm:$0xff pattern:$0x73625140]
        %4763 = vst [vmem:[%s4686] ss:$4 sm:$0xff] 0
        %v4764 = vld.sshfl [vmem:[#allocation1 + $0x20] sm:$0xff pattern:$0x73625140]
        %4765 = vst [vmem:[#allocation1] ss:$4 sm:$0xff] %v847
        %v4766 = vld.sshfl [vmem:[#allocation1] sm:$0xff pattern:$0x73625140]
        %4767 = vst [vmem:[%s4686] ss:$4 sm:$0xff] %v850
        %v4768 = vld.sshfl [vmem:[#allocation1 + $0x20] sm:$0xff pattern:$0x73625140]
        %4769 = vst [vmem:[#allocation1] ss:$4 sm:$0xff] %v853
        %v4770 = vld.sshfl [vmem:[#allocation1] sm:$0xff pattern:$0x73625140]
        %4771 = vst [vmem:[%s4686] ss:$4 sm:$0xff] %v856
        %v4772 = vld.sshfl [vmem:[#allocation1 + $0x20] sm:$0xff pattern:$0x73625140]
        %4773 = vst [vmem:[#allocation1] ss:$4 sm:$0xff] %v859
        %v4774 = vld.sshfl [vmem:[#allocation1] sm:$0xff pattern:$0x73625140]
        %4775 = vst [vmem:[%s4686] ss:$4 sm:$0xff] %v862
        %v4776 = vld.sshfl [vmem:[#allocation1 + $0x20] sm:$0xff pattern:$0x73625140]
        %4777 = vst [vmem:[#allocation1] ss:$4 sm:$0xff] %v865
        %v4778 = vld.sshfl [vmem:[#allocation1] sm:$0xff pattern:$0x73625140]
        %4779 = vst [vmem:[%s4686] ss:$4 sm:$0xff] 0
        %v4780 = vld.sshfl [vmem:[#allocation1 + $0x20] sm:$0xff pattern:$0x73625140]
        %4781 = vst [vmem:[#allocation1] ss:$4 sm:$0xff] %v871
        %v4782 = vld.sshfl [vmem:[#allocation1] sm:$0xff pattern:$0x73625140]
        %4783 = vst [vmem:[%s4686] ss:$4 sm:$0xff] %v874
        %v4784 = vld.sshfl [vmem:[#allocation1 + $0x20] sm:$0xff pattern:$0x73625140]
        %4785 = vst [vmem:[#allocation1] ss:$4 sm:$0xff] %v877
        %v4786 = vld.sshfl [vmem:[#allocation1] sm:$0xff pattern:$0x73625140]
        %4787 = vst [vmem:[%s4686] ss:$4 sm:$0xff] %v880
        %v4788 = vld.sshfl [vmem:[#allocation1 + $0x20] sm:$0xff pattern:$0x73625140]
        %4789 = vst [vmem:[#allocation1] ss:$4 sm:$0xff] %v883
        %v4790 = vld.sshfl [vmem:[#allocation1] sm:$0xff pattern:$0x73625140]
        %4791 = vst [vmem:[%s4686] ss:$4 sm:$0xff] %v886
        %v4792 = vld.sshfl [vmem:[#allocation1 + $0x20] sm:$0xff pattern:$0x73625140]
        %4793 = vst [vmem:[#allocation1] ss:$4 sm:$0xff] %v889
        %v4794 = vld.sshfl [vmem:[#allocation1] sm:$0xff pattern:$0x73625140]
        %4795 = vst [vmem:[%s4686] ss:$4 sm:$0xff] 0
        %v4796 = vld.sshfl [vmem:[#allocation1 + $0x20] sm:$0xff pattern:$0x73625140]
        %4797 = vst [vmem:[#allocation1] ss:$4 sm:$0xff] %v895
        %v4798 = vld.sshfl [vmem:[#allocation1] sm:$0xff pattern:$0x73625140]
        %4799 = vst [vmem:[%s4686] ss:$4 sm:$0xff] %v898
        %v4800 = vld.sshfl [vmem:[#allocation1 + $0x20] sm:$0xff pattern:$0x73625140]
        %4801 = vst [vmem:[#allocation1] ss:$4 sm:$0xff] %v901
        %v4802 = vld.sshfl [vmem:[#allocation1] sm:$0xff pattern:$0x73625140]
        %4803 = vst [vmem:[%s4686] ss:$4 sm:$0xff] %v904
        %v4804 = vld.sshfl [vmem:[#allocation1 + $0x20] sm:$0xff pattern:$0x73625140]
        %4805 = vst [vmem:[#allocation1] ss:$4 sm:$0xff] %v907
        %v4806 = vld.sshfl [vmem:[#allocation1] sm:$0xff pattern:$0x73625140]
        %4807 = vst [vmem:[%s4686] ss:$4 sm:$0xff] %v910
        %v4808 = vld.sshfl [vmem:[#allocation1 + $0x20] sm:$0xff pattern:$0x73625140]
        %4809 = vst [vmem:[#allocation1] ss:$4 sm:$0xff] %v913
        %v4810 = vld.sshfl [vmem:[#allocation1] sm:$0xff pattern:$0x73625140]
        %4811 = vst [vmem:[%s4686] ss:$4 sm:$0xff] 0
        %v4812 = vld.sshfl [vmem:[#allocation1 + $0x20] sm:$0xff pattern:$0x73625140]
        %v4813 = vshrl.u32 %v4685, 16
        %v4815 = vrot.slane %v4813, 7
        %v4816 = vshll.u32 %v4685, 16
        %v4818 = vor.u32 %v4815, %v4816
        %v4819 = vshrl.u32 %v4688, 16
        %v4821 = vrot.slane %v4819, 7
        %v4822 = vshll.u32 %v4688, 16
        %v4824 = vor.u32 %v4821, %v4822
        %v4825 = vshrl.u32 %v4690, 16
        %v4827 = vrot.slane %v4825, 7
        %v4828 = vshll.u32 %v4690, 16
        %v4830 = vor.u32 %v4827, %v4828
        %v4831 = vshrl.u32 %v4692, 16
        %v4833 = vrot.slane %v4831, 7
        %v4834 = vshll.u32 %v4692, 16
        %v4836 = vor.u32 %v4833, %v4834
        %v4837 = vshrl.u32 %v4694, 16
        %v4839 = vrot.slane %v4837, 7
        %v4840 = vshll.u32 %v4694, 16
        %v4842 = vor.u32 %v4839, %v4840
        %v4843 = vshrl.u32 %v4696, 16
        %v4845 = vrot.slane %v4843, 7
        %v4846 = vshll.u32 %v4696, 16
        %v4848 = vor.u32 %v4845, %v4846
        %v4849 = vshrl.u32 %v4698, 16
        %v4851 = vrot.slane %v4849, 7
        %v4852 = vshll.u32 %v4698, 16
        %v4854 = vor.u32 %v4851, %v4852
        %v4855 = vshrl.u32 %v4700, 16
        %v4857 = vrot.slane %v4855, 7
        %v4858 = vshll.u32 %v4700, 16
        %v4860 = vor.u32 %v4857, %v4858
        %v4861 = vshrl.u32 %v4702, 16
        %v4863 = vrot.slane %v4861, 7
        %v4864 = vshll.u32 %v4702, 16
        %v4866 = vor.u32 %v4863, %v4864
        %v4867 = vshrl.u32 %v4704, 16
        %v4869 = vrot.slane %v4867, 7
        %v4870 = vshll.u32 %v4704, 16
        %v4872 = vor.u32 %v4869, %v4870
        %v4873 = vshrl.u32 %v4706, 16
        %v4875 = vrot.slane %v4873, 7
        %v4876 = vshll.u32 %v4706, 16
        %v4878 = vor.u32 %v4875, %v4876
        %v4879 = vshrl.u32 %v4708, 16
        %v4881 = vrot.slane %v4879, 7
        %v4882 = vshll.u32 %v4708, 16
        %v4884 = vor.u32 %v4881, %v4882
        %v4885 = vshrl.u32 %v4710, 16
        %v4887 = vrot.slane %v4885, 7
        %v4888 = vshll.u32 %v4710, 16
        %v4890 = vor.u32 %v4887, %v4888
        %v4891 = vshrl.u32 %v4712, 16
        %v4893 = vrot.slane %v4891, 7
        %v4894 = vshll.u32 %v4712, 16
        %v4896 = vor.u32 %v4893, %v4894
        %v4897 = vshrl.u32 %v4714, 16
        %v4899 = vrot.slane %v4897, 7
        %v4900 = vshll.u32 %v4714, 16
        %v4902 = vor.u32 %v4899, %v4900
        %v4903 = vshrl.u32 %v4716, 16
        %v4905 = vrot.slane %v4903, 7
        %v4906 = vshll.u32 %v4716, 16
        %v4908 = vor.u32 %v4905, %v4906
        %v4909 = vshrl.u32 %v4718, 16
        %v4911 = vrot.slane %v4909, 7
        %v4912 = vshll.u32 %v4718, 16
        %v4914 = vor.u32 %v4911, %v4912
        %v4915 = vshrl.u32 %v4720, 16
        %v4917 = vrot.slane %v4915, 7
        %v4918 = vshll.u32 %v4720, 16
        %v4920 = vor.u32 %v4917, %v4918
        %v4921 = vshrl.u32 %v4722, 16
        %v4923 = vrot.slane %v4921, 7
        %v4924 = vshll.u32 %v4722, 16
        %v4926 = vor.u32 %v4923, %v4924
        %v4927 = vshrl.u32 %v4724, 16
        %v4929 = vrot.slane %v4927, 7
        %v4930 = vshll.u32 %v4724, 16
        %v4932 = vor.u32 %v4929, %v4930
        %v4933 = vshrl.u32 %v4726, 16
        %v4935 = vrot.slane %v4933, 7
        %v4936 = vshll.u32 %v4726, 16
        %v4938 = vor.u32 %v4935, %v4936
        %v4939 = vshrl.u32 %v4728, 16
        %v4941 = vrot.slane %v4939, 7
        %v4942 = vshll.u32 %v4728, 16
        %v4944 = vor.u32 %v4941, %v4942
        %v4945 = vshrl.u32 %v4730, 16
        %v4947 = vrot.slane %v4945, 7
        %v4948 = vshll.u32 %v4730, 16
        %v4950 = vor.u32 %v4947, %v4948
        %v4951 = vshrl.u32 %v4732, 16
        %v4953 = vrot.slane %v4951, 7
        %v4954 = vshll.u32 %v4732, 16
        %v4956 = vor.u32 %v4953, %v4954
        %v4957 = vshrl.u32 %v4734, 16
        %v4959 = vrot.slane %v4957, 7
        %v4960 = vshll.u32 %v4734, 16
        %v4962 = vor.u32 %v4959, %v4960
        %v4963 = vshrl.u32 %v4736, 16
        %v4965 = vrot.slane %v4963, 7
        %v4966 = vshll.u32 %v4736, 16
        %v4968 = vor.u32 %v4965, %v4966
        %v4969 = vshrl.u32 %v4738, 16
        %v4971 = vrot.slane %v4969, 7
        %v4972 = vshll.u32 %v4738, 16
        %v4974 = vor.u32 %v4971, %v4972
        %v4975 = vshrl.u32 %v4740, 16
        %v4977 = vrot.slane %v4975, 7
        %v4978 = vshll.u32 %v4740, 16
        %v4980 = vor.u32 %v4977, %v4978
        %v4981 = vshrl.u32 %v4742, 16
        %v4983 = vrot.slane %v4981, 7
        %v4984 = vshll.u32 %v4742, 16
        %v4986 = vor.u32 %v4983, %v4984
        %v4987 = vshrl.u32 %v4744, 16
        %v4989 = vrot.slane %v4987, 7
        %v4990 = vshll.u32 %v4744, 16
        %v4992 = vor.u32 %v4989, %v4990
        %v4993 = vshrl.u32 %v4746, 16
        %v4995 = vrot.slane %v4993, 7
        %v4996 = vshll.u32 %v4746, 16
        %v4998 = vor.u32 %v4995, %v4996
        %v4999 = vshrl.u32 %v4748, 16
        %v5001 = vrot.slane %v4999, 7
        %v5002 = vshll.u32 %v4748, 16
        %v5004 = vor.u32 %v5001, %v5002
        %v5005 = vshrl.u32 %v4750, 16
        %v5007 = vrot.slane %v5005, 7
        %v5008 = vshll.u32 %v4750, 16
        %v5010 = vor.u32 %v5007, %v5008
        %v5011 = vshrl.u32 %v4752, 16
        %v5013 = vrot.slane %v5011, 7
        %v5014 = vshll.u32 %v4752, 16
        %v5016 = vor.u32 %v5013, %v5014
        %v5017 = vshrl.u32 %v4754, 16
        %v5019 = vrot.slane %v5017, 7
        %v5020 = vshll.u32 %v4754, 16
        %v5022 = vor.u32 %v5019, %v5020
        %v5023 = vshrl.u32 %v4756, 16
        %v5025 = vrot.slane %v5023, 7
        %v5026 = vshll.u32 %v4756, 16
        %v5028 = vor.u32 %v5025, %v5026
        %v5029 = vshrl.u32 %v4758, 16
        %v5031 = vrot.slane %v5029, 7
        %v5032 = vshll.u32 %v4758, 16
        %v5034 = vor.u32 %v5031, %v5032
        %v5035 = vshrl.u32 %v4760, 16
        %v5037 = vrot.slane %v5035, 7
        %v5038 = vshll.u32 %v4760, 16
        %v5040 = vor.u32 %v5037, %v5038
        %v5041 = vshrl.u32 %v4762, 16
        %v5043 = vrot.slane %v5041, 7
        %v5044 = vshll.u32 %v4762, 16
        %v5046 = vor.u32 %v5043, %v5044
        %v5047 = vshrl.u32 %v4764, 16
        %v5049 = vrot.slane %v5047, 7
        %v5050 = vshll.u32 %v4764, 16
        %v5052 = vor.u32 %v5049, %v5050
        %v5053 = vshrl.u32 %v4766, 16
        %v5055 = vrot.slane %v5053, 7
        %v5056 = vshll.u32 %v4766, 16
        %v5058 = vor.u32 %v5055, %v5056
        %v5059 = vshrl.u32 %v4768, 16
        %v5061 = vrot.slane %v5059, 7
        %v5062 = vshll.u32 %v4768, 16
        %v5064 = vor.u32 %v5061, %v5062
        %v5065 = vshrl.u32 %v4770, 16
        %v5067 = vrot.slane %v5065, 7
        %v5068 = vshll.u32 %v4770, 16
        %v5070 = vor.u32 %v5067, %v5068
        %v5071 = vshrl.u32 %v4772, 16
        %v5073 = vrot.slane %v5071, 7
        %v5074 = vshll.u32 %v4772, 16
        %v5076 = vor.u32 %v5073, %v5074
        %v5077 = vshrl.u32 %v4774, 16
        %v5079 = vrot.slane %v5077, 7
        %v5080 = vshll.u32 %v4774, 16
        %v5082 = vor.u32 %v5079, %v5080
        %v5083 = vshrl.u32 %v4776, 16
        %v5085 = vrot.slane %v5083, 7
        %v5086 = vshll.u32 %v4776, 16
        %v5088 = vor.u32 %v5085, %v5086
        %v5089 = vshrl.u32 %v4778, 16
        %v5091 = vrot.slane %v5089, 7
        %v5092 = vshll.u32 %v4778, 16
        %v5094 = vor.u32 %v5091, %v5092
        %v5095 = vshrl.u32 %v4780, 16
        %v5097 = vrot.slane %v5095, 7
        %v5098 = vshll.u32 %v4780, 16
        %v5100 = vor.u32 %v5097, %v5098
        %v5101 = vshrl.u32 %v4782, 16
        %v5103 = vrot.slane %v5101, 7
        %v5104 = vshll.u32 %v4782, 16
        %v5106 = vor.u32 %v5103, %v5104
        %v5107 = vshrl.u32 %v4784, 16
        %v5109 = vrot.slane %v5107, 7
        %v5110 = vshll.u32 %v4784, 16
        %v5112 = vor.u32 %v5109, %v5110
        %v5113 = vshrl.u32 %v4786, 16
        %v5115 = vrot.slane %v5113, 7
        %v5116 = vshll.u32 %v4786, 16
        %v5118 = vor.u32 %v5115, %v5116
        %v5119 = vshrl.u32 %v4788, 16
        %v5121 = vrot.slane %v5119, 7
        %v5122 = vshll.u32 %v4788, 16
        %v5124 = vor.u32 %v5121, %v5122
        %v5125 = vshrl.u32 %v4790, 16
        %v5127 = vrot.slane %v5125, 7
        %v5128 = vshll.u32 %v4790, 16
        %v5130 = vor.u32 %v5127, %v5128
        %v5131 = vshrl.u32 %v4792, 16
        %v5133 = vrot.slane %v5131, 7
        %v5134 = vshll.u32 %v4792, 16
        %v5136 = vor.u32 %v5133, %v5134
        %v5137 = vshrl.u32 %v4794, 16
        %v5139 = vrot.slane %v5137, 7
        %v5140 = vshll.u32 %v4794, 16
        %v5142 = vor.u32 %v5139, %v5140
        %v5143 = vshrl.u32 %v4796, 16
        %v5145 = vrot.slane %v5143, 7
        %v5146 = vshll.u32 %v4796, 16
        %v5148 = vor.u32 %v5145, %v5146
        %v5149 = vshrl.u32 %v4798, 16
        %v5151 = vrot.slane %v5149, 7
        %v5152 = vshll.u32 %v4798, 16
        %v5154 = vor.u32 %v5151, %v5152
        %v5155 = vshrl.u32 %v4800, 16
        %v5157 = vrot.slane %v5155, 7
        %v5158 = vshll.u32 %v4800, 16
        %v5160 = vor.u32 %v5157, %v5158
        %v5161 = vshrl.u32 %v4802, 16
        %v5163 = vrot.slane %v5161, 7
        %v5164 = vshll.u32 %v4802, 16
        %v5166 = vor.u32 %v5163, %v5164
        %v5167 = vshrl.u32 %v4804, 16
        %v5169 = vrot.slane %v5167, 7
        %v5170 = vshll.u32 %v4804, 16
        %v5172 = vor.u32 %v5169, %v5170
        %v5173 = vshrl.u32 %v4806, 16
        %v5175 = vrot.slane %v5173, 7
        %v5176 = vshll.u32 %v4806, 16
        %v5178 = vor.u32 %v5175, %v5176
        %v5179 = vshrl.u32 %v4808, 16
        %v5181 = vrot.slane %v5179, 7
        %v5182 = vshll.u32 %v4808, 16
        %v5184 = vor.u32 %v5181, %v5182
        %v5185 = vshrl.u32 %v4810, 16
        %v5187 = vrot.slane %v5185, 7
        %v5188 = vshll.u32 %v4810, 16
        %v5190 = vor.u32 %v5187, %v5188
        %v5191 = vshrl.u32 %v4812, 16
        %v5193 = vrot.slane %v5191, 7
        %v5194 = vshll.u32 %v4812, 16
        %v5196 = vor.u32 %v5193, %v5194
        %v5261 = vsel %vm1341, 0, %v4818
        %v5262 = vsel %vm1341, 0, %v4824
        %v5263 = vsel %vm1341, 0, %v4830
        %v5264 = vsel %vm1341, 0, %v4836
        %v5265 = vsel %vm1341, 0, %v4842
        %v5266 = vsel %vm1341, 0, %v4848
        %v5267 = vsel %vm1341, 0, %v4854
        %v5268 = vsel %vm1341, 0, %v4860
        %v5269 = vsel %vm1341, 0, %v4866
        %v5270 = vsel %vm1341, 0, %v4872
        %v5271 = vsel %vm1341, 0, %v4878
        %v5272 = vsel %vm1341, 0, %v4884
        %v5273 = vsel %vm1341, 0, %v4890
        %v5274 = vsel %vm1341, 0, %v4896
        %v5275 = vsel %vm1341, 0, %v4902
        %v5276 = vsel %vm1341, 0, %v4908
        %v5277 = vsel %vm1341, 0, %v4914
        %v5278 = vsel %vm1341, 0, %v4920
        %v5279 = vsel %vm1341, 0, %v4926
        %v5280 = vsel %vm1341, 0, %v4932
        %v5281 = vsel %vm1341, 0, %v4938
        %v5282 = vsel %vm1341, 0, %v4944
        %v5283 = vsel %vm1341, 0, %v4950
        %v5284 = vsel %vm1341, 0, %v4956
        %v5285 = vsel %vm1341, 0, %v4962
        %v5286 = vsel %vm1341, 0, %v4968
        %v5287 = vsel %vm1341, 0, %v4974
        %v5288 = vsel %vm1341, 0, %v4980
        %v5289 = vsel %vm1341, 0, %v4986
        %v5290 = vsel %vm1341, 0, %v4992
        %v5291 = vsel %vm1341, 0, %v4998
        %v5292 = vsel %vm1341, 0, %v5004
        %v5293 = vsel %vm1341, 0, %v5010
        %v5294 = vsel %vm1341, 0, %v5016
        %v5295 = vsel %vm1341, 0, %v5022
        %v5296 = vsel %vm1341, 0, %v5028
        %v5297 = vsel %vm1341, 0, %v5034
        %v5298 = vsel %vm1341, 0, %v5040
        %v5299 = vsel %vm1341, 0, %v5046
        %v5300 = vsel %vm1341, 0, %v5052
        %v5301 = vsel %vm1341, 0, %v5058
        %v5302 = vsel %vm1341, 0, %v5064
        %v5303 = vsel %vm1341, 0, %v5070
        %v5304 = vsel %vm1341, 0, %v5076
        %v5305 = vsel %vm1341, 0, %v5082
        %v5306 = vsel %vm1341, 0, %v5088
        %v5307 = vsel %vm1341, 0, %v5094
        %v5308 = vsel %vm1341, 0, %v5100
        %v5309 = vsel %vm1341, 0, %v5106
        %v5310 = vsel %vm1341, 0, %v5112
        %v5311 = vsel %vm1341, 0, %v5118
        %v5312 = vsel %vm1341, 0, %v5124
        %v5313 = vsel %vm1341, 0, %v5130
        %v5314 = vsel %vm1341, 0, %v5136
        %v5315 = vsel %vm1341, 0, %v5142
        %v5316 = vsel %vm1341, 0, %v5148
        %v5317 = vsel %vm1341, 0, %v5154
        %v5318 = vsel %vm1341, 0, %v5160
        %v5319 = vsel %vm1341, 0, %v5166
        %v5320 = vsel %vm1341, 0, %v5172
        %v5321 = vsel %vm1341, 0, %v5178
        %v5322 = vsel %vm1341, 0, %v5184
        %v5323 = vsel %vm1341, 0, %v5190
        %v5324 = vsel %vm1341, 0, %v5196
        %s5325 = scalar_lea.vmem %s3, 96
        %v5326 = vld [vmem:[%s5325] sm:$0xf]
        %v5327 = vld [vmem:[%s5325 + $0x4] sm:$0xf]
        %v5328 = vld [vmem:[%s5325 + $0x8] sm:$0xf]
        %v5329 = vld [vmem:[%s5325 + $0xc] sm:$0xf]
        %5331 = vst [vmem:[#allocation1] ss:$4 sm:$0xff] %v5261
        %s5333 = scalar_lea.vmem [#allocation1], 1
        %5334 = vst [vmem:[%s5333] ss:$4 sm:$0xff] %v5262
        %s5336 = scalar_lea.vmem [#allocation1], 2
        %5337 = vst [vmem:[%s5336] ss:$4 sm:$0xff] %v5263
        %s5339 = scalar_lea.vmem [#allocation1], 3
        %5340 = vst [vmem:[%s5339] ss:$4 sm:$0xff] %v5264
        %s5342 = scalar_lea.vmem [#allocation1], 32
        %5343 = vst [vmem:[%s5342] ss:$4 sm:$0xff] %v5265
        %s5345 = scalar_lea.vmem [#allocation1], 33
        %5346 = vst [vmem:[%s5345] ss:$4 sm:$0xff] %v5266
        %s5348 = scalar_lea.vmem [#allocation1], 34
        %5349 = vst [vmem:[%s5348] ss:$4 sm:$0xff] %v5267
        %s5351 = scalar_lea.vmem [#allocation1], 35
        %5352 = vst [vmem:[%s5351] ss:$4 sm:$0xff] %v5268
        %v5353 = vld.sshfl [vmem:[#allocation1] sm:$0xff pattern:$0x73625140]
        %v5354 = vld.sshfl [vmem:[#allocation1 + $0x20] sm:$0xff pattern:$0x73625140]
        %5356 = vst [vmem:[#allocation1] ss:$4 sm:$0xff] %v5269
        %5358 = vst [vmem:[%s5333] ss:$4 sm:$0xff] %v5270
        %5360 = vst [vmem:[%s5336] ss:$4 sm:$0xff] %v5271
        %5362 = vst [vmem:[%s5339] ss:$4 sm:$0xff] %v5272
        %5364 = vst [vmem:[%s5342] ss:$4 sm:$0xff] %v5273
        %5366 = vst [vmem:[%s5345] ss:$4 sm:$0xff] %v5274
        %5368 = vst [vmem:[%s5348] ss:$4 sm:$0xff] %v5275
        %5370 = vst [vmem:[%s5351] ss:$4 sm:$0xff] %v5276
        %v5371 = vld.sshfl [vmem:[#allocation1] sm:$0xff pattern:$0x73625140]
        %v5372 = vld.sshfl [vmem:[#allocation1 + $0x20] sm:$0xff pattern:$0x73625140]
        %5374 = vst [vmem:[#allocation1] ss:$4 sm:$0xff] %v5277
        %5376 = vst [vmem:[%s5333] ss:$4 sm:$0xff] %v5278
        %5378 = vst [vmem:[%s5336] ss:$4 sm:$0xff] %v5279
        %5380 = vst [vmem:[%s5339] ss:$4 sm:$0xff] %v5280
        %5382 = vst [vmem:[%s5342] ss:$4 sm:$0xff] %v5281
        %5384 = vst [vmem:[%s5345] ss:$4 sm:$0xff] %v5282
        %5386 = vst [vmem:[%s5348] ss:$4 sm:$0xff] %v5283
        %5388 = vst [vmem:[%s5351] ss:$4 sm:$0xff] %v5284
        %v5389 = vld.sshfl [vmem:[#allocation1] sm:$0xff pattern:$0x73625140]
        %v5390 = vld.sshfl [vmem:[#allocation1 + $0x20] sm:$0xff pattern:$0x73625140]
        %5392 = vst [vmem:[#allocation1] ss:$4 sm:$0xff] %v5285
        %5394 = vst [vmem:[%s5333] ss:$4 sm:$0xff] %v5286
        %5396 = vst [vmem:[%s5336] ss:$4 sm:$0xff] %v5287
        %5398 = vst [vmem:[%s5339] ss:$4 sm:$0xff] %v5288
        %5400 = vst [vmem:[%s5342] ss:$4 sm:$0xff] %v5289
        %5402 = vst [vmem:[%s5345] ss:$4 sm:$0xff] %v5290
        %5404 = vst [vmem:[%s5348] ss:$4 sm:$0xff] %v5291
        %5406 = vst [vmem:[%s5351] ss:$4 sm:$0xff] %v5292
        %v5407 = vld.sshfl [vmem:[#allocation1] sm:$0xff pattern:$0x73625140]
        %v5408 = vld.sshfl [vmem:[#allocation1 + $0x20] sm:$0xff pattern:$0x73625140]
        %5410 = vst [vmem:[#allocation1] ss:$4 sm:$0xff] %v5293
        %5412 = vst [vmem:[%s5333] ss:$4 sm:$0xff] %v5294
        %5414 = vst [vmem:[%s5336] ss:$4 sm:$0xff] %v5295
        %5416 = vst [vmem:[%s5339] ss:$4 sm:$0xff] %v5296
        %5418 = vst [vmem:[%s5342] ss:$4 sm:$0xff] %v5297
        %5420 = vst [vmem:[%s5345] ss:$4 sm:$0xff] %v5298
        %5422 = vst [vmem:[%s5348] ss:$4 sm:$0xff] %v5299
        %5424 = vst [vmem:[%s5351] ss:$4 sm:$0xff] %v5300
        %v5425 = vld.sshfl [vmem:[#allocation1] sm:$0xff pattern:$0x73625140]
        %v5426 = vld.sshfl [vmem:[#allocation1 + $0x20] sm:$0xff pattern:$0x73625140]
        %5428 = vst [vmem:[#allocation1] ss:$4 sm:$0xff] %v5301
        %5430 = vst [vmem:[%s5333] ss:$4 sm:$0xff] %v5302
        %5432 = vst [vmem:[%s5336] ss:$4 sm:$0xff] %v5303
        %5434 = vst [vmem:[%s5339] ss:$4 sm:$0xff] %v5304
        %5436 = vst [vmem:[%s5342] ss:$4 sm:$0xff] %v5305
        %5438 = vst [vmem:[%s5345] ss:$4 sm:$0xff] %v5306
        %5440 = vst [vmem:[%s5348] ss:$4 sm:$0xff] %v5307
        %5442 = vst [vmem:[%s5351] ss:$4 sm:$0xff] %v5308
        %v5443 = vld.sshfl [vmem:[#allocation1] sm:$0xff pattern:$0x73625140]
        %v5444 = vld.sshfl [vmem:[#allocation1 + $0x20] sm:$0xff pattern:$0x73625140]
        %5446 = vst [vmem:[#allocation1] ss:$4 sm:$0xff] %v5309
        %5448 = vst [vmem:[%s5333] ss:$4 sm:$0xff] %v5310
        %5450 = vst [vmem:[%s5336] ss:$4 sm:$0xff] %v5311
        %5452 = vst [vmem:[%s5339] ss:$4 sm:$0xff] %v5312
        %5454 = vst [vmem:[%s5342] ss:$4 sm:$0xff] %v5313
        %5456 = vst [vmem:[%s5345] ss:$4 sm:$0xff] %v5314
        %5458 = vst [vmem:[%s5348] ss:$4 sm:$0xff] %v5315
        %5460 = vst [vmem:[%s5351] ss:$4 sm:$0xff] %v5316
        %v5461 = vld.sshfl [vmem:[#allocation1] sm:$0xff pattern:$0x73625140]
        %v5462 = vld.sshfl [vmem:[#allocation1 + $0x20] sm:$0xff pattern:$0x73625140]
        %5464 = vst [vmem:[#allocation1] ss:$4 sm:$0xff] %v5317
        %5466 = vst [vmem:[%s5333] ss:$4 sm:$0xff] %v5318
        %5468 = vst [vmem:[%s5336] ss:$4 sm:$0xff] %v5319
        %5470 = vst [vmem:[%s5339] ss:$4 sm:$0xff] %v5320
        %5472 = vst [vmem:[%s5342] ss:$4 sm:$0xff] %v5321
        %5474 = vst [vmem:[%s5345] ss:$4 sm:$0xff] %v5322
        %5476 = vst [vmem:[%s5348] ss:$4 sm:$0xff] %v5323
        %5478 = vst [vmem:[%s5351] ss:$4 sm:$0xff] %v5324
        %v5479 = vld.sshfl [vmem:[#allocation1] sm:$0xff pattern:$0x73625140]
        %v5480 = vld.sshfl [vmem:[#allocation1 + $0x20] sm:$0xff pattern:$0x73625140]
        %v5485 = vunpack.c.l.b16 %v5326
        %v5486 = vunpack.c.l.b16 %v5327
        %v5487 = vunpack.c.l.b16 %v5328
        %v5488 = vunpack.c.l.b16 %v5329
        %v5489 = vpack.c.b16 %v5486, %v5485
        %v5490 = vpack.c.b16 %v5488, %v5487
        %v5493 = vsel %vm1559, %v5353, 0
        %v5495 = vsel %vm1559, %v5354, 0
        %v5497 = vsel %vm1559, %v5371, 0
        %v5499 = vsel %vm1559, %v5372, 0
        %v5501 = vsel %vm1559, %v5389, 0
        %v5503 = vsel %vm1559, %v5390, 0
        %v5505 = vsel %vm1559, %v5407, 0
        %v5507 = vsel %vm1559, %v5408, 0
        %v5509 = vsel %vm1559, %v5425, 0
        %v5511 = vsel %vm1559, %v5426, 0
        %v5513 = vsel %vm1559, %v5443, 0
        %v5515 = vsel %vm1559, %v5444, 0
        %v5517 = vsel %vm1559, %v5461, 0
        %v5519 = vsel %vm1559, %v5462, 0
        %v5521 = vsel %vm1559, %v5479, 0
        %v5523 = vsel %vm1559, %v5480, 0
        %5525 = vmatpush.bf16.msra.mxu0 0
        %5526 = vmatpush.bf16.msra.mxu0 0
        %5527 = vmatpush.bf16.msra.mxu0 0
        %5528 = vmatpush.bf16.msra.mxu0 0
        %5529 = vmatpush.bf16.msra.mxu0 0
        %5530 = vmatpush.bf16.msra.mxu0 0
        %5531 = vmatpush.bf16.msra.mxu0 %v5490
        %5532 = vmatpush.bf16.msra.mxu0 %v5489
        %5533 = vmatmul.bf16.gmra.mxu0 %v5493
        %v5534 = vpop.f32.mrf.mxu0
        %v5535 = vadd.f32 0.0, %v5534
        %v5536 = vpop.f32.mrf.mxu0
        %v5537 = vadd.f32 0.0, %v5536
        %5538 = vmatmul.bf16.gmra.mxu0 %v5495
        %v5539 = vpop.f32.mrf.mxu0
        %v5540 = vadd.f32 0.0, %v5539
        %v5541 = vpop.f32.mrf.mxu0
        %v5542 = vadd.f32 0.0, %v5541
        %5543 = vmatmul.bf16.gmra.mxu0 %v5497
        %v5544 = vpop.f32.mrf.mxu0
        %v5545 = vadd.f32 0.0, %v5544
        %v5546 = vpop.f32.mrf.mxu0
        %v5547 = vadd.f32 0.0, %v5546
        %5548 = vmatmul.bf16.gmra.mxu0 %v5499
        %v5549 = vpop.f32.mrf.mxu0
        %v5550 = vadd.f32 0.0, %v5549
        %v5551 = vpop.f32.mrf.mxu0
        %v5552 = vadd.f32 0.0, %v5551
        %5553 = vmatmul.bf16.gmra.mxu0 %v5501
        %v5554 = vpop.f32.mrf.mxu0
        %v5555 = vadd.f32 0.0, %v5554
        %v5556 = vpop.f32.mrf.mxu0
        %v5557 = vadd.f32 0.0, %v5556
        %5558 = vmatmul.bf16.gmra.mxu0 %v5503
        %v5559 = vpop.f32.mrf.mxu0
        %v5560 = vadd.f32 0.0, %v5559
        %v5561 = vpop.f32.mrf.mxu0
        %v5562 = vadd.f32 0.0, %v5561
        %5563 = vmatmul.bf16.gmra.mxu0 %v5505
        %v5564 = vpop.f32.mrf.mxu0
        %v5565 = vadd.f32 0.0, %v5564
        %v5566 = vpop.f32.mrf.mxu0
        %v5567 = vadd.f32 0.0, %v5566
        %5568 = vmatmul.bf16.gmra.mxu0 %v5507
        %v5569 = vpop.f32.mrf.mxu0
        %v5570 = vadd.f32 0.0, %v5569
        %v5571 = vpop.f32.mrf.mxu0
        %v5572 = vadd.f32 0.0, %v5571
        %5573 = vmatmul.bf16.gmra.mxu0 %v5509
        %v5574 = vpop.f32.mrf.mxu0
        %v5575 = vadd.f32 0.0, %v5574
        %v5576 = vpop.f32.mrf.mxu0
        %v5577 = vadd.f32 0.0, %v5576
        %5578 = vmatmul.bf16.gmra.mxu0 %v5511
        %v5579 = vpop.f32.mrf.mxu0
        %v5580 = vadd.f32 0.0, %v5579
        %v5581 = vpop.f32.mrf.mxu0
        %v5582 = vadd.f32 0.0, %v5581
        %5583 = vmatmul.bf16.gmra.mxu0 %v5513
        %v5584 = vpop.f32.mrf.mxu0
        %v5585 = vadd.f32 0.0, %v5584
        %v5586 = vpop.f32.mrf.mxu0
        %v5587 = vadd.f32 0.0, %v5586
        %5588 = vmatmul.bf16.gmra.mxu0 %v5515
        %v5589 = vpop.f32.mrf.mxu0
        %v5590 = vadd.f32 0.0, %v5589
        %v5591 = vpop.f32.mrf.mxu0
        %v5592 = vadd.f32 0.0, %v5591
        %5593 = vmatmul.bf16.gmra.mxu0 %v5517
        %v5594 = vpop.f32.mrf.mxu0
        %v5595 = vadd.f32 0.0, %v5594
        %v5596 = vpop.f32.mrf.mxu0
        %v5597 = vadd.f32 0.0, %v5596
        %5598 = vmatmul.bf16.gmra.mxu0 %v5519
        %v5599 = vpop.f32.mrf.mxu0
        %v5600 = vadd.f32 0.0, %v5599
        %v5601 = vpop.f32.mrf.mxu0
        %v5602 = vadd.f32 0.0, %v5601
        %5603 = vmatmul.bf16.gmra.mxu0 %v5521
        %v5604 = vpop.f32.mrf.mxu0
        %v5605 = vadd.f32 0.0, %v5604
        %v5606 = vpop.f32.mrf.mxu0
        %v5607 = vadd.f32 0.0, %v5606
        %5608 = vmatmul.bf16.gmra.mxu0 %v5523
        %v5609 = vpop.f32.mrf.mxu0
        %v5610 = vadd.f32 0.0, %v5609
        %v5611 = vpop.f32.mrf.mxu0
        %v5612 = vadd.f32 0.0, %v5611
        %5613 = vdwg.mxu0
        %v5614 = vadd.f32 %v4652, %v5535
        %v5615 = vadd.f32 %v4653, %v5537
        %v5616 = vadd.f32 %v4654, %v5540
        %v5617 = vadd.f32 %v4655, %v5542
        %v5618 = vadd.f32 %v4656, %v5545
        %v5619 = vadd.f32 %v4657, %v5547
        %v5620 = vadd.f32 %v4658, %v5550
        %v5621 = vadd.f32 %v4659, %v5552
        %v5622 = vadd.f32 %v4660, %v5555
        %v5623 = vadd.f32 %v4661, %v5557
        %v5624 = vadd.f32 %v4662, %v5560
        %v5625 = vadd.f32 %v4663, %v5562
        %v5626 = vadd.f32 %v4664, %v5565
        %v5627 = vadd.f32 %v4665, %v5567
        %v5628 = vadd.f32 %v4666, %v5570
        %v5629 = vadd.f32 %v4667, %v5572
        %v5630 = vadd.f32 %v4668, %v5575
        %v5631 = vadd.f32 %v4669, %v5577
        %v5632 = vadd.f32 %v4670, %v5580
        %v5633 = vadd.f32 %v4671, %v5582
        %v5634 = vadd.f32 %v4672, %v5585
        %v5635 = vadd.f32 %v4673, %v5587
        %v5636 = vadd.f32 %v4674, %v5590
        %v5637 = vadd.f32 %v4675, %v5592
        %v5638 = vadd.f32 %v4676, %v5595
        %v5639 = vadd.f32 %v4677, %v5597
        %v5640 = vadd.f32 %v4678, %v5600
        %v5641 = vadd.f32 %v4679, %v5602
        %v5642 = vadd.f32 %v4680, %v5605
        %v5643 = vadd.f32 %v4681, %v5607
        %v5644 = vadd.f32 %v4682, %v5610
        %v5645 = vadd.f32 %v4683, %v5612
        %s5646 = scalar_lea.vmem %s3, 112
        %v5647 = vld [vmem:[%s5646] sm:$0xf]
        %v5648 = vld [vmem:[%s5646 + $0x4] sm:$0xf]
        %v5649 = vld [vmem:[%s5646 + $0x8] sm:$0xf]
        %v5650 = vld [vmem:[%s5646 + $0xc] sm:$0xf]
        %5651 = vst [vmem:[#allocation1] ss:$4 sm:$0xff] %v727
        %s5652 = scalar_lea.vmem [#allocation1], 1
        %5653 = vst [vmem:[%s5652] ss:$4 sm:$0xff] %v730
        %s5654 = scalar_lea.vmem [#allocation1], 2
        %5655 = vst [vmem:[%s5654] ss:$4 sm:$0xff] %v733
        %s5656 = scalar_lea.vmem [#allocation1], 3
        %5657 = vst [vmem:[%s5656] ss:$4 sm:$0xff] %v736
        %s5658 = scalar_lea.vmem [#allocation1], 32
        %5659 = vst [vmem:[%s5658] ss:$4 sm:$0xff] %v739
        %s5660 = scalar_lea.vmem [#allocation1], 33
        %5661 = vst [vmem:[%s5660] ss:$4 sm:$0xff] %v742
        %s5662 = scalar_lea.vmem [#allocation1], 34
        %5663 = vst [vmem:[%s5662] ss:$4 sm:$0xff] %v745
        %s5664 = scalar_lea.vmem [#allocation1], 35
        %5665 = vst [vmem:[%s5664] ss:$4 sm:$0xff] 0
        %v5666 = vld.sshfl [vmem:[#allocation1] sm:$0xff pattern:$0x73625140]
        %v5667 = vld.sshfl [vmem:[#allocation1 + $0x20] sm:$0xff pattern:$0x73625140]
        %5668 = vst [vmem:[#allocation1] ss:$4 sm:$0xff] %v751
        %5669 = vst [vmem:[%s5652] ss:$4 sm:$0xff] %v754
        %5670 = vst [vmem:[%s5654] ss:$4 sm:$0xff] %v757
        %5671 = vst [vmem:[%s5656] ss:$4 sm:$0xff] %v760
        %5672 = vst [vmem:[%s5658] ss:$4 sm:$0xff] %v763
        %5673 = vst [vmem:[%s5660] ss:$4 sm:$0xff] %v766
        %5674 = vst [vmem:[%s5662] ss:$4 sm:$0xff] %v769
        %5675 = vst [vmem:[%s5664] ss:$4 sm:$0xff] 0
        %v5676 = vld.sshfl [vmem:[#allocation1] sm:$0xff pattern:$0x73625140]
        %v5677 = vld.sshfl [vmem:[#allocation1 + $0x20] sm:$0xff pattern:$0x73625140]
        %5678 = vst [vmem:[#allocation1] ss:$4 sm:$0xff] %v775
        %5679 = vst [vmem:[%s5652] ss:$4 sm:$0xff] %v778
        %5680 = vst [vmem:[%s5654] ss:$4 sm:$0xff] %v781
        %5681 = vst [vmem:[%s5656] ss:$4 sm:$0xff] %v784
        %5682 = vst [vmem:[%s5658] ss:$4 sm:$0xff] %v787
        %5683 = vst [vmem:[%s5660] ss:$4 sm:$0xff] %v790
        %5684 = vst [vmem:[%s5662] ss:$4 sm:$0xff] %v793
        %5685 = vst [vmem:[%s5664] ss:$4 sm:$0xff] 0
        %v5686 = vld.sshfl [vmem:[#allocation1] sm:$0xff pattern:$0x73625140]
        %v5687 = vld.sshfl [vmem:[#allocation1 + $0x20] sm:$0xff pattern:$0x73625140]
        %5688 = vst [vmem:[#allocation1] ss:$4 sm:$0xff] %v799
        %5689 = vst [vmem:[%s5652] ss:$4 sm:$0xff] %v802
        %5690 = vst [vmem:[%s5654] ss:$4 sm:$0xff] %v805
        %5691 = vst [vmem:[%s5656] ss:$4 sm:$0xff] %v808
        %5692 = vst [vmem:[%s5658] ss:$4 sm:$0xff] %v811
        %5693 = vst [vmem:[%s5660] ss:$4 sm:$0xff] %v814
        %5694 = vst [vmem:[%s5662] ss:$4 sm:$0xff] %v817
        %5695 = vst [vmem:[%s5664] ss:$4 sm:$0xff] 0
        %v5696 = vld.sshfl [vmem:[#allocation1] sm:$0xff pattern:$0x73625140]
        %v5697 = vld.sshfl [vmem:[#allocation1 + $0x20] sm:$0xff pattern:$0x73625140]
        %5698 = vst [vmem:[#allocation1] ss:$4 sm:$0xff] %v823
        %5699 = vst [vmem:[%s5652] ss:$4 sm:$0xff] %v826
        %5700 = vst [vmem:[%s5654] ss:$4 sm:$0xff] %v829
        %5701 = vst [vmem:[%s5656] ss:$4 sm:$0xff] %v832
        %5702 = vst [vmem:[%s5658] ss:$4 sm:$0xff] %v835
        %5703 = vst [vmem:[%s5660] ss:$4 sm:$0xff] %v838
        %5704 = vst [vmem:[%s5662] ss:$4 sm:$0xff] %v841
        %5705 = vst [vmem:[%s5664] ss:$4 sm:$0xff] 0
        %v5706 = vld.sshfl [vmem:[#allocation1] sm:$0xff pattern:$0x73625140]
        %v5707 = vld.sshfl [vmem:[#allocation1 + $0x20] sm:$0xff pattern:$0x73625140]
        %5708 = vst [vmem:[#allocation1] ss:$4 sm:$0xff] %v847
        %5709 = vst [vmem:[%s5652] ss:$4 sm:$0xff] %v850
        %5710 = vst [vmem:[%s5654] ss:$4 sm:$0xff] %v853
        %5711 = vst [vmem:[%s5656] ss:$4 sm:$0xff] %v856
        %5712 = vst [vmem:[%s5658] ss:$4 sm:$0xff] %v859
        %5713 = vst [vmem:[%s5660] ss:$4 sm:$0xff] %v862
        %5714 = vst [vmem:[%s5662] ss:$4 sm:$0xff] %v865
        %5715 = vst [vmem:[%s5664] ss:$4 sm:$0xff] 0
        %v5716 = vld.sshfl [vmem:[#allocation1] sm:$0xff pattern:$0x73625140]
        %v5717 = vld.sshfl [vmem:[#allocation1 + $0x20] sm:$0xff pattern:$0x73625140]
        %5718 = vst [vmem:[#allocation1] ss:$4 sm:$0xff] %v871
        %5719 = vst [vmem:[%s5652] ss:$4 sm:$0xff] %v874
        %5720 = vst [vmem:[%s5654] ss:$4 sm:$0xff] %v877
        %5721 = vst [vmem:[%s5656] ss:$4 sm:$0xff] %v880
        %5722 = vst [vmem:[%s5658] ss:$4 sm:$0xff] %v883
        %5723 = vst [vmem:[%s5660] ss:$4 sm:$0xff] %v886
        %5724 = vst [vmem:[%s5662] ss:$4 sm:$0xff] %v889
        %5725 = vst [vmem:[%s5664] ss:$4 sm:$0xff] 0
        %v5726 = vld.sshfl [vmem:[#allocation1] sm:$0xff pattern:$0x73625140]
        %v5727 = vld.sshfl [vmem:[#allocation1 + $0x20] sm:$0xff pattern:$0x73625140]
        %5728 = vst [vmem:[#allocation1] ss:$4 sm:$0xff] %v895
        %5729 = vst [vmem:[%s5652] ss:$4 sm:$0xff] %v898
        %5730 = vst [vmem:[%s5654] ss:$4 sm:$0xff] %v901
        %5731 = vst [vmem:[%s5656] ss:$4 sm:$0xff] %v904
        %5732 = vst [vmem:[%s5658] ss:$4 sm:$0xff] %v907
        %5733 = vst [vmem:[%s5660] ss:$4 sm:$0xff] %v910
        %5734 = vst [vmem:[%s5662] ss:$4 sm:$0xff] %v913
        %5735 = vst [vmem:[%s5664] ss:$4 sm:$0xff] 0
        %v5736 = vld.sshfl [vmem:[#allocation1] sm:$0xff pattern:$0x73625140]
        %v5737 = vld.sshfl [vmem:[#allocation1 + $0x20] sm:$0xff pattern:$0x73625140]
        %v5742 = vunpack.c.l.b16 %v5647
        %v5743 = vunpack.c.l.b16 %v5648
        %v5744 = vunpack.c.l.b16 %v5649
        %v5745 = vunpack.c.l.b16 %v5650
        %v5746 = vpack.c.b16 %v5743, %v5742
        %v5747 = vpack.c.b16 %v5745, %v5744
        %v5750 = vsel %vm1559, %v5666, 0
        %v5752 = vsel %vm1559, %v5667, 0
        %v5754 = vsel %vm1559, %v5676, 0
        %v5756 = vsel %vm1559, %v5677, 0
        %v5758 = vsel %vm1559, %v5686, 0
        %v5760 = vsel %vm1559, %v5687, 0
        %v5762 = vsel %vm1559, %v5696, 0
        %v5764 = vsel %vm1559, %v5697, 0
        %v5766 = vsel %vm1559, %v5706, 0
        %v5768 = vsel %vm1559, %v5707, 0
        %v5770 = vsel %vm1559, %v5716, 0
        %v5772 = vsel %vm1559, %v5717, 0
        %v5774 = vsel %vm1559, %v5726, 0
        %v5776 = vsel %vm1559, %v5727, 0
        %v5778 = vsel %vm1559, %v5736, 0
        %v5780 = vsel %vm1559, %v5737, 0
        %5782 = vmatpush.bf16.msra.mxu0 0
        %5783 = vmatpush.bf16.msra.mxu0 0
        %5784 = vmatpush.bf16.msra.mxu0 0
        %5785 = vmatpush.bf16.msra.mxu0 0
        %5786 = vmatpush.bf16.msra.mxu0 0
        %5787 = vmatpush.bf16.msra.mxu0 0
        %5788 = vmatpush.bf16.msra.mxu0 %v5747
        %5789 = vmatpush.bf16.msra.mxu0 %v5746
        %5790 = vmatmul.bf16.gmra.mxu0 %v5750
        %v5791 = vpop.f32.mrf.mxu0
        %v5792 = vadd.f32 0.0, %v5791
        %v5793 = vpop.f32.mrf.mxu0
        %v5794 = vadd.f32 0.0, %v5793
        %5795 = vmatmul.bf16.gmra.mxu0 %v5752
        %v5796 = vpop.f32.mrf.mxu0
        %v5797 = vadd.f32 0.0, %v5796
        %v5798 = vpop.f32.mrf.mxu0
        %v5799 = vadd.f32 0.0, %v5798
        %5800 = vmatmul.bf16.gmra.mxu0 %v5754
        %v5801 = vpop.f32.mrf.mxu0
        %v5802 = vadd.f32 0.0, %v5801
        %v5803 = vpop.f32.mrf.mxu0
        %v5804 = vadd.f32 0.0, %v5803
        %5805 = vmatmul.bf16.gmra.mxu0 %v5756
        %v5806 = vpop.f32.mrf.mxu0
        %v5807 = vadd.f32 0.0, %v5806
        %v5808 = vpop.f32.mrf.mxu0
        %v5809 = vadd.f32 0.0, %v5808
        %5810 = vmatmul.bf16.gmra.mxu0 %v5758
        %v5811 = vpop.f32.mrf.mxu0
        %v5812 = vadd.f32 0.0, %v5811
        %v5813 = vpop.f32.mrf.mxu0
        %v5814 = vadd.f32 0.0, %v5813
        %5815 = vmatmul.bf16.gmra.mxu0 %v5760
        %v5816 = vpop.f32.mrf.mxu0
        %v5817 = vadd.f32 0.0, %v5816
        %v5818 = vpop.f32.mrf.mxu0
        %v5819 = vadd.f32 0.0, %v5818
        %5820 = vmatmul.bf16.gmra.mxu0 %v5762
        %v5821 = vpop.f32.mrf.mxu0
        %v5822 = vadd.f32 0.0, %v5821
        %v5823 = vpop.f32.mrf.mxu0
        %v5824 = vadd.f32 0.0, %v5823
        %5825 = vmatmul.bf16.gmra.mxu0 %v5764
        %v5826 = vpop.f32.mrf.mxu0
        %v5827 = vadd.f32 0.0, %v5826
        %v5828 = vpop.f32.mrf.mxu0
        %v5829 = vadd.f32 0.0, %v5828
        %5830 = vmatmul.bf16.gmra.mxu0 %v5766
        %v5831 = vpop.f32.mrf.mxu0
        %v5832 = vadd.f32 0.0, %v5831
        %v5833 = vpop.f32.mrf.mxu0
        %v5834 = vadd.f32 0.0, %v5833
        %5835 = vmatmul.bf16.gmra.mxu0 %v5768
        %v5836 = vpop.f32.mrf.mxu0
        %v5837 = vadd.f32 0.0, %v5836
        %v5838 = vpop.f32.mrf.mxu0
        %v5839 = vadd.f32 0.0, %v5838
        %5840 = vmatmul.bf16.gmra.mxu0 %v5770
        %v5841 = vpop.f32.mrf.mxu0
        %v5842 = vadd.f32 0.0, %v5841
        %v5843 = vpop.f32.mrf.mxu0
        %v5844 = vadd.f32 0.0, %v5843
        %5845 = vmatmul.bf16.gmra.mxu0 %v5772
        %v5846 = vpop.f32.mrf.mxu0
        %v5847 = vadd.f32 0.0, %v5846
        %v5848 = vpop.f32.mrf.mxu0
        %v5849 = vadd.f32 0.0, %v5848
        %5850 = vmatmul.bf16.gmra.mxu0 %v5774
        %v5851 = vpop.f32.mrf.mxu0
        %v5852 = vadd.f32 0.0, %v5851
        %v5853 = vpop.f32.mrf.mxu0
        %v5854 = vadd.f32 0.0, %v5853
        %5855 = vmatmul.bf16.gmra.mxu0 %v5776
        %v5856 = vpop.f32.mrf.mxu0
        %v5857 = vadd.f32 0.0, %v5856
        %v5858 = vpop.f32.mrf.mxu0
        %v5859 = vadd.f32 0.0, %v5858
        %5860 = vmatmul.bf16.gmra.mxu0 %v5778
        %v5861 = vpop.f32.mrf.mxu0
        %v5862 = vadd.f32 0.0, %v5861
        %v5863 = vpop.f32.mrf.mxu0
        %v5864 = vadd.f32 0.0, %v5863
        %5865 = vmatmul.bf16.gmra.mxu0 %v5780
        %v5866 = vpop.f32.mrf.mxu0
        %v5867 = vadd.f32 0.0, %v5866
        %v5868 = vpop.f32.mrf.mxu0
        %v5869 = vadd.f32 0.0, %v5868
        %5870 = vdwg.mxu0
        %v5871 = vadd.f32 %v5614, %v5792
        %v5872 = vadd.f32 %v5615, %v5794
        %v5873 = vadd.f32 %v5616, %v5797
        %v5874 = vadd.f32 %v5617, %v5799
        %v5875 = vadd.f32 %v5618, %v5802
        %v5876 = vadd.f32 %v5619, %v5804
        %v5877 = vadd.f32 %v5620, %v5807
        %v5878 = vadd.f32 %v5621, %v5809
        %v5879 = vadd.f32 %v5622, %v5812
        %v5880 = vadd.f32 %v5623, %v5814
        %v5881 = vadd.f32 %v5624, %v5817
        %v5882 = vadd.f32 %v5625, %v5819
        %v5883 = vadd.f32 %v5626, %v5822
        %v5884 = vadd.f32 %v5627, %v5824
        %v5885 = vadd.f32 %v5628, %v5827
        %v5886 = vadd.f32 %v5629, %v5829
        %v5887 = vadd.f32 %v5630, %v5832
        %v5888 = vadd.f32 %v5631, %v5834
        %v5889 = vadd.f32 %v5632, %v5837
        %v5890 = vadd.f32 %v5633, %v5839
        %v5891 = vadd.f32 %v5634, %v5842
        %v5892 = vadd.f32 %v5635, %v5844
        %v5893 = vadd.f32 %v5636, %v5847
        %v5894 = vadd.f32 %v5637, %v5849
        %v5895 = vadd.f32 %v5638, %v5852
        %v5896 = vadd.f32 %v5639, %v5854
        %v5897 = vadd.f32 %v5640, %v5857
        %v5898 = vadd.f32 %v5641, %v5859
        %v5899 = vadd.f32 %v5642, %v5862
        %v5900 = vadd.f32 %v5643, %v5864
        %v5901 = vadd.f32 %v5644, %v5867
        %v5902 = vadd.f32 %v5645, %v5869
        %5903 = vst [vmem:[#allocation1] ss:$4 sm:$0xff] %v727
        %v5904 = vld.sshfl [vmem:[#allocation1] sm:$0xff pattern:$0x73625140]
        %s5905 = scalar_lea.vmem [#allocation1], 32
        %5906 = vst [vmem:[%s5905] ss:$4 sm:$0xff] %v730
        %v5907 = vld.sshfl [vmem:[#allocation1 + $0x20] sm:$0xff pattern:$0x73625140]
        %5908 = vst [vmem:[#allocation1] ss:$4 sm:$0xff] %v733
        %v5909 = vld.sshfl [vmem:[#allocation1] sm:$0xff pattern:$0x73625140]
        %5910 = vst [vmem:[%s5905] ss:$4 sm:$0xff] %v736
        %v5911 = vld.sshfl [vmem:[#allocation1 + $0x20] sm:$0xff pattern:$0x73625140]
        %5912 = vst [vmem:[#allocation1] ss:$4 sm:$0xff] %v739
        %v5913 = vld.sshfl [vmem:[#allocation1] sm:$0xff pattern:$0x73625140]
        %5914 = vst [vmem:[%s5905] ss:$4 sm:$0xff] %v742
        %v5915 = vld.sshfl [vmem:[#allocation1 + $0x20] sm:$0xff pattern:$0x73625140]
        %5916 = vst [vmem:[#allocation1] ss:$4 sm:$0xff] %v745
        %v5917 = vld.sshfl [vmem:[#allocation1] sm:$0xff pattern:$0x73625140]
        %5918 = vst [vmem:[%s5905] ss:$4 sm:$0xff] 0
        %v5919 = vld.sshfl [vmem:[#allocation1 + $0x20] sm:$0xff pattern:$0x73625140]
        %5920 = vst [vmem:[#allocation1] ss:$4 sm:$0xff] %v751
        %v5921 = vld.sshfl [vmem:[#allocation1] sm:$0xff pattern:$0x73625140]
        %5922 = vst [vmem:[%s5905] ss:$4 sm:$0xff] %v754
        %v5923 = vld.sshfl [vmem:[#allocation1 + $0x20] sm:$0xff pattern:$0x73625140]
        %5924 = vst [vmem:[#allocation1] ss:$4 sm:$0xff] %v757
        %v5925 = vld.sshfl [vmem:[#allocation1] sm:$0xff pattern:$0x73625140]
        %5926 = vst [vmem:[%s5905] ss:$4 sm:$0xff] %v760
        %v5927 = vld.sshfl [vmem:[#allocation1 + $0x20] sm:$0xff pattern:$0x73625140]
        %5928 = vst [vmem:[#allocation1] ss:$4 sm:$0xff] %v763
        %v5929 = vld.sshfl [vmem:[#allocation1] sm:$0xff pattern:$0x73625140]
        %5930 = vst [vmem:[%s5905] ss:$4 sm:$0xff] %v766
        %v5931 = vld.sshfl [vmem:[#allocation1 + $0x20] sm:$0xff pattern:$0x73625140]
        %5932 = vst [vmem:[#allocation1] ss:$4 sm:$0xff] %v769
        %v5933 = vld.sshfl [vmem:[#allocation1] sm:$0xff pattern:$0x73625140]
        %5934 = vst [vmem:[%s5905] ss:$4 sm:$0xff] 0
        %v5935 = vld.sshfl [vmem:[#allocation1 + $0x20] sm:$0xff pattern:$0x73625140]
        %5936 = vst [vmem:[#allocation1] ss:$4 sm:$0xff] %v775
        %v5937 = vld.sshfl [vmem:[#allocation1] sm:$0xff pattern:$0x73625140]
        %5938 = vst [vmem:[%s5905] ss:$4 sm:$0xff] %v778
        %v5939 = vld.sshfl [vmem:[#allocation1 + $0x20] sm:$0xff pattern:$0x73625140]
        %5940 = vst [vmem:[#allocation1] ss:$4 sm:$0xff] %v781
        %v5941 = vld.sshfl [vmem:[#allocation1] sm:$0xff pattern:$0x73625140]
        %5942 = vst [vmem:[%s5905] ss:$4 sm:$0xff] %v784
        %v5943 = vld.sshfl [vmem:[#allocation1 + $0x20] sm:$0xff pattern:$0x73625140]
        %5944 = vst [vmem:[#allocation1] ss:$4 sm:$0xff] %v787
        %v5945 = vld.sshfl [vmem:[#allocation1] sm:$0xff pattern:$0x73625140]
        %5946 = vst [vmem:[%s5905] ss:$4 sm:$0xff] %v790
        %v5947 = vld.sshfl [vmem:[#allocation1 + $0x20] sm:$0xff pattern:$0x73625140]
        %5948 = vst [vmem:[#allocation1] ss:$4 sm:$0xff] %v793
        %v5949 = vld.sshfl [vmem:[#allocation1] sm:$0xff pattern:$0x73625140]
        %5950 = vst [vmem:[%s5905] ss:$4 sm:$0xff] 0
        %v5951 = vld.sshfl [vmem:[#allocation1 + $0x20] sm:$0xff pattern:$0x73625140]
        %5952 = vst [vmem:[#allocation1] ss:$4 sm:$0xff] %v799
        %v5953 = vld.sshfl [vmem:[#allocation1] sm:$0xff pattern:$0x73625140]
        %5954 = vst [vmem:[%s5905] ss:$4 sm:$0xff] %v802
        %v5955 = vld.sshfl [vmem:[#allocation1 + $0x20] sm:$0xff pattern:$0x73625140]
        %5956 = vst [vmem:[#allocation1] ss:$4 sm:$0xff] %v805
        %v5957 = vld.sshfl [vmem:[#allocation1] sm:$0xff pattern:$0x73625140]
        %5958 = vst [vmem:[%s5905] ss:$4 sm:$0xff] %v808
        %v5959 = vld.sshfl [vmem:[#allocation1 + $0x20] sm:$0xff pattern:$0x73625140]
        %5960 = vst [vmem:[#allocation1] ss:$4 sm:$0xff] %v811
        %v5961 = vld.sshfl [vmem:[#allocation1] sm:$0xff pattern:$0x73625140]
        %5962 = vst [vmem:[%s5905] ss:$4 sm:$0xff] %v814
        %v5963 = vld.sshfl [vmem:[#allocation1 + $0x20] sm:$0xff pattern:$0x73625140]
        %5964 = vst [vmem:[#allocation1] ss:$4 sm:$0xff] %v817
        %v5965 = vld.sshfl [vmem:[#allocation1] sm:$0xff pattern:$0x73625140]
        %5966 = vst [vmem:[%s5905] ss:$4 sm:$0xff] 0
        %v5967 = vld.sshfl [vmem:[#allocation1 + $0x20] sm:$0xff pattern:$0x73625140]
        %5968 = vst [vmem:[#allocation1] ss:$4 sm:$0xff] %v823
        %v5969 = vld.sshfl [vmem:[#allocation1] sm:$0xff pattern:$0x73625140]
        %5970 = vst [vmem:[%s5905] ss:$4 sm:$0xff] %v826
        %v5971 = vld.sshfl [vmem:[#allocation1 + $0x20] sm:$0xff pattern:$0x73625140]
        %5972 = vst [vmem:[#allocation1] ss:$4 sm:$0xff] %v829
        %v5973 = vld.sshfl [vmem:[#allocation1] sm:$0xff pattern:$0x73625140]
        %5974 = vst [vmem:[%s5905] ss:$4 sm:$0xff] %v832
        %v5975 = vld.sshfl [vmem:[#allocation1 + $0x20] sm:$0xff pattern:$0x73625140]
        %5976 = vst [vmem:[#allocation1] ss:$4 sm:$0xff] %v835
        %v5977 = vld.sshfl [vmem:[#allocation1] sm:$0xff pattern:$0x73625140]
        %5978 = vst [vmem:[%s5905] ss:$4 sm:$0xff] %v838
        %v5979 = vld.sshfl [vmem:[#allocation1 + $0x20] sm:$0xff pattern:$0x73625140]
        %5980 = vst [vmem:[#allocation1] ss:$4 sm:$0xff] %v841
        %v5981 = vld.sshfl [vmem:[#allocation1] sm:$0xff pattern:$0x73625140]
        %5982 = vst [vmem:[%s5905] ss:$4 sm:$0xff] 0
        %v5983 = vld.sshfl [vmem:[#allocation1 + $0x20] sm:$0xff pattern:$0x73625140]
        %5984 = vst [vmem:[#allocation1] ss:$4 sm:$0xff] %v847
        %v5985 = vld.sshfl [vmem:[#allocation1] sm:$0xff pattern:$0x73625140]
        %5986 = vst [vmem:[%s5905] ss:$4 sm:$0xff] %v850
        %v5987 = vld.sshfl [vmem:[#allocation1 + $0x20] sm:$0xff pattern:$0x73625140]
        %5988 = vst [vmem:[#allocation1] ss:$4 sm:$0xff] %v853
        %v5989 = vld.sshfl [vmem:[#allocation1] sm:$0xff pattern:$0x73625140]
        %5990 = vst [vmem:[%s5905] ss:$4 sm:$0xff] %v856
        %v5991 = vld.sshfl [vmem:[#allocation1 + $0x20] sm:$0xff pattern:$0x73625140]
        %5992 = vst [vmem:[#allocation1] ss:$4 sm:$0xff] %v859
        %v5993 = vld.sshfl [vmem:[#allocation1] sm:$0xff pattern:$0x73625140]
        %5994 = vst [vmem:[%s5905] ss:$4 sm:$0xff] %v862
        %v5995 = vld.sshfl [vmem:[#allocation1 + $0x20] sm:$0xff pattern:$0x73625140]
        %5996 = vst [vmem:[#allocation1] ss:$4 sm:$0xff] %v865
        %v5997 = vld.sshfl [vmem:[#allocation1] sm:$0xff pattern:$0x73625140]
        %5998 = vst [vmem:[%s5905] ss:$4 sm:$0xff] 0
        %v5999 = vld.sshfl [vmem:[#allocation1 + $0x20] sm:$0xff pattern:$0x73625140]
        %6000 = vst [vmem:[#allocation1] ss:$4 sm:$0xff] %v871
        %v6001 = vld.sshfl [vmem:[#allocation1] sm:$0xff pattern:$0x73625140]
        %6002 = vst [vmem:[%s5905] ss:$4 sm:$0xff] %v874
        %v6003 = vld.sshfl [vmem:[#allocation1 + $0x20] sm:$0xff pattern:$0x73625140]
        %6004 = vst [vmem:[#allocation1] ss:$4 sm:$0xff] %v877
        %v6005 = vld.sshfl [vmem:[#allocation1] sm:$0xff pattern:$0x73625140]
        %6006 = vst [vmem:[%s5905] ss:$4 sm:$0xff] %v880
        %v6007 = vld.sshfl [vmem:[#allocation1 + $0x20] sm:$0xff pattern:$0x73625140]
        %6008 = vst [vmem:[#allocation1] ss:$4 sm:$0xff] %v883
        %v6009 = vld.sshfl [vmem:[#allocation1] sm:$0xff pattern:$0x73625140]
        %6010 = vst [vmem:[%s5905] ss:$4 sm:$0xff] %v886
        %v6011 = vld.sshfl [vmem:[#allocation1 + $0x20] sm:$0xff pattern:$0x73625140]
        %6012 = vst [vmem:[#allocation1] ss:$4 sm:$0xff] %v889
        %v6013 = vld.sshfl [vmem:[#allocation1] sm:$0xff pattern:$0x73625140]
        %6014 = vst [vmem:[%s5905] ss:$4 sm:$0xff] 0
        %v6015 = vld.sshfl [vmem:[#allocation1 + $0x20] sm:$0xff pattern:$0x73625140]
        %6016 = vst [vmem:[#allocation1] ss:$4 sm:$0xff] %v895
        %v6017 = vld.sshfl [vmem:[#allocation1] sm:$0xff pattern:$0x73625140]
        %6018 = vst [vmem:[%s5905] ss:$4 sm:$0xff] %v898
        %v6019 = vld.sshfl [vmem:[#allocation1 + $0x20] sm:$0xff pattern:$0x73625140]
        %6020 = vst [vmem:[#allocation1] ss:$4 sm:$0xff] %v901
        %v6021 = vld.sshfl [vmem:[#allocation1] sm:$0xff pattern:$0x73625140]
        %6022 = vst [vmem:[%s5905] ss:$4 sm:$0xff] %v904
        %v6023 = vld.sshfl [vmem:[#allocation1 + $0x20] sm:$0xff pattern:$0x73625140]
        %6024 = vst [vmem:[#allocation1] ss:$4 sm:$0xff] %v907
        %v6025 = vld.sshfl [vmem:[#allocation1] sm:$0xff pattern:$0x73625140]
        %6026 = vst [vmem:[%s5905] ss:$4 sm:$0xff] %v910
        %v6027 = vld.sshfl [vmem:[#allocation1 + $0x20] sm:$0xff pattern:$0x73625140]
        %6028 = vst [vmem:[#allocation1] ss:$4 sm:$0xff] %v913
        %v6029 = vld.sshfl [vmem:[#allocation1] sm:$0xff pattern:$0x73625140]
        %6030 = vst [vmem:[%s5905] ss:$4 sm:$0xff] 0
        %v6031 = vld.sshfl [vmem:[#allocation1 + $0x20] sm:$0xff pattern:$0x73625140]
        %v6032 = vshrl.u32 %v5904, 16
        %v6034 = vshll.u32 %v5904, 16
        %v6036 = vrot.slane %v6034, 1
        %v6037 = vor.u32 %v6032, %v6036
        %v6038 = vshrl.u32 %v5907, 16
        %v6040 = vshll.u32 %v5907, 16
        %v6042 = vrot.slane %v6040, 1
        %v6043 = vor.u32 %v6038, %v6042
        %v6044 = vshrl.u32 %v5909, 16
        %v6046 = vshll.u32 %v5909, 16
        %v6048 = vrot.slane %v6046, 1
        %v6049 = vor.u32 %v6044, %v6048
        %v6050 = vshrl.u32 %v5911, 16
        %v6052 = vshll.u32 %v5911, 16
        %v6054 = vrot.slane %v6052, 1
        %v6055 = vor.u32 %v6050, %v6054
        %v6056 = vshrl.u32 %v5913, 16
        %v6058 = vshll.u32 %v5913, 16
        %v6060 = vrot.slane %v6058, 1
        %v6061 = vor.u32 %v6056, %v6060
        %v6062 = vshrl.u32 %v5915, 16
        %v6064 = vshll.u32 %v5915, 16
        %v6066 = vrot.slane %v6064, 1
        %v6067 = vor.u32 %v6062, %v6066
        %v6068 = vshrl.u32 %v5917, 16
        %v6070 = vshll.u32 %v5917, 16
        %v6072 = vrot.slane %v6070, 1
        %v6073 = vor.u32 %v6068, %v6072
        %v6074 = vshrl.u32 %v5919, 16
        %v6076 = vshll.u32 %v5919, 16
        %v6078 = vrot.slane %v6076, 1
        %v6079 = vor.u32 %v6074, %v6078
        %v6080 = vshrl.u32 %v5921, 16
        %v6082 = vshll.u32 %v5921, 16
        %v6084 = vrot.slane %v6082, 1
        %v6085 = vor.u32 %v6080, %v6084
        %v6086 = vshrl.u32 %v5923, 16
        %v6088 = vshll.u32 %v5923, 16
        %v6090 = vrot.slane %v6088, 1
        %v6091 = vor.u32 %v6086, %v6090
        %v6092 = vshrl.u32 %v5925, 16
        %v6094 = vshll.u32 %v5925, 16
        %v6096 = vrot.slane %v6094, 1
        %v6097 = vor.u32 %v6092, %v6096
        %v6098 = vshrl.u32 %v5927, 16
        %v6100 = vshll.u32 %v5927, 16
        %v6102 = vrot.slane %v6100, 1
        %v6103 = vor.u32 %v6098, %v6102
        %v6104 = vshrl.u32 %v5929, 16
        %v6106 = vshll.u32 %v5929, 16
        %v6108 = vrot.slane %v6106, 1
        %v6109 = vor.u32 %v6104, %v6108
        %v6110 = vshrl.u32 %v5931, 16
        %v6112 = vshll.u32 %v5931, 16
        %v6114 = vrot.slane %v6112, 1
        %v6115 = vor.u32 %v6110, %v6114
        %v6116 = vshrl.u32 %v5933, 16
        %v6118 = vshll.u32 %v5933, 16
        %v6120 = vrot.slane %v6118, 1
        %v6121 = vor.u32 %v6116, %v6120
        %v6122 = vshrl.u32 %v5935, 16
        %v6124 = vshll.u32 %v5935, 16
        %v6126 = vrot.slane %v6124, 1
        %v6127 = vor.u32 %v6122, %v6126
        %v6128 = vshrl.u32 %v5937, 16
        %v6130 = vshll.u32 %v5937, 16
        %v6132 = vrot.slane %v6130, 1
        %v6133 = vor.u32 %v6128, %v6132
        %v6134 = vshrl.u32 %v5939, 16
        %v6136 = vshll.u32 %v5939, 16
        %v6138 = vrot.slane %v6136, 1
        %v6139 = vor.u32 %v6134, %v6138
        %v6140 = vshrl.u32 %v5941, 16
        %v6142 = vshll.u32 %v5941, 16
        %v6144 = vrot.slane %v6142, 1
        %v6145 = vor.u32 %v6140, %v6144
        %v6146 = vshrl.u32 %v5943, 16
        %v6148 = vshll.u32 %v5943, 16
        %v6150 = vrot.slane %v6148, 1
        %v6151 = vor.u32 %v6146, %v6150
        %v6152 = vshrl.u32 %v5945, 16
        %v6154 = vshll.u32 %v5945, 16
        %v6156 = vrot.slane %v6154, 1
        %v6157 = vor.u32 %v6152, %v6156
        %v6158 = vshrl.u32 %v5947, 16
        %v6160 = vshll.u32 %v5947, 16
        %v6162 = vrot.slane %v6160, 1
        %v6163 = vor.u32 %v6158, %v6162
        %v6164 = vshrl.u32 %v5949, 16
        %v6166 = vshll.u32 %v5949, 16
        %v6168 = vrot.slane %v6166, 1
        %v6169 = vor.u32 %v6164, %v6168
        %v6170 = vshrl.u32 %v5951, 16
        %v6172 = vshll.u32 %v5951, 16
        %v6174 = vrot.slane %v6172, 1
        %v6175 = vor.u32 %v6170, %v6174
        %v6176 = vshrl.u32 %v5953, 16
        %v6178 = vshll.u32 %v5953, 16
        %v6180 = vrot.slane %v6178, 1
        %v6181 = vor.u32 %v6176, %v6180
        %v6182 = vshrl.u32 %v5955, 16
        %v6184 = vshll.u32 %v5955, 16
        %v6186 = vrot.slane %v6184, 1
        %v6187 = vor.u32 %v6182, %v6186
        %v6188 = vshrl.u32 %v5957, 16
        %v6190 = vshll.u32 %v5957, 16
        %v6192 = vrot.slane %v6190, 1
        %v6193 = vor.u32 %v6188, %v6192
        %v6194 = vshrl.u32 %v5959, 16
        %v6196 = vshll.u32 %v5959, 16
        %v6198 = vrot.slane %v6196, 1
        %v6199 = vor.u32 %v6194, %v6198
        %v6200 = vshrl.u32 %v5961, 16
        %v6202 = vshll.u32 %v5961, 16
        %v6204 = vrot.slane %v6202, 1
        %v6205 = vor.u32 %v6200, %v6204
        %v6206 = vshrl.u32 %v5963, 16
        %v6208 = vshll.u32 %v5963, 16
        %v6210 = vrot.slane %v6208, 1
        %v6211 = vor.u32 %v6206, %v6210
        %v6212 = vshrl.u32 %v5965, 16
        %v6214 = vshll.u32 %v5965, 16
        %v6216 = vrot.slane %v6214, 1
        %v6217 = vor.u32 %v6212, %v6216
        %v6218 = vshrl.u32 %v5967, 16
        %v6220 = vshll.u32 %v5967, 16
        %v6222 = vrot.slane %v6220, 1
        %v6223 = vor.u32 %v6218, %v6222
        %v6224 = vshrl.u32 %v5969, 16
        %v6226 = vshll.u32 %v5969, 16
        %v6228 = vrot.slane %v6226, 1
        %v6229 = vor.u32 %v6224, %v6228
        %v6230 = vshrl.u32 %v5971, 16
        %v6232 = vshll.u32 %v5971, 16
        %v6234 = vrot.slane %v6232, 1
        %v6235 = vor.u32 %v6230, %v6234
        %v6236 = vshrl.u32 %v5973, 16
        %v6238 = vshll.u32 %v5973, 16
        %v6240 = vrot.slane %v6238, 1
        %v6241 = vor.u32 %v6236, %v6240
        %v6242 = vshrl.u32 %v5975, 16
        %v6244 = vshll.u32 %v5975, 16
        %v6246 = vrot.slane %v6244, 1
        %v6247 = vor.u32 %v6242, %v6246
        %v6248 = vshrl.u32 %v5977, 16
        %v6250 = vshll.u32 %v5977, 16
        %v6252 = vrot.slane %v6250, 1
        %v6253 = vor.u32 %v6248, %v6252
        %v6254 = vshrl.u32 %v5979, 16
        %v6256 = vshll.u32 %v5979, 16
        %v6258 = vrot.slane %v6256, 1
        %v6259 = vor.u32 %v6254, %v6258
        %v6260 = vshrl.u32 %v5981, 16
        %v6262 = vshll.u32 %v5981, 16
        %v6264 = vrot.slane %v6262, 1
        %v6265 = vor.u32 %v6260, %v6264
        %v6266 = vshrl.u32 %v5983, 16
        %v6268 = vshll.u32 %v5983, 16
        %v6270 = vrot.slane %v6268, 1
        %v6271 = vor.u32 %v6266, %v6270
        %v6272 = vshrl.u32 %v5985, 16
        %v6274 = vshll.u32 %v5985, 16
        %v6276 = vrot.slane %v6274, 1
        %v6277 = vor.u32 %v6272, %v6276
        %v6278 = vshrl.u32 %v5987, 16
        %v6280 = vshll.u32 %v5987, 16
        %v6282 = vrot.slane %v6280, 1
        %v6283 = vor.u32 %v6278, %v6282
        %v6284 = vshrl.u32 %v5989, 16
        %v6286 = vshll.u32 %v5989, 16
        %v6288 = vrot.slane %v6286, 1
        %v6289 = vor.u32 %v6284, %v6288
        %v6290 = vshrl.u32 %v5991, 16
        %v6292 = vshll.u32 %v5991, 16
        %v6294 = vrot.slane %v6292, 1
        %v6295 = vor.u32 %v6290, %v6294
        %v6296 = vshrl.u32 %v5993, 16
        %v6298 = vshll.u32 %v5993, 16
        %v6300 = vrot.slane %v6298, 1
        %v6301 = vor.u32 %v6296, %v6300
        %v6302 = vshrl.u32 %v5995, 16
        %v6304 = vshll.u32 %v5995, 16
        %v6306 = vrot.slane %v6304, 1
        %v6307 = vor.u32 %v6302, %v6306
        %v6308 = vshrl.u32 %v5997, 16
        %v6310 = vshll.u32 %v5997, 16
        %v6312 = vrot.slane %v6310, 1
        %v6313 = vor.u32 %v6308, %v6312
        %v6314 = vshrl.u32 %v5999, 16
        %v6316 = vshll.u32 %v5999, 16
        %v6318 = vrot.slane %v6316, 1
        %v6319 = vor.u32 %v6314, %v6318
        %v6320 = vshrl.u32 %v6001, 16
        %v6322 = vshll.u32 %v6001, 16
        %v6324 = vrot.slane %v6322, 1
        %v6325 = vor.u32 %v6320, %v6324
        %v6326 = vshrl.u32 %v6003, 16
        %v6328 = vshll.u32 %v6003, 16
        %v6330 = vrot.slane %v6328, 1
        %v6331 = vor.u32 %v6326, %v6330
        %v6332 = vshrl.u32 %v6005, 16
        %v6334 = vshll.u32 %v6005, 16
        %v6336 = vrot.slane %v6334, 1
        %v6337 = vor.u32 %v6332, %v6336
        %v6338 = vshrl.u32 %v6007, 16
        %v6340 = vshll.u32 %v6007, 16
        %v6342 = vrot.slane %v6340, 1
        %v6343 = vor.u32 %v6338, %v6342
        %v6344 = vshrl.u32 %v6009, 16
        %v6346 = vshll.u32 %v6009, 16
        %v6348 = vrot.slane %v6346, 1
        %v6349 = vor.u32 %v6344, %v6348
        %v6350 = vshrl.u32 %v6011, 16
        %v6352 = vshll.u32 %v6011, 16
        %v6354 = vrot.slane %v6352, 1
        %v6355 = vor.u32 %v6350, %v6354
        %v6356 = vshrl.u32 %v6013, 16
        %v6358 = vshll.u32 %v6013, 16
        %v6360 = vrot.slane %v6358, 1
        %v6361 = vor.u32 %v6356, %v6360
        %v6362 = vshrl.u32 %v6015, 16
        %v6364 = vshll.u32 %v6015, 16
        %v6366 = vrot.slane %v6364, 1
        %v6367 = vor.u32 %v6362, %v6366
        %v6368 = vshrl.u32 %v6017, 16
        %v6370 = vshll.u32 %v6017, 16
        %v6372 = vrot.slane %v6370, 1
        %v6373 = vor.u32 %v6368, %v6372
        %v6374 = vshrl.u32 %v6019, 16
        %v6376 = vshll.u32 %v6019, 16
        %v6378 = vrot.slane %v6376, 1
        %v6379 = vor.u32 %v6374, %v6378
        %v6380 = vshrl.u32 %v6021, 16
        %v6382 = vshll.u32 %v6021, 16
        %v6384 = vrot.slane %v6382, 1
        %v6385 = vor.u32 %v6380, %v6384
        %v6386 = vshrl.u32 %v6023, 16
        %v6388 = vshll.u32 %v6023, 16
        %v6390 = vrot.slane %v6388, 1
        %v6391 = vor.u32 %v6386, %v6390
        %v6392 = vshrl.u32 %v6025, 16
        %v6394 = vshll.u32 %v6025, 16
        %v6396 = vrot.slane %v6394, 1
        %v6397 = vor.u32 %v6392, %v6396
        %v6398 = vshrl.u32 %v6027, 16
        %v6400 = vshll.u32 %v6027, 16
        %v6402 = vrot.slane %v6400, 1
        %v6403 = vor.u32 %v6398, %v6402
        %v6404 = vshrl.u32 %v6029, 16
        %v6406 = vshll.u32 %v6029, 16
        %v6408 = vrot.slane %v6406, 1
        %v6409 = vor.u32 %v6404, %v6408
        %v6410 = vshrl.u32 %v6031, 16
        %v6412 = vshll.u32 %v6031, 16
        %v6414 = vrot.slane %v6412, 1
        %v6415 = vor.u32 %v6410, %v6414
        %v6480 = vsel %vm2146, %v6037, 0
        %v6481 = vsel %vm2146, %v6043, 0
        %v6482 = vsel %vm2146, %v6049, 0
        %v6483 = vsel %vm2146, %v6055, 0
        %v6484 = vsel %vm2146, %v6061, 0
        %v6485 = vsel %vm2146, %v6067, 0
        %v6486 = vsel %vm2146, %v6073, 0
        %v6487 = vsel %vm2146, %v6079, 0
        %v6488 = vsel %vm2146, %v6085, 0
        %v6489 = vsel %vm2146, %v6091, 0
        %v6490 = vsel %vm2146, %v6097, 0
        %v6491 = vsel %vm2146, %v6103, 0
        %v6492 = vsel %vm2146, %v6109, 0
        %v6493 = vsel %vm2146, %v6115, 0
        %v6494 = vsel %vm2146, %v6121, 0
        %v6495 = vsel %vm2146, %v6127, 0
        %v6496 = vsel %vm2146, %v6133, 0
        %v6497 = vsel %vm2146, %v6139, 0
        %v6498 = vsel %vm2146, %v6145, 0
        %v6499 = vsel %vm2146, %v6151, 0
        %v6500 = vsel %vm2146, %v6157, 0
        %v6501 = vsel %vm2146, %v6163, 0
        %v6502 = vsel %vm2146, %v6169, 0
        %v6503 = vsel %vm2146, %v6175, 0
        %v6504 = vsel %vm2146, %v6181, 0
        %v6505 = vsel %vm2146, %v6187, 0
        %v6506 = vsel %vm2146, %v6193, 0
        %v6507 = vsel %vm2146, %v6199, 0
        %v6508 = vsel %vm2146, %v6205, 0
        %v6509 = vsel %vm2146, %v6211, 0
        %v6510 = vsel %vm2146, %v6217, 0
        %v6511 = vsel %vm2146, %v6223, 0
        %v6512 = vsel %vm2146, %v6229, 0
        %v6513 = vsel %vm2146, %v6235, 0
        %v6514 = vsel %vm2146, %v6241, 0
        %v6515 = vsel %vm2146, %v6247, 0
        %v6516 = vsel %vm2146, %v6253, 0
        %v6517 = vsel %vm2146, %v6259, 0
        %v6518 = vsel %vm2146, %v6265, 0
        %v6519 = vsel %vm2146, %v6271, 0
        %v6520 = vsel %vm2146, %v6277, 0
        %v6521 = vsel %vm2146, %v6283, 0
        %v6522 = vsel %vm2146, %v6289, 0
        %v6523 = vsel %vm2146, %v6295, 0
        %v6524 = vsel %vm2146, %v6301, 0
        %v6525 = vsel %vm2146, %v6307, 0
        %v6526 = vsel %vm2146, %v6313, 0
        %v6527 = vsel %vm2146, %v6319, 0
        %v6528 = vsel %vm2146, %v6325, 0
        %v6529 = vsel %vm2146, %v6331, 0
        %v6530 = vsel %vm2146, %v6337, 0
        %v6531 = vsel %vm2146, %v6343, 0
        %v6532 = vsel %vm2146, %v6349, 0
        %v6533 = vsel %vm2146, %v6355, 0
        %v6534 = vsel %vm2146, %v6361, 0
        %v6535 = vsel %vm2146, %v6367, 0
        %v6536 = vsel %vm2146, %v6373, 0
        %v6537 = vsel %vm2146, %v6379, 0
        %v6538 = vsel %vm2146, %v6385, 0
        %v6539 = vsel %vm2146, %v6391, 0
        %v6540 = vsel %vm2146, %v6397, 0
        %v6541 = vsel %vm2146, %v6403, 0
        %v6542 = vsel %vm2146, %v6409, 0
        %v6543 = vsel %vm2146, %v6415, 0
        %s6544 = scalar_lea.vmem %s3, 128
        %v6545 = vld [vmem:[%s6544] sm:$0xf]
        %v6546 = vld [vmem:[%s6544 + $0x4] sm:$0xf]
        %v6547 = vld [vmem:[%s6544 + $0x8] sm:$0xf]
        %v6548 = vld [vmem:[%s6544 + $0xc] sm:$0xf]
        %6550 = vst [vmem:[#allocation1] ss:$4 sm:$0xff] %v6480
        %s6552 = scalar_lea.vmem [#allocation1], 1
        %6553 = vst [vmem:[%s6552] ss:$4 sm:$0xff] %v6481
        %s6555 = scalar_lea.vmem [#allocation1], 2
        %6556 = vst [vmem:[%s6555] ss:$4 sm:$0xff] %v6482
        %s6558 = scalar_lea.vmem [#allocation1], 3
        %6559 = vst [vmem:[%s6558] ss:$4 sm:$0xff] %v6483
        %s6561 = scalar_lea.vmem [#allocation1], 32
        %6562 = vst [vmem:[%s6561] ss:$4 sm:$0xff] %v6484
        %s6564 = scalar_lea.vmem [#allocation1], 33
        %6565 = vst [vmem:[%s6564] ss:$4 sm:$0xff] %v6485
        %s6567 = scalar_lea.vmem [#allocation1], 34
        %6568 = vst [vmem:[%s6567] ss:$4 sm:$0xff] %v6486
        %s6570 = scalar_lea.vmem [#allocation1], 35
        %6571 = vst [vmem:[%s6570] ss:$4 sm:$0xff] %v6487
        %v6572 = vld.sshfl [vmem:[#allocation1] sm:$0xff pattern:$0x73625140]
        %v6573 = vld.sshfl [vmem:[#allocation1 + $0x20] sm:$0xff pattern:$0x73625140]
        %6575 = vst [vmem:[#allocation1] ss:$4 sm:$0xff] %v6488
        %6577 = vst [vmem:[%s6552] ss:$4 sm:$0xff] %v6489
        %6579 = vst [vmem:[%s6555] ss:$4 sm:$0xff] %v6490
        %6581 = vst [vmem:[%s6558] ss:$4 sm:$0xff] %v6491
        %6583 = vst [vmem:[%s6561] ss:$4 sm:$0xff] %v6492
        %6585 = vst [vmem:[%s6564] ss:$4 sm:$0xff] %v6493
        %6587 = vst [vmem:[%s6567] ss:$4 sm:$0xff] %v6494
        %6589 = vst [vmem:[%s6570] ss:$4 sm:$0xff] %v6495
        %v6590 = vld.sshfl [vmem:[#allocation1] sm:$0xff pattern:$0x73625140]
        %v6591 = vld.sshfl [vmem:[#allocation1 + $0x20] sm:$0xff pattern:$0x73625140]
        %6593 = vst [vmem:[#allocation1] ss:$4 sm:$0xff] %v6496
        %6595 = vst [vmem:[%s6552] ss:$4 sm:$0xff] %v6497
        %6597 = vst [vmem:[%s6555] ss:$4 sm:$0xff] %v6498
        %6599 = vst [vmem:[%s6558] ss:$4 sm:$0xff] %v6499
        %6601 = vst [vmem:[%s6561] ss:$4 sm:$0xff] %v6500
        %6603 = vst [vmem:[%s6564] ss:$4 sm:$0xff] %v6501
        %6605 = vst [vmem:[%s6567] ss:$4 sm:$0xff] %v6502
        %6607 = vst [vmem:[%s6570] ss:$4 sm:$0xff] %v6503
        %v6608 = vld.sshfl [vmem:[#allocation1] sm:$0xff pattern:$0x73625140]
        %v6609 = vld.sshfl [vmem:[#allocation1 + $0x20] sm:$0xff pattern:$0x73625140]
        %6611 = vst [vmem:[#allocation1] ss:$4 sm:$0xff] %v6504
        %6613 = vst [vmem:[%s6552] ss:$4 sm:$0xff] %v6505
        %6615 = vst [vmem:[%s6555] ss:$4 sm:$0xff] %v6506
        %6617 = vst [vmem:[%s6558] ss:$4 sm:$0xff] %v6507
        %6619 = vst [vmem:[%s6561] ss:$4 sm:$0xff] %v6508
        %6621 = vst [vmem:[%s6564] ss:$4 sm:$0xff] %v6509
        %6623 = vst [vmem:[%s6567] ss:$4 sm:$0xff] %v6510
        %6625 = vst [vmem:[%s6570] ss:$4 sm:$0xff] %v6511
        %v6626 = vld.sshfl [vmem:[#allocation1] sm:$0xff pattern:$0x73625140]
        %v6627 = vld.sshfl [vmem:[#allocation1 + $0x20] sm:$0xff pattern:$0x73625140]
        %6629 = vst [vmem:[#allocation1] ss:$4 sm:$0xff] %v6512
        %6631 = vst [vmem:[%s6552] ss:$4 sm:$0xff] %v6513
        %6633 = vst [vmem:[%s6555] ss:$4 sm:$0xff] %v6514
        %6635 = vst [vmem:[%s6558] ss:$4 sm:$0xff] %v6515
        %6637 = vst [vmem:[%s6561] ss:$4 sm:$0xff] %v6516
        %6639 = vst [vmem:[%s6564] ss:$4 sm:$0xff] %v6517
        %6641 = vst [vmem:[%s6567] ss:$4 sm:$0xff] %v6518
        %6643 = vst [vmem:[%s6570] ss:$4 sm:$0xff] %v6519
        %v6644 = vld.sshfl [vmem:[#allocation1] sm:$0xff pattern:$0x73625140]
        %v6645 = vld.sshfl [vmem:[#allocation1 + $0x20] sm:$0xff pattern:$0x73625140]
        %6647 = vst [vmem:[#allocation1] ss:$4 sm:$0xff] %v6520
        %6649 = vst [vmem:[%s6552] ss:$4 sm:$0xff] %v6521
        %6651 = vst [vmem:[%s6555] ss:$4 sm:$0xff] %v6522
        %6653 = vst [vmem:[%s6558] ss:$4 sm:$0xff] %v6523
        %6655 = vst [vmem:[%s6561] ss:$4 sm:$0xff] %v6524
        %6657 = vst [vmem:[%s6564] ss:$4 sm:$0xff] %v6525
        %6659 = vst [vmem:[%s6567] ss:$4 sm:$0xff] %v6526
        %6661 = vst [vmem:[%s6570] ss:$4 sm:$0xff] %v6527
        %v6662 = vld.sshfl [vmem:[#allocation1] sm:$0xff pattern:$0x73625140]
        %v6663 = vld.sshfl [vmem:[#allocation1 + $0x20] sm:$0xff pattern:$0x73625140]
        %6665 = vst [vmem:[#allocation1] ss:$4 sm:$0xff] %v6528
        %6667 = vst [vmem:[%s6552] ss:$4 sm:$0xff] %v6529
        %6669 = vst [vmem:[%s6555] ss:$4 sm:$0xff] %v6530
        %6671 = vst [vmem:[%s6558] ss:$4 sm:$0xff] %v6531
        %6673 = vst [vmem:[%s6561] ss:$4 sm:$0xff] %v6532
        %6675 = vst [vmem:[%s6564] ss:$4 sm:$0xff] %v6533
        %6677 = vst [vmem:[%s6567] ss:$4 sm:$0xff] %v6534
        %6679 = vst [vmem:[%s6570] ss:$4 sm:$0xff] %v6535
        %v6680 = vld.sshfl [vmem:[#allocation1] sm:$0xff pattern:$0x73625140]
        %v6681 = vld.sshfl [vmem:[#allocation1 + $0x20] sm:$0xff pattern:$0x73625140]
        %6683 = vst [vmem:[#allocation1] ss:$4 sm:$0xff] %v6536
        %6685 = vst [vmem:[%s6552] ss:$4 sm:$0xff] %v6537
        %6687 = vst [vmem:[%s6555] ss:$4 sm:$0xff] %v6538
        %6689 = vst [vmem:[%s6558] ss:$4 sm:$0xff] %v6539
        %6691 = vst [vmem:[%s6561] ss:$4 sm:$0xff] %v6540
        %6693 = vst [vmem:[%s6564] ss:$4 sm:$0xff] %v6541
        %6695 = vst [vmem:[%s6567] ss:$4 sm:$0xff] %v6542
        %6697 = vst [vmem:[%s6570] ss:$4 sm:$0xff] %v6543
        %v6698 = vld.sshfl [vmem:[#allocation1] sm:$0xff pattern:$0x73625140]
        %v6699 = vld.sshfl [vmem:[#allocation1 + $0x20] sm:$0xff pattern:$0x73625140]
        %v6704 = vunpack.c.l.b16 %v6545
        %v6705 = vunpack.c.l.b16 %v6546
        %v6706 = vunpack.c.l.b16 %v6547
        %v6707 = vunpack.c.l.b16 %v6548
        %v6708 = vpack.c.b16 %v6705, %v6704
        %v6709 = vpack.c.b16 %v6707, %v6706
        %v6712 = vsel %vm1559, %v6572, 0
        %v6714 = vsel %vm1559, %v6573, 0
        %v6716 = vsel %vm1559, %v6590, 0
        %v6718 = vsel %vm1559, %v6591, 0
        %v6720 = vsel %vm1559, %v6608, 0
        %v6722 = vsel %vm1559, %v6609, 0
        %v6724 = vsel %vm1559, %v6626, 0
        %v6726 = vsel %vm1559, %v6627, 0
        %v6728 = vsel %vm1559, %v6644, 0
        %v6730 = vsel %vm1559, %v6645, 0
        %v6732 = vsel %vm1559, %v6662, 0
        %v6734 = vsel %vm1559, %v6663, 0
        %v6736 = vsel %vm1559, %v6680, 0
        %v6738 = vsel %vm1559, %v6681, 0
        %v6740 = vsel %vm1559, %v6698, 0
        %v6742 = vsel %vm1559, %v6699, 0
        %6744 = vmatpush.bf16.msra.mxu0 0
        %6745 = vmatpush.bf16.msra.mxu0 0
        %6746 = vmatpush.bf16.msra.mxu0 0
        %6747 = vmatpush.bf16.msra.mxu0 0
        %6748 = vmatpush.bf16.msra.mxu0 0
        %6749 = vmatpush.bf16.msra.mxu0 0
        %6750 = vmatpush.bf16.msra.mxu0 %v6709
        %6751 = vmatpush.bf16.msra.mxu0 %v6708
        %6752 = vmatmul.bf16.gmra.mxu0 %v6712
        %v6753 = vpop.f32.mrf.mxu0
        %v6754 = vadd.f32 0.0, %v6753
        %v6755 = vpop.f32.mrf.mxu0
        %v6756 = vadd.f32 0.0, %v6755
        %6757 = vmatmul.bf16.gmra.mxu0 %v6714
        %v6758 = vpop.f32.mrf.mxu0
        %v6759 = vadd.f32 0.0, %v6758
        %v6760 = vpop.f32.mrf.mxu0
        %v6761 = vadd.f32 0.0, %v6760
        %6762 = vmatmul.bf16.gmra.mxu0 %v6716
        %v6763 = vpop.f32.mrf.mxu0
        %v6764 = vadd.f32 0.0, %v6763
        %v6765 = vpop.f32.mrf.mxu0
        %v6766 = vadd.f32 0.0, %v6765
        %6767 = vmatmul.bf16.gmra.mxu0 %v6718
        %v6768 = vpop.f32.mrf.mxu0
        %v6769 = vadd.f32 0.0, %v6768
        %v6770 = vpop.f32.mrf.mxu0
        %v6771 = vadd.f32 0.0, %v6770
        %6772 = vmatmul.bf16.gmra.mxu0 %v6720
        %v6773 = vpop.f32.mrf.mxu0
        %v6774 = vadd.f32 0.0, %v6773
        %v6775 = vpop.f32.mrf.mxu0
        %v6776 = vadd.f32 0.0, %v6775
        %6777 = vmatmul.bf16.gmra.mxu0 %v6722
        %v6778 = vpop.f32.mrf.mxu0
        %v6779 = vadd.f32 0.0, %v6778
        %v6780 = vpop.f32.mrf.mxu0
        %v6781 = vadd.f32 0.0, %v6780
        %6782 = vmatmul.bf16.gmra.mxu0 %v6724
        %v6783 = vpop.f32.mrf.mxu0
        %v6784 = vadd.f32 0.0, %v6783
        %v6785 = vpop.f32.mrf.mxu0
        %v6786 = vadd.f32 0.0, %v6785
        %6787 = vmatmul.bf16.gmra.mxu0 %v6726
        %v6788 = vpop.f32.mrf.mxu0
        %v6789 = vadd.f32 0.0, %v6788
        %v6790 = vpop.f32.mrf.mxu0
        %v6791 = vadd.f32 0.0, %v6790
        %6792 = vmatmul.bf16.gmra.mxu0 %v6728
        %v6793 = vpop.f32.mrf.mxu0
        %v6794 = vadd.f32 0.0, %v6793
        %v6795 = vpop.f32.mrf.mxu0
        %v6796 = vadd.f32 0.0, %v6795
        %6797 = vmatmul.bf16.gmra.mxu0 %v6730
        %v6798 = vpop.f32.mrf.mxu0
        %v6799 = vadd.f32 0.0, %v6798
        %v6800 = vpop.f32.mrf.mxu0
        %v6801 = vadd.f32 0.0, %v6800
        %6802 = vmatmul.bf16.gmra.mxu0 %v6732
        %v6803 = vpop.f32.mrf.mxu0
        %v6804 = vadd.f32 0.0, %v6803
        %v6805 = vpop.f32.mrf.mxu0
        %v6806 = vadd.f32 0.0, %v6805
        %6807 = vmatmul.bf16.gmra.mxu0 %v6734
        %v6808 = vpop.f32.mrf.mxu0
        %v6809 = vadd.f32 0.0, %v6808
        %v6810 = vpop.f32.mrf.mxu0
        %v6811 = vadd.f32 0.0, %v6810
        %6812 = vmatmul.bf16.gmra.mxu0 %v6736
        %v6813 = vpop.f32.mrf.mxu0
        %v6814 = vadd.f32 0.0, %v6813
        %v6815 = vpop.f32.mrf.mxu0
        %v6816 = vadd.f32 0.0, %v6815
        %6817 = vmatmul.bf16.gmra.mxu0 %v6738
        %v6818 = vpop.f32.mrf.mxu0
        %v6819 = vadd.f32 0.0, %v6818
        %v6820 = vpop.f32.mrf.mxu0
        %v6821 = vadd.f32 0.0, %v6820
        %6822 = vmatmul.bf16.gmra.mxu0 %v6740
        %v6823 = vpop.f32.mrf.mxu0
        %v6824 = vadd.f32 0.0, %v6823
        %v6825 = vpop.f32.mrf.mxu0
        %v6826 = vadd.f32 0.0, %v6825
        %6827 = vmatmul.bf16.gmra.mxu0 %v6742
        %v6828 = vpop.f32.mrf.mxu0
        %v6829 = vadd.f32 0.0, %v6828
        %v6830 = vpop.f32.mrf.mxu0
        %v6831 = vadd.f32 0.0, %v6830
        %6832 = vdwg.mxu0
        %v6833 = vadd.f32 %v5871, %v6754
        %v6834 = vadd.f32 %v5872, %v6756
        %v6835 = vadd.f32 %v5873, %v6759
        %v6836 = vadd.f32 %v5874, %v6761
        %v6837 = vadd.f32 %v5875, %v6764
        %v6838 = vadd.f32 %v5876, %v6766
        %v6839 = vadd.f32 %v5877, %v6769
        %v6840 = vadd.f32 %v5878, %v6771
        %v6841 = vadd.f32 %v5879, %v6774
        %v6842 = vadd.f32 %v5880, %v6776
        %v6843 = vadd.f32 %v5881, %v6779
        %v6844 = vadd.f32 %v5882, %v6781
        %v6845 = vadd.f32 %v5883, %v6784
        %v6846 = vadd.f32 %v5884, %v6786
        %v6847 = vadd.f32 %v5885, %v6789
        %v6848 = vadd.f32 %v5886, %v6791
        %v6849 = vadd.f32 %v5887, %v6794
        %v6850 = vadd.f32 %v5888, %v6796
        %v6851 = vadd.f32 %v5889, %v6799
        %v6852 = vadd.f32 %v5890, %v6801
        %v6853 = vadd.f32 %v5891, %v6804
        %v6854 = vadd.f32 %v5892, %v6806
        %v6855 = vadd.f32 %v5893, %v6809
        %v6856 = vadd.f32 %v5894, %v6811
        %v6857 = vadd.f32 %v5895, %v6814
        %v6858 = vadd.f32 %v5896, %v6816
        %v6859 = vadd.f32 %v5897, %v6819
        %v6860 = vadd.f32 %v5898, %v6821
        %v6861 = vadd.f32 %v5899, %v6824
        %v6862 = vadd.f32 %v5900, %v6826
        %v6863 = vadd.f32 %v5901, %v6829
        %v6864 = vadd.f32 %v5902, %v6831
        %v6865 = vmax.f32 %v6833, 0.0
        %v6866 = vmax.f32 %v6834, 0.0
        %v6867 = vmax.f32 %v6835, 0.0
        %v6868 = vmax.f32 %v6836, 0.0
        %v6869 = vmax.f32 %v6837, 0.0
        %v6870 = vmax.f32 %v6838, 0.0
        %v6871 = vmax.f32 %v6839, 0.0
        %v6872 = vmax.f32 %v6840, 0.0
        %v6873 = vmax.f32 %v6841, 0.0
        %v6874 = vmax.f32 %v6842, 0.0
        %v6875 = vmax.f32 %v6843, 0.0
        %v6876 = vmax.f32 %v6844, 0.0
        %v6877 = vmax.f32 %v6845, 0.0
        %v6878 = vmax.f32 %v6846, 0.0
        %v6879 = vmax.f32 %v6847, 0.0
        %v6880 = vmax.f32 %v6848, 0.0
        %v6881 = vmax.f32 %v6849, 0.0
        %v6882 = vmax.f32 %v6850, 0.0
        %v6883 = vmax.f32 %v6851, 0.0
        %v6884 = vmax.f32 %v6852, 0.0
        %v6885 = vmax.f32 %v6853, 0.0
        %v6886 = vmax.f32 %v6854, 0.0
        %v6887 = vmax.f32 %v6855, 0.0
        %v6888 = vmax.f32 %v6856, 0.0
        %v6889 = vmax.f32 %v6857, 0.0
        %v6890 = vmax.f32 %v6858, 0.0
        %v6891 = vmax.f32 %v6859, 0.0
        %v6892 = vmax.f32 %v6860, 0.0
        %v6893 = vmax.f32 %v6861, 0.0
        %v6894 = vmax.f32 %v6862, 0.0
        %v6895 = vmax.f32 %v6863, 0.0
        %v6896 = vmax.f32 %v6864, 0.0
        %v6897 = vpack.c.bf16 %v6866, %v6865
        %v6898 = vpack.c.bf16 %v6868, %v6867
        %v6899 = vpack.c.bf16 %v6870, %v6869
        %v6900 = vpack.c.bf16 %v6872, %v6871
        %v6901 = vpack.c.bf16 %v6874, %v6873
        %v6902 = vpack.c.bf16 %v6876, %v6875
        %v6903 = vpack.c.bf16 %v6878, %v6877
        %v6904 = vpack.c.bf16 %v6880, %v6879
        %v6905 = vpack.c.bf16 %v6882, %v6881
        %v6906 = vpack.c.bf16 %v6884, %v6883
        %v6907 = vpack.c.bf16 %v6886, %v6885
        %v6908 = vpack.c.bf16 %v6888, %v6887
        %v6909 = vpack.c.bf16 %v6890, %v6889
        %v6910 = vpack.c.bf16 %v6892, %v6891
        %v6911 = vpack.c.bf16 %v6894, %v6893
        %v6912 = vpack.c.bf16 %v6896, %v6895
        %v6913 = vld [vmem:[#allocation7] sm:$0xf]
        %v6914 = vld [vmem:[#allocation7 + $0x4] sm:$0xf]
        %v6915 = vld [vmem:[#allocation7 + $0x8] sm:$0xf]
        %v6916 = vld [vmem:[#allocation7 + $0xc] sm:$0xf]
        %v6917 = vld [vmem:[%s6] sm:$0x1]
        %v6919 = vperm.slane %v6917, 0
        %v6925 = vunpack.c.l.b16 %v6913
        %v6926 = vunpack.c.l.b16 %v6914
        %v6927 = vunpack.c.l.b16 %v6915
        %v6928 = vunpack.c.l.b16 %v6916
        %v6929 = vpack.c.b16 %v6926, %v6925
        %v6930 = vpack.c.b16 %v6928, %v6927
        %v6934 = vsel %vm1559, %v6897, 0
        %v6937 = vsel %vm1559, %v6898, 0
        %v6940 = vsel %vm1559, %v6899, 0
        %v6943 = vsel %vm1559, %v6900, 0
        %v6946 = vsel %vm1559, %v6901, 0
        %v6949 = vsel %vm1559, %v6902, 0
        %v6952 = vsel %vm1559, %v6903, 0
        %v6955 = vsel %vm1559, %v6904, 0
        %v6958 = vsel %vm1559, %v6905, 0
        %v6961 = vsel %vm1559, %v6906, 0
        %v6964 = vsel %vm1559, %v6907, 0
        %v6967 = vsel %vm1559, %v6908, 0
        %v6970 = vsel %vm1559, %v6909, 0
        %v6973 = vsel %vm1559, %v6910, 0
        %v6976 = vsel %vm1559, %v6911, 0
        %v6979 = vsel %vm1559, %v6912, 0
        %6981 = vmatpush.bf16.msra.mxu0 0
        %6982 = vmatpush.bf16.msra.mxu0 0
        %6983 = vmatpush.bf16.msra.mxu0 0
        %6984 = vmatpush.bf16.msra.mxu0 0
        %6985 = vmatpush.bf16.msra.mxu0 0
        %6986 = vmatpush.bf16.msra.mxu0 0
        %6987 = vmatpush.bf16.msra.mxu0 %v6930
        %6988 = vmatpush.bf16.msra.mxu0 %v6929
        %6989 = vmatmul.bf16.gmra.mxu0 %v6934
        %v6990 = vpop.f32.mrf.mxu0
        %v6991 = vadd.f32 %v6919, %v6990
        %v6992 = vpop.f32.mrf.mxu0
        %v6993 = vadd.f32 %v6919, %v6992
        %6994 = vmatmul.bf16.gmra.mxu0 %v6937
        %v6995 = vpop.f32.mrf.mxu0
        %v6996 = vadd.f32 %v6919, %v6995
        %v6997 = vpop.f32.mrf.mxu0
        %v6998 = vadd.f32 %v6919, %v6997
        %6999 = vmatmul.bf16.gmra.mxu0 %v6940
        %v7000 = vpop.f32.mrf.mxu0
        %v7001 = vadd.f32 %v6919, %v7000
        %v7002 = vpop.f32.mrf.mxu0
        %v7003 = vadd.f32 %v6919, %v7002
        %7004 = vmatmul.bf16.gmra.mxu0 %v6943
        %v7005 = vpop.f32.mrf.mxu0
        %v7006 = vadd.f32 %v6919, %v7005
        %v7007 = vpop.f32.mrf.mxu0
        %v7008 = vadd.f32 %v6919, %v7007
        %7009 = vmatmul.bf16.gmra.mxu0 %v6946
        %v7010 = vpop.f32.mrf.mxu0
        %v7011 = vadd.f32 %v6919, %v7010
        %v7012 = vpop.f32.mrf.mxu0
        %v7013 = vadd.f32 %v6919, %v7012
        %7014 = vmatmul.bf16.gmra.mxu0 %v6949
        %v7015 = vpop.f32.mrf.mxu0
        %v7016 = vadd.f32 %v6919, %v7015
        %v7017 = vpop.f32.mrf.mxu0
        %v7018 = vadd.f32 %v6919, %v7017
        %7019 = vmatmul.bf16.gmra.mxu0 %v6952
        %v7020 = vpop.f32.mrf.mxu0
        %v7021 = vadd.f32 %v6919, %v7020
        %v7022 = vpop.f32.mrf.mxu0
        %v7023 = vadd.f32 %v6919, %v7022
        %7024 = vmatmul.bf16.gmra.mxu0 %v6955
        %v7025 = vpop.f32.mrf.mxu0
        %v7026 = vadd.f32 %v6919, %v7025
        %v7027 = vpop.f32.mrf.mxu0
        %v7028 = vadd.f32 %v6919, %v7027
        %7029 = vmatmul.bf16.gmra.mxu0 %v6958
        %v7030 = vpop.f32.mrf.mxu0
        %v7031 = vadd.f32 %v6919, %v7030
        %v7032 = vpop.f32.mrf.mxu0
        %v7033 = vadd.f32 %v6919, %v7032
        %7034 = vmatmul.bf16.gmra.mxu0 %v6961
        %v7035 = vpop.f32.mrf.mxu0
        %v7036 = vadd.f32 %v6919, %v7035
        %v7037 = vpop.f32.mrf.mxu0
        %v7038 = vadd.f32 %v6919, %v7037
        %7039 = vmatmul.bf16.gmra.mxu0 %v6964
        %v7040 = vpop.f32.mrf.mxu0
        %v7041 = vadd.f32 %v6919, %v7040
        %v7042 = vpop.f32.mrf.mxu0
        %v7043 = vadd.f32 %v6919, %v7042
        %7044 = vmatmul.bf16.gmra.mxu0 %v6967
        %v7045 = vpop.f32.mrf.mxu0
        %v7046 = vadd.f32 %v6919, %v7045
        %v7047 = vpop.f32.mrf.mxu0
        %v7048 = vadd.f32 %v6919, %v7047
        %7049 = vmatmul.bf16.gmra.mxu0 %v6970
        %v7050 = vpop.f32.mrf.mxu0
        %v7051 = vadd.f32 %v6919, %v7050
        %v7052 = vpop.f32.mrf.mxu0
        %v7053 = vadd.f32 %v6919, %v7052
        %7054 = vmatmul.bf16.gmra.mxu0 %v6973
        %v7055 = vpop.f32.mrf.mxu0
        %v7056 = vadd.f32 %v6919, %v7055
        %v7057 = vpop.f32.mrf.mxu0
        %v7058 = vadd.f32 %v6919, %v7057
        %7059 = vmatmul.bf16.gmra.mxu0 %v6976
        %v7060 = vpop.f32.mrf.mxu0
        %v7061 = vadd.f32 %v6919, %v7060
        %v7062 = vpop.f32.mrf.mxu0
        %v7063 = vadd.f32 %v6919, %v7062
        %7064 = vmatmul.bf16.gmra.mxu0 %v6979
        %v7065 = vpop.f32.mrf.mxu0
        %v7066 = vadd.f32 %v6919, %v7065
        %v7067 = vpop.f32.mrf.mxu0
        %v7068 = vadd.f32 %v6919, %v7067
        %7069 = vdwg.mxu0
        %v7070 = vadd.f32 %v6991, %v6993
        %v7071 = vadd.f32 %v7070, %v6996
        %v7072 = vadd.f32 %v7071, %v6998
        %v7073 = vrot.slane %v7072, 4
        %v7074 = vadd.f32 %v7072, %v7073
        %v7075 = vrot.slane %v7074, 2
        %v7076 = vadd.f32 %v7074, %v7075
        %v7077 = vrot.slane %v7076, 1
        %v7078 = vadd.f32 %v7076, %v7077
        %v7079 = vadd.f32 %v7001, %v7003
        %v7080 = vadd.f32 %v7079, %v7006
        %v7081 = vadd.f32 %v7080, %v7008
        %v7082 = vrot.slane %v7081, 4
        %v7083 = vadd.f32 %v7081, %v7082
        %v7084 = vrot.slane %v7083, 2
        %v7085 = vadd.f32 %v7083, %v7084
        %v7086 = vrot.slane %v7085, 1
        %v7087 = vadd.f32 %v7085, %v7086
        %v7088 = vadd.f32 %v7011, %v7013
        %v7089 = vadd.f32 %v7088, %v7016
        %v7090 = vadd.f32 %v7089, %v7018
        %v7091 = vrot.slane %v7090, 4
        %v7092 = vadd.f32 %v7090, %v7091
        %v7093 = vrot.slane %v7092, 2
        %v7094 = vadd.f32 %v7092, %v7093
        %v7095 = vrot.slane %v7094, 1
        %v7096 = vadd.f32 %v7094, %v7095
        %v7097 = vadd.f32 %v7021, %v7023
        %v7098 = vadd.f32 %v7097, %v7026
        %v7099 = vadd.f32 %v7098, %v7028
        %v7100 = vrot.slane %v7099, 4
        %v7101 = vadd.f32 %v7099, %v7100
        %v7102 = vrot.slane %v7101, 2
        %v7103 = vadd.f32 %v7101, %v7102
        %v7104 = vrot.slane %v7103, 1
        %v7105 = vadd.f32 %v7103, %v7104
        %v7106 = vadd.f32 %v7031, %v7033
        %v7107 = vadd.f32 %v7106, %v7036
        %v7108 = vadd.f32 %v7107, %v7038
        %v7109 = vrot.slane %v7108, 4
        %v7110 = vadd.f32 %v7108, %v7109
        %v7111 = vrot.slane %v7110, 2
        %v7112 = vadd.f32 %v7110, %v7111
        %v7113 = vrot.slane %v7112, 1
        %v7114 = vadd.f32 %v7112, %v7113
        %v7115 = vadd.f32 %v7041, %v7043
        %v7116 = vadd.f32 %v7115, %v7046
        %v7117 = vadd.f32 %v7116, %v7048
        %v7118 = vrot.slane %v7117, 4
        %v7119 = vadd.f32 %v7117, %v7118
        %v7120 = vrot.slane %v7119, 2
        %v7121 = vadd.f32 %v7119, %v7120
        %v7122 = vrot.slane %v7121, 1
        %v7123 = vadd.f32 %v7121, %v7122
        %v7124 = vadd.f32 %v7051, %v7053
        %v7125 = vadd.f32 %v7124, %v7056
        %v7126 = vadd.f32 %v7125, %v7058
        %v7127 = vrot.slane %v7126, 4
        %v7128 = vadd.f32 %v7126, %v7127
        %v7129 = vrot.slane %v7128, 2
        %v7130 = vadd.f32 %v7128, %v7129
        %v7131 = vrot.slane %v7130, 1
        %v7132 = vadd.f32 %v7130, %v7131
        %v7133 = vadd.f32 %v7061, %v7063
        %v7134 = vadd.f32 %v7133, %v7066
        %v7135 = vadd.f32 %v7134, %v7068
        %v7136 = vrot.slane %v7135, 4
        %v7137 = vadd.f32 %v7135, %v7136
        %v7138 = vrot.slane %v7137, 2
        %v7139 = vadd.f32 %v7137, %v7138
        %v7140 = vrot.slane %v7139, 1
        %v7141 = vadd.f32 %v7139, %v7140
        %v7142 = vrcp.pop 32.0
        %v7143 = vmul.f32 32.0, %v7142
        %v7144 = vsub.f32 1.0, %v7143
        %v7145 = vmul.f32 %v7142, %v7144
        %v7146 = vadd.f32 %v7142, %v7145
        %vm7147 = vweird.f32 %v7142
        %v7148 = vsel %vm7147, %v7142, %v7146
        %v7149 = vmul.f32 %v7078, %v7148
        %v7150 = vmul.f32 %v7087, %v7148
        %v7151 = vmul.f32 %v7096, %v7148
        %v7152 = vmul.f32 %v7105, %v7148
        %v7153 = vmul.f32 %v7114, %v7148
        %v7154 = vmul.f32 %v7123, %v7148
        %v7155 = vmul.f32 %v7132, %v7148
        %v7156 = vmul.f32 %v7141, %v7148
        %v7157 = vpack.c.bf16 %v7149, %v7149
        %v7158 = vpack.c.bf16 %v7150, %v7150
        %v7159 = vpack.c.bf16 %v7151, %v7151
        %v7160 = vpack.c.bf16 %v7152, %v7152
        %v7161 = vpack.c.bf16 %v7153, %v7153
        %v7162 = vpack.c.bf16 %v7154, %v7154
        %v7163 = vpack.c.bf16 %v7155, %v7155
        %v7164 = vpack.c.bf16 %v7156, %v7156
        %v7165 = vld [vmem:[%s7] sm:$0xf]
        %v7166 = vld [vmem:[%s7 + $0x4] sm:$0xf]
        %v7167 = vld [vmem:[%s7 + $0x8] sm:$0xf]
        %v7168 = vld [vmem:[%s7 + $0xc] sm:$0xf]
        %v7169 = vld [vmem:[%s7 + $0x10] sm:$0xf]
        %v7170 = vld [vmem:[%s7 + $0x14] sm:$0xf]
        %v7171 = vld [vmem:[%s7 + $0x18] sm:$0xf]
        %v7172 = vld [vmem:[%s7 + $0x1c] sm:$0xf]
        %v7173 = vld [vmem:[%s7 + $0x20] sm:$0xf]
        %v7174 = vld [vmem:[%s7 + $0x24] sm:$0xf]
        %v7175 = vld [vmem:[%s7 + $0x28] sm:$0xf]
        %v7176 = vld [vmem:[%s7 + $0x2c] sm:$0xf]
        %v7177 = vld [vmem:[%s7 + $0x30] sm:$0xf]
        %v7178 = vld [vmem:[%s7 + $0x34] sm:$0xf]
        %v7179 = vld [vmem:[%s7 + $0x38] sm:$0xf]
        %v7180 = vld [vmem:[%s7 + $0x3c] sm:$0xf]
        %v7189 = vunpack.c.l.b16 %v7157
        %v7190 = vunpack.c.l.b16 %v7158
        %v7191 = vunpack.c.l.b16 %v7159
        %v7192 = vunpack.c.l.b16 %v7160
        %v7193 = vunpack.c.l.b16 %v7161
        %v7194 = vunpack.c.l.b16 %v7162
        %v7195 = vunpack.c.l.b16 %v7163
        %v7196 = vunpack.c.l.b16 %v7164
        %vm7197 = vcmask 1041409
        %v7198 = vsel %vm7197, %v7190, %v7189
        %vm7199 = vcmask 1042434
        %v7200 = vsel %vm7199, %v7191, %v7198
        %vm7201 = vcmask 1043459
        %v7202 = vsel %vm7201, %v7192, %v7200
        %vm7203 = vcmask 1044484
        %v7204 = vsel %vm7203, %v7193, %v7202
        %vm7205 = vcmask 1045509
        %v7206 = vsel %vm7205, %v7194, %v7204
        %vm7207 = vcmask 1046534
        %v7208 = vsel %vm7207, %v7195, %v7206
        %vm7209 = vcmask 1047559
        %v7210 = vsel %vm7209, %v7196, %v7208
        %v7211 = vpack.c.b16 %v7210, %v7210
        %v7229 = vunpack.c.l.b16 %v7165
        %v7230 = vunpack.c.l.b16 %v7166
        %v7231 = vunpack.c.l.b16 %v7167
        %v7232 = vunpack.c.l.b16 %v7168
        %v7233 = vunpack.c.l.b16 %v7169
        %v7234 = vunpack.c.l.b16 %v7170
        %v7235 = vunpack.c.l.b16 %v7171
        %v7236 = vunpack.c.l.b16 %v7172
        %v7237 = vunpack.c.l.b16 %v7173
        %v7238 = vunpack.c.l.b16 %v7174
        %v7239 = vunpack.c.l.b16 %v7175
        %v7240 = vunpack.c.l.b16 %v7176
        %v7241 = vunpack.c.l.b16 %v7177
        %v7242 = vunpack.c.l.b16 %v7178
        %v7243 = vunpack.c.l.b16 %v7179
        %v7244 = vunpack.c.l.b16 %v7180
        %v7245 = vpack.c.b16 %v7230, %v7229
        %v7246 = vpack.c.b16 %v7232, %v7231
        %v7247 = vpack.c.b16 %v7234, %v7233
        %v7248 = vpack.c.b16 %v7236, %v7235
        %v7249 = vpack.c.b16 %v7238, %v7237
        %v7250 = vpack.c.b16 %v7240, %v7239
        %v7251 = vpack.c.b16 %v7242, %v7241
        %v7252 = vpack.c.b16 %v7244, %v7243
        %7261 = vmatpush.bf16.msra.mxu0 %v7252
        %7262 = vmatpush.bf16.msra.mxu0 %v7251
        %7263 = vmatpush.bf16.msra.mxu0 %v7250
        %7264 = vmatpush.bf16.msra.mxu0 %v7249
        %7265 = vmatpush.bf16.msra.mxu0 %v7248
        %7266 = vmatpush.bf16.msra.mxu0 %v7247
        %7267 = vmatpush.bf16.msra.mxu0 %v7246
        %7268 = vmatpush.bf16.msra.mxu0 %v7245
        %7269 = vmatmul.bf16.gmra.mxu0 %v7211
        %v7270 = vpop.f32.mrf.mxu0
        %v7271 = vadd.f32 0.0, %v7270
        %v7272 = vpop.f32.mrf.mxu0
        %7273 = vdwg.mxu0
        %v7274 = vmax.f32 %v7271, 0.0
        %v7275 = vpack.c.bf16 %v7274, %v7274
        %v7276 = vld [vmem:[%s8] sm:$0x3]
        %vm7277 = vcmask 31744
        %v7279 = vsel %vm7277, %v7275, 0
        %v7282 = vsel %vm720, %v7276, 0
        %7284 = vmatpush.bf16.msra.mxu0 0
        %7285 = vmatpush.bf16.msra.mxu0 0
        %7286 = vmatpush.bf16.msra.mxu0 0
        %7287 = vmatpush.bf16.msra.mxu0 0
        %7288 = vmatpush.bf16.msra.mxu0 0
        %7289 = vmatpush.bf16.msra.mxu0 0
        %7290 = vmatpush.bf16.msra.mxu0 0
        %7291 = vmatpush.bf16.msra.mxu0 %v7282
        %7292 = vmatmul.bf16.gmra.mxu0 %v7279
        %v7293 = vpop.f32.mrf.mxu0
        %v7294 = vadd.f32 0.0, %v7293
        %v7295 = vpop.f32.mrf.mxu0
        %7296 = vdwg.mxu0
        %v7297 = vxor.u32 %v7294, 2147483648
        %v7298 = vmul.f32 %v7297, 1.442695
        %v7299 = vpow.pop %v7298
        %v7300 = vadd.f32 %v7299, 1.0
        %v7301 = vrcp.pop %v7300
        %v7302 = vmul.f32 %v7300, %v7301
        %v7303 = vsub.f32 1.0, %v7302
        %v7304 = vmul.f32 %v7301, %v7303
        %v7305 = vadd.f32 %v7301, %v7304
        %vm7306 = vweird.f32 %v7300
        %vm7307 = vweird.f32 %v7301
        %vm7308 = vmor %vm7306, %vm7307
        %v7309 = vsel %vm7308, %v7301, %v7305
        %v7310 = vand.u32 2147483647, %v7300
        %vm7311 = vcmp.eq.f32.partialorder %v7310, 8.507059e+37
        %v7312 = vand.u32 %v7300, 2147483648
        %v7313 = vor.u32 1.1754944e-38, %v7312
        %v7314 = vsel %vm7311, %v7313, %v7309
        %v7315 = vmul.f32 1.0, %v7314
        %v7317 = vrot.slane %v7315, 1
        %v7318 = vrot.slane %v7315, 2
        %v7319 = vrot.slane %v7315, 3
        %v7320 = vrot.slane %v7315, 4
        %v7321 = vrot.slane %v7315, 5
        %v7322 = vrot.slane %v7315, 6
        %v7323 = vrot.slane %v7315, 7
        %v7324 = vperm.slane %v7315, 0
        %v7325 = vperm.slane %v7317, 0
        %v7326 = vperm.slane %v7318, 0
        %v7327 = vperm.slane %v7319, 0
        %v7328 = vperm.slane %v7320, 0
        %v7329 = vperm.slane %v7321, 0
        %v7330 = vperm.slane %v7322, 0
        %v7331 = vperm.slane %v7323, 0
        %v7340 = vmul.f32 %v6991, %v7324
        %v7341 = vmul.f32 %v6993, %v7324
        %v7342 = vmul.f32 %v6996, %v7324
        %v7343 = vmul.f32 %v6998, %v7324
        %v7344 = vmul.f32 %v7001, %v7325
        %v7345 = vmul.f32 %v7003, %v7325
        %v7346 = vmul.f32 %v7006, %v7325
        %v7347 = vmul.f32 %v7008, %v7325
        %v7348 = vmul.f32 %v7011, %v7326
        %v7349 = vmul.f32 %v7013, %v7326
        %v7350 = vmul.f32 %v7016, %v7326
        %v7351 = vmul.f32 %v7018, %v7326
        %v7352 = vmul.f32 %v7021, %v7327
        %v7353 = vmul.f32 %v7023, %v7327
        %v7354 = vmul.f32 %v7026, %v7327
        %v7355 = vmul.f32 %v7028, %v7327
        %v7356 = vmul.f32 %v7031, %v7328
        %v7357 = vmul.f32 %v7033, %v7328
        %v7358 = vmul.f32 %v7036, %v7328
        %v7359 = vmul.f32 %v7038, %v7328
        %v7360 = vmul.f32 %v7041, %v7329
        %v7361 = vmul.f32 %v7043, %v7329
        %v7362 = vmul.f32 %v7046, %v7329
        %v7363 = vmul.f32 %v7048, %v7329
        %v7364 = vmul.f32 %v7051, %v7330
        %v7365 = vmul.f32 %v7053, %v7330
        %v7366 = vmul.f32 %v7056, %v7330
        %v7367 = vmul.f32 %v7058, %v7330
        %v7368 = vmul.f32 %v7061, %v7331
        %v7369 = vmul.f32 %v7063, %v7331
        %v7370 = vmul.f32 %v7066, %v7331
        %v7371 = vmul.f32 %v7068, %v7331
        %v7372 = vadd.f32 %v7340, %v387
        %v7373 = vadd.f32 %v7341, %v388
        %v7374 = vadd.f32 %v7342, %v389
        %v7375 = vadd.f32 %v7343, %v390
        %v7376 = vadd.f32 %v7344, %v391
        %v7377 = vadd.f32 %v7345, %v392
        %v7378 = vadd.f32 %v7346, %v393
        %v7379 = vadd.f32 %v7347, %v394
        %v7380 = vadd.f32 %v7348, %v395
        %v7381 = vadd.f32 %v7349, %v396
        %v7382 = vadd.f32 %v7350, %v397
        %v7383 = vadd.f32 %v7351, %v398
        %v7384 = vadd.f32 %v7352, %v399
        %v7385 = vadd.f32 %v7353, %v400
        %v7386 = vadd.f32 %v7354, %v401
        %v7387 = vadd.f32 %v7355, %v402
        %v7388 = vadd.f32 %v7356, %v403
        %v7389 = vadd.f32 %v7357, %v404
        %v7390 = vadd.f32 %v7358, %v405
        %v7391 = vadd.f32 %v7359, %v406
        %v7392 = vadd.f32 %v7360, %v407
        %v7393 = vadd.f32 %v7361, %v408
        %v7394 = vadd.f32 %v7362, %v409
        %v7395 = vadd.f32 %v7363, %v410
        %v7396 = vadd.f32 %v7364, %v411
        %v7397 = vadd.f32 %v7365, %v412
        %v7398 = vadd.f32 %v7366, %v413
        %v7399 = vadd.f32 %v7367, %v414
        %v7400 = vadd.f32 %v7368, %v415
        %v7401 = vadd.f32 %v7369, %v416
        %v7402 = vadd.f32 %v7370, %v417
        %v7403 = vadd.f32 %v7371, %v418
        %v7404 = vmax.f32 %v7372, 0.0
        %v7405 = vmax.f32 %v7373, 0.0
        %v7406 = vmax.f32 %v7374, 0.0
        %v7407 = vmax.f32 %v7375, 0.0
        %v7408 = vmax.f32 %v7376, 0.0
        %v7409 = vmax.f32 %v7377, 0.0
        %v7410 = vmax.f32 %v7378, 0.0
        %v7411 = vmax.f32 %v7379, 0.0
        %v7412 = vmax.f32 %v7380, 0.0
        %v7413 = vmax.f32 %v7381, 0.0
        %v7414 = vmax.f32 %v7382, 0.0
        %v7415 = vmax.f32 %v7383, 0.0
        %v7416 = vmax.f32 %v7384, 0.0
        %v7417 = vmax.f32 %v7385, 0.0
        %v7418 = vmax.f32 %v7386, 0.0
        %v7419 = vmax.f32 %v7387, 0.0
        %v7420 = vmax.f32 %v7388, 0.0
        %v7421 = vmax.f32 %v7389, 0.0
        %v7422 = vmax.f32 %v7390, 0.0
        %v7423 = vmax.f32 %v7391, 0.0
        %v7424 = vmax.f32 %v7392, 0.0
        %v7425 = vmax.f32 %v7393, 0.0
        %v7426 = vmax.f32 %v7394, 0.0
        %v7427 = vmax.f32 %v7395, 0.0
        %v7428 = vmax.f32 %v7396, 0.0
        %v7429 = vmax.f32 %v7397, 0.0
        %v7430 = vmax.f32 %v7398, 0.0
        %v7431 = vmax.f32 %v7399, 0.0
        %v7432 = vmax.f32 %v7400, 0.0
        %v7433 = vmax.f32 %v7401, 0.0
        %v7434 = vmax.f32 %v7402, 0.0
        %v7435 = vmax.f32 %v7403, 0.0
        %7436 = vst [vmem:[%s383] sm:$0xff] %v7404
        %7437 = vst [vmem:[%s383 + $0x8] sm:$0xff] %v7405
        %7438 = vst [vmem:[%s383 + $0x10] sm:$0xff] %v7406
        %7439 = vst [vmem:[%s383 + $0x18] sm:$0xff] %v7407
        %7440 = vst [vmem:[%s383 + $0x20] sm:$0xff] %v7408
        %7441 = vst [vmem:[%s383 + $0x28] sm:$0xff] %v7409
        %7442 = vst [vmem:[%s383 + $0x30] sm:$0xff] %v7410
        %7443 = vst [vmem:[%s383 + $0x38] sm:$0xff] %v7411
        %7444 = vst [vmem:[%s383 + $0x40] sm:$0xff] %v7412
        %7445 = vst [vmem:[%s383 + $0x48] sm:$0xff] %v7413
        %7446 = vst [vmem:[%s383 + $0x50] sm:$0xff] %v7414
        %7447 = vst [vmem:[%s383 + $0x58] sm:$0xff] %v7415
        %7448 = vst [vmem:[%s383 + $0x60] sm:$0xff] %v7416
        %7449 = vst [vmem:[%s383 + $0x68] sm:$0xff] %v7417
        %7450 = vst [vmem:[%s383 + $0x70] sm:$0xff] %v7418
        %7451 = vst [vmem:[%s383 + $0x78] sm:$0xff] %v7419
        %7452 = vst [vmem:[%s383 + $0x80] sm:$0xff] %v7420
        %7453 = vst [vmem:[%s383 + $0x88] sm:$0xff] %v7421
        %7454 = vst [vmem:[%s383 + $0x90] sm:$0xff] %v7422
        %7455 = vst [vmem:[%s383 + $0x98] sm:$0xff] %v7423
        %7456 = vst [vmem:[%s383 + $0xa0] sm:$0xff] %v7424
        %7457 = vst [vmem:[%s383 + $0xa8] sm:$0xff] %v7425
        %7458 = vst [vmem:[%s383 + $0xb0] sm:$0xff] %v7426
        %7459 = vst [vmem:[%s383 + $0xb8] sm:$0xff] %v7427
        %7460 = vst [vmem:[%s383 + $0xc0] sm:$0xff] %v7428
        %7461 = vst [vmem:[%s383 + $0xc8] sm:$0xff] %v7429
        %7462 = vst [vmem:[%s383 + $0xd0] sm:$0xff] %v7430
        %7463 = vst [vmem:[%s383 + $0xd8] sm:$0xff] %v7431
        %7464 = vst [vmem:[%s383 + $0xe0] sm:$0xff] %v7432
        %7465 = vst [vmem:[%s383 + $0xe8] sm:$0xff] %v7433
        %7466 = vst [vmem:[%s383 + $0xf0] sm:$0xff] %v7434
        %7467 = vst [vmem:[%s383 + $0xf8] sm:$0xff] %v7435
        %s7468 = sand.u32 %s229, 1
        %s7469 = scalar_lea.sflag [#allocation4], %s7468
        %s7470 = sand.u32 %s229, 1
        %s7471 = smul.addr %s7470, 256
        %s7472 = scalar_lea.vmem [#allocation8], %s7471
        // Predicated region
        $region69: #{tpu_custom_call.1} parent=55 // pred_check
          %p7473 = pneg %p239
        $region70: #{tpu_custom_call.1} parent=55 // pred_check_branch
          %7475 = sbr.rel (%p7473) target = $region72
        $region71: #{tpu_custom_call.1} parent=55 // pred_region
          %s7476 = smul.u32 32, %s27
          %7478 = vsyncadd %s7469, 0
          %s7479 = smul.addr %s7476, 8
          %s7480 = scalar_lea.hbm %s9, %s7479
          %s7481 = sshll.u32 %s7472, 4
          %s7482 = int_to_ptr.vmem [resolvable:$true] %s7481
          %s7483 = sshll.u32 %s7480, 4
          %s7484 = int_to_ptr.hbm [resolvable:$true] %s7483
          %7489 = dma.vmem_to_hbm [thread:$0]  %s7482, 4096, %s7484, %s7469, 128, 128, 8
        $region72: #{tpu_custom_call.1} parent=55 // pred_fallthru
          _
      $region56: #{tpu_custom_call.1} parent=5 // pred_fallthru
        _
      %p7490 = scmp.le.s32.totalorder 2, %s22
      // Predicated region
      $region73: #{tpu_custom_call.1} parent=5 // pred_check
        %p7491 = pneg %p7490
      $region74: #{tpu_custom_call.1} parent=5 // pred_check_branch
        %7493 = sbr.rel (%p7491) target = $region76
      $region75: #{tpu_custom_call.1} parent=5 // pred_region
        %s7494 = ssub.s32 %s22, 2
        // Predicated region
        $region77: #{tpu_custom_call.1} parent=75 // pred_check
          %p7495 = pneg %p245
        $region78: #{tpu_custom_call.1} parent=75 // pred_check_branch
          %7497 = sbr.rel (%p7495) target = $region80
        $region79: #{tpu_custom_call.1} parent=75 // pred_region
          %s7498 = sand.u32 %s230, 1
          %s7499 = scalar_lea.sflag [#allocation4], %s7498
          %s7500 = sand.u32 %s230, 1
          %s7501 = smul.addr %s7500, 256
          %s7502 = scalar_lea.vmem [#allocation8], %s7501
          %7504 = dma.done %s7499, 4096
        $region80: #{tpu_custom_call.1} parent=75 // pred_fallthru
          _
      $region76: #{tpu_custom_call.1} parent=5 // pred_fallthru
        _
    $region6: #{tpu_custom_call.1} parent=1 // loop_footer
      %s26 = sadd.s32 1, %s22
    $region7: #{tpu_custom_call.1} parent=1 // loop_footer_branch
      %21 = sbr.rel target = $region3
    $region8: #{tpu_custom_call.1} parent=1 // loop_exit
      _
    %7505 = vsyncpa [#allocation3], 1
    %s7506 = scalar_lea.sflag [#allocation3], 1
    %7507 = vsyncpa %s7506, 1
    %7508 = vsyncpa [#allocation6], 1
    %7509 = vsyncpa [#allocation4], 1
    %s7510 = scalar_lea.sflag [#allocation4], 1
    %7511 = vsyncpa %s7510, 1

</llo_original>
